<compile_context>
chip_gen: v5e
topology: v5e:2x2
jax: 0.10.0
libtpu: 0.0.40
codegen_flags: <defaults>
</compile_context>

<pallas_src>
import functools

import jax
import jax.numpy as jnp
from jax import lax
from jax.experimental import pallas as pl
from jax.experimental.pallas import tpu as pltpu


# ------------------------------ Pallas kernel ------------------------------ #

def _fused_regression_kernel(x_ref, w0, w1, w2, w3, w4,
                             b0, b1, b2, b3, b4, col_ref, o_ref,
                             *, H, W, Cin, F, Cout, fold0):
    """conv1..conv4 (+ReLU) + output conv for one batch element, fully fused.

    x_ref  : (1, H*W, Cin)     bf16 flattened NHWC input
    w*     : (9*Cin_l, Cout_l) bf16 weights, row index = (dy*3+dx)*Cin_l + ci
    b*     : (1, Cout_l)       f32 biases
    col_ref: (H*W, 1)          int32 column index of each flattened pixel
    o_ref  : (1, H*W, Cout)    f32 output (un-padded)
    """
    HW = H * W

    # ---- edge-validity masks (computed once, reused by all 5 layers) -------
    flat = lax.broadcasted_iota(jnp.int32, (HW, 1), 0)
    col = col_ref[...]
    m_up = flat >= W                      # pixel has a row above   (oy = -1)
    m_down = flat < (H - 1) * W           # pixel has a row below   (oy = +1)
    m_left = col >= 1                     # pixel has a col left    (ox = -1)
    m_right = col <= W - 2                # pixel has a col right   (ox = +1)

    def tap_mask(oy, ox):
        m = None
        if oy == -1:
            m = m_up
        elif oy == 1:
            m = m_down
        if ox == -1:
            m = m_left if m is None else jnp.logical_and(m, m_left)
        elif ox == 1:
            m = m_right if m is None else jnp.logical_and(m, m_right)
        return m                          # None => all pixels valid (center tap)

    masks = {(oy, ox): tap_mask(oy, ox) for oy in (-1, 0, 1) for ox in (-1, 0, 1)}

    def shifted_tap(x_f32, oy, ox):
        """Tap input x[h+oy, w+ox] on the flattened image, zero outside."""
        s = oy * W + ox
        t = x_f32 if s == 0 else pltpu.roll(x_f32, shift=(-s) % HW, axis=0)
        m = masks[(oy, ox)]
        return t if m is None else jnp.where(m, t, 0.0)

    def conv3x3(x_f32, w_ref, b_ref, cin, fold):
        """(H*W, cin) f32 -> (H*W, cout) f32 pre-activation (bf16 MXU, f32 acc)."""
        if fold:
            # im2col: a single K = 9*cin contraction keeps the MXU full when cin
            # is tiny (layer 0 with num_features_in = 4 in the synthetic run).
            lhs = jnp.concatenate(
                [shifted_tap(x_f32, dy - 1, dx - 1)
                 for dy in range(3) for dx in range(3)],
                axis=1).astype(jnp.bfloat16)
            acc = jnp.dot(lhs, w_ref[...], preferred_element_type=jnp.float32)
        else:
            # 9 tap matmuls accumulated in a local value (registers / MXU result
            # buffer), written out exactly once — no VMEM accumulator RMW.
            acc = None
            for dy in range(3):
                for dx in range(3):
                    ti = dy * 3 + dx
                    lhs = shifted_tap(x_f32, dy - 1, dx - 1).astype(jnp.bfloat16)
                    part = jnp.dot(lhs, w_ref[pl.ds(ti * cin, cin), :],
                                   preferred_element_type=jnp.float32)
                    acc = part if acc is None else acc + part
        return acc + b_ref[...]                       # broadcast bias add (f32)

    x = x_ref[0].astype(jnp.float32)                  # (H*W, Cin)
    a = jnp.maximum(conv3x3(x, w0, b0, Cin, fold0), 0.0)
    a = jnp.maximum(conv3x3(a, w1, b1, F, False), 0.0)
    a = jnp.maximum(conv3x3(a, w2, b2, F, False), 0.0)
    a = jnp.maximum(conv3x3(a, w3, b3, F, False), 0.0)
    o_ref[0] = conv3x3(a, w4, b4, F, False).astype(o_ref.dtype)   # no ReLU


# --------------------------------- Wrapper ---------------------------------- #

def regression_model_forward(x_nchw, params):
    """Equivalent of RegressionModel.forward for NCHW input."""
    B, Cin, H, W = x_nchw.shape
    F = params["w0"].shape[-1]              # feature_size
    Cout = params["w4"].shape[-1]           # num_anchors * 4
    A = Cout // 4
    HW = H * W

    # NCHW -> NHWC -> (B, H*W, C); bf16 once (same cast the reference applies).
    x = jnp.transpose(x_nchw, (0, 2, 3, 1)).reshape(B, HW, Cin).astype(jnp.bfloat16)

    # HWIO (3,3,C,O) -> (9*C, O) bf16; row index = (dy*3+dx)*C + ci.
    w = [params[f"w{i}"].astype(jnp.bfloat16).reshape(-1, params[f"w{i}"].shape[-1])
         for i in range(5)]
    b = [params[f"b{i}"].astype(jnp.float32) for i in range(5)]

    # Column index per flattened pixel (avoids in-kernel integer div/mod).
    colidx = jnp.tile(jnp.arange(W, dtype=jnp.int32), H).reshape(HW, 1)

    fold0 = (9 * Cin) <= 512                # fold layer-0 taps into one matmul

    kernel = functools.partial(_fused_regression_kernel,
                               H=H, W=W, Cin=Cin, F=F, Cout=Cout, fold0=fold0)

    # ---- explicit VMEM budget ----------------------------------------------
    weight_bytes = (sum(int(wi.size) * 2 for wi in w)
                    + sum(int(bi.size) * 4 for bi in b))
    block_bytes = 2 * (HW * Cin * 2) + 2 * (HW * Cout * 4)   # x / out (dbl-buffered)
    act_bytes = (HW * max(F, Cout) * 4 * 3
                 + HW * max(F, (9 * Cin) if fold0 else Cin) * 2 * 2)
    need = weight_bytes + block_bytes + act_bytes + int(colidx.size) * 4 * 2
    try:
        cap = int(pltpu.get_tpu_info().vmem_capacity_bytes)
    except Exception:
        cap = 64 * 1024 * 1024
    vmem_limit = int(min(max(int(need * 1.5), 32 * 1024 * 1024), int(cap * 0.75)))

    flops = 2 * B * HW * 9 * (Cin * F + 3 * F * F + F * Cout)
    bytes_accessed = (int(x.size) * 2 + weight_bytes + int(colidx.size) * 4
                      + B * HW * Cout * 4)

    def wspec(shape):
        # Grid-invariant operands: fetch once, single-buffered.
        return pl.BlockSpec(shape, lambda bi: (0, 0), pipeline_mode=pl.Buffered(1))

    out = pl.pallas_call(
        kernel,
        out_shape=jax.ShapeDtypeStruct((B, HW, Cout), jnp.float32),
        grid_spec=pltpu.PrefetchScalarGridSpec(
            num_scalar_prefetch=0,
            grid=(B,),
            in_specs=[
                pl.BlockSpec((1, HW, Cin), lambda bi: (bi, 0, 0)),
                wspec((9 * Cin, F)),
                wspec((9 * F, F)),
                wspec((9 * F, F)),
                wspec((9 * F, F)),
                wspec((9 * F, Cout)),
                wspec((1, F)), wspec((1, F)), wspec((1, F)), wspec((1, F)),
                wspec((1, Cout)),
                wspec((HW, 1)),                       # colidx
            ],
            out_specs=pl.BlockSpec((1, HW, Cout), lambda bi: (bi, 0, 0)),
        ),
        compiler_params=pltpu.CompilerParams(
            dimension_semantics=("parallel",),
            vmem_limit_bytes=vmem_limit),
        cost_estimate=pl.CostEstimate(flops=int(flops), transcendentals=0,
                                      bytes_accessed=int(bytes_accessed)),
    )(x, *w, *b, colidx)

    # (B, H*W, A*4) already matches PyTorch's permute(0,2,3,1); the final view
    # to (B, H*W*A, 4) is a contiguous (free) reshape.
    return out.reshape(B, HW * A, 4)


# --------------------------- Model construction ----------------------------- #

def init_params(key, num_features_in, num_anchors=9, feature_size=256):
    """Deterministic synthetic parameters matching RegressionModel's shapes."""
    dims = [
        (num_features_in, feature_size),   # conv1
        (feature_size, feature_size),      # conv2
        (feature_size, feature_size),      # conv3
        (feature_size, feature_size),      # conv4
        (feature_size, num_anchors * 4),   # output
    ]
    params = {}
    keys = jax.random.split(key, 2 * len(dims))
    for i, (cin, cout) in enumerate(dims):
        fan_in = 3 * 3 * cin
        scale = 1.0 / jnp.sqrt(jnp.float32(fan_in))
        params[f"w{i}"] = (
            jax.random.normal(keys[2 * i], (3, 3, cin, cout), jnp.float32) * scale
        )
        params[f"b{i}"] = (
            jax.random.normal(keys[2 * i + 1], (1, cout), jnp.float32) * 0.01
        )
    return params


# -------------------------------- Reference --------------------------------- #

def _conv3x3_ref(x, w, b, *, relu):
    # Same numerics as the kernel: bf16 inputs/weights, f32 accumulation.
    out = lax.conv_general_dilated(
        x.astype(jnp.bfloat16), w.astype(jnp.bfloat16),
        window_strides=(1, 1), padding="SAME",
        dimension_numbers=("NHWC", "HWIO", "NHWC"),
        preferred_element_type=jnp.float32,
    ) + b[0]
    return jnp.maximum(out, 0.0) if relu else out


def regression_model_ref(x_nchw, params):
    x = jnp.transpose(x_nchw, (0, 2, 3, 1)).astype(jnp.float32)
    for i in range(4):
        x = _conv3x3_ref(x, params[f"w{i}"], params[f"b{i}"], relu=True)
    x = _conv3x3_ref(x, params["w4"], params["b4"], relu=False)
    B, H, W, C = x.shape
    return x.reshape(B, H * W * (C // 4), 4)


# ----------------------------------- Main ------------------------------------ #

if __name__ == "__main__":
    B, C_IN, H, W = 2, 4, 16, 16
    NUM_ANCHORS = 9
    FEATURE_SIZE = 32  # small feature_size for the synthetic run

    key = jax.random.PRNGKey(0)
    k_x, k_p = jax.random.split(key)
    x = jax.random.normal(k_x, (B, C_IN, H, W), jnp.float32)  # PyTorch NCHW input
    params = init_params(k_p, C_IN, NUM_ANCHORS, FEATURE_SIZE)

    out = jax.block_until_ready(regression_model_forward(x, params))
    assert out.shape == (B, H * W * NUM_ANCHORS, 4), out.shape

    ref = jax.block_until_ready(regression_model_ref(x, params))
    max_err = float(jnp.max(jnp.abs(out - ref)))
    assert jnp.allclose(out, ref, rtol=2e-2, atol=2e-2), max_err

    print("KERNEL_OK")
</pallas_src>

<mosaic_0001>
module attributes {stable_mosaic.version = 11 : i64} {
  func.func @_fused_regression_kernel(%arg0: i32, %arg1: memref<1x256x4xbf16, #tpu.memory_space<vmem>>, %arg2: memref<36x32xbf16, #tpu.memory_space<vmem>>, %arg3: memref<288x32xbf16, #tpu.memory_space<vmem>>, %arg4: memref<288x32xbf16, #tpu.memory_space<vmem>>, %arg5: memref<288x32xbf16, #tpu.memory_space<vmem>>, %arg6: memref<288x36xbf16, #tpu.memory_space<vmem>>, %arg7: memref<1x32xf32, #tpu.memory_space<vmem>>, %arg8: memref<1x32xf32, #tpu.memory_space<vmem>>, %arg9: memref<1x32xf32, #tpu.memory_space<vmem>>, %arg10: memref<1x32xf32, #tpu.memory_space<vmem>>, %arg11: memref<1x36xf32, #tpu.memory_space<vmem>>, %arg12: memref<256x1xi32, #tpu.memory_space<vmem>>, %arg13: memref<1x256x36xf32, #tpu.memory_space<vmem>>) attributes {dimension_semantics = [#tpu.dimension_semantics<parallel>], iteration_bounds = array<i64: 2>, scalar_prefetch = 0 : i64, scratch_operands = 0 : i64, tpu.core_type = #tpu.core_type<tc>, window_params = [{transform_indices = @transform_0, window_bounds = array<i64: 1, 256, 4>}, {pipeline_mode = #tpu.pipeline_mode<synchronous>, transform_indices = @transform_1, window_bounds = array<i64: 36, 32>}, {pipeline_mode = #tpu.pipeline_mode<synchronous>, transform_indices = @transform_2, window_bounds = array<i64: 288, 32>}, {pipeline_mode = #tpu.pipeline_mode<synchronous>, transform_indices = @transform_3, window_bounds = array<i64: 288, 32>}, {pipeline_mode = #tpu.pipeline_mode<synchronous>, transform_indices = @transform_4, window_bounds = array<i64: 288, 32>}, {pipeline_mode = #tpu.pipeline_mode<synchronous>, transform_indices = @transform_5, window_bounds = array<i64: 288, 36>}, {pipeline_mode = #tpu.pipeline_mode<synchronous>, transform_indices = @transform_6, window_bounds = array<i64: 1, 32>}, {pipeline_mode = #tpu.pipeline_mode<synchronous>, transform_indices = @transform_7, window_bounds = array<i64: 1, 32>}, {pipeline_mode = #tpu.pipeline_mode<synchronous>, transform_indices = @transform_8, window_bounds = array<i64: 1, 32>}, {pipeline_mode = #tpu.pipeline_mode<synchronous>, transform_indices = @transform_9, window_bounds = array<i64: 1, 32>}, {pipeline_mode = #tpu.pipeline_mode<synchronous>, transform_indices = @transform_10, window_bounds = array<i64: 1, 36>}, {pipeline_mode = #tpu.pipeline_mode<synchronous>, transform_indices = @transform_11, window_bounds = array<i64: 256, 1>}, {transform_indices = @transform_12, window_bounds = array<i64: 1, 256, 36>}]} {
    %0 = tpu.iota {dimensions = array<i32: 0>} : vector<256x1xi32>
    %c0 = arith.constant 0 : index
    %c0_0 = arith.constant 0 : index
    %1 = vector.load %arg12[%c0, %c0_0] : memref<256x1xi32, #tpu.memory_space<vmem>>, vector<256x1xi32>
    %c16_i32 = arith.constant 16 : i32
    %2 = vector.broadcast %c16_i32 : i32 to vector<256x1xi32>
    %3 = arith.cmpi sge, %0, %2 : vector<256x1xi32>
    %c240_i32 = arith.constant 240 : i32
    %4 = vector.broadcast %c240_i32 : i32 to vector<256x1xi32>
    %5 = arith.cmpi slt, %0, %4 : vector<256x1xi32>
    %c1_i32 = arith.constant 1 : i32
    %6 = vector.broadcast %c1_i32 : i32 to vector<256x1xi32>
    %7 = arith.cmpi sge, %1, %6 : vector<256x1xi32>
    %c14_i32 = arith.constant 14 : i32
    %8 = vector.broadcast %c14_i32 : i32 to vector<256x1xi32>
    %9 = arith.cmpi sle, %1, %8 : vector<256x1xi32>
    %10 = arith.andi %3, %7 : vector<256x1xi1>
    %11 = arith.andi %3, %9 : vector<256x1xi1>
    %12 = arith.andi %5, %7 : vector<256x1xi1>
    %13 = arith.andi %5, %9 : vector<256x1xi1>
    %c0_1 = arith.constant 0 : index
    %c0_2 = arith.constant 0 : index
    %c0_3 = arith.constant 0 : index
    %14 = vector.load %arg1[%c0_1, %c0_2, %c0_3] : memref<1x256x4xbf16, #tpu.memory_space<vmem>>, vector<1x256x4xbf16>
    %15 = vector.shape_cast %14 : vector<1x256x4xbf16> to vector<256x4xbf16>
    %16 = arith.extf %15 : vector<256x4xbf16> to vector<256x4xf32>
    %c17_i32 = arith.constant 17 : i32
    %17 = tpu.dynamic_rotate %16 by %c17_i32 dim 0 : vector<256x4xf32>, i32 -> vector<256x4xf32>
    %cst = arith.constant 0.000000e+00 : f32
    %18 = vector.shape_cast %10 : vector<256x1xi1> to vector<256x1xi1>
    %19 = vector.broadcast %18 : vector<256x1xi1> to vector<256x4xi1>
    %20 = vector.broadcast %cst : f32 to vector<256x4xf32>
    %21 = arith.select %19, %17, %20 : vector<256x4xi1>, vector<256x4xf32>
    %c16_i32_4 = arith.constant 16 : i32
    %22 = tpu.dynamic_rotate %16 by %c16_i32_4 dim 0 : vector<256x4xf32>, i32 -> vector<256x4xf32>
    %cst_5 = arith.constant 0.000000e+00 : f32
    %23 = vector.shape_cast %3 : vector<256x1xi1> to vector<256x1xi1>
    %24 = vector.broadcast %23 : vector<256x1xi1> to vector<256x4xi1>
    %25 = vector.broadcast %cst_5 : f32 to vector<256x4xf32>
    %26 = arith.select %24, %22, %25 : vector<256x4xi1>, vector<256x4xf32>
    %c15_i32 = arith.constant 15 : i32
    %27 = tpu.dynamic_rotate %16 by %c15_i32 dim 0 : vector<256x4xf32>, i32 -> vector<256x4xf32>
    %cst_6 = arith.constant 0.000000e+00 : f32
    %28 = vector.shape_cast %11 : vector<256x1xi1> to vector<256x1xi1>
    %29 = vector.broadcast %28 : vector<256x1xi1> to vector<256x4xi1>
    %30 = vector.broadcast %cst_6 : f32 to vector<256x4xf32>
    %31 = arith.select %29, %27, %30 : vector<256x4xi1>, vector<256x4xf32>
    %c1_i32_7 = arith.constant 1 : i32
    %32 = tpu.dynamic_rotate %16 by %c1_i32_7 dim 0 : vector<256x4xf32>, i32 -> vector<256x4xf32>
    %cst_8 = arith.constant 0.000000e+00 : f32
    %33 = vector.shape_cast %7 : vector<256x1xi1> to vector<256x1xi1>
    %34 = vector.broadcast %33 : vector<256x1xi1> to vector<256x4xi1>
    %35 = vector.broadcast %cst_8 : f32 to vector<256x4xf32>
    %36 = arith.select %34, %32, %35 : vector<256x4xi1>, vector<256x4xf32>
    %c255_i32 = arith.constant 255 : i32
    %37 = tpu.dynamic_rotate %16 by %c255_i32 dim 0 : vector<256x4xf32>, i32 -> vector<256x4xf32>
    %cst_9 = arith.constant 0.000000e+00 : f32
    %38 = vector.shape_cast %9 : vector<256x1xi1> to vector<256x1xi1>
    %39 = vector.broadcast %38 : vector<256x1xi1> to vector<256x4xi1>
    %40 = vector.broadcast %cst_9 : f32 to vector<256x4xf32>
    %41 = arith.select %39, %37, %40 : vector<256x4xi1>, vector<256x4xf32>
    %c241_i32 = arith.constant 241 : i32
    %42 = tpu.dynamic_rotate %16 by %c241_i32 dim 0 : vector<256x4xf32>, i32 -> vector<256x4xf32>
    %cst_10 = arith.constant 0.000000e+00 : f32
    %43 = vector.shape_cast %12 : vector<256x1xi1> to vector<256x1xi1>
    %44 = vector.broadcast %43 : vector<256x1xi1> to vector<256x4xi1>
    %45 = vector.broadcast %cst_10 : f32 to vector<256x4xf32>
    %46 = arith.select %44, %42, %45 : vector<256x4xi1>, vector<256x4xf32>
    %c240_i32_11 = arith.constant 240 : i32
    %47 = tpu.dynamic_rotate %16 by %c240_i32_11 dim 0 : vector<256x4xf32>, i32 -> vector<256x4xf32>
    %cst_12 = arith.constant 0.000000e+00 : f32
    %48 = vector.shape_cast %5 : vector<256x1xi1> to vector<256x1xi1>
    %49 = vector.broadcast %48 : vector<256x1xi1> to vector<256x4xi1>
    %50 = vector.broadcast %cst_12 : f32 to vector<256x4xf32>
    %51 = arith.select %49, %47, %50 : vector<256x4xi1>, vector<256x4xf32>
    %c239_i32 = arith.constant 239 : i32
    %52 = tpu.dynamic_rotate %16 by %c239_i32 dim 0 : vector<256x4xf32>, i32 -> vector<256x4xf32>
    %cst_13 = arith.constant 0.000000e+00 : f32
    %53 = vector.shape_cast %13 : vector<256x1xi1> to vector<256x1xi1>
    %54 = vector.broadcast %53 : vector<256x1xi1> to vector<256x4xi1>
    %55 = vector.broadcast %cst_13 : f32 to vector<256x4xf32>
    %56 = arith.select %54, %52, %55 : vector<256x4xi1>, vector<256x4xf32>
    %57 = tpu.concatenate %21, %26, %31, %36, %16, %41, %46, %51, %56 in 1 : vector<256x4xf32>, vector<256x4xf32>, vector<256x4xf32>, vector<256x4xf32>, vector<256x4xf32>, vector<256x4xf32>, vector<256x4xf32>, vector<256x4xf32>, vector<256x4xf32> -> vector<256x36xf32>
    %58 = arith.truncf %57 : vector<256x36xf32> to vector<256x36xbf16>
    %c0_14 = arith.constant 0 : index
    %c0_15 = arith.constant 0 : index
    %59 = vector.load %arg2[%c0_14, %c0_15] : memref<36x32xbf16, #tpu.memory_space<vmem>>, vector<36x32xbf16>
    %cst_16 = arith.constant dense<0.000000e+00> : vector<256x32xf32>
    %60 = tpu.matmul %58, %59, %cst_16 {dimension_numbers = #tpu.dot_dimension_numbers<[1], [0], [0], [1], [0, 0, 1, 1], [], []>} : vector<256x36xbf16>, vector<36x32xbf16>, vector<256x32xf32> -> vector<256x32xf32>
    %c0_17 = arith.constant 0 : index
    %c0_18 = arith.constant 0 : index
    %61 = vector.load %arg7[%c0_17, %c0_18] : memref<1x32xf32, #tpu.memory_space<vmem>>, vector<1x32xf32>
    %62 = vector.broadcast %61 : vector<1x32xf32> to vector<256x32xf32>
    %63 = arith.addf %60, %62 : vector<256x32xf32>
    %cst_19 = arith.constant 0.000000e+00 : f32
    %64 = vector.broadcast %cst_19 : f32 to vector<256x32xf32>
    %65 = arith.maximumf %63, %64 : vector<256x32xf32>
    %c17_i32_20 = arith.constant 17 : i32
    %66 = tpu.dynamic_rotate %65 by %c17_i32_20 dim 0 : vector<256x32xf32>, i32 -> vector<256x32xf32>
    %cst_21 = arith.constant 0.000000e+00 : f32
    %67 = vector.shape_cast %10 : vector<256x1xi1> to vector<256x1xi1>
    %68 = vector.broadcast %67 : vector<256x1xi1> to vector<256x32xi1>
    %69 = vector.broadcast %cst_21 : f32 to vector<256x32xf32>
    %70 = arith.select %68, %66, %69 : vector<256x32xi1>, vector<256x32xf32>
    %71 = arith.truncf %70 : vector<256x32xf32> to vector<256x32xbf16>
    %c0_22 = arith.constant 0 : index
    %c0_23 = arith.constant 0 : index
    %72 = vector.load %arg3[%c0_22, %c0_23] : memref<288x32xbf16, #tpu.memory_space<vmem>>, vector<32x32xbf16>
    %cst_24 = arith.constant dense<0.000000e+00> : vector<256x32xf32>
    %73 = tpu.matmul %71, %72, %cst_24 {dimension_numbers = #tpu.dot_dimension_numbers<[1], [0], [0], [1], [0, 0, 1, 1], [], []>} : vector<256x32xbf16>, vector<32x32xbf16>, vector<256x32xf32> -> vector<256x32xf32>
    %c16_i32_25 = arith.constant 16 : i32
    %74 = tpu.dynamic_rotate %65 by %c16_i32_25 dim 0 : vector<256x32xf32>, i32 -> vector<256x32xf32>
    %cst_26 = arith.constant 0.000000e+00 : f32
    %75 = vector.shape_cast %3 : vector<256x1xi1> to vector<256x1xi1>
    %76 = vector.broadcast %75 : vector<256x1xi1> to vector<256x32xi1>
    %77 = vector.broadcast %cst_26 : f32 to vector<256x32xf32>
    %78 = arith.select %76, %74, %77 : vector<256x32xi1>, vector<256x32xf32>
    %79 = arith.truncf %78 : vector<256x32xf32> to vector<256x32xbf16>
    %c32 = arith.constant 32 : index
    %c0_27 = arith.constant 0 : index
    %80 = vector.load %arg3[%c32, %c0_27] : memref<288x32xbf16, #tpu.memory_space<vmem>>, vector<32x32xbf16>
    %cst_28 = arith.constant dense<0.000000e+00> : vector<256x32xf32>
    %81 = tpu.matmul %79, %80, %cst_28 {dimension_numbers = #tpu.dot_dimension_numbers<[1], [0], [0], [1], [0, 0, 1, 1], [], []>} : vector<256x32xbf16>, vector<32x32xbf16>, vector<256x32xf32> -> vector<256x32xf32>
    %82 = arith.addf %73, %81 : vector<256x32xf32>
    %c15_i32_29 = arith.constant 15 : i32
    %83 = tpu.dynamic_rotate %65 by %c15_i32_29 dim 0 : vector<256x32xf32>, i32 -> vector<256x32xf32>
    %cst_30 = arith.constant 0.000000e+00 : f32
    %84 = vector.shape_cast %11 : vector<256x1xi1> to vector<256x1xi1>
    %85 = vector.broadcast %84 : vector<256x1xi1> to vector<256x32xi1>
    %86 = vector.broadcast %cst_30 : f32 to vector<256x32xf32>
    %87 = arith.select %85, %83, %86 : vector<256x32xi1>, vector<256x32xf32>
    %88 = arith.truncf %87 : vector<256x32xf32> to vector<256x32xbf16>
    %c64 = arith.constant 64 : index
    %c0_31 = arith.constant 0 : index
    %89 = vector.load %arg3[%c64, %c0_31] : memref<288x32xbf16, #tpu.memory_space<vmem>>, vector<32x32xbf16>
    %cst_32 = arith.constant dense<0.000000e+00> : vector<256x32xf32>
    %90 = tpu.matmul %88, %89, %cst_32 {dimension_numbers = #tpu.dot_dimension_numbers<[1], [0], [0], [1], [0, 0, 1, 1], [], []>} : vector<256x32xbf16>, vector<32x32xbf16>, vector<256x32xf32> -> vector<256x32xf32>
    %91 = arith.addf %82, %90 : vector<256x32xf32>
    %c1_i32_33 = arith.constant 1 : i32
    %92 = tpu.dynamic_rotate %65 by %c1_i32_33 dim 0 : vector<256x32xf32>, i32 -> vector<256x32xf32>
    %cst_34 = arith.constant 0.000000e+00 : f32
    %93 = vector.shape_cast %7 : vector<256x1xi1> to vector<256x1xi1>
    %94 = vector.broadcast %93 : vector<256x1xi1> to vector<256x32xi1>
    %95 = vector.broadcast %cst_34 : f32 to vector<256x32xf32>
    %96 = arith.select %94, %92, %95 : vector<256x32xi1>, vector<256x32xf32>
    %97 = arith.truncf %96 : vector<256x32xf32> to vector<256x32xbf16>
    %c96 = arith.constant 96 : index
    %c0_35 = arith.constant 0 : index
    %98 = vector.load %arg3[%c96, %c0_35] : memref<288x32xbf16, #tpu.memory_space<vmem>>, vector<32x32xbf16>
    %cst_36 = arith.constant dense<0.000000e+00> : vector<256x32xf32>
    %99 = tpu.matmul %97, %98, %cst_36 {dimension_numbers = #tpu.dot_dimension_numbers<[1], [0], [0], [1], [0, 0, 1, 1], [], []>} : vector<256x32xbf16>, vector<32x32xbf16>, vector<256x32xf32> -> vector<256x32xf32>
    %100 = arith.addf %91, %99 : vector<256x32xf32>
    %101 = arith.truncf %65 : vector<256x32xf32> to vector<256x32xbf16>
    %c128 = arith.constant 128 : index
    %c0_37 = arith.constant 0 : index
    %102 = vector.load %arg3[%c128, %c0_37] : memref<288x32xbf16, #tpu.memory_space<vmem>>, vector<32x32xbf16>
    %cst_38 = arith.constant dense<0.000000e+00> : vector<256x32xf32>
    %103 = tpu.matmul %101, %102, %cst_38 {dimension_numbers = #tpu.dot_dimension_numbers<[1], [0], [0], [1], [0, 0, 1, 1], [], []>} : vector<256x32xbf16>, vector<32x32xbf16>, vector<256x32xf32> -> vector<256x32xf32>
    %104 = arith.addf %100, %103 : vector<256x32xf32>
    %c255_i32_39 = arith.constant 255 : i32
    %105 = tpu.dynamic_rotate %65 by %c255_i32_39 dim 0 : vector<256x32xf32>, i32 -> vector<256x32xf32>
    %cst_40 = arith.constant 0.000000e+00 : f32
    %106 = vector.shape_cast %9 : vector<256x1xi1> to vector<256x1xi1>
    %107 = vector.broadcast %106 : vector<256x1xi1> to vector<256x32xi1>
    %108 = vector.broadcast %cst_40 : f32 to vector<256x32xf32>
    %109 = arith.select %107, %105, %108 : vector<256x32xi1>, vector<256x32xf32>
    %110 = arith.truncf %109 : vector<256x32xf32> to vector<256x32xbf16>
    %c160 = arith.constant 160 : index
    %c0_41 = arith.constant 0 : index
    %111 = vector.load %arg3[%c160, %c0_41] : memref<288x32xbf16, #tpu.memory_space<vmem>>, vector<32x32xbf16>
    %cst_42 = arith.constant dense<0.000000e+00> : vector<256x32xf32>
    %112 = tpu.matmul %110, %111, %cst_42 {dimension_numbers = #tpu.dot_dimension_numbers<[1], [0], [0], [1], [0, 0, 1, 1], [], []>} : vector<256x32xbf16>, vector<32x32xbf16>, vector<256x32xf32> -> vector<256x32xf32>
    %113 = arith.addf %104, %112 : vector<256x32xf32>
    %c241_i32_43 = arith.constant 241 : i32
    %114 = tpu.dynamic_rotate %65 by %c241_i32_43 dim 0 : vector<256x32xf32>, i32 -> vector<256x32xf32>
    %cst_44 = arith.constant 0.000000e+00 : f32
    %115 = vector.shape_cast %12 : vector<256x1xi1> to vector<256x1xi1>
    %116 = vector.broadcast %115 : vector<256x1xi1> to vector<256x32xi1>
    %117 = vector.broadcast %cst_44 : f32 to vector<256x32xf32>
    %118 = arith.select %116, %114, %117 : vector<256x32xi1>, vector<256x32xf32>
    %119 = arith.truncf %118 : vector<256x32xf32> to vector<256x32xbf16>
    %c192 = arith.constant 192 : index
    %c0_45 = arith.constant 0 : index
    %120 = vector.load %arg3[%c192, %c0_45] : memref<288x32xbf16, #tpu.memory_space<vmem>>, vector<32x32xbf16>
    %cst_46 = arith.constant dense<0.000000e+00> : vector<256x32xf32>
    %121 = tpu.matmul %119, %120, %cst_46 {dimension_numbers = #tpu.dot_dimension_numbers<[1], [0], [0], [1], [0, 0, 1, 1], [], []>} : vector<256x32xbf16>, vector<32x32xbf16>, vector<256x32xf32> -> vector<256x32xf32>
    %122 = arith.addf %113, %121 : vector<256x32xf32>
    %c240_i32_47 = arith.constant 240 : i32
    %123 = tpu.dynamic_rotate %65 by %c240_i32_47 dim 0 : vector<256x32xf32>, i32 -> vector<256x32xf32>
    %cst_48 = arith.constant 0.000000e+00 : f32
    %124 = vector.shape_cast %5 : vector<256x1xi1> to vector<256x1xi1>
    %125 = vector.broadcast %124 : vector<256x1xi1> to vector<256x32xi1>
    %126 = vector.broadcast %cst_48 : f32 to vector<256x32xf32>
    %127 = arith.select %125, %123, %126 : vector<256x32xi1>, vector<256x32xf32>
    %128 = arith.truncf %127 : vector<256x32xf32> to vector<256x32xbf16>
    %c224 = arith.constant 224 : index
    %c0_49 = arith.constant 0 : index
    %129 = vector.load %arg3[%c224, %c0_49] : memref<288x32xbf16, #tpu.memory_space<vmem>>, vector<32x32xbf16>
    %cst_50 = arith.constant dense<0.000000e+00> : vector<256x32xf32>
    %130 = tpu.matmul %128, %129, %cst_50 {dimension_numbers = #tpu.dot_dimension_numbers<[1], [0], [0], [1], [0, 0, 1, 1], [], []>} : vector<256x32xbf16>, vector<32x32xbf16>, vector<256x32xf32> -> vector<256x32xf32>
    %131 = arith.addf %122, %130 : vector<256x32xf32>
    %c239_i32_51 = arith.constant 239 : i32
    %132 = tpu.dynamic_rotate %65 by %c239_i32_51 dim 0 : vector<256x32xf32>, i32 -> vector<256x32xf32>
    %cst_52 = arith.constant 0.000000e+00 : f32
    %133 = vector.shape_cast %13 : vector<256x1xi1> to vector<256x1xi1>
    %134 = vector.broadcast %133 : vector<256x1xi1> to vector<256x32xi1>
    %135 = vector.broadcast %cst_52 : f32 to vector<256x32xf32>
    %136 = arith.select %134, %132, %135 : vector<256x32xi1>, vector<256x32xf32>
    %137 = arith.truncf %136 : vector<256x32xf32> to vector<256x32xbf16>
    %c256 = arith.constant 256 : index
    %c0_53 = arith.constant 0 : index
    %138 = vector.load %arg3[%c256, %c0_53] : memref<288x32xbf16, #tpu.memory_space<vmem>>, vector<32x32xbf16>
    %cst_54 = arith.constant dense<0.000000e+00> : vector<256x32xf32>
    %139 = tpu.matmul %137, %138, %cst_54 {dimension_numbers = #tpu.dot_dimension_numbers<[1], [0], [0], [1], [0, 0, 1, 1], [], []>} : vector<256x32xbf16>, vector<32x32xbf16>, vector<256x32xf32> -> vector<256x32xf32>
    %140 = arith.addf %131, %139 : vector<256x32xf32>
    %c0_55 = arith.constant 0 : index
    %c0_56 = arith.constant 0 : index
    %141 = vector.load %arg8[%c0_55, %c0_56] : memref<1x32xf32, #tpu.memory_space<vmem>>, vector<1x32xf32>
    %142 = vector.broadcast %141 : vector<1x32xf32> to vector<256x32xf32>
    %143 = arith.addf %140, %142 : vector<256x32xf32>
    %cst_57 = arith.constant 0.000000e+00 : f32
    %144 = vector.broadcast %cst_57 : f32 to vector<256x32xf32>
    %145 = arith.maximumf %143, %144 : vector<256x32xf32>
    %c17_i32_58 = arith.constant 17 : i32
    %146 = tpu.dynamic_rotate %145 by %c17_i32_58 dim 0 : vector<256x32xf32>, i32 -> vector<256x32xf32>
    %cst_59 = arith.constant 0.000000e+00 : f32
    %147 = vector.shape_cast %10 : vector<256x1xi1> to vector<256x1xi1>
    %148 = vector.broadcast %147 : vector<256x1xi1> to vector<256x32xi1>
    %149 = vector.broadcast %cst_59 : f32 to vector<256x32xf32>
    %150 = arith.select %148, %146, %149 : vector<256x32xi1>, vector<256x32xf32>
    %151 = arith.truncf %150 : vector<256x32xf32> to vector<256x32xbf16>
    %c0_60 = arith.constant 0 : index
    %c0_61 = arith.constant 0 : index
    %152 = vector.load %arg4[%c0_60, %c0_61] : memref<288x32xbf16, #tpu.memory_space<vmem>>, vector<32x32xbf16>
    %cst_62 = arith.constant dense<0.000000e+00> : vector<256x32xf32>
    %153 = tpu.matmul %151, %152, %cst_62 {dimension_numbers = #tpu.dot_dimension_numbers<[1], [0], [0], [1], [0, 0, 1, 1], [], []>} : vector<256x32xbf16>, vector<32x32xbf16>, vector<256x32xf32> -> vector<256x32xf32>
    %c16_i32_63 = arith.constant 16 : i32
    %154 = tpu.dynamic_rotate %145 by %c16_i32_63 dim 0 : vector<256x32xf32>, i32 -> vector<256x32xf32>
    %cst_64 = arith.constant 0.000000e+00 : f32
    %155 = vector.shape_cast %3 : vector<256x1xi1> to vector<256x1xi1>
    %156 = vector.broadcast %155 : vector<256x1xi1> to vector<256x32xi1>
    %157 = vector.broadcast %cst_64 : f32 to vector<256x32xf32>
    %158 = arith.select %156, %154, %157 : vector<256x32xi1>, vector<256x32xf32>
    %159 = arith.truncf %158 : vector<256x32xf32> to vector<256x32xbf16>
    %c32_65 = arith.constant 32 : index
    %c0_66 = arith.constant 0 : index
    %160 = vector.load %arg4[%c32_65, %c0_66] : memref<288x32xbf16, #tpu.memory_space<vmem>>, vector<32x32xbf16>
    %cst_67 = arith.constant dense<0.000000e+00> : vector<256x32xf32>
    %161 = tpu.matmul %159, %160, %cst_67 {dimension_numbers = #tpu.dot_dimension_numbers<[1], [0], [0], [1], [0, 0, 1, 1], [], []>} : vector<256x32xbf16>, vector<32x32xbf16>, vector<256x32xf32> -> vector<256x32xf32>
    %162 = arith.addf %153, %161 : vector<256x32xf32>
    %c15_i32_68 = arith.constant 15 : i32
    %163 = tpu.dynamic_rotate %145 by %c15_i32_68 dim 0 : vector<256x32xf32>, i32 -> vector<256x32xf32>
    %cst_69 = arith.constant 0.000000e+00 : f32
    %164 = vector.shape_cast %11 : vector<256x1xi1> to vector<256x1xi1>
    %165 = vector.broadcast %164 : vector<256x1xi1> to vector<256x32xi1>
    %166 = vector.broadcast %cst_69 : f32 to vector<256x32xf32>
    %167 = arith.select %165, %163, %166 : vector<256x32xi1>, vector<256x32xf32>
    %168 = arith.truncf %167 : vector<256x32xf32> to vector<256x32xbf16>
    %c64_70 = arith.constant 64 : index
    %c0_71 = arith.constant 0 : index
    %169 = vector.load %arg4[%c64_70, %c0_71] : memref<288x32xbf16, #tpu.memory_space<vmem>>, vector<32x32xbf16>
    %cst_72 = arith.constant dense<0.000000e+00> : vector<256x32xf32>
    %170 = tpu.matmul %168, %169, %cst_72 {dimension_numbers = #tpu.dot_dimension_numbers<[1], [0], [0], [1], [0, 0, 1, 1], [], []>} : vector<256x32xbf16>, vector<32x32xbf16>, vector<256x32xf32> -> vector<256x32xf32>
    %171 = arith.addf %162, %170 : vector<256x32xf32>
    %c1_i32_73 = arith.constant 1 : i32
    %172 = tpu.dynamic_rotate %145 by %c1_i32_73 dim 0 : vector<256x32xf32>, i32 -> vector<256x32xf32>
    %cst_74 = arith.constant 0.000000e+00 : f32
    %173 = vector.shape_cast %7 : vector<256x1xi1> to vector<256x1xi1>
    %174 = vector.broadcast %173 : vector<256x1xi1> to vector<256x32xi1>
    %175 = vector.broadcast %cst_74 : f32 to vector<256x32xf32>
    %176 = arith.select %174, %172, %175 : vector<256x32xi1>, vector<256x32xf32>
    %177 = arith.truncf %176 : vector<256x32xf32> to vector<256x32xbf16>
    %c96_75 = arith.constant 96 : index
    %c0_76 = arith.constant 0 : index
    %178 = vector.load %arg4[%c96_75, %c0_76] : memref<288x32xbf16, #tpu.memory_space<vmem>>, vector<32x32xbf16>
    %cst_77 = arith.constant dense<0.000000e+00> : vector<256x32xf32>
    %179 = tpu.matmul %177, %178, %cst_77 {dimension_numbers = #tpu.dot_dimension_numbers<[1], [0], [0], [1], [0, 0, 1, 1], [], []>} : vector<256x32xbf16>, vector<32x32xbf16>, vector<256x32xf32> -> vector<256x32xf32>
    %180 = arith.addf %171, %179 : vector<256x32xf32>
    %181 = arith.truncf %145 : vector<256x32xf32> to vector<256x32xbf16>
    %c128_78 = arith.constant 128 : index
    %c0_79 = arith.constant 0 : index
    %182 = vector.load %arg4[%c128_78, %c0_79] : memref<288x32xbf16, #tpu.memory_space<vmem>>, vector<32x32xbf16>
    %cst_80 = arith.constant dense<0.000000e+00> : vector<256x32xf32>
    %183 = tpu.matmul %181, %182, %cst_80 {dimension_numbers = #tpu.dot_dimension_numbers<[1], [0], [0], [1], [0, 0, 1, 1], [], []>} : vector<256x32xbf16>, vector<32x32xbf16>, vector<256x32xf32> -> vector<256x32xf32>
    %184 = arith.addf %180, %183 : vector<256x32xf32>
    %c255_i32_81 = arith.constant 255 : i32
    %185 = tpu.dynamic_rotate %145 by %c255_i32_81 dim 0 : vector<256x32xf32>, i32 -> vector<256x32xf32>
    %cst_82 = arith.constant 0.000000e+00 : f32
    %186 = vector.shape_cast %9 : vector<256x1xi1> to vector<256x1xi1>
    %187 = vector.broadcast %186 : vector<256x1xi1> to vector<256x32xi1>
    %188 = vector.broadcast %cst_82 : f32 to vector<256x32xf32>
    %189 = arith.select %187, %185, %188 : vector<256x32xi1>, vector<256x32xf32>
    %190 = arith.truncf %189 : vector<256x32xf32> to vector<256x32xbf16>
    %c160_83 = arith.constant 160 : index
    %c0_84 = arith.constant 0 : index
    %191 = vector.load %arg4[%c160_83, %c0_84] : memref<288x32xbf16, #tpu.memory_space<vmem>>, vector<32x32xbf16>
    %cst_85 = arith.constant dense<0.000000e+00> : vector<256x32xf32>
    %192 = tpu.matmul %190, %191, %cst_85 {dimension_numbers = #tpu.dot_dimension_numbers<[1], [0], [0], [1], [0, 0, 1, 1], [], []>} : vector<256x32xbf16>, vector<32x32xbf16>, vector<256x32xf32> -> vector<256x32xf32>
    %193 = arith.addf %184, %192 : vector<256x32xf32>
    %c241_i32_86 = arith.constant 241 : i32
    %194 = tpu.dynamic_rotate %145 by %c241_i32_86 dim 0 : vector<256x32xf32>, i32 -> vector<256x32xf32>
    %cst_87 = arith.constant 0.000000e+00 : f32
    %195 = vector.shape_cast %12 : vector<256x1xi1> to vector<256x1xi1>
    %196 = vector.broadcast %195 : vector<256x1xi1> to vector<256x32xi1>
    %197 = vector.broadcast %cst_87 : f32 to vector<256x32xf32>
    %198 = arith.select %196, %194, %197 : vector<256x32xi1>, vector<256x32xf32>
    %199 = arith.truncf %198 : vector<256x32xf32> to vector<256x32xbf16>
    %c192_88 = arith.constant 192 : index
    %c0_89 = arith.constant 0 : index
    %200 = vector.load %arg4[%c192_88, %c0_89] : memref<288x32xbf16, #tpu.memory_space<vmem>>, vector<32x32xbf16>
    %cst_90 = arith.constant dense<0.000000e+00> : vector<256x32xf32>
    %201 = tpu.matmul %199, %200, %cst_90 {dimension_numbers = #tpu.dot_dimension_numbers<[1], [0], [0], [1], [0, 0, 1, 1], [], []>} : vector<256x32xbf16>, vector<32x32xbf16>, vector<256x32xf32> -> vector<256x32xf32>
    %202 = arith.addf %193, %201 : vector<256x32xf32>
    %c240_i32_91 = arith.constant 240 : i32
    %203 = tpu.dynamic_rotate %145 by %c240_i32_91 dim 0 : vector<256x32xf32>, i32 -> vector<256x32xf32>
    %cst_92 = arith.constant 0.000000e+00 : f32
    %204 = vector.shape_cast %5 : vector<256x1xi1> to vector<256x1xi1>
    %205 = vector.broadcast %204 : vector<256x1xi1> to vector<256x32xi1>
    %206 = vector.broadcast %cst_92 : f32 to vector<256x32xf32>
    %207 = arith.select %205, %203, %206 : vector<256x32xi1>, vector<256x32xf32>
    %208 = arith.truncf %207 : vector<256x32xf32> to vector<256x32xbf16>
    %c224_93 = arith.constant 224 : index
    %c0_94 = arith.constant 0 : index
    %209 = vector.load %arg4[%c224_93, %c0_94] : memref<288x32xbf16, #tpu.memory_space<vmem>>, vector<32x32xbf16>
    %cst_95 = arith.constant dense<0.000000e+00> : vector<256x32xf32>
    %210 = tpu.matmul %208, %209, %cst_95 {dimension_numbers = #tpu.dot_dimension_numbers<[1], [0], [0], [1], [0, 0, 1, 1], [], []>} : vector<256x32xbf16>, vector<32x32xbf16>, vector<256x32xf32> -> vector<256x32xf32>
    %211 = arith.addf %202, %210 : vector<256x32xf32>
    %c239_i32_96 = arith.constant 239 : i32
    %212 = tpu.dynamic_rotate %145 by %c239_i32_96 dim 0 : vector<256x32xf32>, i32 -> vector<256x32xf32>
    %cst_97 = arith.constant 0.000000e+00 : f32
    %213 = vector.shape_cast %13 : vector<256x1xi1> to vector<256x1xi1>
    %214 = vector.broadcast %213 : vector<256x1xi1> to vector<256x32xi1>
    %215 = vector.broadcast %cst_97 : f32 to vector<256x32xf32>
    %216 = arith.select %214, %212, %215 : vector<256x32xi1>, vector<256x32xf32>
    %217 = arith.truncf %216 : vector<256x32xf32> to vector<256x32xbf16>
    %c256_98 = arith.constant 256 : index
    %c0_99 = arith.constant 0 : index
    %218 = vector.load %arg4[%c256_98, %c0_99] : memref<288x32xbf16, #tpu.memory_space<vmem>>, vector<32x32xbf16>
    %cst_100 = arith.constant dense<0.000000e+00> : vector<256x32xf32>
    %219 = tpu.matmul %217, %218, %cst_100 {dimension_numbers = #tpu.dot_dimension_numbers<[1], [0], [0], [1], [0, 0, 1, 1], [], []>} : vector<256x32xbf16>, vector<32x32xbf16>, vector<256x32xf32> -> vector<256x32xf32>
    %220 = arith.addf %211, %219 : vector<256x32xf32>
    %c0_101 = arith.constant 0 : index
    %c0_102 = arith.constant 0 : index
    %221 = vector.load %arg9[%c0_101, %c0_102] : memref<1x32xf32, #tpu.memory_space<vmem>>, vector<1x32xf32>
    %222 = vector.broadcast %221 : vector<1x32xf32> to vector<256x32xf32>
    %223 = arith.addf %220, %222 : vector<256x32xf32>
    %cst_103 = arith.constant 0.000000e+00 : f32
    %224 = vector.broadcast %cst_103 : f32 to vector<256x32xf32>
    %225 = arith.maximumf %223, %224 : vector<256x32xf32>
    %c17_i32_104 = arith.constant 17 : i32
    %226 = tpu.dynamic_rotate %225 by %c17_i32_104 dim 0 : vector<256x32xf32>, i32 -> vector<256x32xf32>
    %cst_105 = arith.constant 0.000000e+00 : f32
    %227 = vector.shape_cast %10 : vector<256x1xi1> to vector<256x1xi1>
    %228 = vector.broadcast %227 : vector<256x1xi1> to vector<256x32xi1>
    %229 = vector.broadcast %cst_105 : f32 to vector<256x32xf32>
    %230 = arith.select %228, %226, %229 : vector<256x32xi1>, vector<256x32xf32>
    %231 = arith.truncf %230 : vector<256x32xf32> to vector<256x32xbf16>
    %c0_106 = arith.constant 0 : index
    %c0_107 = arith.constant 0 : index
    %232 = vector.load %arg5[%c0_106, %c0_107] : memref<288x32xbf16, #tpu.memory_space<vmem>>, vector<32x32xbf16>
    %cst_108 = arith.constant dense<0.000000e+00> : vector<256x32xf32>
    %233 = tpu.matmul %231, %232, %cst_108 {dimension_numbers = #tpu.dot_dimension_numbers<[1], [0], [0], [1], [0, 0, 1, 1], [], []>} : vector<256x32xbf16>, vector<32x32xbf16>, vector<256x32xf32> -> vector<256x32xf32>
    %c16_i32_109 = arith.constant 16 : i32
    %234 = tpu.dynamic_rotate %225 by %c16_i32_109 dim 0 : vector<256x32xf32>, i32 -> vector<256x32xf32>
    %cst_110 = arith.constant 0.000000e+00 : f32
    %235 = vector.shape_cast %3 : vector<256x1xi1> to vector<256x1xi1>
    %236 = vector.broadcast %235 : vector<256x1xi1> to vector<256x32xi1>
    %237 = vector.broadcast %cst_110 : f32 to vector<256x32xf32>
    %238 = arith.select %236, %234, %237 : vector<256x32xi1>, vector<256x32xf32>
    %239 = arith.truncf %238 : vector<256x32xf32> to vector<256x32xbf16>
    %c32_111 = arith.constant 32 : index
    %c0_112 = arith.constant 0 : index
    %240 = vector.load %arg5[%c32_111, %c0_112] : memref<288x32xbf16, #tpu.memory_space<vmem>>, vector<32x32xbf16>
    %cst_113 = arith.constant dense<0.000000e+00> : vector<256x32xf32>
    %241 = tpu.matmul %239, %240, %cst_113 {dimension_numbers = #tpu.dot_dimension_numbers<[1], [0], [0], [1], [0, 0, 1, 1], [], []>} : vector<256x32xbf16>, vector<32x32xbf16>, vector<256x32xf32> -> vector<256x32xf32>
    %242 = arith.addf %233, %241 : vector<256x32xf32>
    %c15_i32_114 = arith.constant 15 : i32
    %243 = tpu.dynamic_rotate %225 by %c15_i32_114 dim 0 : vector<256x32xf32>, i32 -> vector<256x32xf32>
    %cst_115 = arith.constant 0.000000e+00 : f32
    %244 = vector.shape_cast %11 : vector<256x1xi1> to vector<256x1xi1>
    %245 = vector.broadcast %244 : vector<256x1xi1> to vector<256x32xi1>
    %246 = vector.broadcast %cst_115 : f32 to vector<256x32xf32>
    %247 = arith.select %245, %243, %246 : vector<256x32xi1>, vector<256x32xf32>
    %248 = arith.truncf %247 : vector<256x32xf32> to vector<256x32xbf16>
    %c64_116 = arith.constant 64 : index
    %c0_117 = arith.constant 0 : index
    %249 = vector.load %arg5[%c64_116, %c0_117] : memref<288x32xbf16, #tpu.memory_space<vmem>>, vector<32x32xbf16>
    %cst_118 = arith.constant dense<0.000000e+00> : vector<256x32xf32>
    %250 = tpu.matmul %248, %249, %cst_118 {dimension_numbers = #tpu.dot_dimension_numbers<[1], [0], [0], [1], [0, 0, 1, 1], [], []>} : vector<256x32xbf16>, vector<32x32xbf16>, vector<256x32xf32> -> vector<256x32xf32>
    %251 = arith.addf %242, %250 : vector<256x32xf32>
    %c1_i32_119 = arith.constant 1 : i32
    %252 = tpu.dynamic_rotate %225 by %c1_i32_119 dim 0 : vector<256x32xf32>, i32 -> vector<256x32xf32>
    %cst_120 = arith.constant 0.000000e+00 : f32
    %253 = vector.shape_cast %7 : vector<256x1xi1> to vector<256x1xi1>
    %254 = vector.broadcast %253 : vector<256x1xi1> to vector<256x32xi1>
    %255 = vector.broadcast %cst_120 : f32 to vector<256x32xf32>
    %256 = arith.select %254, %252, %255 : vector<256x32xi1>, vector<256x32xf32>
    %257 = arith.truncf %256 : vector<256x32xf32> to vector<256x32xbf16>
    %c96_121 = arith.constant 96 : index
    %c0_122 = arith.constant 0 : index
    %258 = vector.load %arg5[%c96_121, %c0_122] : memref<288x32xbf16, #tpu.memory_space<vmem>>, vector<32x32xbf16>
    %cst_123 = arith.constant dense<0.000000e+00> : vector<256x32xf32>
    %259 = tpu.matmul %257, %258, %cst_123 {dimension_numbers = #tpu.dot_dimension_numbers<[1], [0], [0], [1], [0, 0, 1, 1], [], []>} : vector<256x32xbf16>, vector<32x32xbf16>, vector<256x32xf32> -> vector<256x32xf32>
    %260 = arith.addf %251, %259 : vector<256x32xf32>
    %261 = arith.truncf %225 : vector<256x32xf32> to vector<256x32xbf16>
    %c128_124 = arith.constant 128 : index
    %c0_125 = arith.constant 0 : index
    %262 = vector.load %arg5[%c128_124, %c0_125] : memref<288x32xbf16, #tpu.memory_space<vmem>>, vector<32x32xbf16>
    %cst_126 = arith.constant dense<0.000000e+00> : vector<256x32xf32>
    %263 = tpu.matmul %261, %262, %cst_126 {dimension_numbers = #tpu.dot_dimension_numbers<[1], [0], [0], [1], [0, 0, 1, 1], [], []>} : vector<256x32xbf16>, vector<32x32xbf16>, vector<256x32xf32> -> vector<256x32xf32>
    %264 = arith.addf %260, %263 : vector<256x32xf32>
    %c255_i32_127 = arith.constant 255 : i32
    %265 = tpu.dynamic_rotate %225 by %c255_i32_127 dim 0 : vector<256x32xf32>, i32 -> vector<256x32xf32>
    %cst_128 = arith.constant 0.000000e+00 : f32
    %266 = vector.shape_cast %9 : vector<256x1xi1> to vector<256x1xi1>
    %267 = vector.broadcast %266 : vector<256x1xi1> to vector<256x32xi1>
    %268 = vector.broadcast %cst_128 : f32 to vector<256x32xf32>
    %269 = arith.select %267, %265, %268 : vector<256x32xi1>, vector<256x32xf32>
    %270 = arith.truncf %269 : vector<256x32xf32> to vector<256x32xbf16>
    %c160_129 = arith.constant 160 : index
    %c0_130 = arith.constant 0 : index
    %271 = vector.load %arg5[%c160_129, %c0_130] : memref<288x32xbf16, #tpu.memory_space<vmem>>, vector<32x32xbf16>
    %cst_131 = arith.constant dense<0.000000e+00> : vector<256x32xf32>
    %272 = tpu.matmul %270, %271, %cst_131 {dimension_numbers = #tpu.dot_dimension_numbers<[1], [0], [0], [1], [0, 0, 1, 1], [], []>} : vector<256x32xbf16>, vector<32x32xbf16>, vector<256x32xf32> -> vector<256x32xf32>
    %273 = arith.addf %264, %272 : vector<256x32xf32>
    %c241_i32_132 = arith.constant 241 : i32
    %274 = tpu.dynamic_rotate %225 by %c241_i32_132 dim 0 : vector<256x32xf32>, i32 -> vector<256x32xf32>
    %cst_133 = arith.constant 0.000000e+00 : f32
    %275 = vector.shape_cast %12 : vector<256x1xi1> to vector<256x1xi1>
    %276 = vector.broadcast %275 : vector<256x1xi1> to vector<256x32xi1>
    %277 = vector.broadcast %cst_133 : f32 to vector<256x32xf32>
    %278 = arith.select %276, %274, %277 : vector<256x32xi1>, vector<256x32xf32>
    %279 = arith.truncf %278 : vector<256x32xf32> to vector<256x32xbf16>
    %c192_134 = arith.constant 192 : index
    %c0_135 = arith.constant 0 : index
    %280 = vector.load %arg5[%c192_134, %c0_135] : memref<288x32xbf16, #tpu.memory_space<vmem>>, vector<32x32xbf16>
    %cst_136 = arith.constant dense<0.000000e+00> : vector<256x32xf32>
    %281 = tpu.matmul %279, %280, %cst_136 {dimension_numbers = #tpu.dot_dimension_numbers<[1], [0], [0], [1], [0, 0, 1, 1], [], []>} : vector<256x32xbf16>, vector<32x32xbf16>, vector<256x32xf32> -> vector<256x32xf32>
    %282 = arith.addf %273, %281 : vector<256x32xf32>
    %c240_i32_137 = arith.constant 240 : i32
    %283 = tpu.dynamic_rotate %225 by %c240_i32_137 dim 0 : vector<256x32xf32>, i32 -> vector<256x32xf32>
    %cst_138 = arith.constant 0.000000e+00 : f32
    %284 = vector.shape_cast %5 : vector<256x1xi1> to vector<256x1xi1>
    %285 = vector.broadcast %284 : vector<256x1xi1> to vector<256x32xi1>
    %286 = vector.broadcast %cst_138 : f32 to vector<256x32xf32>
    %287 = arith.select %285, %283, %286 : vector<256x32xi1>, vector<256x32xf32>
    %288 = arith.truncf %287 : vector<256x32xf32> to vector<256x32xbf16>
    %c224_139 = arith.constant 224 : index
    %c0_140 = arith.constant 0 : index
    %289 = vector.load %arg5[%c224_139, %c0_140] : memref<288x32xbf16, #tpu.memory_space<vmem>>, vector<32x32xbf16>
    %cst_141 = arith.constant dense<0.000000e+00> : vector<256x32xf32>
    %290 = tpu.matmul %288, %289, %cst_141 {dimension_numbers = #tpu.dot_dimension_numbers<[1], [0], [0], [1], [0, 0, 1, 1], [], []>} : vector<256x32xbf16>, vector<32x32xbf16>, vector<256x32xf32> -> vector<256x32xf32>
    %291 = arith.addf %282, %290 : vector<256x32xf32>
    %c239_i32_142 = arith.constant 239 : i32
    %292 = tpu.dynamic_rotate %225 by %c239_i32_142 dim 0 : vector<256x32xf32>, i32 -> vector<256x32xf32>
    %cst_143 = arith.constant 0.000000e+00 : f32
    %293 = vector.shape_cast %13 : vector<256x1xi1> to vector<256x1xi1>
    %294 = vector.broadcast %293 : vector<256x1xi1> to vector<256x32xi1>
    %295 = vector.broadcast %cst_143 : f32 to vector<256x32xf32>
    %296 = arith.select %294, %292, %295 : vector<256x32xi1>, vector<256x32xf32>
    %297 = arith.truncf %296 : vector<256x32xf32> to vector<256x32xbf16>
    %c256_144 = arith.constant 256 : index
    %c0_145 = arith.constant 0 : index
    %298 = vector.load %arg5[%c256_144, %c0_145] : memref<288x32xbf16, #tpu.memory_space<vmem>>, vector<32x32xbf16>
    %cst_146 = arith.constant dense<0.000000e+00> : vector<256x32xf32>
    %299 = tpu.matmul %297, %298, %cst_146 {dimension_numbers = #tpu.dot_dimension_numbers<[1], [0], [0], [1], [0, 0, 1, 1], [], []>} : vector<256x32xbf16>, vector<32x32xbf16>, vector<256x32xf32> -> vector<256x32xf32>
    %300 = arith.addf %291, %299 : vector<256x32xf32>
    %c0_147 = arith.constant 0 : index
    %c0_148 = arith.constant 0 : index
    %301 = vector.load %arg10[%c0_147, %c0_148] : memref<1x32xf32, #tpu.memory_space<vmem>>, vector<1x32xf32>
    %302 = vector.broadcast %301 : vector<1x32xf32> to vector<256x32xf32>
    %303 = arith.addf %300, %302 : vector<256x32xf32>
    %cst_149 = arith.constant 0.000000e+00 : f32
    %304 = vector.broadcast %cst_149 : f32 to vector<256x32xf32>
    %305 = arith.maximumf %303, %304 : vector<256x32xf32>
    %c17_i32_150 = arith.constant 17 : i32
    %306 = tpu.dynamic_rotate %305 by %c17_i32_150 dim 0 : vector<256x32xf32>, i32 -> vector<256x32xf32>
    %cst_151 = arith.constant 0.000000e+00 : f32
    %307 = vector.shape_cast %10 : vector<256x1xi1> to vector<256x1xi1>
    %308 = vector.broadcast %307 : vector<256x1xi1> to vector<256x32xi1>
    %309 = vector.broadcast %cst_151 : f32 to vector<256x32xf32>
    %310 = arith.select %308, %306, %309 : vector<256x32xi1>, vector<256x32xf32>
    %311 = arith.truncf %310 : vector<256x32xf32> to vector<256x32xbf16>
    %c0_152 = arith.constant 0 : index
    %c0_153 = arith.constant 0 : index
    %312 = vector.load %arg6[%c0_152, %c0_153] : memref<288x36xbf16, #tpu.memory_space<vmem>>, vector<32x36xbf16>
    %cst_154 = arith.constant dense<0.000000e+00> : vector<256x36xf32>
    %313 = tpu.matmul %311, %312, %cst_154 {dimension_numbers = #tpu.dot_dimension_numbers<[1], [0], [0], [1], [0, 0, 1, 1], [], []>} : vector<256x32xbf16>, vector<32x36xbf16>, vector<256x36xf32> -> vector<256x36xf32>
    %c16_i32_155 = arith.constant 16 : i32
    %314 = tpu.dynamic_rotate %305 by %c16_i32_155 dim 0 : vector<256x32xf32>, i32 -> vector<256x32xf32>
    %cst_156 = arith.constant 0.000000e+00 : f32
    %315 = vector.shape_cast %3 : vector<256x1xi1> to vector<256x1xi1>
    %316 = vector.broadcast %315 : vector<256x1xi1> to vector<256x32xi1>
    %317 = vector.broadcast %cst_156 : f32 to vector<256x32xf32>
    %318 = arith.select %316, %314, %317 : vector<256x32xi1>, vector<256x32xf32>
    %319 = arith.truncf %318 : vector<256x32xf32> to vector<256x32xbf16>
    %c32_157 = arith.constant 32 : index
    %c0_158 = arith.constant 0 : index
    %320 = vector.load %arg6[%c32_157, %c0_158] : memref<288x36xbf16, #tpu.memory_space<vmem>>, vector<32x36xbf16>
    %cst_159 = arith.constant dense<0.000000e+00> : vector<256x36xf32>
    %321 = tpu.matmul %319, %320, %cst_159 {dimension_numbers = #tpu.dot_dimension_numbers<[1], [0], [0], [1], [0, 0, 1, 1], [], []>} : vector<256x32xbf16>, vector<32x36xbf16>, vector<256x36xf32> -> vector<256x36xf32>
    %322 = arith.addf %313, %321 : vector<256x36xf32>
    %c15_i32_160 = arith.constant 15 : i32
    %323 = tpu.dynamic_rotate %305 by %c15_i32_160 dim 0 : vector<256x32xf32>, i32 -> vector<256x32xf32>
    %cst_161 = arith.constant 0.000000e+00 : f32
    %324 = vector.shape_cast %11 : vector<256x1xi1> to vector<256x1xi1>
    %325 = vector.broadcast %324 : vector<256x1xi1> to vector<256x32xi1>
    %326 = vector.broadcast %cst_161 : f32 to vector<256x32xf32>
    %327 = arith.select %325, %323, %326 : vector<256x32xi1>, vector<256x32xf32>
    %328 = arith.truncf %327 : vector<256x32xf32> to vector<256x32xbf16>
    %c64_162 = arith.constant 64 : index
    %c0_163 = arith.constant 0 : index
    %329 = vector.load %arg6[%c64_162, %c0_163] : memref<288x36xbf16, #tpu.memory_space<vmem>>, vector<32x36xbf16>
    %cst_164 = arith.constant dense<0.000000e+00> : vector<256x36xf32>
    %330 = tpu.matmul %328, %329, %cst_164 {dimension_numbers = #tpu.dot_dimension_numbers<[1], [0], [0], [1], [0, 0, 1, 1], [], []>} : vector<256x32xbf16>, vector<32x36xbf16>, vector<256x36xf32> -> vector<256x36xf32>
    %331 = arith.addf %322, %330 : vector<256x36xf32>
    %c1_i32_165 = arith.constant 1 : i32
    %332 = tpu.dynamic_rotate %305 by %c1_i32_165 dim 0 : vector<256x32xf32>, i32 -> vector<256x32xf32>
    %cst_166 = arith.constant 0.000000e+00 : f32
    %333 = vector.shape_cast %7 : vector<256x1xi1> to vector<256x1xi1>
    %334 = vector.broadcast %333 : vector<256x1xi1> to vector<256x32xi1>
    %335 = vector.broadcast %cst_166 : f32 to vector<256x32xf32>
    %336 = arith.select %334, %332, %335 : vector<256x32xi1>, vector<256x32xf32>
    %337 = arith.truncf %336 : vector<256x32xf32> to vector<256x32xbf16>
    %c96_167 = arith.constant 96 : index
    %c0_168 = arith.constant 0 : index
    %338 = vector.load %arg6[%c96_167, %c0_168] : memref<288x36xbf16, #tpu.memory_space<vmem>>, vector<32x36xbf16>
    %cst_169 = arith.constant dense<0.000000e+00> : vector<256x36xf32>
    %339 = tpu.matmul %337, %338, %cst_169 {dimension_numbers = #tpu.dot_dimension_numbers<[1], [0], [0], [1], [0, 0, 1, 1], [], []>} : vector<256x32xbf16>, vector<32x36xbf16>, vector<256x36xf32> -> vector<256x36xf32>
    %340 = arith.addf %331, %339 : vector<256x36xf32>
    %341 = arith.truncf %305 : vector<256x32xf32> to vector<256x32xbf16>
    %c128_170 = arith.constant 128 : index
    %c0_171 = arith.constant 0 : index
    %342 = vector.load %arg6[%c128_170, %c0_171] : memref<288x36xbf16, #tpu.memory_space<vmem>>, vector<32x36xbf16>
    %cst_172 = arith.constant dense<0.000000e+00> : vector<256x36xf32>
    %343 = tpu.matmul %341, %342, %cst_172 {dimension_numbers = #tpu.dot_dimension_numbers<[1], [0], [0], [1], [0, 0, 1, 1], [], []>} : vector<256x32xbf16>, vector<32x36xbf16>, vector<256x36xf32> -> vector<256x36xf32>
    %344 = arith.addf %340, %343 : vector<256x36xf32>
    %c255_i32_173 = arith.constant 255 : i32
    %345 = tpu.dynamic_rotate %305 by %c255_i32_173 dim 0 : vector<256x32xf32>, i32 -> vector<256x32xf32>
    %cst_174 = arith.constant 0.000000e+00 : f32
    %346 = vector.shape_cast %9 : vector<256x1xi1> to vector<256x1xi1>
    %347 = vector.broadcast %346 : vector<256x1xi1> to vector<256x32xi1>
    %348 = vector.broadcast %cst_174 : f32 to vector<256x32xf32>
    %349 = arith.select %347, %345, %348 : vector<256x32xi1>, vector<256x32xf32>
    %350 = arith.truncf %349 : vector<256x32xf32> to vector<256x32xbf16>
    %c160_175 = arith.constant 160 : index
    %c0_176 = arith.constant 0 : index
    %351 = vector.load %arg6[%c160_175, %c0_176] : memref<288x36xbf16, #tpu.memory_space<vmem>>, vector<32x36xbf16>
    %cst_177 = arith.constant dense<0.000000e+00> : vector<256x36xf32>
    %352 = tpu.matmul %350, %351, %cst_177 {dimension_numbers = #tpu.dot_dimension_numbers<[1], [0], [0], [1], [0, 0, 1, 1], [], []>} : vector<256x32xbf16>, vector<32x36xbf16>, vector<256x36xf32> -> vector<256x36xf32>
    %353 = arith.addf %344, %352 : vector<256x36xf32>
    %c241_i32_178 = arith.constant 241 : i32
    %354 = tpu.dynamic_rotate %305 by %c241_i32_178 dim 0 : vector<256x32xf32>, i32 -> vector<256x32xf32>
    %cst_179 = arith.constant 0.000000e+00 : f32
    %355 = vector.shape_cast %12 : vector<256x1xi1> to vector<256x1xi1>
    %356 = vector.broadcast %355 : vector<256x1xi1> to vector<256x32xi1>
    %357 = vector.broadcast %cst_179 : f32 to vector<256x32xf32>
    %358 = arith.select %356, %354, %357 : vector<256x32xi1>, vector<256x32xf32>
    %359 = arith.truncf %358 : vector<256x32xf32> to vector<256x32xbf16>
    %c192_180 = arith.constant 192 : index
    %c0_181 = arith.constant 0 : index
    %360 = vector.load %arg6[%c192_180, %c0_181] : memref<288x36xbf16, #tpu.memory_space<vmem>>, vector<32x36xbf16>
    %cst_182 = arith.constant dense<0.000000e+00> : vector<256x36xf32>
    %361 = tpu.matmul %359, %360, %cst_182 {dimension_numbers = #tpu.dot_dimension_numbers<[1], [0], [0], [1], [0, 0, 1, 1], [], []>} : vector<256x32xbf16>, vector<32x36xbf16>, vector<256x36xf32> -> vector<256x36xf32>
    %362 = arith.addf %353, %361 : vector<256x36xf32>
    %c240_i32_183 = arith.constant 240 : i32
    %363 = tpu.dynamic_rotate %305 by %c240_i32_183 dim 0 : vector<256x32xf32>, i32 -> vector<256x32xf32>
    %cst_184 = arith.constant 0.000000e+00 : f32
    %364 = vector.shape_cast %5 : vector<256x1xi1> to vector<256x1xi1>
    %365 = vector.broadcast %364 : vector<256x1xi1> to vector<256x32xi1>
    %366 = vector.broadcast %cst_184 : f32 to vector<256x32xf32>
    %367 = arith.select %365, %363, %366 : vector<256x32xi1>, vector<256x32xf32>
    %368 = arith.truncf %367 : vector<256x32xf32> to vector<256x32xbf16>
    %c224_185 = arith.constant 224 : index
    %c0_186 = arith.constant 0 : index
    %369 = vector.load %arg6[%c224_185, %c0_186] : memref<288x36xbf16, #tpu.memory_space<vmem>>, vector<32x36xbf16>
    %cst_187 = arith.constant dense<0.000000e+00> : vector<256x36xf32>
    %370 = tpu.matmul %368, %369, %cst_187 {dimension_numbers = #tpu.dot_dimension_numbers<[1], [0], [0], [1], [0, 0, 1, 1], [], []>} : vector<256x32xbf16>, vector<32x36xbf16>, vector<256x36xf32> -> vector<256x36xf32>
    %371 = arith.addf %362, %370 : vector<256x36xf32>
    %c239_i32_188 = arith.constant 239 : i32
    %372 = tpu.dynamic_rotate %305 by %c239_i32_188 dim 0 : vector<256x32xf32>, i32 -> vector<256x32xf32>
    %cst_189 = arith.constant 0.000000e+00 : f32
    %373 = vector.shape_cast %13 : vector<256x1xi1> to vector<256x1xi1>
    %374 = vector.broadcast %373 : vector<256x1xi1> to vector<256x32xi1>
    %375 = vector.broadcast %cst_189 : f32 to vector<256x32xf32>
    %376 = arith.select %374, %372, %375 : vector<256x32xi1>, vector<256x32xf32>
    %377 = arith.truncf %376 : vector<256x32xf32> to vector<256x32xbf16>
    %c256_190 = arith.constant 256 : index
    %c0_191 = arith.constant 0 : index
    %378 = vector.load %arg6[%c256_190, %c0_191] : memref<288x36xbf16, #tpu.memory_space<vmem>>, vector<32x36xbf16>
    %cst_192 = arith.constant dense<0.000000e+00> : vector<256x36xf32>
    %379 = tpu.matmul %377, %378, %cst_192 {dimension_numbers = #tpu.dot_dimension_numbers<[1], [0], [0], [1], [0, 0, 1, 1], [], []>} : vector<256x32xbf16>, vector<32x36xbf16>, vector<256x36xf32> -> vector<256x36xf32>
    %380 = arith.addf %371, %379 : vector<256x36xf32>
    %c0_193 = arith.constant 0 : index
    %c0_194 = arith.constant 0 : index
    %381 = vector.load %arg11[%c0_193, %c0_194] : memref<1x36xf32, #tpu.memory_space<vmem>>, vector<1x36xf32>
    %382 = vector.broadcast %381 : vector<1x36xf32> to vector<256x36xf32>
    %383 = arith.addf %380, %382 : vector<256x36xf32>
    %c0_195 = arith.constant 0 : index
    %c0_196 = arith.constant 0 : index
    %c0_197 = arith.constant 0 : index
    %384 = vector.load %arg13[%c0_195, %c0_196, %c0_197] : memref<1x256x36xf32, #tpu.memory_space<vmem>>, vector<1x256x36xf32>
    %385 = vector.shape_cast %384 : vector<1x256x36xf32> to vector<256x36xf32>
    %386 = vector.shape_cast %383 : vector<256x36xf32> to vector<1x256x36xf32>
    tpu.vector_store %arg13[%c0_195, %c0_196, %c0_197], %386 {strides = array<i32>} : memref<1x256x36xf32, #tpu.memory_space<vmem>>, vector<1x256x36xf32>,
    return
  }
  func.func @transform_0(%arg0: i32) -> (i32, i32, i32) {
    %c0_i32 = arith.constant 0 : i32
    %c0_i32_0 = arith.constant 0 : i32
    %c0_i32_1 = arith.constant 0 : i32
    return %arg0, %c0_i32, %c0_i32_0 : i32, i32, i32
  }
  func.func @transform_1(%arg0: i32) -> (i32, i32) {
    %c0_i32 = arith.constant 0 : i32
    %c0_i32_0 = arith.constant 0 : i32
    %c0_i32_1 = arith.constant 0 : i32
    return %c0_i32, %c0_i32_0 : i32, i32
  }
  func.func @transform_2(%arg0: i32) -> (i32, i32) {
    %c0_i32 = arith.constant 0 : i32
    %c0_i32_0 = arith.constant 0 : i32
    %c0_i32_1 = arith.constant 0 : i32
    return %c0_i32, %c0_i32_0 : i32, i32
  }
  func.func @transform_3(%arg0: i32) -> (i32, i32) {
    %c0_i32 = arith.constant 0 : i32
    %c0_i32_0 = arith.constant 0 : i32
    %c0_i32_1 = arith.constant 0 : i32
    return %c0_i32, %c0_i32_0 : i32, i32
  }
  func.func @transform_4(%arg0: i32) -> (i32, i32) {
    %c0_i32 = arith.constant 0 : i32
    %c0_i32_0 = arith.constant 0 : i32
    %c0_i32_1 = arith.constant 0 : i32
    return %c0_i32, %c0_i32_0 : i32, i32
  }
  func.func @transform_5(%arg0: i32) -> (i32, i32) {
    %c0_i32 = arith.constant 0 : i32
    %c0_i32_0 = arith.constant 0 : i32
    %c0_i32_1 = arith.constant 0 : i32
    return %c0_i32, %c0_i32_0 : i32, i32
  }
  func.func @transform_6(%arg0: i32) -> (i32, i32) {
    %c0_i32 = arith.constant 0 : i32
    %c0_i32_0 = arith.constant 0 : i32
    %c0_i32_1 = arith.constant 0 : i32
    return %c0_i32, %c0_i32_0 : i32, i32
  }
  func.func @transform_7(%arg0: i32) -> (i32, i32) {
    %c0_i32 = arith.constant 0 : i32
    %c0_i32_0 = arith.constant 0 : i32
    %c0_i32_1 = arith.constant 0 : i32
    return %c0_i32, %c0_i32_0 : i32, i32
  }
  func.func @transform_8(%arg0: i32) -> (i32, i32) {
    %c0_i32 = arith.constant 0 : i32
    %c0_i32_0 = arith.constant 0 : i32
    %c0_i32_1 = arith.constant 0 : i32
    return %c0_i32, %c0_i32_0 : i32, i32
  }
  func.func @transform_9(%arg0: i32) -> (i32, i32) {
    %c0_i32 = arith.constant 0 : i32
    %c0_i32_0 = arith.constant 0 : i32
    %c0_i32_1 = arith.constant 0 : i32
    return %c0_i32, %c0_i32_0 : i32, i32
  }
  func.func @transform_10(%arg0: i32) -> (i32, i32) {
    %c0_i32 = arith.constant 0 : i32
    %c0_i32_0 = arith.constant 0 : i32
    %c0_i32_1 = arith.constant 0 : i32
    return %c0_i32, %c0_i32_0 : i32, i32
  }
  func.func @transform_11(%arg0: i32) -> (i32, i32) {
    %c0_i32 = arith.constant 0 : i32
    %c0_i32_0 = arith.constant 0 : i32
    %c0_i32_1 = arith.constant 0 : i32
    return %c0_i32, %c0_i32_0 : i32, i32
  }
  func.func @transform_12(%arg0: i32) -> (i32, i32, i32) {
    %c0_i32 = arith.constant 0 : i32
    %c0_i32_0 = arith.constant 0 : i32
    %c0_i32_1 = arith.constant 0 : i32
    return %arg0, %c0_i32, %c0_i32_0 : i32, i32, i32
  }
}

</mosaic_0001>

<llo_original>
// kernel: tpu_custom_call.1
$region0: #{tpu_custom_call.1}
  #allocation0 [shape = 'u32[]', space=smem, size = 0x4, offset = 0x4, fixed_abs, tag = 'smem constant byte address 0x4 - core index']
  #allocation1 [shape = 'u32[72,128]{1,0:T(1,128)}', space=vmem, size = 0x9000, scoped, tag = 'internal scratch']
  %s0 = inlined_call_operand.vmem [shape: bf16[2,256,4], index: 0, kind: input, shape index: {}]
  %s1 = inlined_call_operand.vmem [shape: bf16[36,32], index: 1, kind: input, shape index: {}]
  %s2 = inlined_call_operand.vmem [shape: bf16[288,32], index: 2, kind: input, shape index: {}]
  %s3 = inlined_call_operand.vmem [shape: bf16[288,32], index: 3, kind: input, shape index: {}]
  %s4 = inlined_call_operand.vmem [shape: bf16[288,32], index: 4, kind: input, shape index: {}]
  %s5 = inlined_call_operand.vmem [shape: bf16[288,36], index: 5, kind: input, shape index: {}]
  %s6 = inlined_call_operand.vmem [shape: f32[1,32], index: 6, kind: input, shape index: {}]
  %s7 = inlined_call_operand.vmem [shape: f32[1,32], index: 7, kind: input, shape index: {}]
  %s8 = inlined_call_operand.vmem [shape: f32[1,32], index: 8, kind: input, shape index: {}]
  %s9 = inlined_call_operand.vmem [shape: f32[1,32], index: 9, kind: input, shape index: {}]
  %s10 = inlined_call_operand.vmem [shape: f32[1,36], index: 10, kind: input, shape index: {}]
  %s11 = inlined_call_operand.vmem [shape: s32[256,1], index: 11, kind: input, shape index: {}]
  %s12 = inlined_call_operand.vmem [shape: f32[2,256,36], index: 12, kind: output, shape index: {}]
  %s13 = sld [smem:[#allocation0]]
  $region81: #{tpu_custom_call.1} parent=0
    _
  %s15 = ssub.s32 1, %s13
  %s16 = scalar_select 0, %s15, %s13
  loop: start=0, step=1, limit=4
  $region2: #{tpu_custom_call.1} parent=0 // loop_pre_header
    _
  $region3: #{tpu_custom_call.1} parent=0 // loop_header
    %s18 = sphi 0, %s22
    %p19 = scmp.ge.s32.totalorder %s18, 4
    %s28 = sphi 0, %s30
    %s31 = sphi 0, %s28
    %s32 = sphi 0, %s31
    %s48 = sphi 0, %s32
    %s52 = sphi 0, %s52
    %s54 = sphi 0, %s52
    %s55 = sphi 0, %s54
    %s69 = sphi 0, %s55
    %s73 = sphi 0, %s73
    %s75 = sphi 0, %s73
    %s76 = sphi 0, %s75
    %s90 = sphi 0, %s76
    %s94 = sphi 0, %s94
    %s96 = sphi 0, %s94
    %s97 = sphi 0, %s96
    %s111 = sphi 0, %s97
    %s115 = sphi 0, %s115
    %s117 = sphi 0, %s115
    %s118 = sphi 0, %s117
    %s132 = sphi 0, %s118
    %s136 = sphi 0, %s136
    %s138 = sphi 0, %s136
    %s139 = sphi 0, %s138
    %s153 = sphi 0, %s139
    %s157 = sphi 0, %s157
    %s159 = sphi 0, %s157
    %s160 = sphi 0, %s159
    %s174 = sphi 0, %s160
    %s178 = sphi 0, %s178
    %s180 = sphi 0, %s178
    %s181 = sphi 0, %s180
    %s195 = sphi 0, %s181
    %s199 = sphi 0, %s199
    %s201 = sphi 0, %s199
    %s202 = sphi 0, %s201
    %s216 = sphi 0, %s202
    %s220 = sphi 0, %s220
    %s222 = sphi 0, %s220
    %s223 = sphi 0, %s222
    %s237 = sphi 0, %s223
    %s241 = sphi 0, %s241
    %s243 = sphi 0, %s241
    %s244 = sphi 0, %s243
    %s258 = sphi 0, %s244
    %s262 = sphi 0, %s262
    %s264 = sphi 0, %s262
    %s265 = sphi 0, %s264
    %s279 = sphi 0, %s265
    %s285 = sphi 0, %s287
    %s288 = sphi 0, %s285
    %s289 = sphi 0, %s288
    %s305 = sphi 0, %s289
  $region4: #{tpu_custom_call.1} parent=0 // loop_header_branch
    %21 = sbr.rel (%p19) target = $region8
  $region5: #{tpu_custom_call.1} parent=0 // loop_body
    %s23 = ssub.s32 %s18, 1
    %s24 = ssub.s32 %s18, 2
    %s25 = sadd.s32 %s18, 1
    %s26 = ssub.s32 %s18, %s25
    %p27 = scmp.eq.s32.totalorder %s26, 0
    %s29 = sadd.s32 %s28, 1
    %s30 = scalar_select %p27, %s28, %s29
    %p33 = pneg %p27
    %p34 = scmp.eq.s32.totalorder %s18, 1
    %p35 = por %p33, %p34
    %p36 = scmp.ne.s32.totalorder %s28, %s31
    %p37 = scmp.eq.s32.totalorder %s18, 0
    %p38 = por %p36, %p37
    %p39 = scmp.ne.s32.totalorder %s28, %s31
    %p40 = scmp.eq.s32.totalorder %s23, 1
    %p41 = por %p39, %p40
    %p42 = scmp.ne.s32.totalorder %s31, %s32
    %p43 = scmp.eq.s32.totalorder %s23, 0
    %p44 = por %p42, %p43
    %p45 = scmp.ne.s32.totalorder %s31, %s32
    %p46 = scmp.eq.s32.totalorder %s24, 1
    %p47 = por %p45, %p46
    %p49 = scmp.ne.s32.totalorder %s32, %s48
    %p50 = scmp.eq.s32.totalorder %s24, 0
    %p51 = por %p49, %p50
    %s53 = sadd.s32 %s52, 1
    %p56 = scmp.eq.s32.totalorder %s18, 1
    %p57 = scmp.ne.s32.totalorder %s52, %s54
    %p58 = scmp.eq.s32.totalorder %s18, 0
    %p59 = por %p57, %p58
    %p60 = scmp.ne.s32.totalorder %s52, %s54
    %p61 = scmp.eq.s32.totalorder %s23, 1
    %p62 = por %p60, %p61
    %p63 = scmp.ne.s32.totalorder %s54, %s55
    %p64 = scmp.eq.s32.totalorder %s23, 0
    %p65 = por %p63, %p64
    %p66 = scmp.ne.s32.totalorder %s54, %s55
    %p67 = scmp.eq.s32.totalorder %s24, 1
    %p68 = por %p66, %p67
    %p70 = scmp.ne.s32.totalorder %s55, %s69
    %p71 = scmp.eq.s32.totalorder %s24, 0
    %p72 = por %p70, %p71
    %s74 = sadd.s32 %s73, 1
    %p77 = scmp.eq.s32.totalorder %s18, 1
    %p78 = scmp.ne.s32.totalorder %s73, %s75
    %p79 = scmp.eq.s32.totalorder %s18, 0
    %p80 = por %p78, %p79
    %p81 = scmp.ne.s32.totalorder %s73, %s75
    %p82 = scmp.eq.s32.totalorder %s23, 1
    %p83 = por %p81, %p82
    %p84 = scmp.ne.s32.totalorder %s75, %s76
    %p85 = scmp.eq.s32.totalorder %s23, 0
    %p86 = por %p84, %p85
    %p87 = scmp.ne.s32.totalorder %s75, %s76
    %p88 = scmp.eq.s32.totalorder %s24, 1
    %p89 = por %p87, %p88
    %p91 = scmp.ne.s32.totalorder %s76, %s90
    %p92 = scmp.eq.s32.totalorder %s24, 0
    %p93 = por %p91, %p92
    %s95 = sadd.s32 %s94, 1
    %p98 = scmp.eq.s32.totalorder %s18, 1
    %p99 = scmp.ne.s32.totalorder %s94, %s96
    %p100 = scmp.eq.s32.totalorder %s18, 0
    %p101 = por %p99, %p100
    %p102 = scmp.ne.s32.totalorder %s94, %s96
    %p103 = scmp.eq.s32.totalorder %s23, 1
    %p104 = por %p102, %p103
    %p105 = scmp.ne.s32.totalorder %s96, %s97
    %p106 = scmp.eq.s32.totalorder %s23, 0
    %p107 = por %p105, %p106
    %p108 = scmp.ne.s32.totalorder %s96, %s97
    %p109 = scmp.eq.s32.totalorder %s24, 1
    %p110 = por %p108, %p109
    %p112 = scmp.ne.s32.totalorder %s97, %s111
    %p113 = scmp.eq.s32.totalorder %s24, 0
    %p114 = por %p112, %p113
    %s116 = sadd.s32 %s115, 1
    %p119 = scmp.eq.s32.totalorder %s18, 1
    %p120 = scmp.ne.s32.totalorder %s115, %s117
    %p121 = scmp.eq.s32.totalorder %s18, 0
    %p122 = por %p120, %p121
    %p123 = scmp.ne.s32.totalorder %s115, %s117
    %p124 = scmp.eq.s32.totalorder %s23, 1
    %p125 = por %p123, %p124
    %p126 = scmp.ne.s32.totalorder %s117, %s118
    %p127 = scmp.eq.s32.totalorder %s23, 0
    %p128 = por %p126, %p127
    %p129 = scmp.ne.s32.totalorder %s117, %s118
    %p130 = scmp.eq.s32.totalorder %s24, 1
    %p131 = por %p129, %p130
    %p133 = scmp.ne.s32.totalorder %s118, %s132
    %p134 = scmp.eq.s32.totalorder %s24, 0
    %p135 = por %p133, %p134
    %s137 = sadd.s32 %s136, 1
    %p140 = scmp.eq.s32.totalorder %s18, 1
    %p141 = scmp.ne.s32.totalorder %s136, %s138
    %p142 = scmp.eq.s32.totalorder %s18, 0
    %p143 = por %p141, %p142
    %p144 = scmp.ne.s32.totalorder %s136, %s138
    %p145 = scmp.eq.s32.totalorder %s23, 1
    %p146 = por %p144, %p145
    %p147 = scmp.ne.s32.totalorder %s138, %s139
    %p148 = scmp.eq.s32.totalorder %s23, 0
    %p149 = por %p147, %p148
    %p150 = scmp.ne.s32.totalorder %s138, %s139
    %p151 = scmp.eq.s32.totalorder %s24, 1
    %p152 = por %p150, %p151
    %p154 = scmp.ne.s32.totalorder %s139, %s153
    %p155 = scmp.eq.s32.totalorder %s24, 0
    %p156 = por %p154, %p155
    %s158 = sadd.s32 %s157, 1
    %p161 = scmp.eq.s32.totalorder %s18, 1
    %p162 = scmp.ne.s32.totalorder %s157, %s159
    %p163 = scmp.eq.s32.totalorder %s18, 0
    %p164 = por %p162, %p163
    %p165 = scmp.ne.s32.totalorder %s157, %s159
    %p166 = scmp.eq.s32.totalorder %s23, 1
    %p167 = por %p165, %p166
    %p168 = scmp.ne.s32.totalorder %s159, %s160
    %p169 = scmp.eq.s32.totalorder %s23, 0
    %p170 = por %p168, %p169
    %p171 = scmp.ne.s32.totalorder %s159, %s160
    %p172 = scmp.eq.s32.totalorder %s24, 1
    %p173 = por %p171, %p172
    %p175 = scmp.ne.s32.totalorder %s160, %s174
    %p176 = scmp.eq.s32.totalorder %s24, 0
    %p177 = por %p175, %p176
    %s179 = sadd.s32 %s178, 1
    %p182 = scmp.eq.s32.totalorder %s18, 1
    %p183 = scmp.ne.s32.totalorder %s178, %s180
    %p184 = scmp.eq.s32.totalorder %s18, 0
    %p185 = por %p183, %p184
    %p186 = scmp.ne.s32.totalorder %s178, %s180
    %p187 = scmp.eq.s32.totalorder %s23, 1
    %p188 = por %p186, %p187
    %p189 = scmp.ne.s32.totalorder %s180, %s181
    %p190 = scmp.eq.s32.totalorder %s23, 0
    %p191 = por %p189, %p190
    %p192 = scmp.ne.s32.totalorder %s180, %s181
    %p193 = scmp.eq.s32.totalorder %s24, 1
    %p194 = por %p192, %p193
    %p196 = scmp.ne.s32.totalorder %s181, %s195
    %p197 = scmp.eq.s32.totalorder %s24, 0
    %p198 = por %p196, %p197
    %s200 = sadd.s32 %s199, 1
    %p203 = scmp.eq.s32.totalorder %s18, 1
    %p204 = scmp.ne.s32.totalorder %s199, %s201
    %p205 = scmp.eq.s32.totalorder %s18, 0
    %p206 = por %p204, %p205
    %p207 = scmp.ne.s32.totalorder %s199, %s201
    %p208 = scmp.eq.s32.totalorder %s23, 1
    %p209 = por %p207, %p208
    %p210 = scmp.ne.s32.totalorder %s201, %s202
    %p211 = scmp.eq.s32.totalorder %s23, 0
    %p212 = por %p210, %p211
    %p213 = scmp.ne.s32.totalorder %s201, %s202
    %p214 = scmp.eq.s32.totalorder %s24, 1
    %p215 = por %p213, %p214
    %p217 = scmp.ne.s32.totalorder %s202, %s216
    %p218 = scmp.eq.s32.totalorder %s24, 0
    %p219 = por %p217, %p218
    %s221 = sadd.s32 %s220, 1
    %p224 = scmp.eq.s32.totalorder %s18, 1
    %p225 = scmp.ne.s32.totalorder %s220, %s222
    %p226 = scmp.eq.s32.totalorder %s18, 0
    %p227 = por %p225, %p226
    %p228 = scmp.ne.s32.totalorder %s220, %s222
    %p229 = scmp.eq.s32.totalorder %s23, 1
    %p230 = por %p228, %p229
    %p231 = scmp.ne.s32.totalorder %s222, %s223
    %p232 = scmp.eq.s32.totalorder %s23, 0
    %p233 = por %p231, %p232
    %p234 = scmp.ne.s32.totalorder %s222, %s223
    %p235 = scmp.eq.s32.totalorder %s24, 1
    %p236 = por %p234, %p235
    %p238 = scmp.ne.s32.totalorder %s223, %s237
    %p239 = scmp.eq.s32.totalorder %s24, 0
    %p240 = por %p238, %p239
    %s242 = sadd.s32 %s241, 1
    %p245 = scmp.eq.s32.totalorder %s18, 1
    %p246 = scmp.ne.s32.totalorder %s241, %s243
    %p247 = scmp.eq.s32.totalorder %s18, 0
    %p248 = por %p246, %p247
    %p249 = scmp.ne.s32.totalorder %s241, %s243
    %p250 = scmp.eq.s32.totalorder %s23, 1
    %p251 = por %p249, %p250
    %p252 = scmp.ne.s32.totalorder %s243, %s244
    %p253 = scmp.eq.s32.totalorder %s23, 0
    %p254 = por %p252, %p253
    %p255 = scmp.ne.s32.totalorder %s243, %s244
    %p256 = scmp.eq.s32.totalorder %s24, 1
    %p257 = por %p255, %p256
    %p259 = scmp.ne.s32.totalorder %s244, %s258
    %p260 = scmp.eq.s32.totalorder %s24, 0
    %p261 = por %p259, %p260
    %s263 = sadd.s32 %s262, 1
    %p266 = scmp.eq.s32.totalorder %s18, 1
    %p267 = scmp.ne.s32.totalorder %s262, %s264
    %p268 = scmp.eq.s32.totalorder %s18, 0
    %p269 = por %p267, %p268
    %p270 = scmp.ne.s32.totalorder %s262, %s264
    %p271 = scmp.eq.s32.totalorder %s23, 1
    %p272 = por %p270, %p271
    %p273 = scmp.ne.s32.totalorder %s264, %s265
    %p274 = scmp.eq.s32.totalorder %s23, 0
    %p275 = por %p273, %p274
    %p276 = scmp.ne.s32.totalorder %s264, %s265
    %p277 = scmp.eq.s32.totalorder %s24, 1
    %p278 = por %p276, %p277
    %p280 = scmp.ne.s32.totalorder %s265, %s279
    %p281 = scmp.eq.s32.totalorder %s24, 0
    %p282 = por %p280, %p281
    %s283 = ssub.s32 %s18, %s25
    %p284 = scmp.eq.s32.totalorder %s283, 0
    %s286 = sadd.s32 %s285, 1
    %s287 = scalar_select %p284, %s285, %s286
    %p290 = pneg %p284
    %p291 = scmp.eq.s32.totalorder %s18, 1
    %p292 = por %p290, %p291
    %p293 = scmp.ne.s32.totalorder %s285, %s288
    %p294 = scmp.eq.s32.totalorder %s18, 0
    %p295 = por %p293, %p294
    %p296 = scmp.ne.s32.totalorder %s285, %s288
    %p297 = scmp.eq.s32.totalorder %s23, 1
    %p298 = por %p296, %p297
    %p299 = scmp.ne.s32.totalorder %s288, %s289
    %p300 = scmp.eq.s32.totalorder %s23, 0
    %p301 = por %p299, %p300
    %p302 = scmp.ne.s32.totalorder %s288, %s289
    %p303 = scmp.eq.s32.totalorder %s24, 1
    %p304 = por %p302, %p303
    %p306 = scmp.ne.s32.totalorder %s289, %s305
    %p307 = scmp.eq.s32.totalorder %s24, 0
    %p308 = por %p306, %p307
    %p309 = scmp.le.s32.totalorder 1, %s18
    %p310 = scmp.lt.s32.totalorder %s18, 3
    %p311 = pnand %p309, %p310
    %p312 = pneg %p311
    // Predicated region
    $region9: #{tpu_custom_call.1} parent=5 // pred_check
      _
    $region10: #{tpu_custom_call.1} parent=5 // pred_check_branch
      %314 = sbr.rel (%p311) target = $region12
    $region11: #{tpu_custom_call.1} parent=5 // pred_region
      %s315 = ssub.s32 %s18, 1
      // Predicated region
      $region13: #{tpu_custom_call.1} parent=11 // pred_check
        %p316 = pneg %p65
      $region14: #{tpu_custom_call.1} parent=11 // pred_check_branch
        %318 = sbr.rel (%p316) target = $region16
      $region15: #{tpu_custom_call.1} parent=11 // pred_region
        _
      $region16: #{tpu_custom_call.1} parent=11 // pred_fallthru
        _
      // Predicated region
      $region17: #{tpu_custom_call.1} parent=11 // pred_check
        %p319 = pneg %p86
      $region18: #{tpu_custom_call.1} parent=11 // pred_check_branch
        %321 = sbr.rel (%p319) target = $region20
      $region19: #{tpu_custom_call.1} parent=11 // pred_region
        _
      $region20: #{tpu_custom_call.1} parent=11 // pred_fallthru
        _
      // Predicated region
      $region21: #{tpu_custom_call.1} parent=11 // pred_check
        %p322 = pneg %p107
      $region22: #{tpu_custom_call.1} parent=11 // pred_check_branch
        %324 = sbr.rel (%p322) target = $region24
      $region23: #{tpu_custom_call.1} parent=11 // pred_region
        _
      $region24: #{tpu_custom_call.1} parent=11 // pred_fallthru
        _
      // Predicated region
      $region25: #{tpu_custom_call.1} parent=11 // pred_check
        %p325 = pneg %p128
      $region26: #{tpu_custom_call.1} parent=11 // pred_check_branch
        %327 = sbr.rel (%p325) target = $region28
      $region27: #{tpu_custom_call.1} parent=11 // pred_region
        _
      $region28: #{tpu_custom_call.1} parent=11 // pred_fallthru
        _
      // Predicated region
      $region29: #{tpu_custom_call.1} parent=11 // pred_check
        %p328 = pneg %p149
      $region30: #{tpu_custom_call.1} parent=11 // pred_check_branch
        %330 = sbr.rel (%p328) target = $region32
      $region31: #{tpu_custom_call.1} parent=11 // pred_region
        _
      $region32: #{tpu_custom_call.1} parent=11 // pred_fallthru
        _
      // Predicated region
      $region33: #{tpu_custom_call.1} parent=11 // pred_check
        %p331 = pneg %p170
      $region34: #{tpu_custom_call.1} parent=11 // pred_check_branch
        %333 = sbr.rel (%p331) target = $region36
      $region35: #{tpu_custom_call.1} parent=11 // pred_region
        _
      $region36: #{tpu_custom_call.1} parent=11 // pred_fallthru
        _
      // Predicated region
      $region37: #{tpu_custom_call.1} parent=11 // pred_check
        %p334 = pneg %p191
      $region38: #{tpu_custom_call.1} parent=11 // pred_check_branch
        %336 = sbr.rel (%p334) target = $region40
      $region39: #{tpu_custom_call.1} parent=11 // pred_region
        _
      $region40: #{tpu_custom_call.1} parent=11 // pred_fallthru
        _
      // Predicated region
      $region41: #{tpu_custom_call.1} parent=11 // pred_check
        %p337 = pneg %p212
      $region42: #{tpu_custom_call.1} parent=11 // pred_check_branch
        %339 = sbr.rel (%p337) target = $region44
      $region43: #{tpu_custom_call.1} parent=11 // pred_region
        _
      $region44: #{tpu_custom_call.1} parent=11 // pred_fallthru
        _
      // Predicated region
      $region45: #{tpu_custom_call.1} parent=11 // pred_check
        %p340 = pneg %p233
      $region46: #{tpu_custom_call.1} parent=11 // pred_check_branch
        %342 = sbr.rel (%p340) target = $region48
      $region47: #{tpu_custom_call.1} parent=11 // pred_region
        _
      $region48: #{tpu_custom_call.1} parent=11 // pred_fallthru
        _
      // Predicated region
      $region49: #{tpu_custom_call.1} parent=11 // pred_check
        %p343 = pneg %p254
      $region50: #{tpu_custom_call.1} parent=11 // pred_check_branch
        %345 = sbr.rel (%p343) target = $region52
      $region51: #{tpu_custom_call.1} parent=11 // pred_region
        _
      $region52: #{tpu_custom_call.1} parent=11 // pred_fallthru
        _
      // Predicated region
      $region53: #{tpu_custom_call.1} parent=11 // pred_check
        %p346 = pneg %p275
      $region54: #{tpu_custom_call.1} parent=11 // pred_check_branch
        %348 = sbr.rel (%p346) target = $region56
      $region55: #{tpu_custom_call.1} parent=11 // pred_region
        _
      $region56: #{tpu_custom_call.1} parent=11 // pred_fallthru
        _
    $region12: #{tpu_custom_call.1} parent=5 // pred_fallthru
      _
    %p349 = scmp.lt.s32.totalorder %s18, 2
    // Predicated region
    $region57: #{tpu_custom_call.1} parent=5 // pred_check
      %p350 = pneg %p349
    $region58: #{tpu_custom_call.1} parent=5 // pred_check_branch
      %352 = sbr.rel (%p350) target = $region60
    $region59: #{tpu_custom_call.1} parent=5 // pred_region
      // Predicated region
      $region61: #{tpu_custom_call.1} parent=59 // pred_check
        %p353 = pneg %p38
      $region62: #{tpu_custom_call.1} parent=59 // pred_check_branch
        %355 = sbr.rel (%p353) target = $region64
      $region63: #{tpu_custom_call.1} parent=59 // pred_region
        %p356 = scmp.lt.s32.totalorder %s18, 1
        %s357 = scalar_select %p356, %s18, 1
        %s358 = smul.addr %s357, 32
        %s359 = smul.addr %s358, 4
        %s360 = scalar_lea.vmem %s0, %s359
      $region64: #{tpu_custom_call.1} parent=59 // pred_fallthru
        _
    $region60: #{tpu_custom_call.1} parent=5 // pred_fallthru
      _
    %p361 = scmp.le.s32.totalorder 1, %s18
    %p362 = scmp.lt.s32.totalorder %s18, 3
    %p363 = pnand %p361, %p362
    %p364 = pneg %p363
    // Predicated region
    $region65: #{tpu_custom_call.1} parent=5 // pred_check
      _
    $region66: #{tpu_custom_call.1} parent=5 // pred_check_branch
      %366 = sbr.rel (%p363) target = $region68
    $region67: #{tpu_custom_call.1} parent=5 // pred_region
      %s367 = ssub.s32 %s18, 1
      %p368 = scmp.lt.s32.totalorder %s23, 1
      %s369 = scalar_select %p368, %s23, 1
      %s370 = smul.addr %s369, 32
      %s371 = smul.addr %s370, 4
      %s372 = scalar_lea.vmem %s0, %s371
      %p373 = pneg %p44
      %p374 = pneg %p41
      %p375 = pneg %p65
      %p376 = pneg %p62
      %p377 = pneg %p86
      %p378 = pneg %p83
      %p379 = pneg %p107
      %p380 = pneg %p104
      %p381 = pneg %p128
      %p382 = pneg %p125
      %p383 = pneg %p149
      %p384 = pneg %p146
      %p385 = pneg %p170
      %p386 = pneg %p167
      %p387 = pneg %p191
      %p388 = pneg %p188
      %p389 = pneg %p212
      %p390 = pneg %p209
      %p391 = pneg %p233
      %p392 = pneg %p230
      %p393 = pneg %p254
      %p394 = pneg %p251
      %p395 = pneg %p275
      %p396 = pneg %p272
      %p397 = pneg %p301
      %p398 = pneg %p298
      %p399 = scmp.lt.s32.totalorder %s23, 1
      %s400 = scalar_select %p399, %s23, 1
      %s401 = smul.addr %s400, 32
      %s402 = smul.addr %s401, 8
      %s403 = scalar_lea.vmem %s12, %s402
      %p404 = scmp.lt.s32.totalorder %s23, 1
      %s405 = scalar_select %p404, %s23, 1
      %s406 = smul.addr %s405, 32
      %s407 = smul.addr %s406, 4
      %s408 = scalar_lea.vmem %s0, %s407
      %p409 = scmp.lt.s32.totalorder %s23, 1
      %s410 = scalar_select %p409, %s23, 1
      %s411 = smul.addr %s410, 32
      %s412 = smul.addr %s411, 8
      %s413 = scalar_lea.vmem %s12, %s412
      %v415 = vlaneseq
      %v416 = vshrl.u32 %v415, 7
      %v417 = vadd.s32 %v416, 8
      %v418 = vadd.s32 %v416, 16
      %v419 = vadd.s32 %v416, 24
      %v420 = vadd.s32 %v416, 32
      %v421 = vadd.s32 %v416, 40
      %v422 = vadd.s32 %v416, 48
      %v423 = vadd.s32 %v416, 56
      %v424 = vadd.s32 %v416, 64
      %v425 = vadd.s32 %v416, 72
      %v426 = vadd.s32 %v416, 80
      %v427 = vadd.s32 %v416, 88
      %v428 = vadd.s32 %v416, 96
      %v429 = vadd.s32 %v416, 104
      %v430 = vadd.s32 %v416, 112
      %v431 = vadd.s32 %v416, 120
      %v432 = vadd.s32 %v416, 128
      %v433 = vadd.s32 %v416, 136
      %v434 = vadd.s32 %v416, 144
      %v435 = vadd.s32 %v416, 152
      %v436 = vadd.s32 %v416, 160
      %v437 = vadd.s32 %v416, 168
      %v438 = vadd.s32 %v416, 176
      %v439 = vadd.s32 %v416, 184
      %v440 = vadd.s32 %v416, 192
      %v441 = vadd.s32 %v416, 200
      %v442 = vadd.s32 %v416, 208
      %v443 = vadd.s32 %v416, 216
      %v444 = vadd.s32 %v416, 224
      %v445 = vadd.s32 %v416, 232
      %v446 = vadd.s32 %v416, 240
      %v447 = vadd.s32 %v416, 248
      %v448 = vld [vmem:[%s11] sm:$0xff]
      %v449 = vld [vmem:[%s11 + $0x8] sm:$0xff]
      %v450 = vld [vmem:[%s11 + $0x10] sm:$0xff]
      %v451 = vld [vmem:[%s11 + $0x18] sm:$0xff]
      %v452 = vld [vmem:[%s11 + $0x20] sm:$0xff]
      %v453 = vld [vmem:[%s11 + $0x28] sm:$0xff]
      %v454 = vld [vmem:[%s11 + $0x30] sm:$0xff]
      %v455 = vld [vmem:[%s11 + $0x38] sm:$0xff]
      %v456 = vld [vmem:[%s11 + $0x40] sm:$0xff]
      %v457 = vld [vmem:[%s11 + $0x48] sm:$0xff]
      %v458 = vld [vmem:[%s11 + $0x50] sm:$0xff]
      %v459 = vld [vmem:[%s11 + $0x58] sm:$0xff]
      %v460 = vld [vmem:[%s11 + $0x60] sm:$0xff]
      %v461 = vld [vmem:[%s11 + $0x68] sm:$0xff]
      %v462 = vld [vmem:[%s11 + $0x70] sm:$0xff]
      %v463 = vld [vmem:[%s11 + $0x78] sm:$0xff]
      %v464 = vld [vmem:[%s11 + $0x80] sm:$0xff]
      %v465 = vld [vmem:[%s11 + $0x88] sm:$0xff]
      %v466 = vld [vmem:[%s11 + $0x90] sm:$0xff]
      %v467 = vld [vmem:[%s11 + $0x98] sm:$0xff]
      %v468 = vld [vmem:[%s11 + $0xa0] sm:$0xff]
      %v469 = vld [vmem:[%s11 + $0xa8] sm:$0xff]
      %v470 = vld [vmem:[%s11 + $0xb0] sm:$0xff]
      %v471 = vld [vmem:[%s11 + $0xb8] sm:$0xff]
      %v472 = vld [vmem:[%s11 + $0xc0] sm:$0xff]
      %v473 = vld [vmem:[%s11 + $0xc8] sm:$0xff]
      %v474 = vld [vmem:[%s11 + $0xd0] sm:$0xff]
      %v475 = vld [vmem:[%s11 + $0xd8] sm:$0xff]
      %v476 = vld [vmem:[%s11 + $0xe0] sm:$0xff]
      %v477 = vld [vmem:[%s11 + $0xe8] sm:$0xff]
      %v478 = vld [vmem:[%s11 + $0xf0] sm:$0xff]
      %v479 = vld [vmem:[%s11 + $0xf8] sm:$0xff]
      %vm480 = vcmp.ge.s32.totalorder %v416, 16
      %vm481 = vcmp.ge.s32.totalorder %v417, 16
      %vm482 = vcmp.ge.s32.totalorder %v418, 16
      %vm483 = vcmp.ge.s32.totalorder %v419, 16
      %vm484 = vcmp.ge.s32.totalorder %v420, 16
      %vm485 = vcmp.ge.s32.totalorder %v421, 16
      %vm486 = vcmp.ge.s32.totalorder %v422, 16
      %vm487 = vcmp.ge.s32.totalorder %v423, 16
      %vm488 = vcmp.ge.s32.totalorder %v424, 16
      %vm489 = vcmp.ge.s32.totalorder %v425, 16
      %vm490 = vcmp.ge.s32.totalorder %v426, 16
      %vm491 = vcmp.ge.s32.totalorder %v427, 16
      %vm492 = vcmp.ge.s32.totalorder %v428, 16
      %vm493 = vcmp.ge.s32.totalorder %v429, 16
      %vm494 = vcmp.ge.s32.totalorder %v430, 16
      %vm495 = vcmp.ge.s32.totalorder %v431, 16
      %vm496 = vcmp.ge.s32.totalorder %v432, 16
      %vm497 = vcmp.ge.s32.totalorder %v433, 16
      %vm498 = vcmp.ge.s32.totalorder %v434, 16
      %vm499 = vcmp.ge.s32.totalorder %v435, 16
      %vm500 = vcmp.ge.s32.totalorder %v436, 16
      %vm501 = vcmp.ge.s32.totalorder %v437, 16
      %vm502 = vcmp.ge.s32.totalorder %v438, 16
      %vm503 = vcmp.ge.s32.totalorder %v439, 16
      %vm504 = vcmp.ge.s32.totalorder %v440, 16
      %vm505 = vcmp.ge.s32.totalorder %v441, 16
      %vm506 = vcmp.ge.s32.totalorder %v442, 16
      %vm507 = vcmp.ge.s32.totalorder %v443, 16
      %vm508 = vcmp.ge.s32.totalorder %v444, 16
      %vm509 = vcmp.ge.s32.totalorder %v445, 16
      %vm510 = vcmp.ge.s32.totalorder %v446, 16
      %vm511 = vcmp.ge.s32.totalorder %v447, 16
      %vm512 = vcmp.lt.s32.totalorder %v416, 240
      %vm513 = vcmp.lt.s32.totalorder %v417, 240
      %vm514 = vcmp.lt.s32.totalorder %v418, 240
      %vm515 = vcmp.lt.s32.totalorder %v419, 240
      %vm516 = vcmp.lt.s32.totalorder %v420, 240
      %vm517 = vcmp.lt.s32.totalorder %v421, 240
      %vm518 = vcmp.lt.s32.totalorder %v422, 240
      %vm519 = vcmp.lt.s32.totalorder %v423, 240
      %vm520 = vcmp.lt.s32.totalorder %v424, 240
      %vm521 = vcmp.lt.s32.totalorder %v425, 240
      %vm522 = vcmp.lt.s32.totalorder %v426, 240
      %vm523 = vcmp.lt.s32.totalorder %v427, 240
      %vm524 = vcmp.lt.s32.totalorder %v428, 240
      %vm525 = vcmp.lt.s32.totalorder %v429, 240
      %vm526 = vcmp.lt.s32.totalorder %v430, 240
      %vm527 = vcmp.lt.s32.totalorder %v431, 240
      %vm528 = vcmp.lt.s32.totalorder %v432, 240
      %vm529 = vcmp.lt.s32.totalorder %v433, 240
      %vm530 = vcmp.lt.s32.totalorder %v434, 240
      %vm531 = vcmp.lt.s32.totalorder %v435, 240
      %vm532 = vcmp.lt.s32.totalorder %v436, 240
      %vm533 = vcmp.lt.s32.totalorder %v437, 240
      %vm534 = vcmp.lt.s32.totalorder %v438, 240
      %vm535 = vcmp.lt.s32.totalorder %v439, 240
      %vm536 = vcmp.lt.s32.totalorder %v440, 240
      %vm537 = vcmp.lt.s32.totalorder %v441, 240
      %vm538 = vcmp.lt.s32.totalorder %v442, 240
      %vm539 = vcmp.lt.s32.totalorder %v443, 240
      %vm540 = vcmp.lt.s32.totalorder %v444, 240
      %vm541 = vcmp.lt.s32.totalorder %v445, 240
      %vm542 = vcmp.lt.s32.totalorder %v446, 240
      %vm543 = vcmp.lt.s32.totalorder %v447, 240
      %vm544 = vcmp.ge.s32.totalorder %v448, 1
      %vm545 = vcmp.ge.s32.totalorder %v449, 1
      %vm546 = vcmp.ge.s32.totalorder %v450, 1
      %vm547 = vcmp.ge.s32.totalorder %v451, 1
      %vm548 = vcmp.ge.s32.totalorder %v452, 1
      %vm549 = vcmp.ge.s32.totalorder %v453, 1
      %vm550 = vcmp.ge.s32.totalorder %v454, 1
      %vm551 = vcmp.ge.s32.totalorder %v455, 1
      %vm552 = vcmp.ge.s32.totalorder %v456, 1
      %vm553 = vcmp.ge.s32.totalorder %v457, 1
      %vm554 = vcmp.ge.s32.totalorder %v458, 1
      %vm555 = vcmp.ge.s32.totalorder %v459, 1
      %vm556 = vcmp.ge.s32.totalorder %v460, 1
      %vm557 = vcmp.ge.s32.totalorder %v461, 1
      %vm558 = vcmp.ge.s32.totalorder %v462, 1
      %vm559 = vcmp.ge.s32.totalorder %v463, 1
      %vm560 = vcmp.ge.s32.totalorder %v464, 1
      %vm561 = vcmp.ge.s32.totalorder %v465, 1
      %vm562 = vcmp.ge.s32.totalorder %v466, 1
      %vm563 = vcmp.ge.s32.totalorder %v467, 1
      %vm564 = vcmp.ge.s32.totalorder %v468, 1
      %vm565 = vcmp.ge.s32.totalorder %v469, 1
      %vm566 = vcmp.ge.s32.totalorder %v470, 1
      %vm567 = vcmp.ge.s32.totalorder %v471, 1
      %vm568 = vcmp.ge.s32.totalorder %v472, 1
      %vm569 = vcmp.ge.s32.totalorder %v473, 1
      %vm570 = vcmp.ge.s32.totalorder %v474, 1
      %vm571 = vcmp.ge.s32.totalorder %v475, 1
      %vm572 = vcmp.ge.s32.totalorder %v476, 1
      %vm573 = vcmp.ge.s32.totalorder %v477, 1
      %vm574 = vcmp.ge.s32.totalorder %v478, 1
      %vm575 = vcmp.ge.s32.totalorder %v479, 1
      %vm576 = vcmp.le.s32.totalorder %v448, 14
      %vm577 = vcmp.le.s32.totalorder %v449, 14
      %vm578 = vcmp.le.s32.totalorder %v450, 14
      %vm579 = vcmp.le.s32.totalorder %v451, 14
      %vm580 = vcmp.le.s32.totalorder %v452, 14
      %vm581 = vcmp.le.s32.totalorder %v453, 14
      %vm582 = vcmp.le.s32.totalorder %v454, 14
      %vm583 = vcmp.le.s32.totalorder %v455, 14
      %vm584 = vcmp.le.s32.totalorder %v456, 14
      %vm585 = vcmp.le.s32.totalorder %v457, 14
      %vm586 = vcmp.le.s32.totalorder %v458, 14
      %vm587 = vcmp.le.s32.totalorder %v459, 14
      %vm588 = vcmp.le.s32.totalorder %v460, 14
      %vm589 = vcmp.le.s32.totalorder %v461, 14
      %vm590 = vcmp.le.s32.totalorder %v462, 14
      %vm591 = vcmp.le.s32.totalorder %v463, 14
      %vm592 = vcmp.le.s32.totalorder %v464, 14
      %vm593 = vcmp.le.s32.totalorder %v465, 14
      %vm594 = vcmp.le.s32.totalorder %v466, 14
      %vm595 = vcmp.le.s32.totalorder %v467, 14
      %vm596 = vcmp.le.s32.totalorder %v468, 14
      %vm597 = vcmp.le.s32.totalorder %v469, 14
      %vm598 = vcmp.le.s32.totalorder %v470, 14
      %vm599 = vcmp.le.s32.totalorder %v471, 14
      %vm600 = vcmp.le.s32.totalorder %v472, 14
      %vm601 = vcmp.le.s32.totalorder %v473, 14
      %vm602 = vcmp.le.s32.totalorder %v474, 14
      %vm603 = vcmp.le.s32.totalorder %v475, 14
      %vm604 = vcmp.le.s32.totalorder %v476, 14
      %vm605 = vcmp.le.s32.totalorder %v477, 14
      %vm606 = vcmp.le.s32.totalorder %v478, 14
      %vm607 = vcmp.le.s32.totalorder %v479, 14
      %vm608 = vmand %vm480, %vm544
      %vm609 = vmand %vm481, %vm545
      %vm610 = vmand %vm482, %vm546
      %vm611 = vmand %vm483, %vm547
      %vm612 = vmand %vm484, %vm548
      %vm613 = vmand %vm485, %vm549
      %vm614 = vmand %vm486, %vm550
      %vm615 = vmand %vm487, %vm551
      %vm616 = vmand %vm488, %vm552
      %vm617 = vmand %vm489, %vm553
      %vm618 = vmand %vm490, %vm554
      %vm619 = vmand %vm491, %vm555
      %vm620 = vmand %vm492, %vm556
      %vm621 = vmand %vm493, %vm557
      %vm622 = vmand %vm494, %vm558
      %vm623 = vmand %vm495, %vm559
      %vm624 = vmand %vm496, %vm560
      %vm625 = vmand %vm497, %vm561
      %vm626 = vmand %vm498, %vm562
      %vm627 = vmand %vm499, %vm563
      %vm628 = vmand %vm500, %vm564
      %vm629 = vmand %vm501, %vm565
      %vm630 = vmand %vm502, %vm566
      %vm631 = vmand %vm503, %vm567
      %vm632 = vmand %vm504, %vm568
      %vm633 = vmand %vm505, %vm569
      %vm634 = vmand %vm506, %vm570
      %vm635 = vmand %vm507, %vm571
      %vm636 = vmand %vm508, %vm572
      %vm637 = vmand %vm509, %vm573
      %vm638 = vmand %vm510, %vm574
      %vm639 = vmand %vm511, %vm575
      %vm640 = vmand %vm480, %vm576
      %vm641 = vmand %vm481, %vm577
      %vm642 = vmand %vm482, %vm578
      %vm643 = vmand %vm483, %vm579
      %vm644 = vmand %vm484, %vm580
      %vm645 = vmand %vm485, %vm581
      %vm646 = vmand %vm486, %vm582
      %vm647 = vmand %vm487, %vm583
      %vm648 = vmand %vm488, %vm584
      %vm649 = vmand %vm489, %vm585
      %vm650 = vmand %vm490, %vm586
      %vm651 = vmand %vm491, %vm587
      %vm652 = vmand %vm492, %vm588
      %vm653 = vmand %vm493, %vm589
      %vm654 = vmand %vm494, %vm590
      %vm655 = vmand %vm495, %vm591
      %vm656 = vmand %vm496, %vm592
      %vm657 = vmand %vm497, %vm593
      %vm658 = vmand %vm498, %vm594
      %vm659 = vmand %vm499, %vm595
      %vm660 = vmand %vm500, %vm596
      %vm661 = vmand %vm501, %vm597
      %vm662 = vmand %vm502, %vm598
      %vm663 = vmand %vm503, %vm599
      %vm664 = vmand %vm504, %vm600
      %vm665 = vmand %vm505, %vm601
      %vm666 = vmand %vm506, %vm602
      %vm667 = vmand %vm507, %vm603
      %vm668 = vmand %vm508, %vm604
      %vm669 = vmand %vm509, %vm605
      %vm670 = vmand %vm510, %vm606
      %vm671 = vmand %vm511, %vm607
      %vm672 = vmand %vm512, %vm544
      %vm673 = vmand %vm513, %vm545
      %vm674 = vmand %vm514, %vm546
      %vm675 = vmand %vm515, %vm547
      %vm676 = vmand %vm516, %vm548
      %vm677 = vmand %vm517, %vm549
      %vm678 = vmand %vm518, %vm550
      %vm679 = vmand %vm519, %vm551
      %vm680 = vmand %vm520, %vm552
      %vm681 = vmand %vm521, %vm553
      %vm682 = vmand %vm522, %vm554
      %vm683 = vmand %vm523, %vm555
      %vm684 = vmand %vm524, %vm556
      %vm685 = vmand %vm525, %vm557
      %vm686 = vmand %vm526, %vm558
      %vm687 = vmand %vm527, %vm559
      %vm688 = vmand %vm528, %vm560
      %vm689 = vmand %vm529, %vm561
      %vm690 = vmand %vm530, %vm562
      %vm691 = vmand %vm531, %vm563
      %vm692 = vmand %vm532, %vm564
      %vm693 = vmand %vm533, %vm565
      %vm694 = vmand %vm534, %vm566
      %vm695 = vmand %vm535, %vm567
      %vm696 = vmand %vm536, %vm568
      %vm697 = vmand %vm537, %vm569
      %vm698 = vmand %vm538, %vm570
      %vm699 = vmand %vm539, %vm571
      %vm700 = vmand %vm540, %vm572
      %vm701 = vmand %vm541, %vm573
      %vm702 = vmand %vm542, %vm574
      %vm703 = vmand %vm543, %vm575
      %vm704 = vmand %vm512, %vm576
      %vm705 = vmand %vm513, %vm577
      %vm706 = vmand %vm514, %vm578
      %vm707 = vmand %vm515, %vm579
      %vm708 = vmand %vm516, %vm580
      %vm709 = vmand %vm517, %vm581
      %vm710 = vmand %vm518, %vm582
      %vm711 = vmand %vm519, %vm583
      %vm712 = vmand %vm520, %vm584
      %vm713 = vmand %vm521, %vm585
      %vm714 = vmand %vm522, %vm586
      %vm715 = vmand %vm523, %vm587
      %vm716 = vmand %vm524, %vm588
      %vm717 = vmand %vm525, %vm589
      %vm718 = vmand %vm526, %vm590
      %vm719 = vmand %vm527, %vm591
      %vm720 = vmand %vm528, %vm592
      %vm721 = vmand %vm529, %vm593
      %vm722 = vmand %vm530, %vm594
      %vm723 = vmand %vm531, %vm595
      %vm724 = vmand %vm532, %vm596
      %vm725 = vmand %vm533, %vm597
      %vm726 = vmand %vm534, %vm598
      %vm727 = vmand %vm535, %vm599
      %vm728 = vmand %vm536, %vm600
      %vm729 = vmand %vm537, %vm601
      %vm730 = vmand %vm538, %vm602
      %vm731 = vmand %vm539, %vm603
      %vm732 = vmand %vm540, %vm604
      %vm733 = vmand %vm541, %vm605
      %vm734 = vmand %vm542, %vm606
      %vm735 = vmand %vm543, %vm607
      %v736 = vld [vmem:[%s408] sm:$0xf]
      %v737 = vld [vmem:[%s408 + $0x4] sm:$0xf]
      %v738 = vld [vmem:[%s408 + $0x8] sm:$0xf]
      %v739 = vld [vmem:[%s408 + $0xc] sm:$0xf]
      %v740 = vld [vmem:[%s408 + $0x10] sm:$0xf]
      %v741 = vld [vmem:[%s408 + $0x14] sm:$0xf]
      %v742 = vld [vmem:[%s408 + $0x18] sm:$0xf]
      %v743 = vld [vmem:[%s408 + $0x1c] sm:$0xf]
      %v744 = vld [vmem:[%s408 + $0x20] sm:$0xf]
      %v745 = vld [vmem:[%s408 + $0x24] sm:$0xf]
      %v746 = vld [vmem:[%s408 + $0x28] sm:$0xf]
      %v747 = vld [vmem:[%s408 + $0x2c] sm:$0xf]
      %v748 = vld [vmem:[%s408 + $0x30] sm:$0xf]
      %v749 = vld [vmem:[%s408 + $0x34] sm:$0xf]
      %v750 = vld [vmem:[%s408 + $0x38] sm:$0xf]
      %v751 = vld [vmem:[%s408 + $0x3c] sm:$0xf]
      %v752 = vld [vmem:[%s408 + $0x40] sm:$0xf]
      %v753 = vld [vmem:[%s408 + $0x44] sm:$0xf]
      %v754 = vld [vmem:[%s408 + $0x48] sm:$0xf]
      %v755 = vld [vmem:[%s408 + $0x4c] sm:$0xf]
      %v756 = vld [vmem:[%s408 + $0x50] sm:$0xf]
      %v757 = vld [vmem:[%s408 + $0x54] sm:$0xf]
      %v758 = vld [vmem:[%s408 + $0x58] sm:$0xf]
      %v759 = vld [vmem:[%s408 + $0x5c] sm:$0xf]
      %v760 = vld [vmem:[%s408 + $0x60] sm:$0xf]
      %v761 = vld [vmem:[%s408 + $0x64] sm:$0xf]
      %v762 = vld [vmem:[%s408 + $0x68] sm:$0xf]
      %v763 = vld [vmem:[%s408 + $0x6c] sm:$0xf]
      %v764 = vld [vmem:[%s408 + $0x70] sm:$0xf]
      %v765 = vld [vmem:[%s408 + $0x74] sm:$0xf]
      %v766 = vld [vmem:[%s408 + $0x78] sm:$0xf]
      %v767 = vld [vmem:[%s408 + $0x7c] sm:$0xf]
      %v768 = vunpack.c.l.bf16 %v736
      %v769 = vunpack.c.l.bf16 %v737
      %v770 = vunpack.c.l.bf16 %v738
      %v771 = vunpack.c.l.bf16 %v739
      %v772 = vunpack.c.l.bf16 %v740
      %v773 = vunpack.c.l.bf16 %v741
      %v774 = vunpack.c.l.bf16 %v742
      %v775 = vunpack.c.l.bf16 %v743
      %v776 = vunpack.c.l.bf16 %v744
      %v777 = vunpack.c.l.bf16 %v745
      %v778 = vunpack.c.l.bf16 %v746
      %v779 = vunpack.c.l.bf16 %v747
      %v780 = vunpack.c.l.bf16 %v748
      %v781 = vunpack.c.l.bf16 %v749
      %v782 = vunpack.c.l.bf16 %v750
      %v783 = vunpack.c.l.bf16 %v751
      %v784 = vunpack.c.l.bf16 %v752
      %v785 = vunpack.c.l.bf16 %v753
      %v786 = vunpack.c.l.bf16 %v754
      %v787 = vunpack.c.l.bf16 %v755
      %v788 = vunpack.c.l.bf16 %v756
      %v789 = vunpack.c.l.bf16 %v757
      %v790 = vunpack.c.l.bf16 %v758
      %v791 = vunpack.c.l.bf16 %v759
      %v792 = vunpack.c.l.bf16 %v760
      %v793 = vunpack.c.l.bf16 %v761
      %v794 = vunpack.c.l.bf16 %v762
      %v795 = vunpack.c.l.bf16 %v763
      %v796 = vunpack.c.l.bf16 %v764
      %v797 = vunpack.c.l.bf16 %v765
      %v798 = vunpack.c.l.bf16 %v766
      %v799 = vunpack.c.l.bf16 %v767
      %v800 = vrot.slane %v768, 7
      %v801 = vrot.slane %v769, 7
      %v802 = vrot.slane %v770, 7
      %v803 = vrot.slane %v771, 7
      %v804 = vrot.slane %v772, 7
      %v805 = vrot.slane %v773, 7
      %v806 = vrot.slane %v774, 7
      %v807 = vrot.slane %v775, 7
      %v808 = vrot.slane %v776, 7
      %v809 = vrot.slane %v777, 7
      %v810 = vrot.slane %v778, 7
      %v811 = vrot.slane %v779, 7
      %v812 = vrot.slane %v780, 7
      %v813 = vrot.slane %v781, 7
      %v814 = vrot.slane %v782, 7
      %v815 = vrot.slane %v783, 7
      %v816 = vrot.slane %v784, 7
      %v817 = vrot.slane %v785, 7
      %v818 = vrot.slane %v786, 7
      %v819 = vrot.slane %v787, 7
      %v820 = vrot.slane %v788, 7
      %v821 = vrot.slane %v789, 7
      %v822 = vrot.slane %v790, 7
      %v823 = vrot.slane %v791, 7
      %v824 = vrot.slane %v792, 7
      %v825 = vrot.slane %v793, 7
      %v826 = vrot.slane %v794, 7
      %v827 = vrot.slane %v795, 7
      %v828 = vrot.slane %v796, 7
      %v829 = vrot.slane %v797, 7
      %v830 = vrot.slane %v798, 7
      %v831 = vrot.slane %v799, 7
      %vm832 = vcmp.lt.s32.totalorder %v416, 1
      %v833 = vsel %vm832, %v830, %v831
      %v834 = vsel %vm832, %v829, %v830
      %v835 = vsel %vm832, %v828, %v829
      %v836 = vsel %vm832, %v827, %v828
      %v837 = vsel %vm832, %v826, %v827
      %v838 = vsel %vm832, %v825, %v826
      %v839 = vsel %vm832, %v824, %v825
      %v840 = vsel %vm832, %v823, %v824
      %v841 = vsel %vm832, %v822, %v823
      %v842 = vsel %vm832, %v821, %v822
      %v843 = vsel %vm832, %v820, %v821
      %v844 = vsel %vm832, %v819, %v820
      %v845 = vsel %vm832, %v818, %v819
      %v846 = vsel %vm832, %v817, %v818
      %v847 = vsel %vm832, %v816, %v817
      %v848 = vsel %vm832, %v815, %v816
      %v849 = vsel %vm832, %v814, %v815
      %v850 = vsel %vm832, %v813, %v814
      %v851 = vsel %vm832, %v812, %v813
      %v852 = vsel %vm832, %v811, %v812
      %v853 = vsel %vm832, %v810, %v811
      %v854 = vsel %vm832, %v809, %v810
      %v855 = vsel %vm832, %v808, %v809
      %v856 = vsel %vm832, %v807, %v808
      %v857 = vsel %vm832, %v806, %v807
      %v858 = vsel %vm832, %v805, %v806
      %v859 = vsel %vm832, %v804, %v805
      %v860 = vsel %vm832, %v803, %v804
      %v861 = vsel %vm832, %v802, %v803
      %v862 = vsel %vm832, %v801, %v802
      %v863 = vsel %vm832, %v800, %v801
      %v864 = vsel %vm832, %v831, %v800
      %v865 = vsel %vm608, 1, 0
      %v866 = vsel %vm609, 1, 0
      %v867 = vsel %vm610, 1, 0
      %v868 = vsel %vm611, 1, 0
      %v869 = vsel %vm612, 1, 0
      %v870 = vsel %vm613, 1, 0
      %v871 = vsel %vm614, 1, 0
      %v872 = vsel %vm615, 1, 0
      %v873 = vsel %vm616, 1, 0
      %v874 = vsel %vm617, 1, 0
      %v875 = vsel %vm618, 1, 0
      %v876 = vsel %vm619, 1, 0
      %v877 = vsel %vm620, 1, 0
      %v878 = vsel %vm621, 1, 0
      %v879 = vsel %vm622, 1, 0
      %v880 = vsel %vm623, 1, 0
      %v881 = vsel %vm624, 1, 0
      %v882 = vsel %vm625, 1, 0
      %v883 = vsel %vm626, 1, 0
      %v884 = vsel %vm627, 1, 0
      %v885 = vsel %vm628, 1, 0
      %v886 = vsel %vm629, 1, 0
      %v887 = vsel %vm630, 1, 0
      %v888 = vsel %vm631, 1, 0
      %v889 = vsel %vm632, 1, 0
      %v890 = vsel %vm633, 1, 0
      %v891 = vsel %vm634, 1, 0
      %v892 = vsel %vm635, 1, 0
      %v893 = vsel %vm636, 1, 0
      %v894 = vsel %vm637, 1, 0
      %v895 = vsel %vm638, 1, 0
      %v896 = vsel %vm639, 1, 0
      %897 = vset.pattern.permute.xlu0 0
      %898 = vperm.xlu0 %897, %v865
      %v899 = vpop.permute.xlu0 %898
      %900 = vset.pattern.permute.xlu0 0
      %901 = vperm.xlu0 %900, %v866
      %v902 = vpop.permute.xlu0 %901
      %903 = vset.pattern.permute.xlu0 0
      %904 = vperm.xlu0 %903, %v867
      %v905 = vpop.permute.xlu0 %904
      %906 = vset.pattern.permute.xlu0 0
      %907 = vperm.xlu0 %906, %v868
      %v908 = vpop.permute.xlu0 %907
      %909 = vset.pattern.permute.xlu0 0
      %910 = vperm.xlu0 %909, %v869
      %v911 = vpop.permute.xlu0 %910
      %912 = vset.pattern.permute.xlu0 0
      %913 = vperm.xlu0 %912, %v870
      %v914 = vpop.permute.xlu0 %913
      %915 = vset.pattern.permute.xlu0 0
      %916 = vperm.xlu0 %915, %v871
      %v917 = vpop.permute.xlu0 %916
      %918 = vset.pattern.permute.xlu0 0
      %919 = vperm.xlu0 %918, %v872
      %v920 = vpop.permute.xlu0 %919
      %921 = vset.pattern.permute.xlu0 0
      %922 = vperm.xlu0 %921, %v873
      %v923 = vpop.permute.xlu0 %922
      %924 = vset.pattern.permute.xlu0 0
      %925 = vperm.xlu0 %924, %v874
      %v926 = vpop.permute.xlu0 %925
      %927 = vset.pattern.permute.xlu0 0
      %928 = vperm.xlu0 %927, %v875
      %v929 = vpop.permute.xlu0 %928
      %930 = vset.pattern.permute.xlu0 0
      %931 = vperm.xlu0 %930, %v876
      %v932 = vpop.permute.xlu0 %931
      %933 = vset.pattern.permute.xlu0 0
      %934 = vperm.xlu0 %933, %v877
      %v935 = vpop.permute.xlu0 %934
      %936 = vset.pattern.permute.xlu0 0
      %937 = vperm.xlu0 %936, %v878
      %v938 = vpop.permute.xlu0 %937
      %939 = vset.pattern.permute.xlu0 0
      %940 = vperm.xlu0 %939, %v879
      %v941 = vpop.permute.xlu0 %940
      %942 = vset.pattern.permute.xlu0 0
      %943 = vperm.xlu0 %942, %v880
      %v944 = vpop.permute.xlu0 %943
      %945 = vset.pattern.permute.xlu0 0
      %946 = vperm.xlu0 %945, %v881
      %v947 = vpop.permute.xlu0 %946
      %948 = vset.pattern.permute.xlu0 0
      %949 = vperm.xlu0 %948, %v882
      %v950 = vpop.permute.xlu0 %949
      %951 = vset.pattern.permute.xlu0 0
      %952 = vperm.xlu0 %951, %v883
      %v953 = vpop.permute.xlu0 %952
      %954 = vset.pattern.permute.xlu0 0
      %955 = vperm.xlu0 %954, %v884
      %v956 = vpop.permute.xlu0 %955
      %957 = vset.pattern.permute.xlu0 0
      %958 = vperm.xlu0 %957, %v885
      %v959 = vpop.permute.xlu0 %958
      %960 = vset.pattern.permute.xlu0 0
      %961 = vperm.xlu0 %960, %v886
      %v962 = vpop.permute.xlu0 %961
      %963 = vset.pattern.permute.xlu0 0
      %964 = vperm.xlu0 %963, %v887
      %v965 = vpop.permute.xlu0 %964
      %966 = vset.pattern.permute.xlu0 0
      %967 = vperm.xlu0 %966, %v888
      %v968 = vpop.permute.xlu0 %967
      %969 = vset.pattern.permute.xlu0 0
      %970 = vperm.xlu0 %969, %v889
      %v971 = vpop.permute.xlu0 %970
      %972 = vset.pattern.permute.xlu0 0
      %973 = vperm.xlu0 %972, %v890
      %v974 = vpop.permute.xlu0 %973
      %975 = vset.pattern.permute.xlu0 0
      %976 = vperm.xlu0 %975, %v891
      %v977 = vpop.permute.xlu0 %976
      %978 = vset.pattern.permute.xlu0 0
      %979 = vperm.xlu0 %978, %v892
      %v980 = vpop.permute.xlu0 %979
      %981 = vset.pattern.permute.xlu0 0
      %982 = vperm.xlu0 %981, %v893
      %v983 = vpop.permute.xlu0 %982
      %984 = vset.pattern.permute.xlu0 0
      %985 = vperm.xlu0 %984, %v894
      %v986 = vpop.permute.xlu0 %985
      %987 = vset.pattern.permute.xlu0 0
      %988 = vperm.xlu0 %987, %v895
      %v989 = vpop.permute.xlu0 %988
      %990 = vset.pattern.permute.xlu0 0
      %991 = vperm.xlu0 %990, %v896
      %v992 = vpop.permute.xlu0 %991
      %vm993 = vcmp.eq.s32.totalorder %v899, 1
      %vm994 = vcmp.eq.s32.totalorder %v902, 1
      %vm995 = vcmp.eq.s32.totalorder %v905, 1
      %vm996 = vcmp.eq.s32.totalorder %v908, 1
      %vm997 = vcmp.eq.s32.totalorder %v911, 1
      %vm998 = vcmp.eq.s32.totalorder %v914, 1
      %vm999 = vcmp.eq.s32.totalorder %v917, 1
      %vm1000 = vcmp.eq.s32.totalorder %v920, 1
      %vm1001 = vcmp.eq.s32.totalorder %v923, 1
      %vm1002 = vcmp.eq.s32.totalorder %v926, 1
      %vm1003 = vcmp.eq.s32.totalorder %v929, 1
      %vm1004 = vcmp.eq.s32.totalorder %v932, 1
      %vm1005 = vcmp.eq.s32.totalorder %v935, 1
      %vm1006 = vcmp.eq.s32.totalorder %v938, 1
      %vm1007 = vcmp.eq.s32.totalorder %v941, 1
      %vm1008 = vcmp.eq.s32.totalorder %v944, 1
      %vm1009 = vcmp.eq.s32.totalorder %v947, 1
      %vm1010 = vcmp.eq.s32.totalorder %v950, 1
      %vm1011 = vcmp.eq.s32.totalorder %v953, 1
      %vm1012 = vcmp.eq.s32.totalorder %v956, 1
      %vm1013 = vcmp.eq.s32.totalorder %v959, 1
      %vm1014 = vcmp.eq.s32.totalorder %v962, 1
      %vm1015 = vcmp.eq.s32.totalorder %v965, 1
      %vm1016 = vcmp.eq.s32.totalorder %v968, 1
      %vm1017 = vcmp.eq.s32.totalorder %v971, 1
      %vm1018 = vcmp.eq.s32.totalorder %v974, 1
      %vm1019 = vcmp.eq.s32.totalorder %v977, 1
      %vm1020 = vcmp.eq.s32.totalorder %v980, 1
      %vm1021 = vcmp.eq.s32.totalorder %v983, 1
      %vm1022 = vcmp.eq.s32.totalorder %v986, 1
      %vm1023 = vcmp.eq.s32.totalorder %v989, 1
      %vm1024 = vcmp.eq.s32.totalorder %v992, 1
      %v1025 = vsel %vm993, %v834, 0.0
      %v1026 = vsel %vm994, %v833, 0.0
      %v1027 = vsel %vm995, %v864, 0.0
      %v1028 = vsel %vm996, %v863, 0.0
      %v1029 = vsel %vm997, %v862, 0.0
      %v1030 = vsel %vm998, %v861, 0.0
      %v1031 = vsel %vm999, %v860, 0.0
      %v1032 = vsel %vm1000, %v859, 0.0
      %v1033 = vsel %vm1001, %v858, 0.0
      %v1034 = vsel %vm1002, %v857, 0.0
      %v1035 = vsel %vm1003, %v856, 0.0
      %v1036 = vsel %vm1004, %v855, 0.0
      %v1037 = vsel %vm1005, %v854, 0.0
      %v1038 = vsel %vm1006, %v853, 0.0
      %v1039 = vsel %vm1007, %v852, 0.0
      %v1040 = vsel %vm1008, %v851, 0.0
      %v1041 = vsel %vm1009, %v850, 0.0
      %v1042 = vsel %vm1010, %v849, 0.0
      %v1043 = vsel %vm1011, %v848, 0.0
      %v1044 = vsel %vm1012, %v847, 0.0
      %v1045 = vsel %vm1013, %v846, 0.0
      %v1046 = vsel %vm1014, %v845, 0.0
      %v1047 = vsel %vm1015, %v844, 0.0
      %v1048 = vsel %vm1016, %v843, 0.0
      %v1049 = vsel %vm1017, %v842, 0.0
      %v1050 = vsel %vm1018, %v841, 0.0
      %v1051 = vsel %vm1019, %v840, 0.0
      %v1052 = vsel %vm1020, %v839, 0.0
      %v1053 = vsel %vm1021, %v838, 0.0
      %v1054 = vsel %vm1022, %v837, 0.0
      %v1055 = vsel %vm1023, %v836, 0.0
      %v1056 = vsel %vm1024, %v835, 0.0
      %v1057 = vsel %vm480, 1, 0
      %v1058 = vsel %vm481, 1, 0
      %v1059 = vsel %vm482, 1, 0
      %v1060 = vsel %vm483, 1, 0
      %v1061 = vsel %vm484, 1, 0
      %v1062 = vsel %vm485, 1, 0
      %v1063 = vsel %vm486, 1, 0
      %v1064 = vsel %vm487, 1, 0
      %v1065 = vsel %vm488, 1, 0
      %v1066 = vsel %vm489, 1, 0
      %v1067 = vsel %vm490, 1, 0
      %v1068 = vsel %vm491, 1, 0
      %v1069 = vsel %vm492, 1, 0
      %v1070 = vsel %vm493, 1, 0
      %v1071 = vsel %vm494, 1, 0
      %v1072 = vsel %vm495, 1, 0
      %v1073 = vsel %vm496, 1, 0
      %v1074 = vsel %vm497, 1, 0
      %v1075 = vsel %vm498, 1, 0
      %v1076 = vsel %vm499, 1, 0
      %v1077 = vsel %vm500, 1, 0
      %v1078 = vsel %vm501, 1, 0
      %v1079 = vsel %vm502, 1, 0
      %v1080 = vsel %vm503, 1, 0
      %v1081 = vsel %vm504, 1, 0
      %v1082 = vsel %vm505, 1, 0
      %v1083 = vsel %vm506, 1, 0
      %v1084 = vsel %vm507, 1, 0
      %v1085 = vsel %vm508, 1, 0
      %v1086 = vsel %vm509, 1, 0
      %v1087 = vsel %vm510, 1, 0
      %v1088 = vsel %vm511, 1, 0
      %vm1089 = vcmp.eq.s32.totalorder %v1057, 1
      %vm1090 = vcmp.eq.s32.totalorder %v1058, 1
      %vm1091 = vcmp.eq.s32.totalorder %v1059, 1
      %vm1092 = vcmp.eq.s32.totalorder %v1060, 1
      %vm1093 = vcmp.eq.s32.totalorder %v1061, 1
      %vm1094 = vcmp.eq.s32.totalorder %v1062, 1
      %vm1095 = vcmp.eq.s32.totalorder %v1063, 1
      %vm1096 = vcmp.eq.s32.totalorder %v1064, 1
      %vm1097 = vcmp.eq.s32.totalorder %v1065, 1
      %vm1098 = vcmp.eq.s32.totalorder %v1066, 1
      %vm1099 = vcmp.eq.s32.totalorder %v1067, 1
      %vm1100 = vcmp.eq.s32.totalorder %v1068, 1
      %vm1101 = vcmp.eq.s32.totalorder %v1069, 1
      %vm1102 = vcmp.eq.s32.totalorder %v1070, 1
      %vm1103 = vcmp.eq.s32.totalorder %v1071, 1
      %vm1104 = vcmp.eq.s32.totalorder %v1072, 1
      %vm1105 = vcmp.eq.s32.totalorder %v1073, 1
      %vm1106 = vcmp.eq.s32.totalorder %v1074, 1
      %vm1107 = vcmp.eq.s32.totalorder %v1075, 1
      %vm1108 = vcmp.eq.s32.totalorder %v1076, 1
      %vm1109 = vcmp.eq.s32.totalorder %v1077, 1
      %vm1110 = vcmp.eq.s32.totalorder %v1078, 1
      %vm1111 = vcmp.eq.s32.totalorder %v1079, 1
      %vm1112 = vcmp.eq.s32.totalorder %v1080, 1
      %vm1113 = vcmp.eq.s32.totalorder %v1081, 1
      %vm1114 = vcmp.eq.s32.totalorder %v1082, 1
      %vm1115 = vcmp.eq.s32.totalorder %v1083, 1
      %vm1116 = vcmp.eq.s32.totalorder %v1084, 1
      %vm1117 = vcmp.eq.s32.totalorder %v1085, 1
      %vm1118 = vcmp.eq.s32.totalorder %v1086, 1
      %vm1119 = vcmp.eq.s32.totalorder %v1087, 1
      %vm1120 = vcmp.eq.s32.totalorder %v1088, 1
      %v1121 = vsel %vm1089, %v798, 0.0
      %v1122 = vsel %vm1090, %v799, 0.0
      %v1123 = vsel %vm1091, %v768, 0.0
      %v1124 = vsel %vm1092, %v769, 0.0
      %v1125 = vsel %vm1093, %v770, 0.0
      %v1126 = vsel %vm1094, %v771, 0.0
      %v1127 = vsel %vm1095, %v772, 0.0
      %v1128 = vsel %vm1096, %v773, 0.0
      %v1129 = vsel %vm1097, %v774, 0.0
      %v1130 = vsel %vm1098, %v775, 0.0
      %v1131 = vsel %vm1099, %v776, 0.0
      %v1132 = vsel %vm1100, %v777, 0.0
      %v1133 = vsel %vm1101, %v778, 0.0
      %v1134 = vsel %vm1102, %v779, 0.0
      %v1135 = vsel %vm1103, %v780, 0.0
      %v1136 = vsel %vm1104, %v781, 0.0
      %v1137 = vsel %vm1105, %v782, 0.0
      %v1138 = vsel %vm1106, %v783, 0.0
      %v1139 = vsel %vm1107, %v784, 0.0
      %v1140 = vsel %vm1108, %v785, 0.0
      %v1141 = vsel %vm1109, %v786, 0.0
      %v1142 = vsel %vm1110, %v787, 0.0
      %v1143 = vsel %vm1111, %v788, 0.0
      %v1144 = vsel %vm1112, %v789, 0.0
      %v1145 = vsel %vm1113, %v790, 0.0
      %v1146 = vsel %vm1114, %v791, 0.0
      %v1147 = vsel %vm1115, %v792, 0.0
      %v1148 = vsel %vm1116, %v793, 0.0
      %v1149 = vsel %vm1117, %v794, 0.0
      %v1150 = vsel %vm1118, %v795, 0.0
      %v1151 = vsel %vm1119, %v796, 0.0
      %v1152 = vsel %vm1120, %v797, 0.0
      %v1153 = vrot.slane %v768, 1
      %v1154 = vrot.slane %v769, 1
      %v1155 = vrot.slane %v770, 1
      %v1156 = vrot.slane %v771, 1
      %v1157 = vrot.slane %v772, 1
      %v1158 = vrot.slane %v773, 1
      %v1159 = vrot.slane %v774, 1
      %v1160 = vrot.slane %v775, 1
      %v1161 = vrot.slane %v776, 1
      %v1162 = vrot.slane %v777, 1
      %v1163 = vrot.slane %v778, 1
      %v1164 = vrot.slane %v779, 1
      %v1165 = vrot.slane %v780, 1
      %v1166 = vrot.slane %v781, 1
      %v1167 = vrot.slane %v782, 1
      %v1168 = vrot.slane %v783, 1
      %v1169 = vrot.slane %v784, 1
      %v1170 = vrot.slane %v785, 1
      %v1171 = vrot.slane %v786, 1
      %v1172 = vrot.slane %v787, 1
      %v1173 = vrot.slane %v788, 1
      %v1174 = vrot.slane %v789, 1
      %v1175 = vrot.slane %v790, 1
      %v1176 = vrot.slane %v791, 1
      %v1177 = vrot.slane %v792, 1
      %v1178 = vrot.slane %v793, 1
      %v1179 = vrot.slane %v794, 1
      %v1180 = vrot.slane %v795, 1
      %v1181 = vrot.slane %v796, 1
      %v1182 = vrot.slane %v797, 1
      %v1183 = vrot.slane %v798, 1
      %v1184 = vrot.slane %v799, 1
      %vm1185 = vcmp.lt.s32.totalorder %v416, 7
      %v1186 = vsel %vm1185, %v1183, %v1184
      %v1187 = vsel %vm1185, %v1182, %v1183
      %v1188 = vsel %vm1185, %v1181, %v1182
      %v1189 = vsel %vm1185, %v1180, %v1181
      %v1190 = vsel %vm1185, %v1179, %v1180
      %v1191 = vsel %vm1185, %v1178, %v1179
      %v1192 = vsel %vm1185, %v1177, %v1178
      %v1193 = vsel %vm1185, %v1176, %v1177
      %v1194 = vsel %vm1185, %v1175, %v1176
      %v1195 = vsel %vm1185, %v1174, %v1175
      %v1196 = vsel %vm1185, %v1173, %v1174
      %v1197 = vsel %vm1185, %v1172, %v1173
      %v1198 = vsel %vm1185, %v1171, %v1172
      %v1199 = vsel %vm1185, %v1170, %v1171
      %v1200 = vsel %vm1185, %v1169, %v1170
      %v1201 = vsel %vm1185, %v1168, %v1169
      %v1202 = vsel %vm1185, %v1167, %v1168
      %v1203 = vsel %vm1185, %v1166, %v1167
      %v1204 = vsel %vm1185, %v1165, %v1166
      %v1205 = vsel %vm1185, %v1164, %v1165
      %v1206 = vsel %vm1185, %v1163, %v1164
      %v1207 = vsel %vm1185, %v1162, %v1163
      %v1208 = vsel %vm1185, %v1161, %v1162
      %v1209 = vsel %vm1185, %v1160, %v1161
      %v1210 = vsel %vm1185, %v1159, %v1160
      %v1211 = vsel %vm1185, %v1158, %v1159
      %v1212 = vsel %vm1185, %v1157, %v1158
      %v1213 = vsel %vm1185, %v1156, %v1157
      %v1214 = vsel %vm1185, %v1155, %v1156
      %v1215 = vsel %vm1185, %v1154, %v1155
      %v1216 = vsel %vm1185, %v1153, %v1154
      %v1217 = vsel %vm1185, %v1184, %v1153
      %v1218 = vsel %vm640, 1, 0
      %v1219 = vsel %vm641, 1, 0
      %v1220 = vsel %vm642, 1, 0
      %v1221 = vsel %vm643, 1, 0
      %v1222 = vsel %vm644, 1, 0
      %v1223 = vsel %vm645, 1, 0
      %v1224 = vsel %vm646, 1, 0
      %v1225 = vsel %vm647, 1, 0
      %v1226 = vsel %vm648, 1, 0
      %v1227 = vsel %vm649, 1, 0
      %v1228 = vsel %vm650, 1, 0
      %v1229 = vsel %vm651, 1, 0
      %v1230 = vsel %vm652, 1, 0
      %v1231 = vsel %vm653, 1, 0
      %v1232 = vsel %vm654, 1, 0
      %v1233 = vsel %vm655, 1, 0
      %v1234 = vsel %vm656, 1, 0
      %v1235 = vsel %vm657, 1, 0
      %v1236 = vsel %vm658, 1, 0
      %v1237 = vsel %vm659, 1, 0
      %v1238 = vsel %vm660, 1, 0
      %v1239 = vsel %vm661, 1, 0
      %v1240 = vsel %vm662, 1, 0
      %v1241 = vsel %vm663, 1, 0
      %v1242 = vsel %vm664, 1, 0
      %v1243 = vsel %vm665, 1, 0
      %v1244 = vsel %vm666, 1, 0
      %v1245 = vsel %vm667, 1, 0
      %v1246 = vsel %vm668, 1, 0
      %v1247 = vsel %vm669, 1, 0
      %v1248 = vsel %vm670, 1, 0
      %v1249 = vsel %vm671, 1, 0
      %1250 = vset.pattern.permute.xlu0 0
      %1251 = vperm.xlu0 %1250, %v1218
      %v1252 = vpop.permute.xlu0 %1251
      %1253 = vset.pattern.permute.xlu0 0
      %1254 = vperm.xlu0 %1253, %v1219
      %v1255 = vpop.permute.xlu0 %1254
      %1256 = vset.pattern.permute.xlu0 0
      %1257 = vperm.xlu0 %1256, %v1220
      %v1258 = vpop.permute.xlu0 %1257
      %1259 = vset.pattern.permute.xlu0 0
      %1260 = vperm.xlu0 %1259, %v1221
      %v1261 = vpop.permute.xlu0 %1260
      %1262 = vset.pattern.permute.xlu0 0
      %1263 = vperm.xlu0 %1262, %v1222
      %v1264 = vpop.permute.xlu0 %1263
      %1265 = vset.pattern.permute.xlu0 0
      %1266 = vperm.xlu0 %1265, %v1223
      %v1267 = vpop.permute.xlu0 %1266
      %1268 = vset.pattern.permute.xlu0 0
      %1269 = vperm.xlu0 %1268, %v1224
      %v1270 = vpop.permute.xlu0 %1269
      %1271 = vset.pattern.permute.xlu0 0
      %1272 = vperm.xlu0 %1271, %v1225
      %v1273 = vpop.permute.xlu0 %1272
      %1274 = vset.pattern.permute.xlu0 0
      %1275 = vperm.xlu0 %1274, %v1226
      %v1276 = vpop.permute.xlu0 %1275
      %1277 = vset.pattern.permute.xlu0 0
      %1278 = vperm.xlu0 %1277, %v1227
      %v1279 = vpop.permute.xlu0 %1278
      %1280 = vset.pattern.permute.xlu0 0
      %1281 = vperm.xlu0 %1280, %v1228
      %v1282 = vpop.permute.xlu0 %1281
      %1283 = vset.pattern.permute.xlu0 0
      %1284 = vperm.xlu0 %1283, %v1229
      %v1285 = vpop.permute.xlu0 %1284
      %1286 = vset.pattern.permute.xlu0 0
      %1287 = vperm.xlu0 %1286, %v1230
      %v1288 = vpop.permute.xlu0 %1287
      %1289 = vset.pattern.permute.xlu0 0
      %1290 = vperm.xlu0 %1289, %v1231
      %v1291 = vpop.permute.xlu0 %1290
      %1292 = vset.pattern.permute.xlu0 0
      %1293 = vperm.xlu0 %1292, %v1232
      %v1294 = vpop.permute.xlu0 %1293
      %1295 = vset.pattern.permute.xlu0 0
      %1296 = vperm.xlu0 %1295, %v1233
      %v1297 = vpop.permute.xlu0 %1296
      %1298 = vset.pattern.permute.xlu0 0
      %1299 = vperm.xlu0 %1298, %v1234
      %v1300 = vpop.permute.xlu0 %1299
      %1301 = vset.pattern.permute.xlu0 0
      %1302 = vperm.xlu0 %1301, %v1235
      %v1303 = vpop.permute.xlu0 %1302
      %1304 = vset.pattern.permute.xlu0 0
      %1305 = vperm.xlu0 %1304, %v1236
      %v1306 = vpop.permute.xlu0 %1305
      %1307 = vset.pattern.permute.xlu0 0
      %1308 = vperm.xlu0 %1307, %v1237
      %v1309 = vpop.permute.xlu0 %1308
      %1310 = vset.pattern.permute.xlu0 0
      %1311 = vperm.xlu0 %1310, %v1238
      %v1312 = vpop.permute.xlu0 %1311
      %1313 = vset.pattern.permute.xlu0 0
      %1314 = vperm.xlu0 %1313, %v1239
      %v1315 = vpop.permute.xlu0 %1314
      %1316 = vset.pattern.permute.xlu0 0
      %1317 = vperm.xlu0 %1316, %v1240
      %v1318 = vpop.permute.xlu0 %1317
      %1319 = vset.pattern.permute.xlu0 0
      %1320 = vperm.xlu0 %1319, %v1241
      %v1321 = vpop.permute.xlu0 %1320
      %1322 = vset.pattern.permute.xlu0 0
      %1323 = vperm.xlu0 %1322, %v1242
      %v1324 = vpop.permute.xlu0 %1323
      %1325 = vset.pattern.permute.xlu0 0
      %1326 = vperm.xlu0 %1325, %v1243
      %v1327 = vpop.permute.xlu0 %1326
      %1328 = vset.pattern.permute.xlu0 0
      %1329 = vperm.xlu0 %1328, %v1244
      %v1330 = vpop.permute.xlu0 %1329
      %1331 = vset.pattern.permute.xlu0 0
      %1332 = vperm.xlu0 %1331, %v1245
      %v1333 = vpop.permute.xlu0 %1332
      %1334 = vset.pattern.permute.xlu0 0
      %1335 = vperm.xlu0 %1334, %v1246
      %v1336 = vpop.permute.xlu0 %1335
      %1337 = vset.pattern.permute.xlu0 0
      %1338 = vperm.xlu0 %1337, %v1247
      %v1339 = vpop.permute.xlu0 %1338
      %1340 = vset.pattern.permute.xlu0 0
      %1341 = vperm.xlu0 %1340, %v1248
      %v1342 = vpop.permute.xlu0 %1341
      %1343 = vset.pattern.permute.xlu0 0
      %1344 = vperm.xlu0 %1343, %v1249
      %v1345 = vpop.permute.xlu0 %1344
      %vm1346 = vcmp.eq.s32.totalorder %v1252, 1
      %vm1347 = vcmp.eq.s32.totalorder %v1255, 1
      %vm1348 = vcmp.eq.s32.totalorder %v1258, 1
      %vm1349 = vcmp.eq.s32.totalorder %v1261, 1
      %vm1350 = vcmp.eq.s32.totalorder %v1264, 1
      %vm1351 = vcmp.eq.s32.totalorder %v1267, 1
      %vm1352 = vcmp.eq.s32.totalorder %v1270, 1
      %vm1353 = vcmp.eq.s32.totalorder %v1273, 1
      %vm1354 = vcmp.eq.s32.totalorder %v1276, 1
      %vm1355 = vcmp.eq.s32.totalorder %v1279, 1
      %vm1356 = vcmp.eq.s32.totalorder %v1282, 1
      %vm1357 = vcmp.eq.s32.totalorder %v1285, 1
      %vm1358 = vcmp.eq.s32.totalorder %v1288, 1
      %vm1359 = vcmp.eq.s32.totalorder %v1291, 1
      %vm1360 = vcmp.eq.s32.totalorder %v1294, 1
      %vm1361 = vcmp.eq.s32.totalorder %v1297, 1
      %vm1362 = vcmp.eq.s32.totalorder %v1300, 1
      %vm1363 = vcmp.eq.s32.totalorder %v1303, 1
      %vm1364 = vcmp.eq.s32.totalorder %v1306, 1
      %vm1365 = vcmp.eq.s32.totalorder %v1309, 1
      %vm1366 = vcmp.eq.s32.totalorder %v1312, 1
      %vm1367 = vcmp.eq.s32.totalorder %v1315, 1
      %vm1368 = vcmp.eq.s32.totalorder %v1318, 1
      %vm1369 = vcmp.eq.s32.totalorder %v1321, 1
      %vm1370 = vcmp.eq.s32.totalorder %v1324, 1
      %vm1371 = vcmp.eq.s32.totalorder %v1327, 1
      %vm1372 = vcmp.eq.s32.totalorder %v1330, 1
      %vm1373 = vcmp.eq.s32.totalorder %v1333, 1
      %vm1374 = vcmp.eq.s32.totalorder %v1336, 1
      %vm1375 = vcmp.eq.s32.totalorder %v1339, 1
      %vm1376 = vcmp.eq.s32.totalorder %v1342, 1
      %vm1377 = vcmp.eq.s32.totalorder %v1345, 1
      %v1378 = vsel %vm1346, %v1186, 0.0
      %v1379 = vsel %vm1347, %v1217, 0.0
      %v1380 = vsel %vm1348, %v1216, 0.0
      %v1381 = vsel %vm1349, %v1215, 0.0
      %v1382 = vsel %vm1350, %v1214, 0.0
      %v1383 = vsel %vm1351, %v1213, 0.0
      %v1384 = vsel %vm1352, %v1212, 0.0
      %v1385 = vsel %vm1353, %v1211, 0.0
      %v1386 = vsel %vm1354, %v1210, 0.0
      %v1387 = vsel %vm1355, %v1209, 0.0
      %v1388 = vsel %vm1356, %v1208, 0.0
      %v1389 = vsel %vm1357, %v1207, 0.0
      %v1390 = vsel %vm1358, %v1206, 0.0
      %v1391 = vsel %vm1359, %v1205, 0.0
      %v1392 = vsel %vm1360, %v1204, 0.0
      %v1393 = vsel %vm1361, %v1203, 0.0
      %v1394 = vsel %vm1362, %v1202, 0.0
      %v1395 = vsel %vm1363, %v1201, 0.0
      %v1396 = vsel %vm1364, %v1200, 0.0
      %v1397 = vsel %vm1365, %v1199, 0.0
      %v1398 = vsel %vm1366, %v1198, 0.0
      %v1399 = vsel %vm1367, %v1197, 0.0
      %v1400 = vsel %vm1368, %v1196, 0.0
      %v1401 = vsel %vm1369, %v1195, 0.0
      %v1402 = vsel %vm1370, %v1194, 0.0
      %v1403 = vsel %vm1371, %v1193, 0.0
      %v1404 = vsel %vm1372, %v1192, 0.0
      %v1405 = vsel %vm1373, %v1191, 0.0
      %v1406 = vsel %vm1374, %v1190, 0.0
      %v1407 = vsel %vm1375, %v1189, 0.0
      %v1408 = vsel %vm1376, %v1188, 0.0
      %v1409 = vsel %vm1377, %v1187, 0.0
      %v1410 = vsel %vm544, 1, 0
      %v1411 = vsel %vm545, 1, 0
      %v1412 = vsel %vm546, 1, 0
      %v1413 = vsel %vm547, 1, 0
      %v1414 = vsel %vm548, 1, 0
      %v1415 = vsel %vm549, 1, 0
      %v1416 = vsel %vm550, 1, 0
      %v1417 = vsel %vm551, 1, 0
      %v1418 = vsel %vm552, 1, 0
      %v1419 = vsel %vm553, 1, 0
      %v1420 = vsel %vm554, 1, 0
      %v1421 = vsel %vm555, 1, 0
      %v1422 = vsel %vm556, 1, 0
      %v1423 = vsel %vm557, 1, 0
      %v1424 = vsel %vm558, 1, 0
      %v1425 = vsel %vm559, 1, 0
      %v1426 = vsel %vm560, 1, 0
      %v1427 = vsel %vm561, 1, 0
      %v1428 = vsel %vm562, 1, 0
      %v1429 = vsel %vm563, 1, 0
      %v1430 = vsel %vm564, 1, 0
      %v1431 = vsel %vm565, 1, 0
      %v1432 = vsel %vm566, 1, 0
      %v1433 = vsel %vm567, 1, 0
      %v1434 = vsel %vm568, 1, 0
      %v1435 = vsel %vm569, 1, 0
      %v1436 = vsel %vm570, 1, 0
      %v1437 = vsel %vm571, 1, 0
      %v1438 = vsel %vm572, 1, 0
      %v1439 = vsel %vm573, 1, 0
      %v1440 = vsel %vm574, 1, 0
      %v1441 = vsel %vm575, 1, 0
      %1442 = vset.pattern.permute.xlu0 0
      %1443 = vperm.xlu0 %1442, %v1410
      %v1444 = vpop.permute.xlu0 %1443
      %1445 = vset.pattern.permute.xlu0 0
      %1446 = vperm.xlu0 %1445, %v1411
      %v1447 = vpop.permute.xlu0 %1446
      %1448 = vset.pattern.permute.xlu0 0
      %1449 = vperm.xlu0 %1448, %v1412
      %v1450 = vpop.permute.xlu0 %1449
      %1451 = vset.pattern.permute.xlu0 0
      %1452 = vperm.xlu0 %1451, %v1413
      %v1453 = vpop.permute.xlu0 %1452
      %1454 = vset.pattern.permute.xlu0 0
      %1455 = vperm.xlu0 %1454, %v1414
      %v1456 = vpop.permute.xlu0 %1455
      %1457 = vset.pattern.permute.xlu0 0
      %1458 = vperm.xlu0 %1457, %v1415
      %v1459 = vpop.permute.xlu0 %1458
      %1460 = vset.pattern.permute.xlu0 0
      %1461 = vperm.xlu0 %1460, %v1416
      %v1462 = vpop.permute.xlu0 %1461
      %1463 = vset.pattern.permute.xlu0 0
      %1464 = vperm.xlu0 %1463, %v1417
      %v1465 = vpop.permute.xlu0 %1464
      %1466 = vset.pattern.permute.xlu0 0
      %1467 = vperm.xlu0 %1466, %v1418
      %v1468 = vpop.permute.xlu0 %1467
      %1469 = vset.pattern.permute.xlu0 0
      %1470 = vperm.xlu0 %1469, %v1419
      %v1471 = vpop.permute.xlu0 %1470
      %1472 = vset.pattern.permute.xlu0 0
      %1473 = vperm.xlu0 %1472, %v1420
      %v1474 = vpop.permute.xlu0 %1473
      %1475 = vset.pattern.permute.xlu0 0
      %1476 = vperm.xlu0 %1475, %v1421
      %v1477 = vpop.permute.xlu0 %1476
      %1478 = vset.pattern.permute.xlu0 0
      %1479 = vperm.xlu0 %1478, %v1422
      %v1480 = vpop.permute.xlu0 %1479
      %1481 = vset.pattern.permute.xlu0 0
      %1482 = vperm.xlu0 %1481, %v1423
      %v1483 = vpop.permute.xlu0 %1482
      %1484 = vset.pattern.permute.xlu0 0
      %1485 = vperm.xlu0 %1484, %v1424
      %v1486 = vpop.permute.xlu0 %1485
      %1487 = vset.pattern.permute.xlu0 0
      %1488 = vperm.xlu0 %1487, %v1425
      %v1489 = vpop.permute.xlu0 %1488
      %1490 = vset.pattern.permute.xlu0 0
      %1491 = vperm.xlu0 %1490, %v1426
      %v1492 = vpop.permute.xlu0 %1491
      %1493 = vset.pattern.permute.xlu0 0
      %1494 = vperm.xlu0 %1493, %v1427
      %v1495 = vpop.permute.xlu0 %1494
      %1496 = vset.pattern.permute.xlu0 0
      %1497 = vperm.xlu0 %1496, %v1428
      %v1498 = vpop.permute.xlu0 %1497
      %1499 = vset.pattern.permute.xlu0 0
      %1500 = vperm.xlu0 %1499, %v1429
      %v1501 = vpop.permute.xlu0 %1500
      %1502 = vset.pattern.permute.xlu0 0
      %1503 = vperm.xlu0 %1502, %v1430
      %v1504 = vpop.permute.xlu0 %1503
      %1505 = vset.pattern.permute.xlu0 0
      %1506 = vperm.xlu0 %1505, %v1431
      %v1507 = vpop.permute.xlu0 %1506
      %1508 = vset.pattern.permute.xlu0 0
      %1509 = vperm.xlu0 %1508, %v1432
      %v1510 = vpop.permute.xlu0 %1509
      %1511 = vset.pattern.permute.xlu0 0
      %1512 = vperm.xlu0 %1511, %v1433
      %v1513 = vpop.permute.xlu0 %1512
      %1514 = vset.pattern.permute.xlu0 0
      %1515 = vperm.xlu0 %1514, %v1434
      %v1516 = vpop.permute.xlu0 %1515
      %1517 = vset.pattern.permute.xlu0 0
      %1518 = vperm.xlu0 %1517, %v1435
      %v1519 = vpop.permute.xlu0 %1518
      %1520 = vset.pattern.permute.xlu0 0
      %1521 = vperm.xlu0 %1520, %v1436
      %v1522 = vpop.permute.xlu0 %1521
      %1523 = vset.pattern.permute.xlu0 0
      %1524 = vperm.xlu0 %1523, %v1437
      %v1525 = vpop.permute.xlu0 %1524
      %1526 = vset.pattern.permute.xlu0 0
      %1527 = vperm.xlu0 %1526, %v1438
      %v1528 = vpop.permute.xlu0 %1527
      %1529 = vset.pattern.permute.xlu0 0
      %1530 = vperm.xlu0 %1529, %v1439
      %v1531 = vpop.permute.xlu0 %1530
      %1532 = vset.pattern.permute.xlu0 0
      %1533 = vperm.xlu0 %1532, %v1440
      %v1534 = vpop.permute.xlu0 %1533
      %1535 = vset.pattern.permute.xlu0 0
      %1536 = vperm.xlu0 %1535, %v1441
      %v1537 = vpop.permute.xlu0 %1536
      %vm1538 = vcmp.eq.s32.totalorder %v1444, 1
      %vm1539 = vcmp.eq.s32.totalorder %v1447, 1
      %vm1540 = vcmp.eq.s32.totalorder %v1450, 1
      %vm1541 = vcmp.eq.s32.totalorder %v1453, 1
      %vm1542 = vcmp.eq.s32.totalorder %v1456, 1
      %vm1543 = vcmp.eq.s32.totalorder %v1459, 1
      %vm1544 = vcmp.eq.s32.totalorder %v1462, 1
      %vm1545 = vcmp.eq.s32.totalorder %v1465, 1
      %vm1546 = vcmp.eq.s32.totalorder %v1468, 1
      %vm1547 = vcmp.eq.s32.totalorder %v1471, 1
      %vm1548 = vcmp.eq.s32.totalorder %v1474, 1
      %vm1549 = vcmp.eq.s32.totalorder %v1477, 1
      %vm1550 = vcmp.eq.s32.totalorder %v1480, 1
      %vm1551 = vcmp.eq.s32.totalorder %v1483, 1
      %vm1552 = vcmp.eq.s32.totalorder %v1486, 1
      %vm1553 = vcmp.eq.s32.totalorder %v1489, 1
      %vm1554 = vcmp.eq.s32.totalorder %v1492, 1
      %vm1555 = vcmp.eq.s32.totalorder %v1495, 1
      %vm1556 = vcmp.eq.s32.totalorder %v1498, 1
      %vm1557 = vcmp.eq.s32.totalorder %v1501, 1
      %vm1558 = vcmp.eq.s32.totalorder %v1504, 1
      %vm1559 = vcmp.eq.s32.totalorder %v1507, 1
      %vm1560 = vcmp.eq.s32.totalorder %v1510, 1
      %vm1561 = vcmp.eq.s32.totalorder %v1513, 1
      %vm1562 = vcmp.eq.s32.totalorder %v1516, 1
      %vm1563 = vcmp.eq.s32.totalorder %v1519, 1
      %vm1564 = vcmp.eq.s32.totalorder %v1522, 1
      %vm1565 = vcmp.eq.s32.totalorder %v1525, 1
      %vm1566 = vcmp.eq.s32.totalorder %v1528, 1
      %vm1567 = vcmp.eq.s32.totalorder %v1531, 1
      %vm1568 = vcmp.eq.s32.totalorder %v1534, 1
      %vm1569 = vcmp.eq.s32.totalorder %v1537, 1
      %v1570 = vsel %vm1538, %v864, 0.0
      %v1571 = vsel %vm1539, %v863, 0.0
      %v1572 = vsel %vm1540, %v862, 0.0
      %v1573 = vsel %vm1541, %v861, 0.0
      %v1574 = vsel %vm1542, %v860, 0.0
      %v1575 = vsel %vm1543, %v859, 0.0
      %v1576 = vsel %vm1544, %v858, 0.0
      %v1577 = vsel %vm1545, %v857, 0.0
      %v1578 = vsel %vm1546, %v856, 0.0
      %v1579 = vsel %vm1547, %v855, 0.0
      %v1580 = vsel %vm1548, %v854, 0.0
      %v1581 = vsel %vm1549, %v853, 0.0
      %v1582 = vsel %vm1550, %v852, 0.0
      %v1583 = vsel %vm1551, %v851, 0.0
      %v1584 = vsel %vm1552, %v850, 0.0
      %v1585 = vsel %vm1553, %v849, 0.0
      %v1586 = vsel %vm1554, %v848, 0.0
      %v1587 = vsel %vm1555, %v847, 0.0
      %v1588 = vsel %vm1556, %v846, 0.0
      %v1589 = vsel %vm1557, %v845, 0.0
      %v1590 = vsel %vm1558, %v844, 0.0
      %v1591 = vsel %vm1559, %v843, 0.0
      %v1592 = vsel %vm1560, %v842, 0.0
      %v1593 = vsel %vm1561, %v841, 0.0
      %v1594 = vsel %vm1562, %v840, 0.0
      %v1595 = vsel %vm1563, %v839, 0.0
      %v1596 = vsel %vm1564, %v838, 0.0
      %v1597 = vsel %vm1565, %v837, 0.0
      %v1598 = vsel %vm1566, %v836, 0.0
      %v1599 = vsel %vm1567, %v835, 0.0
      %v1600 = vsel %vm1568, %v834, 0.0
      %v1601 = vsel %vm1569, %v833, 0.0
      %v1602 = vsel %vm576, 1, 0
      %v1603 = vsel %vm577, 1, 0
      %v1604 = vsel %vm578, 1, 0
      %v1605 = vsel %vm579, 1, 0
      %v1606 = vsel %vm580, 1, 0
      %v1607 = vsel %vm581, 1, 0
      %v1608 = vsel %vm582, 1, 0
      %v1609 = vsel %vm583, 1, 0
      %v1610 = vsel %vm584, 1, 0
      %v1611 = vsel %vm585, 1, 0
      %v1612 = vsel %vm586, 1, 0
      %v1613 = vsel %vm587, 1, 0
      %v1614 = vsel %vm588, 1, 0
      %v1615 = vsel %vm589, 1, 0
      %v1616 = vsel %vm590, 1, 0
      %v1617 = vsel %vm591, 1, 0
      %v1618 = vsel %vm592, 1, 0
      %v1619 = vsel %vm593, 1, 0
      %v1620 = vsel %vm594, 1, 0
      %v1621 = vsel %vm595, 1, 0
      %v1622 = vsel %vm596, 1, 0
      %v1623 = vsel %vm597, 1, 0
      %v1624 = vsel %vm598, 1, 0
      %v1625 = vsel %vm599, 1, 0
      %v1626 = vsel %vm600, 1, 0
      %v1627 = vsel %vm601, 1, 0
      %v1628 = vsel %vm602, 1, 0
      %v1629 = vsel %vm603, 1, 0
      %v1630 = vsel %vm604, 1, 0
      %v1631 = vsel %vm605, 1, 0
      %v1632 = vsel %vm606, 1, 0
      %v1633 = vsel %vm607, 1, 0
      %1634 = vset.pattern.permute.xlu0 0
      %1635 = vperm.xlu0 %1634, %v1602
      %v1636 = vpop.permute.xlu0 %1635
      %1637 = vset.pattern.permute.xlu0 0
      %1638 = vperm.xlu0 %1637, %v1603
      %v1639 = vpop.permute.xlu0 %1638
      %1640 = vset.pattern.permute.xlu0 0
      %1641 = vperm.xlu0 %1640, %v1604
      %v1642 = vpop.permute.xlu0 %1641
      %1643 = vset.pattern.permute.xlu0 0
      %1644 = vperm.xlu0 %1643, %v1605
      %v1645 = vpop.permute.xlu0 %1644
      %1646 = vset.pattern.permute.xlu0 0
      %1647 = vperm.xlu0 %1646, %v1606
      %v1648 = vpop.permute.xlu0 %1647
      %1649 = vset.pattern.permute.xlu0 0
      %1650 = vperm.xlu0 %1649, %v1607
      %v1651 = vpop.permute.xlu0 %1650
      %1652 = vset.pattern.permute.xlu0 0
      %1653 = vperm.xlu0 %1652, %v1608
      %v1654 = vpop.permute.xlu0 %1653
      %1655 = vset.pattern.permute.xlu0 0
      %1656 = vperm.xlu0 %1655, %v1609
      %v1657 = vpop.permute.xlu0 %1656
      %1658 = vset.pattern.permute.xlu0 0
      %1659 = vperm.xlu0 %1658, %v1610
      %v1660 = vpop.permute.xlu0 %1659
      %1661 = vset.pattern.permute.xlu0 0
      %1662 = vperm.xlu0 %1661, %v1611
      %v1663 = vpop.permute.xlu0 %1662
      %1664 = vset.pattern.permute.xlu0 0
      %1665 = vperm.xlu0 %1664, %v1612
      %v1666 = vpop.permute.xlu0 %1665
      %1667 = vset.pattern.permute.xlu0 0
      %1668 = vperm.xlu0 %1667, %v1613
      %v1669 = vpop.permute.xlu0 %1668
      %1670 = vset.pattern.permute.xlu0 0
      %1671 = vperm.xlu0 %1670, %v1614
      %v1672 = vpop.permute.xlu0 %1671
      %1673 = vset.pattern.permute.xlu0 0
      %1674 = vperm.xlu0 %1673, %v1615
      %v1675 = vpop.permute.xlu0 %1674
      %1676 = vset.pattern.permute.xlu0 0
      %1677 = vperm.xlu0 %1676, %v1616
      %v1678 = vpop.permute.xlu0 %1677
      %1679 = vset.pattern.permute.xlu0 0
      %1680 = vperm.xlu0 %1679, %v1617
      %v1681 = vpop.permute.xlu0 %1680
      %1682 = vset.pattern.permute.xlu0 0
      %1683 = vperm.xlu0 %1682, %v1618
      %v1684 = vpop.permute.xlu0 %1683
      %1685 = vset.pattern.permute.xlu0 0
      %1686 = vperm.xlu0 %1685, %v1619
      %v1687 = vpop.permute.xlu0 %1686
      %1688 = vset.pattern.permute.xlu0 0
      %1689 = vperm.xlu0 %1688, %v1620
      %v1690 = vpop.permute.xlu0 %1689
      %1691 = vset.pattern.permute.xlu0 0
      %1692 = vperm.xlu0 %1691, %v1621
      %v1693 = vpop.permute.xlu0 %1692
      %1694 = vset.pattern.permute.xlu0 0
      %1695 = vperm.xlu0 %1694, %v1622
      %v1696 = vpop.permute.xlu0 %1695
      %1697 = vset.pattern.permute.xlu0 0
      %1698 = vperm.xlu0 %1697, %v1623
      %v1699 = vpop.permute.xlu0 %1698
      %1700 = vset.pattern.permute.xlu0 0
      %1701 = vperm.xlu0 %1700, %v1624
      %v1702 = vpop.permute.xlu0 %1701
      %1703 = vset.pattern.permute.xlu0 0
      %1704 = vperm.xlu0 %1703, %v1625
      %v1705 = vpop.permute.xlu0 %1704
      %1706 = vset.pattern.permute.xlu0 0
      %1707 = vperm.xlu0 %1706, %v1626
      %v1708 = vpop.permute.xlu0 %1707
      %1709 = vset.pattern.permute.xlu0 0
      %1710 = vperm.xlu0 %1709, %v1627
      %v1711 = vpop.permute.xlu0 %1710
      %1712 = vset.pattern.permute.xlu0 0
      %1713 = vperm.xlu0 %1712, %v1628
      %v1714 = vpop.permute.xlu0 %1713
      %1715 = vset.pattern.permute.xlu0 0
      %1716 = vperm.xlu0 %1715, %v1629
      %v1717 = vpop.permute.xlu0 %1716
      %1718 = vset.pattern.permute.xlu0 0
      %1719 = vperm.xlu0 %1718, %v1630
      %v1720 = vpop.permute.xlu0 %1719
      %1721 = vset.pattern.permute.xlu0 0
      %1722 = vperm.xlu0 %1721, %v1631
      %v1723 = vpop.permute.xlu0 %1722
      %1724 = vset.pattern.permute.xlu0 0
      %1725 = vperm.xlu0 %1724, %v1632
      %v1726 = vpop.permute.xlu0 %1725
      %1727 = vset.pattern.permute.xlu0 0
      %1728 = vperm.xlu0 %1727, %v1633
      %v1729 = vpop.permute.xlu0 %1728
      %vm1730 = vcmp.eq.s32.totalorder %v1636, 1
      %vm1731 = vcmp.eq.s32.totalorder %v1639, 1
      %vm1732 = vcmp.eq.s32.totalorder %v1642, 1
      %vm1733 = vcmp.eq.s32.totalorder %v1645, 1
      %vm1734 = vcmp.eq.s32.totalorder %v1648, 1
      %vm1735 = vcmp.eq.s32.totalorder %v1651, 1
      %vm1736 = vcmp.eq.s32.totalorder %v1654, 1
      %vm1737 = vcmp.eq.s32.totalorder %v1657, 1
      %vm1738 = vcmp.eq.s32.totalorder %v1660, 1
      %vm1739 = vcmp.eq.s32.totalorder %v1663, 1
      %vm1740 = vcmp.eq.s32.totalorder %v1666, 1
      %vm1741 = vcmp.eq.s32.totalorder %v1669, 1
      %vm1742 = vcmp.eq.s32.totalorder %v1672, 1
      %vm1743 = vcmp.eq.s32.totalorder %v1675, 1
      %vm1744 = vcmp.eq.s32.totalorder %v1678, 1
      %vm1745 = vcmp.eq.s32.totalorder %v1681, 1
      %vm1746 = vcmp.eq.s32.totalorder %v1684, 1
      %vm1747 = vcmp.eq.s32.totalorder %v1687, 1
      %vm1748 = vcmp.eq.s32.totalorder %v1690, 1
      %vm1749 = vcmp.eq.s32.totalorder %v1693, 1
      %vm1750 = vcmp.eq.s32.totalorder %v1696, 1
      %vm1751 = vcmp.eq.s32.totalorder %v1699, 1
      %vm1752 = vcmp.eq.s32.totalorder %v1702, 1
      %vm1753 = vcmp.eq.s32.totalorder %v1705, 1
      %vm1754 = vcmp.eq.s32.totalorder %v1708, 1
      %vm1755 = vcmp.eq.s32.totalorder %v1711, 1
      %vm1756 = vcmp.eq.s32.totalorder %v1714, 1
      %vm1757 = vcmp.eq.s32.totalorder %v1717, 1
      %vm1758 = vcmp.eq.s32.totalorder %v1720, 1
      %vm1759 = vcmp.eq.s32.totalorder %v1723, 1
      %vm1760 = vcmp.eq.s32.totalorder %v1726, 1
      %vm1761 = vcmp.eq.s32.totalorder %v1729, 1
      %v1762 = vsel %vm1730, %v1216, 0.0
      %v1763 = vsel %vm1731, %v1215, 0.0
      %v1764 = vsel %vm1732, %v1214, 0.0
      %v1765 = vsel %vm1733, %v1213, 0.0
      %v1766 = vsel %vm1734, %v1212, 0.0
      %v1767 = vsel %vm1735, %v1211, 0.0
      %v1768 = vsel %vm1736, %v1210, 0.0
      %v1769 = vsel %vm1737, %v1209, 0.0
      %v1770 = vsel %vm1738, %v1208, 0.0
      %v1771 = vsel %vm1739, %v1207, 0.0
      %v1772 = vsel %vm1740, %v1206, 0.0
      %v1773 = vsel %vm1741, %v1205, 0.0
      %v1774 = vsel %vm1742, %v1204, 0.0
      %v1775 = vsel %vm1743, %v1203, 0.0
      %v1776 = vsel %vm1744, %v1202, 0.0
      %v1777 = vsel %vm1745, %v1201, 0.0
      %v1778 = vsel %vm1746, %v1200, 0.0
      %v1779 = vsel %vm1747, %v1199, 0.0
      %v1780 = vsel %vm1748, %v1198, 0.0
      %v1781 = vsel %vm1749, %v1197, 0.0
      %v1782 = vsel %vm1750, %v1196, 0.0
      %v1783 = vsel %vm1751, %v1195, 0.0
      %v1784 = vsel %vm1752, %v1194, 0.0
      %v1785 = vsel %vm1753, %v1193, 0.0
      %v1786 = vsel %vm1754, %v1192, 0.0
      %v1787 = vsel %vm1755, %v1191, 0.0
      %v1788 = vsel %vm1756, %v1190, 0.0
      %v1789 = vsel %vm1757, %v1189, 0.0
      %v1790 = vsel %vm1758, %v1188, 0.0
      %v1791 = vsel %vm1759, %v1187, 0.0
      %v1792 = vsel %vm1760, %v1186, 0.0
      %v1793 = vsel %vm1761, %v1217, 0.0
      %v1794 = vsel %vm672, 1, 0
      %v1795 = vsel %vm673, 1, 0
      %v1796 = vsel %vm674, 1, 0
      %v1797 = vsel %vm675, 1, 0
      %v1798 = vsel %vm676, 1, 0
      %v1799 = vsel %vm677, 1, 0
      %v1800 = vsel %vm678, 1, 0
      %v1801 = vsel %vm679, 1, 0
      %v1802 = vsel %vm680, 1, 0
      %v1803 = vsel %vm681, 1, 0
      %v1804 = vsel %vm682, 1, 0
      %v1805 = vsel %vm683, 1, 0
      %v1806 = vsel %vm684, 1, 0
      %v1807 = vsel %vm685, 1, 0
      %v1808 = vsel %vm686, 1, 0
      %v1809 = vsel %vm687, 1, 0
      %v1810 = vsel %vm688, 1, 0
      %v1811 = vsel %vm689, 1, 0
      %v1812 = vsel %vm690, 1, 0
      %v1813 = vsel %vm691, 1, 0
      %v1814 = vsel %vm692, 1, 0
      %v1815 = vsel %vm693, 1, 0
      %v1816 = vsel %vm694, 1, 0
      %v1817 = vsel %vm695, 1, 0
      %v1818 = vsel %vm696, 1, 0
      %v1819 = vsel %vm697, 1, 0
      %v1820 = vsel %vm698, 1, 0
      %v1821 = vsel %vm699, 1, 0
      %v1822 = vsel %vm700, 1, 0
      %v1823 = vsel %vm701, 1, 0
      %v1824 = vsel %vm702, 1, 0
      %v1825 = vsel %vm703, 1, 0
      %1826 = vset.pattern.permute.xlu0 0
      %1827 = vperm.xlu0 %1826, %v1794
      %v1828 = vpop.permute.xlu0 %1827
      %1829 = vset.pattern.permute.xlu0 0
      %1830 = vperm.xlu0 %1829, %v1795
      %v1831 = vpop.permute.xlu0 %1830
      %1832 = vset.pattern.permute.xlu0 0
      %1833 = vperm.xlu0 %1832, %v1796
      %v1834 = vpop.permute.xlu0 %1833
      %1835 = vset.pattern.permute.xlu0 0
      %1836 = vperm.xlu0 %1835, %v1797
      %v1837 = vpop.permute.xlu0 %1836
      %1838 = vset.pattern.permute.xlu0 0
      %1839 = vperm.xlu0 %1838, %v1798
      %v1840 = vpop.permute.xlu0 %1839
      %1841 = vset.pattern.permute.xlu0 0
      %1842 = vperm.xlu0 %1841, %v1799
      %v1843 = vpop.permute.xlu0 %1842
      %1844 = vset.pattern.permute.xlu0 0
      %1845 = vperm.xlu0 %1844, %v1800
      %v1846 = vpop.permute.xlu0 %1845
      %1847 = vset.pattern.permute.xlu0 0
      %1848 = vperm.xlu0 %1847, %v1801
      %v1849 = vpop.permute.xlu0 %1848
      %1850 = vset.pattern.permute.xlu0 0
      %1851 = vperm.xlu0 %1850, %v1802
      %v1852 = vpop.permute.xlu0 %1851
      %1853 = vset.pattern.permute.xlu0 0
      %1854 = vperm.xlu0 %1853, %v1803
      %v1855 = vpop.permute.xlu0 %1854
      %1856 = vset.pattern.permute.xlu0 0
      %1857 = vperm.xlu0 %1856, %v1804
      %v1858 = vpop.permute.xlu0 %1857
      %1859 = vset.pattern.permute.xlu0 0
      %1860 = vperm.xlu0 %1859, %v1805
      %v1861 = vpop.permute.xlu0 %1860
      %1862 = vset.pattern.permute.xlu0 0
      %1863 = vperm.xlu0 %1862, %v1806
      %v1864 = vpop.permute.xlu0 %1863
      %1865 = vset.pattern.permute.xlu0 0
      %1866 = vperm.xlu0 %1865, %v1807
      %v1867 = vpop.permute.xlu0 %1866
      %1868 = vset.pattern.permute.xlu0 0
      %1869 = vperm.xlu0 %1868, %v1808
      %v1870 = vpop.permute.xlu0 %1869
      %1871 = vset.pattern.permute.xlu0 0
      %1872 = vperm.xlu0 %1871, %v1809
      %v1873 = vpop.permute.xlu0 %1872
      %1874 = vset.pattern.permute.xlu0 0
      %1875 = vperm.xlu0 %1874, %v1810
      %v1876 = vpop.permute.xlu0 %1875
      %1877 = vset.pattern.permute.xlu0 0
      %1878 = vperm.xlu0 %1877, %v1811
      %v1879 = vpop.permute.xlu0 %1878
      %1880 = vset.pattern.permute.xlu0 0
      %1881 = vperm.xlu0 %1880, %v1812
      %v1882 = vpop.permute.xlu0 %1881
      %1883 = vset.pattern.permute.xlu0 0
      %1884 = vperm.xlu0 %1883, %v1813
      %v1885 = vpop.permute.xlu0 %1884
      %1886 = vset.pattern.permute.xlu0 0
      %1887 = vperm.xlu0 %1886, %v1814
      %v1888 = vpop.permute.xlu0 %1887
      %1889 = vset.pattern.permute.xlu0 0
      %1890 = vperm.xlu0 %1889, %v1815
      %v1891 = vpop.permute.xlu0 %1890
      %1892 = vset.pattern.permute.xlu0 0
      %1893 = vperm.xlu0 %1892, %v1816
      %v1894 = vpop.permute.xlu0 %1893
      %1895 = vset.pattern.permute.xlu0 0
      %1896 = vperm.xlu0 %1895, %v1817
      %v1897 = vpop.permute.xlu0 %1896
      %1898 = vset.pattern.permute.xlu0 0
      %1899 = vperm.xlu0 %1898, %v1818
      %v1900 = vpop.permute.xlu0 %1899
      %1901 = vset.pattern.permute.xlu0 0
      %1902 = vperm.xlu0 %1901, %v1819
      %v1903 = vpop.permute.xlu0 %1902
      %1904 = vset.pattern.permute.xlu0 0
      %1905 = vperm.xlu0 %1904, %v1820
      %v1906 = vpop.permute.xlu0 %1905
      %1907 = vset.pattern.permute.xlu0 0
      %1908 = vperm.xlu0 %1907, %v1821
      %v1909 = vpop.permute.xlu0 %1908
      %1910 = vset.pattern.permute.xlu0 0
      %1911 = vperm.xlu0 %1910, %v1822
      %v1912 = vpop.permute.xlu0 %1911
      %1913 = vset.pattern.permute.xlu0 0
      %1914 = vperm.xlu0 %1913, %v1823
      %v1915 = vpop.permute.xlu0 %1914
      %1916 = vset.pattern.permute.xlu0 0
      %1917 = vperm.xlu0 %1916, %v1824
      %v1918 = vpop.permute.xlu0 %1917
      %1919 = vset.pattern.permute.xlu0 0
      %1920 = vperm.xlu0 %1919, %v1825
      %v1921 = vpop.permute.xlu0 %1920
      %vm1922 = vcmp.eq.s32.totalorder %v1828, 1
      %vm1923 = vcmp.eq.s32.totalorder %v1831, 1
      %vm1924 = vcmp.eq.s32.totalorder %v1834, 1
      %vm1925 = vcmp.eq.s32.totalorder %v1837, 1
      %vm1926 = vcmp.eq.s32.totalorder %v1840, 1
      %vm1927 = vcmp.eq.s32.totalorder %v1843, 1
      %vm1928 = vcmp.eq.s32.totalorder %v1846, 1
      %vm1929 = vcmp.eq.s32.totalorder %v1849, 1
      %vm1930 = vcmp.eq.s32.totalorder %v1852, 1
      %vm1931 = vcmp.eq.s32.totalorder %v1855, 1
      %vm1932 = vcmp.eq.s32.totalorder %v1858, 1
      %vm1933 = vcmp.eq.s32.totalorder %v1861, 1
      %vm1934 = vcmp.eq.s32.totalorder %v1864, 1
      %vm1935 = vcmp.eq.s32.totalorder %v1867, 1
      %vm1936 = vcmp.eq.s32.totalorder %v1870, 1
      %vm1937 = vcmp.eq.s32.totalorder %v1873, 1
      %vm1938 = vcmp.eq.s32.totalorder %v1876, 1
      %vm1939 = vcmp.eq.s32.totalorder %v1879, 1
      %vm1940 = vcmp.eq.s32.totalorder %v1882, 1
      %vm1941 = vcmp.eq.s32.totalorder %v1885, 1
      %vm1942 = vcmp.eq.s32.totalorder %v1888, 1
      %vm1943 = vcmp.eq.s32.totalorder %v1891, 1
      %vm1944 = vcmp.eq.s32.totalorder %v1894, 1
      %vm1945 = vcmp.eq.s32.totalorder %v1897, 1
      %vm1946 = vcmp.eq.s32.totalorder %v1900, 1
      %vm1947 = vcmp.eq.s32.totalorder %v1903, 1
      %vm1948 = vcmp.eq.s32.totalorder %v1906, 1
      %vm1949 = vcmp.eq.s32.totalorder %v1909, 1
      %vm1950 = vcmp.eq.s32.totalorder %v1912, 1
      %vm1951 = vcmp.eq.s32.totalorder %v1915, 1
      %vm1952 = vcmp.eq.s32.totalorder %v1918, 1
      %vm1953 = vcmp.eq.s32.totalorder %v1921, 1
      %v1954 = vsel %vm1922, %v862, 0.0
      %v1955 = vsel %vm1923, %v861, 0.0
      %v1956 = vsel %vm1924, %v860, 0.0
      %v1957 = vsel %vm1925, %v859, 0.0
      %v1958 = vsel %vm1926, %v858, 0.0
      %v1959 = vsel %vm1927, %v857, 0.0
      %v1960 = vsel %vm1928, %v856, 0.0
      %v1961 = vsel %vm1929, %v855, 0.0
      %v1962 = vsel %vm1930, %v854, 0.0
      %v1963 = vsel %vm1931, %v853, 0.0
      %v1964 = vsel %vm1932, %v852, 0.0
      %v1965 = vsel %vm1933, %v851, 0.0
      %v1966 = vsel %vm1934, %v850, 0.0
      %v1967 = vsel %vm1935, %v849, 0.0
      %v1968 = vsel %vm1936, %v848, 0.0
      %v1969 = vsel %vm1937, %v847, 0.0
      %v1970 = vsel %vm1938, %v846, 0.0
      %v1971 = vsel %vm1939, %v845, 0.0
      %v1972 = vsel %vm1940, %v844, 0.0
      %v1973 = vsel %vm1941, %v843, 0.0
      %v1974 = vsel %vm1942, %v842, 0.0
      %v1975 = vsel %vm1943, %v841, 0.0
      %v1976 = vsel %vm1944, %v840, 0.0
      %v1977 = vsel %vm1945, %v839, 0.0
      %v1978 = vsel %vm1946, %v838, 0.0
      %v1979 = vsel %vm1947, %v837, 0.0
      %v1980 = vsel %vm1948, %v836, 0.0
      %v1981 = vsel %vm1949, %v835, 0.0
      %v1982 = vsel %vm1950, %v834, 0.0
      %v1983 = vsel %vm1951, %v833, 0.0
      %v1984 = vsel %vm1952, %v864, 0.0
      %v1985 = vsel %vm1953, %v863, 0.0
      %v1986 = vsel %vm512, 1, 0
      %v1987 = vsel %vm513, 1, 0
      %v1988 = vsel %vm514, 1, 0
      %v1989 = vsel %vm515, 1, 0
      %v1990 = vsel %vm516, 1, 0
      %v1991 = vsel %vm517, 1, 0
      %v1992 = vsel %vm518, 1, 0
      %v1993 = vsel %vm519, 1, 0
      %v1994 = vsel %vm520, 1, 0
      %v1995 = vsel %vm521, 1, 0
      %v1996 = vsel %vm522, 1, 0
      %v1997 = vsel %vm523, 1, 0
      %v1998 = vsel %vm524, 1, 0
      %v1999 = vsel %vm525, 1, 0
      %v2000 = vsel %vm526, 1, 0
      %v2001 = vsel %vm527, 1, 0
      %v2002 = vsel %vm528, 1, 0
      %v2003 = vsel %vm529, 1, 0
      %v2004 = vsel %vm530, 1, 0
      %v2005 = vsel %vm531, 1, 0
      %v2006 = vsel %vm532, 1, 0
      %v2007 = vsel %vm533, 1, 0
      %v2008 = vsel %vm534, 1, 0
      %v2009 = vsel %vm535, 1, 0
      %v2010 = vsel %vm536, 1, 0
      %v2011 = vsel %vm537, 1, 0
      %v2012 = vsel %vm538, 1, 0
      %v2013 = vsel %vm539, 1, 0
      %v2014 = vsel %vm540, 1, 0
      %v2015 = vsel %vm541, 1, 0
      %v2016 = vsel %vm542, 1, 0
      %v2017 = vsel %vm543, 1, 0
      %vm2018 = vcmp.eq.s32.totalorder %v1986, 1
      %vm2019 = vcmp.eq.s32.totalorder %v1987, 1
      %vm2020 = vcmp.eq.s32.totalorder %v1988, 1
      %vm2021 = vcmp.eq.s32.totalorder %v1989, 1
      %vm2022 = vcmp.eq.s32.totalorder %v1990, 1
      %vm2023 = vcmp.eq.s32.totalorder %v1991, 1
      %vm2024 = vcmp.eq.s32.totalorder %v1992, 1
      %vm2025 = vcmp.eq.s32.totalorder %v1993, 1
      %vm2026 = vcmp.eq.s32.totalorder %v1994, 1
      %vm2027 = vcmp.eq.s32.totalorder %v1995, 1
      %vm2028 = vcmp.eq.s32.totalorder %v1996, 1
      %vm2029 = vcmp.eq.s32.totalorder %v1997, 1
      %vm2030 = vcmp.eq.s32.totalorder %v1998, 1
      %vm2031 = vcmp.eq.s32.totalorder %v1999, 1
      %vm2032 = vcmp.eq.s32.totalorder %v2000, 1
      %vm2033 = vcmp.eq.s32.totalorder %v2001, 1
      %vm2034 = vcmp.eq.s32.totalorder %v2002, 1
      %vm2035 = vcmp.eq.s32.totalorder %v2003, 1
      %vm2036 = vcmp.eq.s32.totalorder %v2004, 1
      %vm2037 = vcmp.eq.s32.totalorder %v2005, 1
      %vm2038 = vcmp.eq.s32.totalorder %v2006, 1
      %vm2039 = vcmp.eq.s32.totalorder %v2007, 1
      %vm2040 = vcmp.eq.s32.totalorder %v2008, 1
      %vm2041 = vcmp.eq.s32.totalorder %v2009, 1
      %vm2042 = vcmp.eq.s32.totalorder %v2010, 1
      %vm2043 = vcmp.eq.s32.totalorder %v2011, 1
      %vm2044 = vcmp.eq.s32.totalorder %v2012, 1
      %vm2045 = vcmp.eq.s32.totalorder %v2013, 1
      %vm2046 = vcmp.eq.s32.totalorder %v2014, 1
      %vm2047 = vcmp.eq.s32.totalorder %v2015, 1
      %vm2048 = vcmp.eq.s32.totalorder %v2016, 1
      %vm2049 = vcmp.eq.s32.totalorder %v2017, 1
      %v2050 = vsel %vm2018, %v770, 0.0
      %v2051 = vsel %vm2019, %v771, 0.0
      %v2052 = vsel %vm2020, %v772, 0.0
      %v2053 = vsel %vm2021, %v773, 0.0
      %v2054 = vsel %vm2022, %v774, 0.0
      %v2055 = vsel %vm2023, %v775, 0.0
      %v2056 = vsel %vm2024, %v776, 0.0
      %v2057 = vsel %vm2025, %v777, 0.0
      %v2058 = vsel %vm2026, %v778, 0.0
      %v2059 = vsel %vm2027, %v779, 0.0
      %v2060 = vsel %vm2028, %v780, 0.0
      %v2061 = vsel %vm2029, %v781, 0.0
      %v2062 = vsel %vm2030, %v782, 0.0
      %v2063 = vsel %vm2031, %v783, 0.0
      %v2064 = vsel %vm2032, %v784, 0.0
      %v2065 = vsel %vm2033, %v785, 0.0
      %v2066 = vsel %vm2034, %v786, 0.0
      %v2067 = vsel %vm2035, %v787, 0.0
      %v2068 = vsel %vm2036, %v788, 0.0
      %v2069 = vsel %vm2037, %v789, 0.0
      %v2070 = vsel %vm2038, %v790, 0.0
      %v2071 = vsel %vm2039, %v791, 0.0
      %v2072 = vsel %vm2040, %v792, 0.0
      %v2073 = vsel %vm2041, %v793, 0.0
      %v2074 = vsel %vm2042, %v794, 0.0
      %v2075 = vsel %vm2043, %v795, 0.0
      %v2076 = vsel %vm2044, %v796, 0.0
      %v2077 = vsel %vm2045, %v797, 0.0
      %v2078 = vsel %vm2046, %v798, 0.0
      %v2079 = vsel %vm2047, %v799, 0.0
      %v2080 = vsel %vm2048, %v768, 0.0
      %v2081 = vsel %vm2049, %v769, 0.0
      %v2082 = vsel %vm704, 1, 0
      %v2083 = vsel %vm705, 1, 0
      %v2084 = vsel %vm706, 1, 0
      %v2085 = vsel %vm707, 1, 0
      %v2086 = vsel %vm708, 1, 0
      %v2087 = vsel %vm709, 1, 0
      %v2088 = vsel %vm710, 1, 0
      %v2089 = vsel %vm711, 1, 0
      %v2090 = vsel %vm712, 1, 0
      %v2091 = vsel %vm713, 1, 0
      %v2092 = vsel %vm714, 1, 0
      %v2093 = vsel %vm715, 1, 0
      %v2094 = vsel %vm716, 1, 0
      %v2095 = vsel %vm717, 1, 0
      %v2096 = vsel %vm718, 1, 0
      %v2097 = vsel %vm719, 1, 0
      %v2098 = vsel %vm720, 1, 0
      %v2099 = vsel %vm721, 1, 0
      %v2100 = vsel %vm722, 1, 0
      %v2101 = vsel %vm723, 1, 0
      %v2102 = vsel %vm724, 1, 0
      %v2103 = vsel %vm725, 1, 0
      %v2104 = vsel %vm726, 1, 0
      %v2105 = vsel %vm727, 1, 0
      %v2106 = vsel %vm728, 1, 0
      %v2107 = vsel %vm729, 1, 0
      %v2108 = vsel %vm730, 1, 0
      %v2109 = vsel %vm731, 1, 0
      %v2110 = vsel %vm732, 1, 0
      %v2111 = vsel %vm733, 1, 0
      %v2112 = vsel %vm734, 1, 0
      %v2113 = vsel %vm735, 1, 0
      %2114 = vset.pattern.permute.xlu0 0
      %2115 = vperm.xlu0 %2114, %v2082
      %v2116 = vpop.permute.xlu0 %2115
      %2117 = vset.pattern.permute.xlu0 0
      %2118 = vperm.xlu0 %2117, %v2083
      %v2119 = vpop.permute.xlu0 %2118
      %2120 = vset.pattern.permute.xlu0 0
      %2121 = vperm.xlu0 %2120, %v2084
      %v2122 = vpop.permute.xlu0 %2121
      %2123 = vset.pattern.permute.xlu0 0
      %2124 = vperm.xlu0 %2123, %v2085
      %v2125 = vpop.permute.xlu0 %2124
      %2126 = vset.pattern.permute.xlu0 0
      %2127 = vperm.xlu0 %2126, %v2086
      %v2128 = vpop.permute.xlu0 %2127
      %2129 = vset.pattern.permute.xlu0 0
      %2130 = vperm.xlu0 %2129, %v2087
      %v2131 = vpop.permute.xlu0 %2130
      %2132 = vset.pattern.permute.xlu0 0
      %2133 = vperm.xlu0 %2132, %v2088
      %v2134 = vpop.permute.xlu0 %2133
      %2135 = vset.pattern.permute.xlu0 0
      %2136 = vperm.xlu0 %2135, %v2089
      %v2137 = vpop.permute.xlu0 %2136
      %2138 = vset.pattern.permute.xlu0 0
      %2139 = vperm.xlu0 %2138, %v2090
      %v2140 = vpop.permute.xlu0 %2139
      %2141 = vset.pattern.permute.xlu0 0
      %2142 = vperm.xlu0 %2141, %v2091
      %v2143 = vpop.permute.xlu0 %2142
      %2144 = vset.pattern.permute.xlu0 0
      %2145 = vperm.xlu0 %2144, %v2092
      %v2146 = vpop.permute.xlu0 %2145
      %2147 = vset.pattern.permute.xlu0 0
      %2148 = vperm.xlu0 %2147, %v2093
      %v2149 = vpop.permute.xlu0 %2148
      %2150 = vset.pattern.permute.xlu0 0
      %2151 = vperm.xlu0 %2150, %v2094
      %v2152 = vpop.permute.xlu0 %2151
      %2153 = vset.pattern.permute.xlu0 0
      %2154 = vperm.xlu0 %2153, %v2095
      %v2155 = vpop.permute.xlu0 %2154
      %2156 = vset.pattern.permute.xlu0 0
      %2157 = vperm.xlu0 %2156, %v2096
      %v2158 = vpop.permute.xlu0 %2157
      %2159 = vset.pattern.permute.xlu0 0
      %2160 = vperm.xlu0 %2159, %v2097
      %v2161 = vpop.permute.xlu0 %2160
      %2162 = vset.pattern.permute.xlu0 0
      %2163 = vperm.xlu0 %2162, %v2098
      %v2164 = vpop.permute.xlu0 %2163
      %2165 = vset.pattern.permute.xlu0 0
      %2166 = vperm.xlu0 %2165, %v2099
      %v2167 = vpop.permute.xlu0 %2166
      %2168 = vset.pattern.permute.xlu0 0
      %2169 = vperm.xlu0 %2168, %v2100
      %v2170 = vpop.permute.xlu0 %2169
      %2171 = vset.pattern.permute.xlu0 0
      %2172 = vperm.xlu0 %2171, %v2101
      %v2173 = vpop.permute.xlu0 %2172
      %2174 = vset.pattern.permute.xlu0 0
      %2175 = vperm.xlu0 %2174, %v2102
      %v2176 = vpop.permute.xlu0 %2175
      %2177 = vset.pattern.permute.xlu0 0
      %2178 = vperm.xlu0 %2177, %v2103
      %v2179 = vpop.permute.xlu0 %2178
      %2180 = vset.pattern.permute.xlu0 0
      %2181 = vperm.xlu0 %2180, %v2104
      %v2182 = vpop.permute.xlu0 %2181
      %2183 = vset.pattern.permute.xlu0 0
      %2184 = vperm.xlu0 %2183, %v2105
      %v2185 = vpop.permute.xlu0 %2184
      %2186 = vset.pattern.permute.xlu0 0
      %2187 = vperm.xlu0 %2186, %v2106
      %v2188 = vpop.permute.xlu0 %2187
      %2189 = vset.pattern.permute.xlu0 0
      %2190 = vperm.xlu0 %2189, %v2107
      %v2191 = vpop.permute.xlu0 %2190
      %2192 = vset.pattern.permute.xlu0 0
      %2193 = vperm.xlu0 %2192, %v2108
      %v2194 = vpop.permute.xlu0 %2193
      %2195 = vset.pattern.permute.xlu0 0
      %2196 = vperm.xlu0 %2195, %v2109
      %v2197 = vpop.permute.xlu0 %2196
      %2198 = vset.pattern.permute.xlu0 0
      %2199 = vperm.xlu0 %2198, %v2110
      %v2200 = vpop.permute.xlu0 %2199
      %2201 = vset.pattern.permute.xlu0 0
      %2202 = vperm.xlu0 %2201, %v2111
      %v2203 = vpop.permute.xlu0 %2202
      %2204 = vset.pattern.permute.xlu0 0
      %2205 = vperm.xlu0 %2204, %v2112
      %v2206 = vpop.permute.xlu0 %2205
      %2207 = vset.pattern.permute.xlu0 0
      %2208 = vperm.xlu0 %2207, %v2113
      %v2209 = vpop.permute.xlu0 %2208
      %vm2210 = vcmp.eq.s32.totalorder %v2116, 1
      %vm2211 = vcmp.eq.s32.totalorder %v2119, 1
      %vm2212 = vcmp.eq.s32.totalorder %v2122, 1
      %vm2213 = vcmp.eq.s32.totalorder %v2125, 1
      %vm2214 = vcmp.eq.s32.totalorder %v2128, 1
      %vm2215 = vcmp.eq.s32.totalorder %v2131, 1
      %vm2216 = vcmp.eq.s32.totalorder %v2134, 1
      %vm2217 = vcmp.eq.s32.totalorder %v2137, 1
      %vm2218 = vcmp.eq.s32.totalorder %v2140, 1
      %vm2219 = vcmp.eq.s32.totalorder %v2143, 1
      %vm2220 = vcmp.eq.s32.totalorder %v2146, 1
      %vm2221 = vcmp.eq.s32.totalorder %v2149, 1
      %vm2222 = vcmp.eq.s32.totalorder %v2152, 1
      %vm2223 = vcmp.eq.s32.totalorder %v2155, 1
      %vm2224 = vcmp.eq.s32.totalorder %v2158, 1
      %vm2225 = vcmp.eq.s32.totalorder %v2161, 1
      %vm2226 = vcmp.eq.s32.totalorder %v2164, 1
      %vm2227 = vcmp.eq.s32.totalorder %v2167, 1
      %vm2228 = vcmp.eq.s32.totalorder %v2170, 1
      %vm2229 = vcmp.eq.s32.totalorder %v2173, 1
      %vm2230 = vcmp.eq.s32.totalorder %v2176, 1
      %vm2231 = vcmp.eq.s32.totalorder %v2179, 1
      %vm2232 = vcmp.eq.s32.totalorder %v2182, 1
      %vm2233 = vcmp.eq.s32.totalorder %v2185, 1
      %vm2234 = vcmp.eq.s32.totalorder %v2188, 1
      %vm2235 = vcmp.eq.s32.totalorder %v2191, 1
      %vm2236 = vcmp.eq.s32.totalorder %v2194, 1
      %vm2237 = vcmp.eq.s32.totalorder %v2197, 1
      %vm2238 = vcmp.eq.s32.totalorder %v2200, 1
      %vm2239 = vcmp.eq.s32.totalorder %v2203, 1
      %vm2240 = vcmp.eq.s32.totalorder %v2206, 1
      %vm2241 = vcmp.eq.s32.totalorder %v2209, 1
      %v2242 = vsel %vm2210, %v1214, 0.0
      %v2243 = vsel %vm2211, %v1213, 0.0
      %v2244 = vsel %vm2212, %v1212, 0.0
      %v2245 = vsel %vm2213, %v1211, 0.0
      %v2246 = vsel %vm2214, %v1210, 0.0
      %v2247 = vsel %vm2215, %v1209, 0.0
      %v2248 = vsel %vm2216, %v1208, 0.0
      %v2249 = vsel %vm2217, %v1207, 0.0
      %v2250 = vsel %vm2218, %v1206, 0.0
      %v2251 = vsel %vm2219, %v1205, 0.0
      %v2252 = vsel %vm2220, %v1204, 0.0
      %v2253 = vsel %vm2221, %v1203, 0.0
      %v2254 = vsel %vm2222, %v1202, 0.0
      %v2255 = vsel %vm2223, %v1201, 0.0
      %v2256 = vsel %vm2224, %v1200, 0.0
      %v2257 = vsel %vm2225, %v1199, 0.0
      %v2258 = vsel %vm2226, %v1198, 0.0
      %v2259 = vsel %vm2227, %v1197, 0.0
      %v2260 = vsel %vm2228, %v1196, 0.0
      %v2261 = vsel %vm2229, %v1195, 0.0
      %v2262 = vsel %vm2230, %v1194, 0.0
      %v2263 = vsel %vm2231, %v1193, 0.0
      %v2264 = vsel %vm2232, %v1192, 0.0
      %v2265 = vsel %vm2233, %v1191, 0.0
      %v2266 = vsel %vm2234, %v1190, 0.0
      %v2267 = vsel %vm2235, %v1189, 0.0
      %v2268 = vsel %vm2236, %v1188, 0.0
      %v2269 = vsel %vm2237, %v1187, 0.0
      %v2270 = vsel %vm2238, %v1186, 0.0
      %v2271 = vsel %vm2239, %v1217, 0.0
      %v2272 = vsel %vm2240, %v1216, 0.0
      %v2273 = vsel %vm2241, %v1215, 0.0
      %2306 = vrot.lane.b32.xlu0 %v1121, 4
      %v2307 = vpop.permute.xlu0 %2306
      %2308 = vrot.lane.b32.xlu0 %v1122, 4
      %v2309 = vpop.permute.xlu0 %2308
      %2310 = vrot.lane.b32.xlu0 %v1123, 4
      %v2311 = vpop.permute.xlu0 %2310
      %2312 = vrot.lane.b32.xlu0 %v1124, 4
      %v2313 = vpop.permute.xlu0 %2312
      %2314 = vrot.lane.b32.xlu0 %v1125, 4
      %v2315 = vpop.permute.xlu0 %2314
      %2316 = vrot.lane.b32.xlu0 %v1126, 4
      %v2317 = vpop.permute.xlu0 %2316
      %2318 = vrot.lane.b32.xlu0 %v1127, 4
      %v2319 = vpop.permute.xlu0 %2318
      %2320 = vrot.lane.b32.xlu0 %v1128, 4
      %v2321 = vpop.permute.xlu0 %2320
      %2322 = vrot.lane.b32.xlu0 %v1129, 4
      %v2323 = vpop.permute.xlu0 %2322
      %2324 = vrot.lane.b32.xlu0 %v1130, 4
      %v2325 = vpop.permute.xlu0 %2324
      %2326 = vrot.lane.b32.xlu0 %v1131, 4
      %v2327 = vpop.permute.xlu0 %2326
      %2328 = vrot.lane.b32.xlu0 %v1132, 4
      %v2329 = vpop.permute.xlu0 %2328
      %2330 = vrot.lane.b32.xlu0 %v1133, 4
      %v2331 = vpop.permute.xlu0 %2330
      %2332 = vrot.lane.b32.xlu0 %v1134, 4
      %v2333 = vpop.permute.xlu0 %2332
      %2334 = vrot.lane.b32.xlu0 %v1135, 4
      %v2335 = vpop.permute.xlu0 %2334
      %2336 = vrot.lane.b32.xlu0 %v1136, 4
      %v2337 = vpop.permute.xlu0 %2336
      %2338 = vrot.lane.b32.xlu0 %v1137, 4
      %v2339 = vpop.permute.xlu0 %2338
      %2340 = vrot.lane.b32.xlu0 %v1138, 4
      %v2341 = vpop.permute.xlu0 %2340
      %2342 = vrot.lane.b32.xlu0 %v1139, 4
      %v2343 = vpop.permute.xlu0 %2342
      %2344 = vrot.lane.b32.xlu0 %v1140, 4
      %v2345 = vpop.permute.xlu0 %2344
      %2346 = vrot.lane.b32.xlu0 %v1141, 4
      %v2347 = vpop.permute.xlu0 %2346
      %2348 = vrot.lane.b32.xlu0 %v1142, 4
      %v2349 = vpop.permute.xlu0 %2348
      %2350 = vrot.lane.b32.xlu0 %v1143, 4
      %v2351 = vpop.permute.xlu0 %2350
      %2352 = vrot.lane.b32.xlu0 %v1144, 4
      %v2353 = vpop.permute.xlu0 %2352
      %2354 = vrot.lane.b32.xlu0 %v1145, 4
      %v2355 = vpop.permute.xlu0 %2354
      %2356 = vrot.lane.b32.xlu0 %v1146, 4
      %v2357 = vpop.permute.xlu0 %2356
      %2358 = vrot.lane.b32.xlu0 %v1147, 4
      %v2359 = vpop.permute.xlu0 %2358
      %2360 = vrot.lane.b32.xlu0 %v1148, 4
      %v2361 = vpop.permute.xlu0 %2360
      %2362 = vrot.lane.b32.xlu0 %v1149, 4
      %v2363 = vpop.permute.xlu0 %2362
      %2364 = vrot.lane.b32.xlu0 %v1150, 4
      %v2365 = vpop.permute.xlu0 %2364
      %2366 = vrot.lane.b32.xlu0 %v1151, 4
      %v2367 = vpop.permute.xlu0 %2366
      %2368 = vrot.lane.b32.xlu0 %v1152, 4
      %v2369 = vpop.permute.xlu0 %2368
      %2434 = vrot.lane.b32.xlu0 %v1378, 8
      %v2435 = vpop.permute.xlu0 %2434
      %2436 = vrot.lane.b32.xlu0 %v1379, 8
      %v2437 = vpop.permute.xlu0 %2436
      %2438 = vrot.lane.b32.xlu0 %v1380, 8
      %v2439 = vpop.permute.xlu0 %2438
      %2440 = vrot.lane.b32.xlu0 %v1381, 8
      %v2441 = vpop.permute.xlu0 %2440
      %2442 = vrot.lane.b32.xlu0 %v1382, 8
      %v2443 = vpop.permute.xlu0 %2442
      %2444 = vrot.lane.b32.xlu0 %v1383, 8
      %v2445 = vpop.permute.xlu0 %2444
      %2446 = vrot.lane.b32.xlu0 %v1384, 8
      %v2447 = vpop.permute.xlu0 %2446
      %2448 = vrot.lane.b32.xlu0 %v1385, 8
      %v2449 = vpop.permute.xlu0 %2448
      %2450 = vrot.lane.b32.xlu0 %v1386, 8
      %v2451 = vpop.permute.xlu0 %2450
      %2452 = vrot.lane.b32.xlu0 %v1387, 8
      %v2453 = vpop.permute.xlu0 %2452
      %2454 = vrot.lane.b32.xlu0 %v1388, 8
      %v2455 = vpop.permute.xlu0 %2454
      %2456 = vrot.lane.b32.xlu0 %v1389, 8
      %v2457 = vpop.permute.xlu0 %2456
      %2458 = vrot.lane.b32.xlu0 %v1390, 8
      %v2459 = vpop.permute.xlu0 %2458
      %2460 = vrot.lane.b32.xlu0 %v1391, 8
      %v2461 = vpop.permute.xlu0 %2460
      %2462 = vrot.lane.b32.xlu0 %v1392, 8
      %v2463 = vpop.permute.xlu0 %2462
      %2464 = vrot.lane.b32.xlu0 %v1393, 8
      %v2465 = vpop.permute.xlu0 %2464
      %2466 = vrot.lane.b32.xlu0 %v1394, 8
      %v2467 = vpop.permute.xlu0 %2466
      %2468 = vrot.lane.b32.xlu0 %v1395, 8
      %v2469 = vpop.permute.xlu0 %2468
      %2470 = vrot.lane.b32.xlu0 %v1396, 8
      %v2471 = vpop.permute.xlu0 %2470
      %2472 = vrot.lane.b32.xlu0 %v1397, 8
      %v2473 = vpop.permute.xlu0 %2472
      %2474 = vrot.lane.b32.xlu0 %v1398, 8
      %v2475 = vpop.permute.xlu0 %2474
      %2476 = vrot.lane.b32.xlu0 %v1399, 8
      %v2477 = vpop.permute.xlu0 %2476
      %2478 = vrot.lane.b32.xlu0 %v1400, 8
      %v2479 = vpop.permute.xlu0 %2478
      %2480 = vrot.lane.b32.xlu0 %v1401, 8
      %v2481 = vpop.permute.xlu0 %2480
      %2482 = vrot.lane.b32.xlu0 %v1402, 8
      %v2483 = vpop.permute.xlu0 %2482
      %2484 = vrot.lane.b32.xlu0 %v1403, 8
      %v2485 = vpop.permute.xlu0 %2484
      %2486 = vrot.lane.b32.xlu0 %v1404, 8
      %v2487 = vpop.permute.xlu0 %2486
      %2488 = vrot.lane.b32.xlu0 %v1405, 8
      %v2489 = vpop.permute.xlu0 %2488
      %2490 = vrot.lane.b32.xlu0 %v1406, 8
      %v2491 = vpop.permute.xlu0 %2490
      %2492 = vrot.lane.b32.xlu0 %v1407, 8
      %v2493 = vpop.permute.xlu0 %2492
      %2494 = vrot.lane.b32.xlu0 %v1408, 8
      %v2495 = vpop.permute.xlu0 %2494
      %2496 = vrot.lane.b32.xlu0 %v1409, 8
      %v2497 = vpop.permute.xlu0 %2496
      %2562 = vrot.lane.b32.xlu0 %v1570, 12
      %v2563 = vpop.permute.xlu0 %2562
      %2564 = vrot.lane.b32.xlu0 %v1571, 12
      %v2565 = vpop.permute.xlu0 %2564
      %2566 = vrot.lane.b32.xlu0 %v1572, 12
      %v2567 = vpop.permute.xlu0 %2566
      %2568 = vrot.lane.b32.xlu0 %v1573, 12
      %v2569 = vpop.permute.xlu0 %2568
      %2570 = vrot.lane.b32.xlu0 %v1574, 12
      %v2571 = vpop.permute.xlu0 %2570
      %2572 = vrot.lane.b32.xlu0 %v1575, 12
      %v2573 = vpop.permute.xlu0 %2572
      %2574 = vrot.lane.b32.xlu0 %v1576, 12
      %v2575 = vpop.permute.xlu0 %2574
      %2576 = vrot.lane.b32.xlu0 %v1577, 12
      %v2577 = vpop.permute.xlu0 %2576
      %2578 = vrot.lane.b32.xlu0 %v1578, 12
      %v2579 = vpop.permute.xlu0 %2578
      %2580 = vrot.lane.b32.xlu0 %v1579, 12
      %v2581 = vpop.permute.xlu0 %2580
      %2582 = vrot.lane.b32.xlu0 %v1580, 12
      %v2583 = vpop.permute.xlu0 %2582
      %2584 = vrot.lane.b32.xlu0 %v1581, 12
      %v2585 = vpop.permute.xlu0 %2584
      %2586 = vrot.lane.b32.xlu0 %v1582, 12
      %v2587 = vpop.permute.xlu0 %2586
      %2588 = vrot.lane.b32.xlu0 %v1583, 12
      %v2589 = vpop.permute.xlu0 %2588
      %2590 = vrot.lane.b32.xlu0 %v1584, 12
      %v2591 = vpop.permute.xlu0 %2590
      %2592 = vrot.lane.b32.xlu0 %v1585, 12
      %v2593 = vpop.permute.xlu0 %2592
      %2594 = vrot.lane.b32.xlu0 %v1586, 12
      %v2595 = vpop.permute.xlu0 %2594
      %2596 = vrot.lane.b32.xlu0 %v1587, 12
      %v2597 = vpop.permute.xlu0 %2596
      %2598 = vrot.lane.b32.xlu0 %v1588, 12
      %v2599 = vpop.permute.xlu0 %2598
      %2600 = vrot.lane.b32.xlu0 %v1589, 12
      %v2601 = vpop.permute.xlu0 %2600
      %2602 = vrot.lane.b32.xlu0 %v1590, 12
      %v2603 = vpop.permute.xlu0 %2602
      %2604 = vrot.lane.b32.xlu0 %v1591, 12
      %v2605 = vpop.permute.xlu0 %2604
      %2606 = vrot.lane.b32.xlu0 %v1592, 12
      %v2607 = vpop.permute.xlu0 %2606
      %2608 = vrot.lane.b32.xlu0 %v1593, 12
      %v2609 = vpop.permute.xlu0 %2608
      %2610 = vrot.lane.b32.xlu0 %v1594, 12
      %v2611 = vpop.permute.xlu0 %2610
      %2612 = vrot.lane.b32.xlu0 %v1595, 12
      %v2613 = vpop.permute.xlu0 %2612
      %2614 = vrot.lane.b32.xlu0 %v1596, 12
      %v2615 = vpop.permute.xlu0 %2614
      %2616 = vrot.lane.b32.xlu0 %v1597, 12
      %v2617 = vpop.permute.xlu0 %2616
      %2618 = vrot.lane.b32.xlu0 %v1598, 12
      %v2619 = vpop.permute.xlu0 %2618
      %2620 = vrot.lane.b32.xlu0 %v1599, 12
      %v2621 = vpop.permute.xlu0 %2620
      %2622 = vrot.lane.b32.xlu0 %v1600, 12
      %v2623 = vpop.permute.xlu0 %2622
      %2624 = vrot.lane.b32.xlu0 %v1601, 12
      %v2625 = vpop.permute.xlu0 %2624
      %2690 = vrot.lane.b32.xlu0 %v768, 16
      %v2691 = vpop.permute.xlu0 %2690
      %2692 = vrot.lane.b32.xlu0 %v769, 16
      %v2693 = vpop.permute.xlu0 %2692
      %2694 = vrot.lane.b32.xlu0 %v770, 16
      %v2695 = vpop.permute.xlu0 %2694
      %2696 = vrot.lane.b32.xlu0 %v771, 16
      %v2697 = vpop.permute.xlu0 %2696
      %2698 = vrot.lane.b32.xlu0 %v772, 16
      %v2699 = vpop.permute.xlu0 %2698
      %2700 = vrot.lane.b32.xlu0 %v773, 16
      %v2701 = vpop.permute.xlu0 %2700
      %2702 = vrot.lane.b32.xlu0 %v774, 16
      %v2703 = vpop.permute.xlu0 %2702
      %2704 = vrot.lane.b32.xlu0 %v775, 16
      %v2705 = vpop.permute.xlu0 %2704
      %2706 = vrot.lane.b32.xlu0 %v776, 16
      %v2707 = vpop.permute.xlu0 %2706
      %2708 = vrot.lane.b32.xlu0 %v777, 16
      %v2709 = vpop.permute.xlu0 %2708
      %2710 = vrot.lane.b32.xlu0 %v778, 16
      %v2711 = vpop.permute.xlu0 %2710
      %2712 = vrot.lane.b32.xlu0 %v779, 16
      %v2713 = vpop.permute.xlu0 %2712
      %2714 = vrot.lane.b32.xlu0 %v780, 16
      %v2715 = vpop.permute.xlu0 %2714
      %2716 = vrot.lane.b32.xlu0 %v781, 16
      %v2717 = vpop.permute.xlu0 %2716
      %2718 = vrot.lane.b32.xlu0 %v782, 16
      %v2719 = vpop.permute.xlu0 %2718
      %2720 = vrot.lane.b32.xlu0 %v783, 16
      %v2721 = vpop.permute.xlu0 %2720
      %2722 = vrot.lane.b32.xlu0 %v784, 16
      %v2723 = vpop.permute.xlu0 %2722
      %2724 = vrot.lane.b32.xlu0 %v785, 16
      %v2725 = vpop.permute.xlu0 %2724
      %2726 = vrot.lane.b32.xlu0 %v786, 16
      %v2727 = vpop.permute.xlu0 %2726
      %2728 = vrot.lane.b32.xlu0 %v787, 16
      %v2729 = vpop.permute.xlu0 %2728
      %2730 = vrot.lane.b32.xlu0 %v788, 16
      %v2731 = vpop.permute.xlu0 %2730
      %2732 = vrot.lane.b32.xlu0 %v789, 16
      %v2733 = vpop.permute.xlu0 %2732
      %2734 = vrot.lane.b32.xlu0 %v790, 16
      %v2735 = vpop.permute.xlu0 %2734
      %2736 = vrot.lane.b32.xlu0 %v791, 16
      %v2737 = vpop.permute.xlu0 %2736
      %2738 = vrot.lane.b32.xlu0 %v792, 16
      %v2739 = vpop.permute.xlu0 %2738
      %2740 = vrot.lane.b32.xlu0 %v793, 16
      %v2741 = vpop.permute.xlu0 %2740
      %2742 = vrot.lane.b32.xlu0 %v794, 16
      %v2743 = vpop.permute.xlu0 %2742
      %2744 = vrot.lane.b32.xlu0 %v795, 16
      %v2745 = vpop.permute.xlu0 %2744
      %2746 = vrot.lane.b32.xlu0 %v796, 16
      %v2747 = vpop.permute.xlu0 %2746
      %2748 = vrot.lane.b32.xlu0 %v797, 16
      %v2749 = vpop.permute.xlu0 %2748
      %2750 = vrot.lane.b32.xlu0 %v798, 16
      %v2751 = vpop.permute.xlu0 %2750
      %2752 = vrot.lane.b32.xlu0 %v799, 16
      %v2753 = vpop.permute.xlu0 %2752
      %2818 = vrot.lane.b32.xlu0 %v1762, 20
      %v2819 = vpop.permute.xlu0 %2818
      %2820 = vrot.lane.b32.xlu0 %v1763, 20
      %v2821 = vpop.permute.xlu0 %2820
      %2822 = vrot.lane.b32.xlu0 %v1764, 20
      %v2823 = vpop.permute.xlu0 %2822
      %2824 = vrot.lane.b32.xlu0 %v1765, 20
      %v2825 = vpop.permute.xlu0 %2824
      %2826 = vrot.lane.b32.xlu0 %v1766, 20
      %v2827 = vpop.permute.xlu0 %2826
      %2828 = vrot.lane.b32.xlu0 %v1767, 20
      %v2829 = vpop.permute.xlu0 %2828
      %2830 = vrot.lane.b32.xlu0 %v1768, 20
      %v2831 = vpop.permute.xlu0 %2830
      %2832 = vrot.lane.b32.xlu0 %v1769, 20
      %v2833 = vpop.permute.xlu0 %2832
      %2834 = vrot.lane.b32.xlu0 %v1770, 20
      %v2835 = vpop.permute.xlu0 %2834
      %2836 = vrot.lane.b32.xlu0 %v1771, 20
      %v2837 = vpop.permute.xlu0 %2836
      %2838 = vrot.lane.b32.xlu0 %v1772, 20
      %v2839 = vpop.permute.xlu0 %2838
      %2840 = vrot.lane.b32.xlu0 %v1773, 20
      %v2841 = vpop.permute.xlu0 %2840
      %2842 = vrot.lane.b32.xlu0 %v1774, 20
      %v2843 = vpop.permute.xlu0 %2842
      %2844 = vrot.lane.b32.xlu0 %v1775, 20
      %v2845 = vpop.permute.xlu0 %2844
      %2846 = vrot.lane.b32.xlu0 %v1776, 20
      %v2847 = vpop.permute.xlu0 %2846
      %2848 = vrot.lane.b32.xlu0 %v1777, 20
      %v2849 = vpop.permute.xlu0 %2848
      %2850 = vrot.lane.b32.xlu0 %v1778, 20
      %v2851 = vpop.permute.xlu0 %2850
      %2852 = vrot.lane.b32.xlu0 %v1779, 20
      %v2853 = vpop.permute.xlu0 %2852
      %2854 = vrot.lane.b32.xlu0 %v1780, 20
      %v2855 = vpop.permute.xlu0 %2854
      %2856 = vrot.lane.b32.xlu0 %v1781, 20
      %v2857 = vpop.permute.xlu0 %2856
      %2858 = vrot.lane.b32.xlu0 %v1782, 20
      %v2859 = vpop.permute.xlu0 %2858
      %2860 = vrot.lane.b32.xlu0 %v1783, 20
      %v2861 = vpop.permute.xlu0 %2860
      %2862 = vrot.lane.b32.xlu0 %v1784, 20
      %v2863 = vpop.permute.xlu0 %2862
      %2864 = vrot.lane.b32.xlu0 %v1785, 20
      %v2865 = vpop.permute.xlu0 %2864
      %2866 = vrot.lane.b32.xlu0 %v1786, 20
      %v2867 = vpop.permute.xlu0 %2866
      %2868 = vrot.lane.b32.xlu0 %v1787, 20
      %v2869 = vpop.permute.xlu0 %2868
      %2870 = vrot.lane.b32.xlu0 %v1788, 20
      %v2871 = vpop.permute.xlu0 %2870
      %2872 = vrot.lane.b32.xlu0 %v1789, 20
      %v2873 = vpop.permute.xlu0 %2872
      %2874 = vrot.lane.b32.xlu0 %v1790, 20
      %v2875 = vpop.permute.xlu0 %2874
      %2876 = vrot.lane.b32.xlu0 %v1791, 20
      %v2877 = vpop.permute.xlu0 %2876
      %2878 = vrot.lane.b32.xlu0 %v1792, 20
      %v2879 = vpop.permute.xlu0 %2878
      %2880 = vrot.lane.b32.xlu0 %v1793, 20
      %v2881 = vpop.permute.xlu0 %2880
      %2946 = vrot.lane.b32.xlu0 %v1954, 24
      %v2947 = vpop.permute.xlu0 %2946
      %2948 = vrot.lane.b32.xlu0 %v1955, 24
      %v2949 = vpop.permute.xlu0 %2948
      %2950 = vrot.lane.b32.xlu0 %v1956, 24
      %v2951 = vpop.permute.xlu0 %2950
      %2952 = vrot.lane.b32.xlu0 %v1957, 24
      %v2953 = vpop.permute.xlu0 %2952
      %2954 = vrot.lane.b32.xlu0 %v1958, 24
      %v2955 = vpop.permute.xlu0 %2954
      %2956 = vrot.lane.b32.xlu0 %v1959, 24
      %v2957 = vpop.permute.xlu0 %2956
      %2958 = vrot.lane.b32.xlu0 %v1960, 24
      %v2959 = vpop.permute.xlu0 %2958
      %2960 = vrot.lane.b32.xlu0 %v1961, 24
      %v2961 = vpop.permute.xlu0 %2960
      %2962 = vrot.lane.b32.xlu0 %v1962, 24
      %v2963 = vpop.permute.xlu0 %2962
      %2964 = vrot.lane.b32.xlu0 %v1963, 24
      %v2965 = vpop.permute.xlu0 %2964
      %2966 = vrot.lane.b32.xlu0 %v1964, 24
      %v2967 = vpop.permute.xlu0 %2966
      %2968 = vrot.lane.b32.xlu0 %v1965, 24
      %v2969 = vpop.permute.xlu0 %2968
      %2970 = vrot.lane.b32.xlu0 %v1966, 24
      %v2971 = vpop.permute.xlu0 %2970
      %2972 = vrot.lane.b32.xlu0 %v1967, 24
      %v2973 = vpop.permute.xlu0 %2972
      %2974 = vrot.lane.b32.xlu0 %v1968, 24
      %v2975 = vpop.permute.xlu0 %2974
      %2976 = vrot.lane.b32.xlu0 %v1969, 24
      %v2977 = vpop.permute.xlu0 %2976
      %2978 = vrot.lane.b32.xlu0 %v1970, 24
      %v2979 = vpop.permute.xlu0 %2978
      %2980 = vrot.lane.b32.xlu0 %v1971, 24
      %v2981 = vpop.permute.xlu0 %2980
      %2982 = vrot.lane.b32.xlu0 %v1972, 24
      %v2983 = vpop.permute.xlu0 %2982
      %2984 = vrot.lane.b32.xlu0 %v1973, 24
      %v2985 = vpop.permute.xlu0 %2984
      %2986 = vrot.lane.b32.xlu0 %v1974, 24
      %v2987 = vpop.permute.xlu0 %2986
      %2988 = vrot.lane.b32.xlu0 %v1975, 24
      %v2989 = vpop.permute.xlu0 %2988
      %2990 = vrot.lane.b32.xlu0 %v1976, 24
      %v2991 = vpop.permute.xlu0 %2990
      %2992 = vrot.lane.b32.xlu0 %v1977, 24
      %v2993 = vpop.permute.xlu0 %2992
      %2994 = vrot.lane.b32.xlu0 %v1978, 24
      %v2995 = vpop.permute.xlu0 %2994
      %2996 = vrot.lane.b32.xlu0 %v1979, 24
      %v2997 = vpop.permute.xlu0 %2996
      %2998 = vrot.lane.b32.xlu0 %v1980, 24
      %v2999 = vpop.permute.xlu0 %2998
      %3000 = vrot.lane.b32.xlu0 %v1981, 24
      %v3001 = vpop.permute.xlu0 %3000
      %3002 = vrot.lane.b32.xlu0 %v1982, 24
      %v3003 = vpop.permute.xlu0 %3002
      %3004 = vrot.lane.b32.xlu0 %v1983, 24
      %v3005 = vpop.permute.xlu0 %3004
      %3006 = vrot.lane.b32.xlu0 %v1984, 24
      %v3007 = vpop.permute.xlu0 %3006
      %3008 = vrot.lane.b32.xlu0 %v1985, 24
      %v3009 = vpop.permute.xlu0 %3008
      %3074 = vrot.lane.b32.xlu0 %v2050, 28
      %v3075 = vpop.permute.xlu0 %3074
      %3076 = vrot.lane.b32.xlu0 %v2051, 28
      %v3077 = vpop.permute.xlu0 %3076
      %3078 = vrot.lane.b32.xlu0 %v2052, 28
      %v3079 = vpop.permute.xlu0 %3078
      %3080 = vrot.lane.b32.xlu0 %v2053, 28
      %v3081 = vpop.permute.xlu0 %3080
      %3082 = vrot.lane.b32.xlu0 %v2054, 28
      %v3083 = vpop.permute.xlu0 %3082
      %3084 = vrot.lane.b32.xlu0 %v2055, 28
      %v3085 = vpop.permute.xlu0 %3084
      %3086 = vrot.lane.b32.xlu0 %v2056, 28
      %v3087 = vpop.permute.xlu0 %3086
      %3088 = vrot.lane.b32.xlu0 %v2057, 28
      %v3089 = vpop.permute.xlu0 %3088
      %3090 = vrot.lane.b32.xlu0 %v2058, 28
      %v3091 = vpop.permute.xlu0 %3090
      %3092 = vrot.lane.b32.xlu0 %v2059, 28
      %v3093 = vpop.permute.xlu0 %3092
      %3094 = vrot.lane.b32.xlu0 %v2060, 28
      %v3095 = vpop.permute.xlu0 %3094
      %3096 = vrot.lane.b32.xlu0 %v2061, 28
      %v3097 = vpop.permute.xlu0 %3096
      %3098 = vrot.lane.b32.xlu0 %v2062, 28
      %v3099 = vpop.permute.xlu0 %3098
      %3100 = vrot.lane.b32.xlu0 %v2063, 28
      %v3101 = vpop.permute.xlu0 %3100
      %3102 = vrot.lane.b32.xlu0 %v2064, 28
      %v3103 = vpop.permute.xlu0 %3102
      %3104 = vrot.lane.b32.xlu0 %v2065, 28
      %v3105 = vpop.permute.xlu0 %3104
      %3106 = vrot.lane.b32.xlu0 %v2066, 28
      %v3107 = vpop.permute.xlu0 %3106
      %3108 = vrot.lane.b32.xlu0 %v2067, 28
      %v3109 = vpop.permute.xlu0 %3108
      %3110 = vrot.lane.b32.xlu0 %v2068, 28
      %v3111 = vpop.permute.xlu0 %3110
      %3112 = vrot.lane.b32.xlu0 %v2069, 28
      %v3113 = vpop.permute.xlu0 %3112
      %3114 = vrot.lane.b32.xlu0 %v2070, 28
      %v3115 = vpop.permute.xlu0 %3114
      %3116 = vrot.lane.b32.xlu0 %v2071, 28
      %v3117 = vpop.permute.xlu0 %3116
      %3118 = vrot.lane.b32.xlu0 %v2072, 28
      %v3119 = vpop.permute.xlu0 %3118
      %3120 = vrot.lane.b32.xlu0 %v2073, 28
      %v3121 = vpop.permute.xlu0 %3120
      %3122 = vrot.lane.b32.xlu0 %v2074, 28
      %v3123 = vpop.permute.xlu0 %3122
      %3124 = vrot.lane.b32.xlu0 %v2075, 28
      %v3125 = vpop.permute.xlu0 %3124
      %3126 = vrot.lane.b32.xlu0 %v2076, 28
      %v3127 = vpop.permute.xlu0 %3126
      %3128 = vrot.lane.b32.xlu0 %v2077, 28
      %v3129 = vpop.permute.xlu0 %3128
      %3130 = vrot.lane.b32.xlu0 %v2078, 28
      %v3131 = vpop.permute.xlu0 %3130
      %3132 = vrot.lane.b32.xlu0 %v2079, 28
      %v3133 = vpop.permute.xlu0 %3132
      %3134 = vrot.lane.b32.xlu0 %v2080, 28
      %v3135 = vpop.permute.xlu0 %3134
      %3136 = vrot.lane.b32.xlu0 %v2081, 28
      %v3137 = vpop.permute.xlu0 %3136
      %3202 = vrot.lane.b32.xlu0 %v2242, 32
      %v3203 = vpop.permute.xlu0 %3202
      %3204 = vrot.lane.b32.xlu0 %v2243, 32
      %v3205 = vpop.permute.xlu0 %3204
      %3206 = vrot.lane.b32.xlu0 %v2244, 32
      %v3207 = vpop.permute.xlu0 %3206
      %3208 = vrot.lane.b32.xlu0 %v2245, 32
      %v3209 = vpop.permute.xlu0 %3208
      %3210 = vrot.lane.b32.xlu0 %v2246, 32
      %v3211 = vpop.permute.xlu0 %3210
      %3212 = vrot.lane.b32.xlu0 %v2247, 32
      %v3213 = vpop.permute.xlu0 %3212
      %3214 = vrot.lane.b32.xlu0 %v2248, 32
      %v3215 = vpop.permute.xlu0 %3214
      %3216 = vrot.lane.b32.xlu0 %v2249, 32
      %v3217 = vpop.permute.xlu0 %3216
      %3218 = vrot.lane.b32.xlu0 %v2250, 32
      %v3219 = vpop.permute.xlu0 %3218
      %3220 = vrot.lane.b32.xlu0 %v2251, 32
      %v3221 = vpop.permute.xlu0 %3220
      %3222 = vrot.lane.b32.xlu0 %v2252, 32
      %v3223 = vpop.permute.xlu0 %3222
      %3224 = vrot.lane.b32.xlu0 %v2253, 32
      %v3225 = vpop.permute.xlu0 %3224
      %3226 = vrot.lane.b32.xlu0 %v2254, 32
      %v3227 = vpop.permute.xlu0 %3226
      %3228 = vrot.lane.b32.xlu0 %v2255, 32
      %v3229 = vpop.permute.xlu0 %3228
      %3230 = vrot.lane.b32.xlu0 %v2256, 32
      %v3231 = vpop.permute.xlu0 %3230
      %3232 = vrot.lane.b32.xlu0 %v2257, 32
      %v3233 = vpop.permute.xlu0 %3232
      %3234 = vrot.lane.b32.xlu0 %v2258, 32
      %v3235 = vpop.permute.xlu0 %3234
      %3236 = vrot.lane.b32.xlu0 %v2259, 32
      %v3237 = vpop.permute.xlu0 %3236
      %3238 = vrot.lane.b32.xlu0 %v2260, 32
      %v3239 = vpop.permute.xlu0 %3238
      %3240 = vrot.lane.b32.xlu0 %v2261, 32
      %v3241 = vpop.permute.xlu0 %3240
      %3242 = vrot.lane.b32.xlu0 %v2262, 32
      %v3243 = vpop.permute.xlu0 %3242
      %3244 = vrot.lane.b32.xlu0 %v2263, 32
      %v3245 = vpop.permute.xlu0 %3244
      %3246 = vrot.lane.b32.xlu0 %v2264, 32
      %v3247 = vpop.permute.xlu0 %3246
      %3248 = vrot.lane.b32.xlu0 %v2265, 32
      %v3249 = vpop.permute.xlu0 %3248
      %3250 = vrot.lane.b32.xlu0 %v2266, 32
      %v3251 = vpop.permute.xlu0 %3250
      %3252 = vrot.lane.b32.xlu0 %v2267, 32
      %v3253 = vpop.permute.xlu0 %3252
      %3254 = vrot.lane.b32.xlu0 %v2268, 32
      %v3255 = vpop.permute.xlu0 %3254
      %3256 = vrot.lane.b32.xlu0 %v2269, 32
      %v3257 = vpop.permute.xlu0 %3256
      %3258 = vrot.lane.b32.xlu0 %v2270, 32
      %v3259 = vpop.permute.xlu0 %3258
      %3260 = vrot.lane.b32.xlu0 %v2271, 32
      %v3261 = vpop.permute.xlu0 %3260
      %3262 = vrot.lane.b32.xlu0 %v2272, 32
      %v3263 = vpop.permute.xlu0 %3262
      %3264 = vrot.lane.b32.xlu0 %v2273, 32
      %v3265 = vpop.permute.xlu0 %3264
      %vm3298 = vcmask 31744
      %v3299 = vsel %vm3298, %v1025, %v2307
      %v3300 = vsel %vm3298, %v1026, %v2309
      %v3301 = vsel %vm3298, %v1027, %v2311
      %v3302 = vsel %vm3298, %v1028, %v2313
      %v3303 = vsel %vm3298, %v1029, %v2315
      %v3304 = vsel %vm3298, %v1030, %v2317
      %v3305 = vsel %vm3298, %v1031, %v2319
      %v3306 = vsel %vm3298, %v1032, %v2321
      %v3307 = vsel %vm3298, %v1033, %v2323
      %v3308 = vsel %vm3298, %v1034, %v2325
      %v3309 = vsel %vm3298, %v1035, %v2327
      %v3310 = vsel %vm3298, %v1036, %v2329
      %v3311 = vsel %vm3298, %v1037, %v2331
      %v3312 = vsel %vm3298, %v1038, %v2333
      %v3313 = vsel %vm3298, %v1039, %v2335
      %v3314 = vsel %vm3298, %v1040, %v2337
      %v3315 = vsel %vm3298, %v1041, %v2339
      %v3316 = vsel %vm3298, %v1042, %v2341
      %v3317 = vsel %vm3298, %v1043, %v2343
      %v3318 = vsel %vm3298, %v1044, %v2345
      %v3319 = vsel %vm3298, %v1045, %v2347
      %v3320 = vsel %vm3298, %v1046, %v2349
      %v3321 = vsel %vm3298, %v1047, %v2351
      %v3322 = vsel %vm3298, %v1048, %v2353
      %v3323 = vsel %vm3298, %v1049, %v2355
      %v3324 = vsel %vm3298, %v1050, %v2357
      %v3325 = vsel %vm3298, %v1051, %v2359
      %v3326 = vsel %vm3298, %v1052, %v2361
      %v3327 = vsel %vm3298, %v1053, %v2363
      %v3328 = vsel %vm3298, %v1054, %v2365
      %v3329 = vsel %vm3298, %v1055, %v2367
      %v3330 = vsel %vm3298, %v1056, %v2369
      %vm3331 = vcmask 64512
      %v3332 = vsel %vm3331, %v3299, %v2435
      %v3333 = vsel %vm3331, %v3300, %v2437
      %v3334 = vsel %vm3331, %v3301, %v2439
      %v3335 = vsel %vm3331, %v3302, %v2441
      %v3336 = vsel %vm3331, %v3303, %v2443
      %v3337 = vsel %vm3331, %v3304, %v2445
      %v3338 = vsel %vm3331, %v3305, %v2447
      %v3339 = vsel %vm3331, %v3306, %v2449
      %v3340 = vsel %vm3331, %v3307, %v2451
      %v3341 = vsel %vm3331, %v3308, %v2453
      %v3342 = vsel %vm3331, %v3309, %v2455
      %v3343 = vsel %vm3331, %v3310, %v2457
      %v3344 = vsel %vm3331, %v3311, %v2459
      %v3345 = vsel %vm3331, %v3312, %v2461
      %v3346 = vsel %vm3331, %v3313, %v2463
      %v3347 = vsel %vm3331, %v3314, %v2465
      %v3348 = vsel %vm3331, %v3315, %v2467
      %v3349 = vsel %vm3331, %v3316, %v2469
      %v3350 = vsel %vm3331, %v3317, %v2471
      %v3351 = vsel %vm3331, %v3318, %v2473
      %v3352 = vsel %vm3331, %v3319, %v2475
      %v3353 = vsel %vm3331, %v3320, %v2477
      %v3354 = vsel %vm3331, %v3321, %v2479
      %v3355 = vsel %vm3331, %v3322, %v2481
      %v3356 = vsel %vm3331, %v3323, %v2483
      %v3357 = vsel %vm3331, %v3324, %v2485
      %v3358 = vsel %vm3331, %v3325, %v2487
      %v3359 = vsel %vm3331, %v3326, %v2489
      %v3360 = vsel %vm3331, %v3327, %v2491
      %v3361 = vsel %vm3331, %v3328, %v2493
      %v3362 = vsel %vm3331, %v3329, %v2495
      %v3363 = vsel %vm3331, %v3330, %v2497
      %vm3364 = vcmask 97280
      %v3365 = vsel %vm3364, %v3332, %v2563
      %v3366 = vsel %vm3364, %v3333, %v2565
      %v3367 = vsel %vm3364, %v3334, %v2567
      %v3368 = vsel %vm3364, %v3335, %v2569
      %v3369 = vsel %vm3364, %v3336, %v2571
      %v3370 = vsel %vm3364, %v3337, %v2573
      %v3371 = vsel %vm3364, %v3338, %v2575
      %v3372 = vsel %vm3364, %v3339, %v2577
      %v3373 = vsel %vm3364, %v3340, %v2579
      %v3374 = vsel %vm3364, %v3341, %v2581
      %v3375 = vsel %vm3364, %v3342, %v2583
      %v3376 = vsel %vm3364, %v3343, %v2585
      %v3377 = vsel %vm3364, %v3344, %v2587
      %v3378 = vsel %vm3364, %v3345, %v2589
      %v3379 = vsel %vm3364, %v3346, %v2591
      %v3380 = vsel %vm3364, %v3347, %v2593
      %v3381 = vsel %vm3364, %v3348, %v2595
      %v3382 = vsel %vm3364, %v3349, %v2597
      %v3383 = vsel %vm3364, %v3350, %v2599
      %v3384 = vsel %vm3364, %v3351, %v2601
      %v3385 = vsel %vm3364, %v3352, %v2603
      %v3386 = vsel %vm3364, %v3353, %v2605
      %v3387 = vsel %vm3364, %v3354, %v2607
      %v3388 = vsel %vm3364, %v3355, %v2609
      %v3389 = vsel %vm3364, %v3356, %v2611
      %v3390 = vsel %vm3364, %v3357, %v2613
      %v3391 = vsel %vm3364, %v3358, %v2615
      %v3392 = vsel %vm3364, %v3359, %v2617
      %v3393 = vsel %vm3364, %v3360, %v2619
      %v3394 = vsel %vm3364, %v3361, %v2621
      %v3395 = vsel %vm3364, %v3362, %v2623
      %v3396 = vsel %vm3364, %v3363, %v2625
      %vm3397 = vcmask 130048
      %v3398 = vsel %vm3397, %v3365, %v2691
      %v3399 = vsel %vm3397, %v3366, %v2693
      %v3400 = vsel %vm3397, %v3367, %v2695
      %v3401 = vsel %vm3397, %v3368, %v2697
      %v3402 = vsel %vm3397, %v3369, %v2699
      %v3403 = vsel %vm3397, %v3370, %v2701
      %v3404 = vsel %vm3397, %v3371, %v2703
      %v3405 = vsel %vm3397, %v3372, %v2705
      %v3406 = vsel %vm3397, %v3373, %v2707
      %v3407 = vsel %vm3397, %v3374, %v2709
      %v3408 = vsel %vm3397, %v3375, %v2711
      %v3409 = vsel %vm3397, %v3376, %v2713
      %v3410 = vsel %vm3397, %v3377, %v2715
      %v3411 = vsel %vm3397, %v3378, %v2717
      %v3412 = vsel %vm3397, %v3379, %v2719
      %v3413 = vsel %vm3397, %v3380, %v2721
      %v3414 = vsel %vm3397, %v3381, %v2723
      %v3415 = vsel %vm3397, %v3382, %v2725
      %v3416 = vsel %vm3397, %v3383, %v2727
      %v3417 = vsel %vm3397, %v3384, %v2729
      %v3418 = vsel %vm3397, %v3385, %v2731
      %v3419 = vsel %vm3397, %v3386, %v2733
      %v3420 = vsel %vm3397, %v3387, %v2735
      %v3421 = vsel %vm3397, %v3388, %v2737
      %v3422 = vsel %vm3397, %v3389, %v2739
      %v3423 = vsel %vm3397, %v3390, %v2741
      %v3424 = vsel %vm3397, %v3391, %v2743
      %v3425 = vsel %vm3397, %v3392, %v2745
      %v3426 = vsel %vm3397, %v3393, %v2747
      %v3427 = vsel %vm3397, %v3394, %v2749
      %v3428 = vsel %vm3397, %v3395, %v2751
      %v3429 = vsel %vm3397, %v3396, %v2753
      %vm3430 = vcmask 162816
      %v3431 = vsel %vm3430, %v3398, %v2819
      %v3432 = vsel %vm3430, %v3399, %v2821
      %v3433 = vsel %vm3430, %v3400, %v2823
      %v3434 = vsel %vm3430, %v3401, %v2825
      %v3435 = vsel %vm3430, %v3402, %v2827
      %v3436 = vsel %vm3430, %v3403, %v2829
      %v3437 = vsel %vm3430, %v3404, %v2831
      %v3438 = vsel %vm3430, %v3405, %v2833
      %v3439 = vsel %vm3430, %v3406, %v2835
      %v3440 = vsel %vm3430, %v3407, %v2837
      %v3441 = vsel %vm3430, %v3408, %v2839
      %v3442 = vsel %vm3430, %v3409, %v2841
      %v3443 = vsel %vm3430, %v3410, %v2843
      %v3444 = vsel %vm3430, %v3411, %v2845
      %v3445 = vsel %vm3430, %v3412, %v2847
      %v3446 = vsel %vm3430, %v3413, %v2849
      %v3447 = vsel %vm3430, %v3414, %v2851
      %v3448 = vsel %vm3430, %v3415, %v2853
      %v3449 = vsel %vm3430, %v3416, %v2855
      %v3450 = vsel %vm3430, %v3417, %v2857
      %v3451 = vsel %vm3430, %v3418, %v2859
      %v3452 = vsel %vm3430, %v3419, %v2861
      %v3453 = vsel %vm3430, %v3420, %v2863
      %v3454 = vsel %vm3430, %v3421, %v2865
      %v3455 = vsel %vm3430, %v3422, %v2867
      %v3456 = vsel %vm3430, %v3423, %v2869
      %v3457 = vsel %vm3430, %v3424, %v2871
      %v3458 = vsel %vm3430, %v3425, %v2873
      %v3459 = vsel %vm3430, %v3426, %v2875
      %v3460 = vsel %vm3430, %v3427, %v2877
      %v3461 = vsel %vm3430, %v3428, %v2879
      %v3462 = vsel %vm3430, %v3429, %v2881
      %vm3463 = vcmask 195584
      %v3464 = vsel %vm3463, %v3431, %v2947
      %v3465 = vsel %vm3463, %v3432, %v2949
      %v3466 = vsel %vm3463, %v3433, %v2951
      %v3467 = vsel %vm3463, %v3434, %v2953
      %v3468 = vsel %vm3463, %v3435, %v2955
      %v3469 = vsel %vm3463, %v3436, %v2957
      %v3470 = vsel %vm3463, %v3437, %v2959
      %v3471 = vsel %vm3463, %v3438, %v2961
      %v3472 = vsel %vm3463, %v3439, %v2963
      %v3473 = vsel %vm3463, %v3440, %v2965
      %v3474 = vsel %vm3463, %v3441, %v2967
      %v3475 = vsel %vm3463, %v3442, %v2969
      %v3476 = vsel %vm3463, %v3443, %v2971
      %v3477 = vsel %vm3463, %v3444, %v2973
      %v3478 = vsel %vm3463, %v3445, %v2975
      %v3479 = vsel %vm3463, %v3446, %v2977
      %v3480 = vsel %vm3463, %v3447, %v2979
      %v3481 = vsel %vm3463, %v3448, %v2981
      %v3482 = vsel %vm3463, %v3449, %v2983
      %v3483 = vsel %vm3463, %v3450, %v2985
      %v3484 = vsel %vm3463, %v3451, %v2987
      %v3485 = vsel %vm3463, %v3452, %v2989
      %v3486 = vsel %vm3463, %v3453, %v2991
      %v3487 = vsel %vm3463, %v3454, %v2993
      %v3488 = vsel %vm3463, %v3455, %v2995
      %v3489 = vsel %vm3463, %v3456, %v2997
      %v3490 = vsel %vm3463, %v3457, %v2999
      %v3491 = vsel %vm3463, %v3458, %v3001
      %v3492 = vsel %vm3463, %v3459, %v3003
      %v3493 = vsel %vm3463, %v3460, %v3005
      %v3494 = vsel %vm3463, %v3461, %v3007
      %v3495 = vsel %vm3463, %v3462, %v3009
      %vm3496 = vcmask 228352
      %v3497 = vsel %vm3496, %v3464, %v3075
      %v3498 = vsel %vm3496, %v3465, %v3077
      %v3499 = vsel %vm3496, %v3466, %v3079
      %v3500 = vsel %vm3496, %v3467, %v3081
      %v3501 = vsel %vm3496, %v3468, %v3083
      %v3502 = vsel %vm3496, %v3469, %v3085
      %v3503 = vsel %vm3496, %v3470, %v3087
      %v3504 = vsel %vm3496, %v3471, %v3089
      %v3505 = vsel %vm3496, %v3472, %v3091
      %v3506 = vsel %vm3496, %v3473, %v3093
      %v3507 = vsel %vm3496, %v3474, %v3095
      %v3508 = vsel %vm3496, %v3475, %v3097
      %v3509 = vsel %vm3496, %v3476, %v3099
      %v3510 = vsel %vm3496, %v3477, %v3101
      %v3511 = vsel %vm3496, %v3478, %v3103
      %v3512 = vsel %vm3496, %v3479, %v3105
      %v3513 = vsel %vm3496, %v3480, %v3107
      %v3514 = vsel %vm3496, %v3481, %v3109
      %v3515 = vsel %vm3496, %v3482, %v3111
      %v3516 = vsel %vm3496, %v3483, %v3113
      %v3517 = vsel %vm3496, %v3484, %v3115
      %v3518 = vsel %vm3496, %v3485, %v3117
      %v3519 = vsel %vm3496, %v3486, %v3119
      %v3520 = vsel %vm3496, %v3487, %v3121
      %v3521 = vsel %vm3496, %v3488, %v3123
      %v3522 = vsel %vm3496, %v3489, %v3125
      %v3523 = vsel %vm3496, %v3490, %v3127
      %v3524 = vsel %vm3496, %v3491, %v3129
      %v3525 = vsel %vm3496, %v3492, %v3131
      %v3526 = vsel %vm3496, %v3493, %v3133
      %v3527 = vsel %vm3496, %v3494, %v3135
      %v3528 = vsel %vm3496, %v3495, %v3137
      %vm3529 = vcmask 261120
      %v3530 = vsel %vm3529, %v3497, %v3203
      %v3531 = vsel %vm3529, %v3498, %v3205
      %v3532 = vsel %vm3529, %v3499, %v3207
      %v3533 = vsel %vm3529, %v3500, %v3209
      %v3534 = vsel %vm3529, %v3501, %v3211
      %v3535 = vsel %vm3529, %v3502, %v3213
      %v3536 = vsel %vm3529, %v3503, %v3215
      %v3537 = vsel %vm3529, %v3504, %v3217
      %v3538 = vsel %vm3529, %v3505, %v3219
      %v3539 = vsel %vm3529, %v3506, %v3221
      %v3540 = vsel %vm3529, %v3507, %v3223
      %v3541 = vsel %vm3529, %v3508, %v3225
      %v3542 = vsel %vm3529, %v3509, %v3227
      %v3543 = vsel %vm3529, %v3510, %v3229
      %v3544 = vsel %vm3529, %v3511, %v3231
      %v3545 = vsel %vm3529, %v3512, %v3233
      %v3546 = vsel %vm3529, %v3513, %v3235
      %v3547 = vsel %vm3529, %v3514, %v3237
      %v3548 = vsel %vm3529, %v3515, %v3239
      %v3549 = vsel %vm3529, %v3516, %v3241
      %v3550 = vsel %vm3529, %v3517, %v3243
      %v3551 = vsel %vm3529, %v3518, %v3245
      %v3552 = vsel %vm3529, %v3519, %v3247
      %v3553 = vsel %vm3529, %v3520, %v3249
      %v3554 = vsel %vm3529, %v3521, %v3251
      %v3555 = vsel %vm3529, %v3522, %v3253
      %v3556 = vsel %vm3529, %v3523, %v3255
      %v3557 = vsel %vm3529, %v3524, %v3257
      %v3558 = vsel %vm3529, %v3525, %v3259
      %v3559 = vsel %vm3529, %v3526, %v3261
      %v3560 = vsel %vm3529, %v3527, %v3263
      %v3561 = vsel %vm3529, %v3528, %v3265
      %v3562 = vpack.c.bf16 %v3531, %v3530
      %v3563 = vpack.c.bf16 %v3533, %v3532
      %v3564 = vpack.c.bf16 %v3535, %v3534
      %v3565 = vpack.c.bf16 %v3537, %v3536
      %v3566 = vpack.c.bf16 %v3539, %v3538
      %v3567 = vpack.c.bf16 %v3541, %v3540
      %v3568 = vpack.c.bf16 %v3543, %v3542
      %v3569 = vpack.c.bf16 %v3545, %v3544
      %v3570 = vpack.c.bf16 %v3547, %v3546
      %v3571 = vpack.c.bf16 %v3549, %v3548
      %v3572 = vpack.c.bf16 %v3551, %v3550
      %v3573 = vpack.c.bf16 %v3553, %v3552
      %v3574 = vpack.c.bf16 %v3555, %v3554
      %v3575 = vpack.c.bf16 %v3557, %v3556
      %v3576 = vpack.c.bf16 %v3559, %v3558
      %v3577 = vpack.c.bf16 %v3561, %v3560
      %v3578 = vld [vmem:[%s1] sm:$0xf]
      %v3579 = vld [vmem:[%s1 + $0x4] sm:$0xf]
      %v3580 = vld [vmem:[%s1 + $0x8] sm:$0xf]
      %v3581 = vld [vmem:[%s1 + $0xc] sm:$0xf]
      %v3582 = vld [vmem:[%s1 + $0x10] sm:$0x3]
      %v3583 = vld [vmem:[%s6] sm:$0x1]
      %v3585 = vperm.slane %v3583, 0
      %v3592 = vunpack.c.l.b16 %v3578
      %v3593 = vunpack.c.l.b16 %v3579
      %v3594 = vunpack.c.l.b16 %v3580
      %v3595 = vunpack.c.l.b16 %v3581
      %v3596 = vunpack.c.l.b16 %v3582
      %v3597 = vpack.c.b16 %v3593, %v3592
      %v3598 = vpack.c.b16 %v3595, %v3594
      %v3599 = vpack.c.b16 %v3596, %v3596
      %vm3602 = vcmask 293888
      %v3604 = vsel %vm3602, %v3562, 0
      %v3607 = vsel %vm3602, %v3563, 0
      %v3610 = vsel %vm3602, %v3564, 0
      %v3613 = vsel %vm3602, %v3565, 0
      %v3616 = vsel %vm3602, %v3566, 0
      %v3619 = vsel %vm3602, %v3567, 0
      %v3622 = vsel %vm3602, %v3568, 0
      %v3625 = vsel %vm3602, %v3569, 0
      %v3628 = vsel %vm3602, %v3570, 0
      %v3631 = vsel %vm3602, %v3571, 0
      %v3634 = vsel %vm3602, %v3572, 0
      %v3637 = vsel %vm3602, %v3573, 0
      %v3640 = vsel %vm3602, %v3574, 0
      %v3643 = vsel %vm3602, %v3575, 0
      %v3646 = vsel %vm3602, %v3576, 0
      %v3649 = vsel %vm3602, %v3577, 0
      %vm3651 = vcmask 1041408
      %v3653 = vsel %vm3651, %v3599, 0
      %3655 = vmatpush.bf16.msra.mxu0 0
      %3656 = vmatpush.bf16.msra.mxu0 0
      %3657 = vmatpush.bf16.msra.mxu0 0
      %3658 = vmatpush.bf16.msra.mxu0 0
      %3659 = vmatpush.bf16.msra.mxu0 0
      %3660 = vmatpush.bf16.msra.mxu0 %v3653
      %3661 = vmatpush.bf16.msra.mxu0 %v3598
      %3662 = vmatpush.bf16.msra.mxu0 %v3597
      %3663 = vmatmul.bf16.gmra.mxu0 %v3604
      %v3664 = vpop.f32.mrf.mxu0
      %v3665 = vadd.f32 %v3585, %v3664
      %v3666 = vpop.f32.mrf.mxu0
      %v3667 = vadd.f32 %v3585, %v3666
      %3668 = vmatmul.bf16.gmra.mxu0 %v3607
      %v3669 = vpop.f32.mrf.mxu0
      %v3670 = vadd.f32 %v3585, %v3669
      %v3671 = vpop.f32.mrf.mxu0
      %v3672 = vadd.f32 %v3585, %v3671
      %3673 = vmatmul.bf16.gmra.mxu0 %v3610
      %v3674 = vpop.f32.mrf.mxu0
      %v3675 = vadd.f32 %v3585, %v3674
      %v3676 = vpop.f32.mrf.mxu0
      %v3677 = vadd.f32 %v3585, %v3676
      %3678 = vmatmul.bf16.gmra.mxu0 %v3613
      %v3679 = vpop.f32.mrf.mxu0
      %v3680 = vadd.f32 %v3585, %v3679
      %v3681 = vpop.f32.mrf.mxu0
      %v3682 = vadd.f32 %v3585, %v3681
      %3683 = vmatmul.bf16.gmra.mxu0 %v3616
      %v3684 = vpop.f32.mrf.mxu0
      %v3685 = vadd.f32 %v3585, %v3684
      %v3686 = vpop.f32.mrf.mxu0
      %v3687 = vadd.f32 %v3585, %v3686
      %3688 = vmatmul.bf16.gmra.mxu0 %v3619
      %v3689 = vpop.f32.mrf.mxu0
      %v3690 = vadd.f32 %v3585, %v3689
      %v3691 = vpop.f32.mrf.mxu0
      %v3692 = vadd.f32 %v3585, %v3691
      %3693 = vmatmul.bf16.gmra.mxu0 %v3622
      %v3694 = vpop.f32.mrf.mxu0
      %v3695 = vadd.f32 %v3585, %v3694
      %v3696 = vpop.f32.mrf.mxu0
      %v3697 = vadd.f32 %v3585, %v3696
      %3698 = vmatmul.bf16.gmra.mxu0 %v3625
      %v3699 = vpop.f32.mrf.mxu0
      %v3700 = vadd.f32 %v3585, %v3699
      %v3701 = vpop.f32.mrf.mxu0
      %v3702 = vadd.f32 %v3585, %v3701
      %3703 = vmatmul.bf16.gmra.mxu0 %v3628
      %v3704 = vpop.f32.mrf.mxu0
      %v3705 = vadd.f32 %v3585, %v3704
      %v3706 = vpop.f32.mrf.mxu0
      %v3707 = vadd.f32 %v3585, %v3706
      %3708 = vmatmul.bf16.gmra.mxu0 %v3631
      %v3709 = vpop.f32.mrf.mxu0
      %v3710 = vadd.f32 %v3585, %v3709
      %v3711 = vpop.f32.mrf.mxu0
      %v3712 = vadd.f32 %v3585, %v3711
      %3713 = vmatmul.bf16.gmra.mxu0 %v3634
      %v3714 = vpop.f32.mrf.mxu0
      %v3715 = vadd.f32 %v3585, %v3714
      %v3716 = vpop.f32.mrf.mxu0
      %v3717 = vadd.f32 %v3585, %v3716
      %3718 = vmatmul.bf16.gmra.mxu0 %v3637
      %v3719 = vpop.f32.mrf.mxu0
      %v3720 = vadd.f32 %v3585, %v3719
      %v3721 = vpop.f32.mrf.mxu0
      %v3722 = vadd.f32 %v3585, %v3721
      %3723 = vmatmul.bf16.gmra.mxu0 %v3640
      %v3724 = vpop.f32.mrf.mxu0
      %v3725 = vadd.f32 %v3585, %v3724
      %v3726 = vpop.f32.mrf.mxu0
      %v3727 = vadd.f32 %v3585, %v3726
      %3728 = vmatmul.bf16.gmra.mxu0 %v3643
      %v3729 = vpop.f32.mrf.mxu0
      %v3730 = vadd.f32 %v3585, %v3729
      %v3731 = vpop.f32.mrf.mxu0
      %v3732 = vadd.f32 %v3585, %v3731
      %3733 = vmatmul.bf16.gmra.mxu0 %v3646
      %v3734 = vpop.f32.mrf.mxu0
      %v3735 = vadd.f32 %v3585, %v3734
      %v3736 = vpop.f32.mrf.mxu0
      %v3737 = vadd.f32 %v3585, %v3736
      %3738 = vmatmul.bf16.gmra.mxu0 %v3649
      %v3739 = vpop.f32.mrf.mxu0
      %v3740 = vadd.f32 %v3585, %v3739
      %v3741 = vpop.f32.mrf.mxu0
      %v3742 = vadd.f32 %v3585, %v3741
      %3743 = vdwg.mxu0
      %v3744 = vmax.f32 %v3665, 0.0
      %v3745 = vmax.f32 %v3667, 0.0
      %v3746 = vmax.f32 %v3670, 0.0
      %v3747 = vmax.f32 %v3672, 0.0
      %v3748 = vmax.f32 %v3675, 0.0
      %v3749 = vmax.f32 %v3677, 0.0
      %v3750 = vmax.f32 %v3680, 0.0
      %v3751 = vmax.f32 %v3682, 0.0
      %v3752 = vmax.f32 %v3685, 0.0
      %v3753 = vmax.f32 %v3687, 0.0
      %v3754 = vmax.f32 %v3690, 0.0
      %v3755 = vmax.f32 %v3692, 0.0
      %v3756 = vmax.f32 %v3695, 0.0
      %v3757 = vmax.f32 %v3697, 0.0
      %v3758 = vmax.f32 %v3700, 0.0
      %v3759 = vmax.f32 %v3702, 0.0
      %v3760 = vmax.f32 %v3705, 0.0
      %v3761 = vmax.f32 %v3707, 0.0
      %v3762 = vmax.f32 %v3710, 0.0
      %v3763 = vmax.f32 %v3712, 0.0
      %v3764 = vmax.f32 %v3715, 0.0
      %v3765 = vmax.f32 %v3717, 0.0
      %v3766 = vmax.f32 %v3720, 0.0
      %v3767 = vmax.f32 %v3722, 0.0
      %v3768 = vmax.f32 %v3725, 0.0
      %v3769 = vmax.f32 %v3727, 0.0
      %v3770 = vmax.f32 %v3730, 0.0
      %v3771 = vmax.f32 %v3732, 0.0
      %v3772 = vmax.f32 %v3735, 0.0
      %v3773 = vmax.f32 %v3737, 0.0
      %v3774 = vmax.f32 %v3740, 0.0
      %v3775 = vmax.f32 %v3742, 0.0
      %v3776 = vrot.slane %v3744, 7
      %v3777 = vrot.slane %v3745, 7
      %v3778 = vrot.slane %v3746, 7
      %v3779 = vrot.slane %v3747, 7
      %v3780 = vrot.slane %v3748, 7
      %v3781 = vrot.slane %v3749, 7
      %v3782 = vrot.slane %v3750, 7
      %v3783 = vrot.slane %v3751, 7
      %v3784 = vrot.slane %v3752, 7
      %v3785 = vrot.slane %v3753, 7
      %v3786 = vrot.slane %v3754, 7
      %v3787 = vrot.slane %v3755, 7
      %v3788 = vrot.slane %v3756, 7
      %v3789 = vrot.slane %v3757, 7
      %v3790 = vrot.slane %v3758, 7
      %v3791 = vrot.slane %v3759, 7
      %v3792 = vrot.slane %v3760, 7
      %v3793 = vrot.slane %v3761, 7
      %v3794 = vrot.slane %v3762, 7
      %v3795 = vrot.slane %v3763, 7
      %v3796 = vrot.slane %v3764, 7
      %v3797 = vrot.slane %v3765, 7
      %v3798 = vrot.slane %v3766, 7
      %v3799 = vrot.slane %v3767, 7
      %v3800 = vrot.slane %v3768, 7
      %v3801 = vrot.slane %v3769, 7
      %v3802 = vrot.slane %v3770, 7
      %v3803 = vrot.slane %v3771, 7
      %v3804 = vrot.slane %v3772, 7
      %v3805 = vrot.slane %v3773, 7
      %v3806 = vrot.slane %v3774, 7
      %v3807 = vrot.slane %v3775, 7
      %v3808 = vsel %vm832, %v3806, %v3807
      %v3809 = vsel %vm832, %v3805, %v3806
      %v3810 = vsel %vm832, %v3804, %v3805
      %v3811 = vsel %vm832, %v3803, %v3804
      %v3812 = vsel %vm832, %v3802, %v3803
      %v3813 = vsel %vm832, %v3801, %v3802
      %v3814 = vsel %vm832, %v3800, %v3801
      %v3815 = vsel %vm832, %v3799, %v3800
      %v3816 = vsel %vm832, %v3798, %v3799
      %v3817 = vsel %vm832, %v3797, %v3798
      %v3818 = vsel %vm832, %v3796, %v3797
      %v3819 = vsel %vm832, %v3795, %v3796
      %v3820 = vsel %vm832, %v3794, %v3795
      %v3821 = vsel %vm832, %v3793, %v3794
      %v3822 = vsel %vm832, %v3792, %v3793
      %v3823 = vsel %vm832, %v3791, %v3792
      %v3824 = vsel %vm832, %v3790, %v3791
      %v3825 = vsel %vm832, %v3789, %v3790
      %v3826 = vsel %vm832, %v3788, %v3789
      %v3827 = vsel %vm832, %v3787, %v3788
      %v3828 = vsel %vm832, %v3786, %v3787
      %v3829 = vsel %vm832, %v3785, %v3786
      %v3830 = vsel %vm832, %v3784, %v3785
      %v3831 = vsel %vm832, %v3783, %v3784
      %v3832 = vsel %vm832, %v3782, %v3783
      %v3833 = vsel %vm832, %v3781, %v3782
      %v3834 = vsel %vm832, %v3780, %v3781
      %v3835 = vsel %vm832, %v3779, %v3780
      %v3836 = vsel %vm832, %v3778, %v3779
      %v3837 = vsel %vm832, %v3777, %v3778
      %v3838 = vsel %vm832, %v3776, %v3777
      %v3839 = vsel %vm832, %v3807, %v3776
      %v3840 = vsel %vm993, %v3809, 0.0
      %v3841 = vsel %vm994, %v3808, 0.0
      %v3842 = vsel %vm995, %v3839, 0.0
      %v3843 = vsel %vm996, %v3838, 0.0
      %v3844 = vsel %vm997, %v3837, 0.0
      %v3845 = vsel %vm998, %v3836, 0.0
      %v3846 = vsel %vm999, %v3835, 0.0
      %v3847 = vsel %vm1000, %v3834, 0.0
      %v3848 = vsel %vm1001, %v3833, 0.0
      %v3849 = vsel %vm1002, %v3832, 0.0
      %v3850 = vsel %vm1003, %v3831, 0.0
      %v3851 = vsel %vm1004, %v3830, 0.0
      %v3852 = vsel %vm1005, %v3829, 0.0
      %v3853 = vsel %vm1006, %v3828, 0.0
      %v3854 = vsel %vm1007, %v3827, 0.0
      %v3855 = vsel %vm1008, %v3826, 0.0
      %v3856 = vsel %vm1009, %v3825, 0.0
      %v3857 = vsel %vm1010, %v3824, 0.0
      %v3858 = vsel %vm1011, %v3823, 0.0
      %v3859 = vsel %vm1012, %v3822, 0.0
      %v3860 = vsel %vm1013, %v3821, 0.0
      %v3861 = vsel %vm1014, %v3820, 0.0
      %v3862 = vsel %vm1015, %v3819, 0.0
      %v3863 = vsel %vm1016, %v3818, 0.0
      %v3864 = vsel %vm1017, %v3817, 0.0
      %v3865 = vsel %vm1018, %v3816, 0.0
      %v3866 = vsel %vm1019, %v3815, 0.0
      %v3867 = vsel %vm1020, %v3814, 0.0
      %v3868 = vsel %vm1021, %v3813, 0.0
      %v3869 = vsel %vm1022, %v3812, 0.0
      %v3870 = vsel %vm1023, %v3811, 0.0
      %v3871 = vsel %vm1024, %v3810, 0.0
      %v3872 = vpack.c.bf16 %v3841, %v3840
      %v3873 = vpack.c.bf16 %v3843, %v3842
      %v3874 = vpack.c.bf16 %v3845, %v3844
      %v3875 = vpack.c.bf16 %v3847, %v3846
      %v3876 = vpack.c.bf16 %v3849, %v3848
      %v3877 = vpack.c.bf16 %v3851, %v3850
      %v3878 = vpack.c.bf16 %v3853, %v3852
      %v3879 = vpack.c.bf16 %v3855, %v3854
      %v3880 = vpack.c.bf16 %v3857, %v3856
      %v3881 = vpack.c.bf16 %v3859, %v3858
      %v3882 = vpack.c.bf16 %v3861, %v3860
      %v3883 = vpack.c.bf16 %v3863, %v3862
      %v3884 = vpack.c.bf16 %v3865, %v3864
      %v3885 = vpack.c.bf16 %v3867, %v3866
      %v3886 = vpack.c.bf16 %v3869, %v3868
      %v3887 = vpack.c.bf16 %v3871, %v3870
      %v3888 = vld [vmem:[%s2] sm:$0xf]
      %v3889 = vld [vmem:[%s2 + $0x4] sm:$0xf]
      %v3890 = vld [vmem:[%s2 + $0x8] sm:$0xf]
      %v3891 = vld [vmem:[%s2 + $0xc] sm:$0xf]
      %v3892 = vsel %vm1089, %v3774, 0.0
      %v3893 = vsel %vm1090, %v3775, 0.0
      %v3894 = vsel %vm1091, %v3744, 0.0
      %v3895 = vsel %vm1092, %v3745, 0.0
      %v3896 = vsel %vm1093, %v3746, 0.0
      %v3897 = vsel %vm1094, %v3747, 0.0
      %v3898 = vsel %vm1095, %v3748, 0.0
      %v3899 = vsel %vm1096, %v3749, 0.0
      %v3900 = vsel %vm1097, %v3750, 0.0
      %v3901 = vsel %vm1098, %v3751, 0.0
      %v3902 = vsel %vm1099, %v3752, 0.0
      %v3903 = vsel %vm1100, %v3753, 0.0
      %v3904 = vsel %vm1101, %v3754, 0.0
      %v3905 = vsel %vm1102, %v3755, 0.0
      %v3906 = vsel %vm1103, %v3756, 0.0
      %v3907 = vsel %vm1104, %v3757, 0.0
      %v3908 = vsel %vm1105, %v3758, 0.0
      %v3909 = vsel %vm1106, %v3759, 0.0
      %v3910 = vsel %vm1107, %v3760, 0.0
      %v3911 = vsel %vm1108, %v3761, 0.0
      %v3912 = vsel %vm1109, %v3762, 0.0
      %v3913 = vsel %vm1110, %v3763, 0.0
      %v3914 = vsel %vm1111, %v3764, 0.0
      %v3915 = vsel %vm1112, %v3765, 0.0
      %v3916 = vsel %vm1113, %v3766, 0.0
      %v3917 = vsel %vm1114, %v3767, 0.0
      %v3918 = vsel %vm1115, %v3768, 0.0
      %v3919 = vsel %vm1116, %v3769, 0.0
      %v3920 = vsel %vm1117, %v3770, 0.0
      %v3921 = vsel %vm1118, %v3771, 0.0
      %v3922 = vsel %vm1119, %v3772, 0.0
      %v3923 = vsel %vm1120, %v3773, 0.0
      %v3924 = vpack.c.bf16 %v3893, %v3892
      %v3925 = vpack.c.bf16 %v3895, %v3894
      %v3926 = vpack.c.bf16 %v3897, %v3896
      %v3927 = vpack.c.bf16 %v3899, %v3898
      %v3928 = vpack.c.bf16 %v3901, %v3900
      %v3929 = vpack.c.bf16 %v3903, %v3902
      %v3930 = vpack.c.bf16 %v3905, %v3904
      %v3931 = vpack.c.bf16 %v3907, %v3906
      %v3932 = vpack.c.bf16 %v3909, %v3908
      %v3933 = vpack.c.bf16 %v3911, %v3910
      %v3934 = vpack.c.bf16 %v3913, %v3912
      %v3935 = vpack.c.bf16 %v3915, %v3914
      %v3936 = vpack.c.bf16 %v3917, %v3916
      %v3937 = vpack.c.bf16 %v3919, %v3918
      %v3938 = vpack.c.bf16 %v3921, %v3920
      %v3939 = vpack.c.bf16 %v3923, %v3922
      %v3940 = vld [vmem:[%s2 + $0x10] sm:$0xf]
      %v3941 = vld [vmem:[%s2 + $0x14] sm:$0xf]
      %v3942 = vld [vmem:[%s2 + $0x18] sm:$0xf]
      %v3943 = vld [vmem:[%s2 + $0x1c] sm:$0xf]
      %v3948 = vunpack.c.l.b16 %v3940
      %v3949 = vunpack.c.l.b16 %v3941
      %v3950 = vunpack.c.l.b16 %v3942
      %v3951 = vunpack.c.l.b16 %v3943
      %v3952 = vpack.c.b16 %v3949, %v3948
      %v3953 = vpack.c.b16 %v3951, %v3950
      %v3957 = vsel %vm3529, %v3924, 0
      %v3960 = vsel %vm3529, %v3925, 0
      %v3963 = vsel %vm3529, %v3926, 0
      %v3966 = vsel %vm3529, %v3927, 0
      %v3969 = vsel %vm3529, %v3928, 0
      %v3972 = vsel %vm3529, %v3929, 0
      %v3975 = vsel %vm3529, %v3930, 0
      %v3978 = vsel %vm3529, %v3931, 0
      %v3981 = vsel %vm3529, %v3932, 0
      %v3984 = vsel %vm3529, %v3933, 0
      %v3987 = vsel %vm3529, %v3934, 0
      %v3990 = vsel %vm3529, %v3935, 0
      %v3993 = vsel %vm3529, %v3936, 0
      %v3996 = vsel %vm3529, %v3937, 0
      %v3999 = vsel %vm3529, %v3938, 0
      %v4002 = vsel %vm3529, %v3939, 0
      %4004 = vmatpush.bf16.msra.mxu0 0
      %4005 = vmatpush.bf16.msra.mxu0 0
      %4006 = vmatpush.bf16.msra.mxu0 0
      %4007 = vmatpush.bf16.msra.mxu0 0
      %4008 = vmatpush.bf16.msra.mxu0 0
      %4009 = vmatpush.bf16.msra.mxu0 0
      %4010 = vmatpush.bf16.msra.mxu0 %v3953
      %4011 = vmatpush.bf16.msra.mxu0 %v3952
      %4012 = vmatmul.bf16.gmra.mxu0 %v3957
      %v4013 = vpop.f32.mrf.mxu0
      %v4014 = vadd.f32 0.0, %v4013
      %v4015 = vpop.f32.mrf.mxu0
      %v4016 = vadd.f32 0.0, %v4015
      %4017 = vmatmul.bf16.gmra.mxu0 %v3960
      %v4018 = vpop.f32.mrf.mxu0
      %v4019 = vadd.f32 0.0, %v4018
      %v4020 = vpop.f32.mrf.mxu0
      %v4021 = vadd.f32 0.0, %v4020
      %4022 = vmatmul.bf16.gmra.mxu0 %v3963
      %v4023 = vpop.f32.mrf.mxu0
      %v4024 = vadd.f32 0.0, %v4023
      %v4025 = vpop.f32.mrf.mxu0
      %v4026 = vadd.f32 0.0, %v4025
      %4027 = vmatmul.bf16.gmra.mxu0 %v3966
      %v4028 = vpop.f32.mrf.mxu0
      %v4029 = vadd.f32 0.0, %v4028
      %v4030 = vpop.f32.mrf.mxu0
      %v4031 = vadd.f32 0.0, %v4030
      %4032 = vmatmul.bf16.gmra.mxu0 %v3969
      %v4033 = vpop.f32.mrf.mxu0
      %v4034 = vadd.f32 0.0, %v4033
      %v4035 = vpop.f32.mrf.mxu0
      %v4036 = vadd.f32 0.0, %v4035
      %4037 = vmatmul.bf16.gmra.mxu0 %v3972
      %v4038 = vpop.f32.mrf.mxu0
      %v4039 = vadd.f32 0.0, %v4038
      %v4040 = vpop.f32.mrf.mxu0
      %v4041 = vadd.f32 0.0, %v4040
      %4042 = vmatmul.bf16.gmra.mxu0 %v3975
      %v4043 = vpop.f32.mrf.mxu0
      %v4044 = vadd.f32 0.0, %v4043
      %v4045 = vpop.f32.mrf.mxu0
      %v4046 = vadd.f32 0.0, %v4045
      %4047 = vmatmul.bf16.gmra.mxu0 %v3978
      %v4048 = vpop.f32.mrf.mxu0
      %v4049 = vadd.f32 0.0, %v4048
      %v4050 = vpop.f32.mrf.mxu0
      %v4051 = vadd.f32 0.0, %v4050
      %4052 = vmatmul.bf16.gmra.mxu0 %v3981
      %v4053 = vpop.f32.mrf.mxu0
      %v4054 = vadd.f32 0.0, %v4053
      %v4055 = vpop.f32.mrf.mxu0
      %v4056 = vadd.f32 0.0, %v4055
      %4057 = vmatmul.bf16.gmra.mxu0 %v3984
      %v4058 = vpop.f32.mrf.mxu0
      %v4059 = vadd.f32 0.0, %v4058
      %v4060 = vpop.f32.mrf.mxu0
      %v4061 = vadd.f32 0.0, %v4060
      %4062 = vmatmul.bf16.gmra.mxu0 %v3987
      %v4063 = vpop.f32.mrf.mxu0
      %v4064 = vadd.f32 0.0, %v4063
      %v4065 = vpop.f32.mrf.mxu0
      %v4066 = vadd.f32 0.0, %v4065
      %4067 = vmatmul.bf16.gmra.mxu0 %v3990
      %v4068 = vpop.f32.mrf.mxu0
      %v4069 = vadd.f32 0.0, %v4068
      %v4070 = vpop.f32.mrf.mxu0
      %v4071 = vadd.f32 0.0, %v4070
      %4072 = vmatmul.bf16.gmra.mxu0 %v3993
      %v4073 = vpop.f32.mrf.mxu0
      %v4074 = vadd.f32 0.0, %v4073
      %v4075 = vpop.f32.mrf.mxu0
      %v4076 = vadd.f32 0.0, %v4075
      %4077 = vmatmul.bf16.gmra.mxu0 %v3996
      %v4078 = vpop.f32.mrf.mxu0
      %v4079 = vadd.f32 0.0, %v4078
      %v4080 = vpop.f32.mrf.mxu0
      %v4081 = vadd.f32 0.0, %v4080
      %4082 = vmatmul.bf16.gmra.mxu0 %v3999
      %v4083 = vpop.f32.mrf.mxu0
      %v4084 = vadd.f32 0.0, %v4083
      %v4085 = vpop.f32.mrf.mxu0
      %v4086 = vadd.f32 0.0, %v4085
      %4087 = vmatmul.bf16.gmra.mxu0 %v4002
      %v4088 = vpop.f32.mrf.mxu0
      %v4089 = vadd.f32 0.0, %v4088
      %v4090 = vpop.f32.mrf.mxu0
      %v4091 = vadd.f32 0.0, %v4090
      %4092 = vdwg.mxu0
      %v4097 = vunpack.c.l.b16 %v3888
      %v4098 = vunpack.c.l.b16 %v3889
      %v4099 = vunpack.c.l.b16 %v3890
      %v4100 = vunpack.c.l.b16 %v3891
      %v4101 = vpack.c.b16 %v4098, %v4097
      %v4102 = vpack.c.b16 %v4100, %v4099
      %v4106 = vsel %vm3529, %v3872, 0
      %v4109 = vsel %vm3529, %v3873, 0
      %v4112 = vsel %vm3529, %v3874, 0
      %v4115 = vsel %vm3529, %v3875, 0
      %v4118 = vsel %vm3529, %v3876, 0
      %v4121 = vsel %vm3529, %v3877, 0
      %v4124 = vsel %vm3529, %v3878, 0
      %v4127 = vsel %vm3529, %v3879, 0
      %v4130 = vsel %vm3529, %v3880, 0
      %v4133 = vsel %vm3529, %v3881, 0
      %v4136 = vsel %vm3529, %v3882, 0
      %v4139 = vsel %vm3529, %v3883, 0
      %v4142 = vsel %vm3529, %v3884, 0
      %v4145 = vsel %vm3529, %v3885, 0
      %v4148 = vsel %vm3529, %v3886, 0
      %v4151 = vsel %vm3529, %v3887, 0
      %4153 = vmatpush.bf16.msra.mxu0 0
      %4154 = vmatpush.bf16.msra.mxu0 0
      %4155 = vmatpush.bf16.msra.mxu0 0
      %4156 = vmatpush.bf16.msra.mxu0 0
      %4157 = vmatpush.bf16.msra.mxu0 0
      %4158 = vmatpush.bf16.msra.mxu0 0
      %4159 = vmatpush.bf16.msra.mxu0 %v4102
      %4160 = vmatpush.bf16.msra.mxu0 %v4101
      %4161 = vmatmul.bf16.gmra.mxu0 %v4106
      %v4162 = vpop.f32.mrf.mxu0
      %v4163 = vadd.f32 %v4014, %v4162
      %v4164 = vpop.f32.mrf.mxu0
      %v4165 = vadd.f32 %v4016, %v4164
      %4166 = vmatmul.bf16.gmra.mxu0 %v4109
      %v4167 = vpop.f32.mrf.mxu0
      %v4168 = vadd.f32 %v4019, %v4167
      %v4169 = vpop.f32.mrf.mxu0
      %v4170 = vadd.f32 %v4021, %v4169
      %4171 = vmatmul.bf16.gmra.mxu0 %v4112
      %v4172 = vpop.f32.mrf.mxu0
      %v4173 = vadd.f32 %v4024, %v4172
      %v4174 = vpop.f32.mrf.mxu0
      %v4175 = vadd.f32 %v4026, %v4174
      %4176 = vmatmul.bf16.gmra.mxu0 %v4115
      %v4177 = vpop.f32.mrf.mxu0
      %v4178 = vadd.f32 %v4029, %v4177
      %v4179 = vpop.f32.mrf.mxu0
      %v4180 = vadd.f32 %v4031, %v4179
      %4181 = vmatmul.bf16.gmra.mxu0 %v4118
      %v4182 = vpop.f32.mrf.mxu0
      %v4183 = vadd.f32 %v4034, %v4182
      %v4184 = vpop.f32.mrf.mxu0
      %v4185 = vadd.f32 %v4036, %v4184
      %4186 = vmatmul.bf16.gmra.mxu0 %v4121
      %v4187 = vpop.f32.mrf.mxu0
      %v4188 = vadd.f32 %v4039, %v4187
      %v4189 = vpop.f32.mrf.mxu0
      %v4190 = vadd.f32 %v4041, %v4189
      %4191 = vmatmul.bf16.gmra.mxu0 %v4124
      %v4192 = vpop.f32.mrf.mxu0
      %v4193 = vadd.f32 %v4044, %v4192
      %v4194 = vpop.f32.mrf.mxu0
      %v4195 = vadd.f32 %v4046, %v4194
      %4196 = vmatmul.bf16.gmra.mxu0 %v4127
      %v4197 = vpop.f32.mrf.mxu0
      %v4198 = vadd.f32 %v4049, %v4197
      %v4199 = vpop.f32.mrf.mxu0
      %v4200 = vadd.f32 %v4051, %v4199
      %4201 = vmatmul.bf16.gmra.mxu0 %v4130
      %v4202 = vpop.f32.mrf.mxu0
      %v4203 = vadd.f32 %v4054, %v4202
      %v4204 = vpop.f32.mrf.mxu0
      %v4205 = vadd.f32 %v4056, %v4204
      %4206 = vmatmul.bf16.gmra.mxu0 %v4133
      %v4207 = vpop.f32.mrf.mxu0
      %v4208 = vadd.f32 %v4059, %v4207
      %v4209 = vpop.f32.mrf.mxu0
      %v4210 = vadd.f32 %v4061, %v4209
      %4211 = vmatmul.bf16.gmra.mxu0 %v4136
      %v4212 = vpop.f32.mrf.mxu0
      %v4213 = vadd.f32 %v4064, %v4212
      %v4214 = vpop.f32.mrf.mxu0
      %v4215 = vadd.f32 %v4066, %v4214
      %4216 = vmatmul.bf16.gmra.mxu0 %v4139
      %v4217 = vpop.f32.mrf.mxu0
      %v4218 = vadd.f32 %v4069, %v4217
      %v4219 = vpop.f32.mrf.mxu0
      %v4220 = vadd.f32 %v4071, %v4219
      %4221 = vmatmul.bf16.gmra.mxu0 %v4142
      %v4222 = vpop.f32.mrf.mxu0
      %v4223 = vadd.f32 %v4074, %v4222
      %v4224 = vpop.f32.mrf.mxu0
      %v4225 = vadd.f32 %v4076, %v4224
      %4226 = vmatmul.bf16.gmra.mxu0 %v4145
      %v4227 = vpop.f32.mrf.mxu0
      %v4228 = vadd.f32 %v4079, %v4227
      %v4229 = vpop.f32.mrf.mxu0
      %v4230 = vadd.f32 %v4081, %v4229
      %4231 = vmatmul.bf16.gmra.mxu0 %v4148
      %v4232 = vpop.f32.mrf.mxu0
      %v4233 = vadd.f32 %v4084, %v4232
      %v4234 = vpop.f32.mrf.mxu0
      %v4235 = vadd.f32 %v4086, %v4234
      %4236 = vmatmul.bf16.gmra.mxu0 %v4151
      %v4237 = vpop.f32.mrf.mxu0
      %v4238 = vadd.f32 %v4089, %v4237
      %v4239 = vpop.f32.mrf.mxu0
      %v4240 = vadd.f32 %v4091, %v4239
      %4241 = vdwg.mxu0
      %v4242 = vrot.slane %v3744, 1
      %v4243 = vrot.slane %v3745, 1
      %v4244 = vrot.slane %v3746, 1
      %v4245 = vrot.slane %v3747, 1
      %v4246 = vrot.slane %v3748, 1
      %v4247 = vrot.slane %v3749, 1
      %v4248 = vrot.slane %v3750, 1
      %v4249 = vrot.slane %v3751, 1
      %v4250 = vrot.slane %v3752, 1
      %v4251 = vrot.slane %v3753, 1
      %v4252 = vrot.slane %v3754, 1
      %v4253 = vrot.slane %v3755, 1
      %v4254 = vrot.slane %v3756, 1
      %v4255 = vrot.slane %v3757, 1
      %v4256 = vrot.slane %v3758, 1
      %v4257 = vrot.slane %v3759, 1
      %v4258 = vrot.slane %v3760, 1
      %v4259 = vrot.slane %v3761, 1
      %v4260 = vrot.slane %v3762, 1
      %v4261 = vrot.slane %v3763, 1
      %v4262 = vrot.slane %v3764, 1
      %v4263 = vrot.slane %v3765, 1
      %v4264 = vrot.slane %v3766, 1
      %v4265 = vrot.slane %v3767, 1
      %v4266 = vrot.slane %v3768, 1
      %v4267 = vrot.slane %v3769, 1
      %v4268 = vrot.slane %v3770, 1
      %v4269 = vrot.slane %v3771, 1
      %v4270 = vrot.slane %v3772, 1
      %v4271 = vrot.slane %v3773, 1
      %v4272 = vrot.slane %v3774, 1
      %v4273 = vrot.slane %v3775, 1
      %v4274 = vsel %vm1185, %v4272, %v4273
      %v4275 = vsel %vm1185, %v4271, %v4272
      %v4276 = vsel %vm1185, %v4270, %v4271
      %v4277 = vsel %vm1185, %v4269, %v4270
      %v4278 = vsel %vm1185, %v4268, %v4269
      %v4279 = vsel %vm1185, %v4267, %v4268
      %v4280 = vsel %vm1185, %v4266, %v4267
      %v4281 = vsel %vm1185, %v4265, %v4266
      %v4282 = vsel %vm1185, %v4264, %v4265
      %v4283 = vsel %vm1185, %v4263, %v4264
      %v4284 = vsel %vm1185, %v4262, %v4263
      %v4285 = vsel %vm1185, %v4261, %v4262
      %v4286 = vsel %vm1185, %v4260, %v4261
      %v4287 = vsel %vm1185, %v4259, %v4260
      %v4288 = vsel %vm1185, %v4258, %v4259
      %v4289 = vsel %vm1185, %v4257, %v4258
      %v4290 = vsel %vm1185, %v4256, %v4257
      %v4291 = vsel %vm1185, %v4255, %v4256
      %v4292 = vsel %vm1185, %v4254, %v4255
      %v4293 = vsel %vm1185, %v4253, %v4254
      %v4294 = vsel %vm1185, %v4252, %v4253
      %v4295 = vsel %vm1185, %v4251, %v4252
      %v4296 = vsel %vm1185, %v4250, %v4251
      %v4297 = vsel %vm1185, %v4249, %v4250
      %v4298 = vsel %vm1185, %v4248, %v4249
      %v4299 = vsel %vm1185, %v4247, %v4248
      %v4300 = vsel %vm1185, %v4246, %v4247
      %v4301 = vsel %vm1185, %v4245, %v4246
      %v4302 = vsel %vm1185, %v4244, %v4245
      %v4303 = vsel %vm1185, %v4243, %v4244
      %v4304 = vsel %vm1185, %v4242, %v4243
      %v4305 = vsel %vm1185, %v4273, %v4242
      %v4306 = vsel %vm1346, %v4274, 0.0
      %v4307 = vsel %vm1347, %v4305, 0.0
      %v4308 = vsel %vm1348, %v4304, 0.0
      %v4309 = vsel %vm1349, %v4303, 0.0
      %v4310 = vsel %vm1350, %v4302, 0.0
      %v4311 = vsel %vm1351, %v4301, 0.0
      %v4312 = vsel %vm1352, %v4300, 0.0
      %v4313 = vsel %vm1353, %v4299, 0.0
      %v4314 = vsel %vm1354, %v4298, 0.0
      %v4315 = vsel %vm1355, %v4297, 0.0
      %v4316 = vsel %vm1356, %v4296, 0.0
      %v4317 = vsel %vm1357, %v4295, 0.0
      %v4318 = vsel %vm1358, %v4294, 0.0
      %v4319 = vsel %vm1359, %v4293, 0.0
      %v4320 = vsel %vm1360, %v4292, 0.0
      %v4321 = vsel %vm1361, %v4291, 0.0
      %v4322 = vsel %vm1362, %v4290, 0.0
      %v4323 = vsel %vm1363, %v4289, 0.0
      %v4324 = vsel %vm1364, %v4288, 0.0
      %v4325 = vsel %vm1365, %v4287, 0.0
      %v4326 = vsel %vm1366, %v4286, 0.0
      %v4327 = vsel %vm1367, %v4285, 0.0
      %v4328 = vsel %vm1368, %v4284, 0.0
      %v4329 = vsel %vm1369, %v4283, 0.0
      %v4330 = vsel %vm1370, %v4282, 0.0
      %v4331 = vsel %vm1371, %v4281, 0.0
      %v4332 = vsel %vm1372, %v4280, 0.0
      %v4333 = vsel %vm1373, %v4279, 0.0
      %v4334 = vsel %vm1374, %v4278, 0.0
      %v4335 = vsel %vm1375, %v4277, 0.0
      %v4336 = vsel %vm1376, %v4276, 0.0
      %v4337 = vsel %vm1377, %v4275, 0.0
      %v4338 = vpack.c.bf16 %v4307, %v4306
      %v4339 = vpack.c.bf16 %v4309, %v4308
      %v4340 = vpack.c.bf16 %v4311, %v4310
      %v4341 = vpack.c.bf16 %v4313, %v4312
      %v4342 = vpack.c.bf16 %v4315, %v4314
      %v4343 = vpack.c.bf16 %v4317, %v4316
      %v4344 = vpack.c.bf16 %v4319, %v4318
      %v4345 = vpack.c.bf16 %v4321, %v4320
      %v4346 = vpack.c.bf16 %v4323, %v4322
      %v4347 = vpack.c.bf16 %v4325, %v4324
      %v4348 = vpack.c.bf16 %v4327, %v4326
      %v4349 = vpack.c.bf16 %v4329, %v4328
      %v4350 = vpack.c.bf16 %v4331, %v4330
      %v4351 = vpack.c.bf16 %v4333, %v4332
      %v4352 = vpack.c.bf16 %v4335, %v4334
      %v4353 = vpack.c.bf16 %v4337, %v4336
      %v4354 = vld [vmem:[%s2 + $0x20] sm:$0xf]
      %v4355 = vld [vmem:[%s2 + $0x24] sm:$0xf]
      %v4356 = vld [vmem:[%s2 + $0x28] sm:$0xf]
      %v4357 = vld [vmem:[%s2 + $0x2c] sm:$0xf]
      %v4362 = vunpack.c.l.b16 %v4354
      %v4363 = vunpack.c.l.b16 %v4355
      %v4364 = vunpack.c.l.b16 %v4356
      %v4365 = vunpack.c.l.b16 %v4357
      %v4366 = vpack.c.b16 %v4363, %v4362
      %v4367 = vpack.c.b16 %v4365, %v4364
      %v4371 = vsel %vm3529, %v4338, 0
      %v4374 = vsel %vm3529, %v4339, 0
      %v4377 = vsel %vm3529, %v4340, 0
      %v4380 = vsel %vm3529, %v4341, 0
      %v4383 = vsel %vm3529, %v4342, 0
      %v4386 = vsel %vm3529, %v4343, 0
      %v4389 = vsel %vm3529, %v4344, 0
      %v4392 = vsel %vm3529, %v4345, 0
      %v4395 = vsel %vm3529, %v4346, 0
      %v4398 = vsel %vm3529, %v4347, 0
      %v4401 = vsel %vm3529, %v4348, 0
      %v4404 = vsel %vm3529, %v4349, 0
      %v4407 = vsel %vm3529, %v4350, 0
      %v4410 = vsel %vm3529, %v4351, 0
      %v4413 = vsel %vm3529, %v4352, 0
      %v4416 = vsel %vm3529, %v4353, 0
      %4418 = vmatpush.bf16.msra.mxu0 0
      %4419 = vmatpush.bf16.msra.mxu0 0
      %4420 = vmatpush.bf16.msra.mxu0 0
      %4421 = vmatpush.bf16.msra.mxu0 0
      %4422 = vmatpush.bf16.msra.mxu0 0
      %4423 = vmatpush.bf16.msra.mxu0 0
      %4424 = vmatpush.bf16.msra.mxu0 %v4367
      %4425 = vmatpush.bf16.msra.mxu0 %v4366
      %4426 = vmatmul.bf16.gmra.mxu0 %v4371
      %v4427 = vpop.f32.mrf.mxu0
      %v4428 = vadd.f32 0.0, %v4427
      %v4429 = vpop.f32.mrf.mxu0
      %v4430 = vadd.f32 0.0, %v4429
      %4431 = vmatmul.bf16.gmra.mxu0 %v4374
      %v4432 = vpop.f32.mrf.mxu0
      %v4433 = vadd.f32 0.0, %v4432
      %v4434 = vpop.f32.mrf.mxu0
      %v4435 = vadd.f32 0.0, %v4434
      %4436 = vmatmul.bf16.gmra.mxu0 %v4377
      %v4437 = vpop.f32.mrf.mxu0
      %v4438 = vadd.f32 0.0, %v4437
      %v4439 = vpop.f32.mrf.mxu0
      %v4440 = vadd.f32 0.0, %v4439
      %4441 = vmatmul.bf16.gmra.mxu0 %v4380
      %v4442 = vpop.f32.mrf.mxu0
      %v4443 = vadd.f32 0.0, %v4442
      %v4444 = vpop.f32.mrf.mxu0
      %v4445 = vadd.f32 0.0, %v4444
      %4446 = vmatmul.bf16.gmra.mxu0 %v4383
      %v4447 = vpop.f32.mrf.mxu0
      %v4448 = vadd.f32 0.0, %v4447
      %v4449 = vpop.f32.mrf.mxu0
      %v4450 = vadd.f32 0.0, %v4449
      %4451 = vmatmul.bf16.gmra.mxu0 %v4386
      %v4452 = vpop.f32.mrf.mxu0
      %v4453 = vadd.f32 0.0, %v4452
      %v4454 = vpop.f32.mrf.mxu0
      %v4455 = vadd.f32 0.0, %v4454
      %4456 = vmatmul.bf16.gmra.mxu0 %v4389
      %v4457 = vpop.f32.mrf.mxu0
      %v4458 = vadd.f32 0.0, %v4457
      %v4459 = vpop.f32.mrf.mxu0
      %v4460 = vadd.f32 0.0, %v4459
      %4461 = vmatmul.bf16.gmra.mxu0 %v4392
      %v4462 = vpop.f32.mrf.mxu0
      %v4463 = vadd.f32 0.0, %v4462
      %v4464 = vpop.f32.mrf.mxu0
      %v4465 = vadd.f32 0.0, %v4464
      %4466 = vmatmul.bf16.gmra.mxu0 %v4395
      %v4467 = vpop.f32.mrf.mxu0
      %v4468 = vadd.f32 0.0, %v4467
      %v4469 = vpop.f32.mrf.mxu0
      %v4470 = vadd.f32 0.0, %v4469
      %4471 = vmatmul.bf16.gmra.mxu0 %v4398
      %v4472 = vpop.f32.mrf.mxu0
      %v4473 = vadd.f32 0.0, %v4472
      %v4474 = vpop.f32.mrf.mxu0
      %v4475 = vadd.f32 0.0, %v4474
      %4476 = vmatmul.bf16.gmra.mxu0 %v4401
      %v4477 = vpop.f32.mrf.mxu0
      %v4478 = vadd.f32 0.0, %v4477
      %v4479 = vpop.f32.mrf.mxu0
      %v4480 = vadd.f32 0.0, %v4479
      %4481 = vmatmul.bf16.gmra.mxu0 %v4404
      %v4482 = vpop.f32.mrf.mxu0
      %v4483 = vadd.f32 0.0, %v4482
      %v4484 = vpop.f32.mrf.mxu0
      %v4485 = vadd.f32 0.0, %v4484
      %4486 = vmatmul.bf16.gmra.mxu0 %v4407
      %v4487 = vpop.f32.mrf.mxu0
      %v4488 = vadd.f32 0.0, %v4487
      %v4489 = vpop.f32.mrf.mxu0
      %v4490 = vadd.f32 0.0, %v4489
      %4491 = vmatmul.bf16.gmra.mxu0 %v4410
      %v4492 = vpop.f32.mrf.mxu0
      %v4493 = vadd.f32 0.0, %v4492
      %v4494 = vpop.f32.mrf.mxu0
      %v4495 = vadd.f32 0.0, %v4494
      %4496 = vmatmul.bf16.gmra.mxu0 %v4413
      %v4497 = vpop.f32.mrf.mxu0
      %v4498 = vadd.f32 0.0, %v4497
      %v4499 = vpop.f32.mrf.mxu0
      %v4500 = vadd.f32 0.0, %v4499
      %4501 = vmatmul.bf16.gmra.mxu0 %v4416
      %v4502 = vpop.f32.mrf.mxu0
      %v4503 = vadd.f32 0.0, %v4502
      %v4504 = vpop.f32.mrf.mxu0
      %v4505 = vadd.f32 0.0, %v4504
      %4506 = vdwg.mxu0
      %v4507 = vadd.f32 %v4163, %v4428
      %v4508 = vadd.f32 %v4165, %v4430
      %v4509 = vadd.f32 %v4168, %v4433
      %v4510 = vadd.f32 %v4170, %v4435
      %v4511 = vadd.f32 %v4173, %v4438
      %v4512 = vadd.f32 %v4175, %v4440
      %v4513 = vadd.f32 %v4178, %v4443
      %v4514 = vadd.f32 %v4180, %v4445
      %v4515 = vadd.f32 %v4183, %v4448
      %v4516 = vadd.f32 %v4185, %v4450
      %v4517 = vadd.f32 %v4188, %v4453
      %v4518 = vadd.f32 %v4190, %v4455
      %v4519 = vadd.f32 %v4193, %v4458
      %v4520 = vadd.f32 %v4195, %v4460
      %v4521 = vadd.f32 %v4198, %v4463
      %v4522 = vadd.f32 %v4200, %v4465
      %v4523 = vadd.f32 %v4203, %v4468
      %v4524 = vadd.f32 %v4205, %v4470
      %v4525 = vadd.f32 %v4208, %v4473
      %v4526 = vadd.f32 %v4210, %v4475
      %v4527 = vadd.f32 %v4213, %v4478
      %v4528 = vadd.f32 %v4215, %v4480
      %v4529 = vadd.f32 %v4218, %v4483
      %v4530 = vadd.f32 %v4220, %v4485
      %v4531 = vadd.f32 %v4223, %v4488
      %v4532 = vadd.f32 %v4225, %v4490
      %v4533 = vadd.f32 %v4228, %v4493
      %v4534 = vadd.f32 %v4230, %v4495
      %v4535 = vadd.f32 %v4233, %v4498
      %v4536 = vadd.f32 %v4235, %v4500
      %v4537 = vadd.f32 %v4238, %v4503
      %v4538 = vadd.f32 %v4240, %v4505
      %v4539 = vsel %vm1538, %v3839, 0.0
      %v4540 = vsel %vm1539, %v3838, 0.0
      %v4541 = vsel %vm1540, %v3837, 0.0
      %v4542 = vsel %vm1541, %v3836, 0.0
      %v4543 = vsel %vm1542, %v3835, 0.0
      %v4544 = vsel %vm1543, %v3834, 0.0
      %v4545 = vsel %vm1544, %v3833, 0.0
      %v4546 = vsel %vm1545, %v3832, 0.0
      %v4547 = vsel %vm1546, %v3831, 0.0
      %v4548 = vsel %vm1547, %v3830, 0.0
      %v4549 = vsel %vm1548, %v3829, 0.0
      %v4550 = vsel %vm1549, %v3828, 0.0
      %v4551 = vsel %vm1550, %v3827, 0.0
      %v4552 = vsel %vm1551, %v3826, 0.0
      %v4553 = vsel %vm1552, %v3825, 0.0
      %v4554 = vsel %vm1553, %v3824, 0.0
      %v4555 = vsel %vm1554, %v3823, 0.0
      %v4556 = vsel %vm1555, %v3822, 0.0
      %v4557 = vsel %vm1556, %v3821, 0.0
      %v4558 = vsel %vm1557, %v3820, 0.0
      %v4559 = vsel %vm1558, %v3819, 0.0
      %v4560 = vsel %vm1559, %v3818, 0.0
      %v4561 = vsel %vm1560, %v3817, 0.0
      %v4562 = vsel %vm1561, %v3816, 0.0
      %v4563 = vsel %vm1562, %v3815, 0.0
      %v4564 = vsel %vm1563, %v3814, 0.0
      %v4565 = vsel %vm1564, %v3813, 0.0
      %v4566 = vsel %vm1565, %v3812, 0.0
      %v4567 = vsel %vm1566, %v3811, 0.0
      %v4568 = vsel %vm1567, %v3810, 0.0
      %v4569 = vsel %vm1568, %v3809, 0.0
      %v4570 = vsel %vm1569, %v3808, 0.0
      %v4571 = vpack.c.bf16 %v4540, %v4539
      %v4572 = vpack.c.bf16 %v4542, %v4541
      %v4573 = vpack.c.bf16 %v4544, %v4543
      %v4574 = vpack.c.bf16 %v4546, %v4545
      %v4575 = vpack.c.bf16 %v4548, %v4547
      %v4576 = vpack.c.bf16 %v4550, %v4549
      %v4577 = vpack.c.bf16 %v4552, %v4551
      %v4578 = vpack.c.bf16 %v4554, %v4553
      %v4579 = vpack.c.bf16 %v4556, %v4555
      %v4580 = vpack.c.bf16 %v4558, %v4557
      %v4581 = vpack.c.bf16 %v4560, %v4559
      %v4582 = vpack.c.bf16 %v4562, %v4561
      %v4583 = vpack.c.bf16 %v4564, %v4563
      %v4584 = vpack.c.bf16 %v4566, %v4565
      %v4585 = vpack.c.bf16 %v4568, %v4567
      %v4586 = vpack.c.bf16 %v4570, %v4569
      %v4587 = vld [vmem:[%s2 + $0x30] sm:$0xf]
      %v4588 = vld [vmem:[%s2 + $0x34] sm:$0xf]
      %v4589 = vld [vmem:[%s2 + $0x38] sm:$0xf]
      %v4590 = vld [vmem:[%s2 + $0x3c] sm:$0xf]
      %v4595 = vunpack.c.l.b16 %v4587
      %v4596 = vunpack.c.l.b16 %v4588
      %v4597 = vunpack.c.l.b16 %v4589
      %v4598 = vunpack.c.l.b16 %v4590
      %v4599 = vpack.c.b16 %v4596, %v4595
      %v4600 = vpack.c.b16 %v4598, %v4597
      %v4604 = vsel %vm3529, %v4571, 0
      %v4607 = vsel %vm3529, %v4572, 0
      %v4610 = vsel %vm3529, %v4573, 0
      %v4613 = vsel %vm3529, %v4574, 0
      %v4616 = vsel %vm3529, %v4575, 0
      %v4619 = vsel %vm3529, %v4576, 0
      %v4622 = vsel %vm3529, %v4577, 0
      %v4625 = vsel %vm3529, %v4578, 0
      %v4628 = vsel %vm3529, %v4579, 0
      %v4631 = vsel %vm3529, %v4580, 0
      %v4634 = vsel %vm3529, %v4581, 0
      %v4637 = vsel %vm3529, %v4582, 0
      %v4640 = vsel %vm3529, %v4583, 0
      %v4643 = vsel %vm3529, %v4584, 0
      %v4646 = vsel %vm3529, %v4585, 0
      %v4649 = vsel %vm3529, %v4586, 0
      %4651 = vmatpush.bf16.msra.mxu0 0
      %4652 = vmatpush.bf16.msra.mxu0 0
      %4653 = vmatpush.bf16.msra.mxu0 0
      %4654 = vmatpush.bf16.msra.mxu0 0
      %4655 = vmatpush.bf16.msra.mxu0 0
      %4656 = vmatpush.bf16.msra.mxu0 0
      %4657 = vmatpush.bf16.msra.mxu0 %v4600
      %4658 = vmatpush.bf16.msra.mxu0 %v4599
      %4659 = vmatmul.bf16.gmra.mxu0 %v4604
      %v4660 = vpop.f32.mrf.mxu0
      %v4661 = vadd.f32 0.0, %v4660
      %v4662 = vpop.f32.mrf.mxu0
      %v4663 = vadd.f32 0.0, %v4662
      %4664 = vmatmul.bf16.gmra.mxu0 %v4607
      %v4665 = vpop.f32.mrf.mxu0
      %v4666 = vadd.f32 0.0, %v4665
      %v4667 = vpop.f32.mrf.mxu0
      %v4668 = vadd.f32 0.0, %v4667
      %4669 = vmatmul.bf16.gmra.mxu0 %v4610
      %v4670 = vpop.f32.mrf.mxu0
      %v4671 = vadd.f32 0.0, %v4670
      %v4672 = vpop.f32.mrf.mxu0
      %v4673 = vadd.f32 0.0, %v4672
      %4674 = vmatmul.bf16.gmra.mxu0 %v4613
      %v4675 = vpop.f32.mrf.mxu0
      %v4676 = vadd.f32 0.0, %v4675
      %v4677 = vpop.f32.mrf.mxu0
      %v4678 = vadd.f32 0.0, %v4677
      %4679 = vmatmul.bf16.gmra.mxu0 %v4616
      %v4680 = vpop.f32.mrf.mxu0
      %v4681 = vadd.f32 0.0, %v4680
      %v4682 = vpop.f32.mrf.mxu0
      %v4683 = vadd.f32 0.0, %v4682
      %4684 = vmatmul.bf16.gmra.mxu0 %v4619
      %v4685 = vpop.f32.mrf.mxu0
      %v4686 = vadd.f32 0.0, %v4685
      %v4687 = vpop.f32.mrf.mxu0
      %v4688 = vadd.f32 0.0, %v4687
      %4689 = vmatmul.bf16.gmra.mxu0 %v4622
      %v4690 = vpop.f32.mrf.mxu0
      %v4691 = vadd.f32 0.0, %v4690
      %v4692 = vpop.f32.mrf.mxu0
      %v4693 = vadd.f32 0.0, %v4692
      %4694 = vmatmul.bf16.gmra.mxu0 %v4625
      %v4695 = vpop.f32.mrf.mxu0
      %v4696 = vadd.f32 0.0, %v4695
      %v4697 = vpop.f32.mrf.mxu0
      %v4698 = vadd.f32 0.0, %v4697
      %4699 = vmatmul.bf16.gmra.mxu0 %v4628
      %v4700 = vpop.f32.mrf.mxu0
      %v4701 = vadd.f32 0.0, %v4700
      %v4702 = vpop.f32.mrf.mxu0
      %v4703 = vadd.f32 0.0, %v4702
      %4704 = vmatmul.bf16.gmra.mxu0 %v4631
      %v4705 = vpop.f32.mrf.mxu0
      %v4706 = vadd.f32 0.0, %v4705
      %v4707 = vpop.f32.mrf.mxu0
      %v4708 = vadd.f32 0.0, %v4707
      %4709 = vmatmul.bf16.gmra.mxu0 %v4634
      %v4710 = vpop.f32.mrf.mxu0
      %v4711 = vadd.f32 0.0, %v4710
      %v4712 = vpop.f32.mrf.mxu0
      %v4713 = vadd.f32 0.0, %v4712
      %4714 = vmatmul.bf16.gmra.mxu0 %v4637
      %v4715 = vpop.f32.mrf.mxu0
      %v4716 = vadd.f32 0.0, %v4715
      %v4717 = vpop.f32.mrf.mxu0
      %v4718 = vadd.f32 0.0, %v4717
      %4719 = vmatmul.bf16.gmra.mxu0 %v4640
      %v4720 = vpop.f32.mrf.mxu0
      %v4721 = vadd.f32 0.0, %v4720
      %v4722 = vpop.f32.mrf.mxu0
      %v4723 = vadd.f32 0.0, %v4722
      %4724 = vmatmul.bf16.gmra.mxu0 %v4643
      %v4725 = vpop.f32.mrf.mxu0
      %v4726 = vadd.f32 0.0, %v4725
      %v4727 = vpop.f32.mrf.mxu0
      %v4728 = vadd.f32 0.0, %v4727
      %4729 = vmatmul.bf16.gmra.mxu0 %v4646
      %v4730 = vpop.f32.mrf.mxu0
      %v4731 = vadd.f32 0.0, %v4730
      %v4732 = vpop.f32.mrf.mxu0
      %v4733 = vadd.f32 0.0, %v4732
      %4734 = vmatmul.bf16.gmra.mxu0 %v4649
      %v4735 = vpop.f32.mrf.mxu0
      %v4736 = vadd.f32 0.0, %v4735
      %v4737 = vpop.f32.mrf.mxu0
      %v4738 = vadd.f32 0.0, %v4737
      %4739 = vdwg.mxu0
      %v4740 = vadd.f32 %v4507, %v4661
      %v4741 = vadd.f32 %v4508, %v4663
      %v4742 = vadd.f32 %v4509, %v4666
      %v4743 = vadd.f32 %v4510, %v4668
      %v4744 = vadd.f32 %v4511, %v4671
      %v4745 = vadd.f32 %v4512, %v4673
      %v4746 = vadd.f32 %v4513, %v4676
      %v4747 = vadd.f32 %v4514, %v4678
      %v4748 = vadd.f32 %v4515, %v4681
      %v4749 = vadd.f32 %v4516, %v4683
      %v4750 = vadd.f32 %v4517, %v4686
      %v4751 = vadd.f32 %v4518, %v4688
      %v4752 = vadd.f32 %v4519, %v4691
      %v4753 = vadd.f32 %v4520, %v4693
      %v4754 = vadd.f32 %v4521, %v4696
      %v4755 = vadd.f32 %v4522, %v4698
      %v4756 = vadd.f32 %v4523, %v4701
      %v4757 = vadd.f32 %v4524, %v4703
      %v4758 = vadd.f32 %v4525, %v4706
      %v4759 = vadd.f32 %v4526, %v4708
      %v4760 = vadd.f32 %v4527, %v4711
      %v4761 = vadd.f32 %v4528, %v4713
      %v4762 = vadd.f32 %v4529, %v4716
      %v4763 = vadd.f32 %v4530, %v4718
      %v4764 = vadd.f32 %v4531, %v4721
      %v4765 = vadd.f32 %v4532, %v4723
      %v4766 = vadd.f32 %v4533, %v4726
      %v4767 = vadd.f32 %v4534, %v4728
      %v4768 = vadd.f32 %v4535, %v4731
      %v4769 = vadd.f32 %v4536, %v4733
      %v4770 = vadd.f32 %v4537, %v4736
      %v4771 = vadd.f32 %v4538, %v4738
      %v4772 = vpack.c.bf16 %v3745, %v3744
      %v4773 = vpack.c.bf16 %v3747, %v3746
      %v4774 = vpack.c.bf16 %v3749, %v3748
      %v4775 = vpack.c.bf16 %v3751, %v3750
      %v4776 = vpack.c.bf16 %v3753, %v3752
      %v4777 = vpack.c.bf16 %v3755, %v3754
      %v4778 = vpack.c.bf16 %v3757, %v3756
      %v4779 = vpack.c.bf16 %v3759, %v3758
      %v4780 = vpack.c.bf16 %v3761, %v3760
      %v4781 = vpack.c.bf16 %v3763, %v3762
      %v4782 = vpack.c.bf16 %v3765, %v3764
      %v4783 = vpack.c.bf16 %v3767, %v3766
      %v4784 = vpack.c.bf16 %v3769, %v3768
      %v4785 = vpack.c.bf16 %v3771, %v3770
      %v4786 = vpack.c.bf16 %v3773, %v3772
      %v4787 = vpack.c.bf16 %v3775, %v3774
      %v4788 = vld [vmem:[%s2 + $0x40] sm:$0xf]
      %v4789 = vld [vmem:[%s2 + $0x44] sm:$0xf]
      %v4790 = vld [vmem:[%s2 + $0x48] sm:$0xf]
      %v4791 = vld [vmem:[%s2 + $0x4c] sm:$0xf]
      %v4796 = vunpack.c.l.b16 %v4788
      %v4797 = vunpack.c.l.b16 %v4789
      %v4798 = vunpack.c.l.b16 %v4790
      %v4799 = vunpack.c.l.b16 %v4791
      %v4800 = vpack.c.b16 %v4797, %v4796
      %v4801 = vpack.c.b16 %v4799, %v4798
      %v4805 = vsel %vm3529, %v4772, 0
      %v4808 = vsel %vm3529, %v4773, 0
      %v4811 = vsel %vm3529, %v4774, 0
      %v4814 = vsel %vm3529, %v4775, 0
      %v4817 = vsel %vm3529, %v4776, 0
      %v4820 = vsel %vm3529, %v4777, 0
      %v4823 = vsel %vm3529, %v4778, 0
      %v4826 = vsel %vm3529, %v4779, 0
      %v4829 = vsel %vm3529, %v4780, 0
      %v4832 = vsel %vm3529, %v4781, 0
      %v4835 = vsel %vm3529, %v4782, 0
      %v4838 = vsel %vm3529, %v4783, 0
      %v4841 = vsel %vm3529, %v4784, 0
      %v4844 = vsel %vm3529, %v4785, 0
      %v4847 = vsel %vm3529, %v4786, 0
      %v4850 = vsel %vm3529, %v4787, 0
      %4852 = vmatpush.bf16.msra.mxu0 0
      %4853 = vmatpush.bf16.msra.mxu0 0
      %4854 = vmatpush.bf16.msra.mxu0 0
      %4855 = vmatpush.bf16.msra.mxu0 0
      %4856 = vmatpush.bf16.msra.mxu0 0
      %4857 = vmatpush.bf16.msra.mxu0 0
      %4858 = vmatpush.bf16.msra.mxu0 %v4801
      %4859 = vmatpush.bf16.msra.mxu0 %v4800
      %4860 = vmatmul.bf16.gmra.mxu0 %v4805
      %v4861 = vpop.f32.mrf.mxu0
      %v4862 = vadd.f32 0.0, %v4861
      %v4863 = vpop.f32.mrf.mxu0
      %v4864 = vadd.f32 0.0, %v4863
      %4865 = vmatmul.bf16.gmra.mxu0 %v4808
      %v4866 = vpop.f32.mrf.mxu0
      %v4867 = vadd.f32 0.0, %v4866
      %v4868 = vpop.f32.mrf.mxu0
      %v4869 = vadd.f32 0.0, %v4868
      %4870 = vmatmul.bf16.gmra.mxu0 %v4811
      %v4871 = vpop.f32.mrf.mxu0
      %v4872 = vadd.f32 0.0, %v4871
      %v4873 = vpop.f32.mrf.mxu0
      %v4874 = vadd.f32 0.0, %v4873
      %4875 = vmatmul.bf16.gmra.mxu0 %v4814
      %v4876 = vpop.f32.mrf.mxu0
      %v4877 = vadd.f32 0.0, %v4876
      %v4878 = vpop.f32.mrf.mxu0
      %v4879 = vadd.f32 0.0, %v4878
      %4880 = vmatmul.bf16.gmra.mxu0 %v4817
      %v4881 = vpop.f32.mrf.mxu0
      %v4882 = vadd.f32 0.0, %v4881
      %v4883 = vpop.f32.mrf.mxu0
      %v4884 = vadd.f32 0.0, %v4883
      %4885 = vmatmul.bf16.gmra.mxu0 %v4820
      %v4886 = vpop.f32.mrf.mxu0
      %v4887 = vadd.f32 0.0, %v4886
      %v4888 = vpop.f32.mrf.mxu0
      %v4889 = vadd.f32 0.0, %v4888
      %4890 = vmatmul.bf16.gmra.mxu0 %v4823
      %v4891 = vpop.f32.mrf.mxu0
      %v4892 = vadd.f32 0.0, %v4891
      %v4893 = vpop.f32.mrf.mxu0
      %v4894 = vadd.f32 0.0, %v4893
      %4895 = vmatmul.bf16.gmra.mxu0 %v4826
      %v4896 = vpop.f32.mrf.mxu0
      %v4897 = vadd.f32 0.0, %v4896
      %v4898 = vpop.f32.mrf.mxu0
      %v4899 = vadd.f32 0.0, %v4898
      %4900 = vmatmul.bf16.gmra.mxu0 %v4829
      %v4901 = vpop.f32.mrf.mxu0
      %v4902 = vadd.f32 0.0, %v4901
      %v4903 = vpop.f32.mrf.mxu0
      %v4904 = vadd.f32 0.0, %v4903
      %4905 = vmatmul.bf16.gmra.mxu0 %v4832
      %v4906 = vpop.f32.mrf.mxu0
      %v4907 = vadd.f32 0.0, %v4906
      %v4908 = vpop.f32.mrf.mxu0
      %v4909 = vadd.f32 0.0, %v4908
      %4910 = vmatmul.bf16.gmra.mxu0 %v4835
      %v4911 = vpop.f32.mrf.mxu0
      %v4912 = vadd.f32 0.0, %v4911
      %v4913 = vpop.f32.mrf.mxu0
      %v4914 = vadd.f32 0.0, %v4913
      %4915 = vmatmul.bf16.gmra.mxu0 %v4838
      %v4916 = vpop.f32.mrf.mxu0
      %v4917 = vadd.f32 0.0, %v4916
      %v4918 = vpop.f32.mrf.mxu0
      %v4919 = vadd.f32 0.0, %v4918
      %4920 = vmatmul.bf16.gmra.mxu0 %v4841
      %v4921 = vpop.f32.mrf.mxu0
      %v4922 = vadd.f32 0.0, %v4921
      %v4923 = vpop.f32.mrf.mxu0
      %v4924 = vadd.f32 0.0, %v4923
      %4925 = vmatmul.bf16.gmra.mxu0 %v4844
      %v4926 = vpop.f32.mrf.mxu0
      %v4927 = vadd.f32 0.0, %v4926
      %v4928 = vpop.f32.mrf.mxu0
      %v4929 = vadd.f32 0.0, %v4928
      %4930 = vmatmul.bf16.gmra.mxu0 %v4847
      %v4931 = vpop.f32.mrf.mxu0
      %v4932 = vadd.f32 0.0, %v4931
      %v4933 = vpop.f32.mrf.mxu0
      %v4934 = vadd.f32 0.0, %v4933
      %4935 = vmatmul.bf16.gmra.mxu0 %v4850
      %v4936 = vpop.f32.mrf.mxu0
      %v4937 = vadd.f32 0.0, %v4936
      %v4938 = vpop.f32.mrf.mxu0
      %v4939 = vadd.f32 0.0, %v4938
      %4940 = vdwg.mxu0
      %v4941 = vadd.f32 %v4740, %v4862
      %v4942 = vadd.f32 %v4741, %v4864
      %v4943 = vadd.f32 %v4742, %v4867
      %v4944 = vadd.f32 %v4743, %v4869
      %v4945 = vadd.f32 %v4744, %v4872
      %v4946 = vadd.f32 %v4745, %v4874
      %v4947 = vadd.f32 %v4746, %v4877
      %v4948 = vadd.f32 %v4747, %v4879
      %v4949 = vadd.f32 %v4748, %v4882
      %v4950 = vadd.f32 %v4749, %v4884
      %v4951 = vadd.f32 %v4750, %v4887
      %v4952 = vadd.f32 %v4751, %v4889
      %v4953 = vadd.f32 %v4752, %v4892
      %v4954 = vadd.f32 %v4753, %v4894
      %v4955 = vadd.f32 %v4754, %v4897
      %v4956 = vadd.f32 %v4755, %v4899
      %v4957 = vadd.f32 %v4756, %v4902
      %v4958 = vadd.f32 %v4757, %v4904
      %v4959 = vadd.f32 %v4758, %v4907
      %v4960 = vadd.f32 %v4759, %v4909
      %v4961 = vadd.f32 %v4760, %v4912
      %v4962 = vadd.f32 %v4761, %v4914
      %v4963 = vadd.f32 %v4762, %v4917
      %v4964 = vadd.f32 %v4763, %v4919
      %v4965 = vadd.f32 %v4764, %v4922
      %v4966 = vadd.f32 %v4765, %v4924
      %v4967 = vadd.f32 %v4766, %v4927
      %v4968 = vadd.f32 %v4767, %v4929
      %v4969 = vadd.f32 %v4768, %v4932
      %v4970 = vadd.f32 %v4769, %v4934
      %v4971 = vadd.f32 %v4770, %v4937
      %v4972 = vadd.f32 %v4771, %v4939
      %v4973 = vsel %vm1730, %v4304, 0.0
      %v4974 = vsel %vm1731, %v4303, 0.0
      %v4975 = vsel %vm1732, %v4302, 0.0
      %v4976 = vsel %vm1733, %v4301, 0.0
      %v4977 = vsel %vm1734, %v4300, 0.0
      %v4978 = vsel %vm1735, %v4299, 0.0
      %v4979 = vsel %vm1736, %v4298, 0.0
      %v4980 = vsel %vm1737, %v4297, 0.0
      %v4981 = vsel %vm1738, %v4296, 0.0
      %v4982 = vsel %vm1739, %v4295, 0.0
      %v4983 = vsel %vm1740, %v4294, 0.0
      %v4984 = vsel %vm1741, %v4293, 0.0
      %v4985 = vsel %vm1742, %v4292, 0.0
      %v4986 = vsel %vm1743, %v4291, 0.0
      %v4987 = vsel %vm1744, %v4290, 0.0
      %v4988 = vsel %vm1745, %v4289, 0.0
      %v4989 = vsel %vm1746, %v4288, 0.0
      %v4990 = vsel %vm1747, %v4287, 0.0
      %v4991 = vsel %vm1748, %v4286, 0.0
      %v4992 = vsel %vm1749, %v4285, 0.0
      %v4993 = vsel %vm1750, %v4284, 0.0
      %v4994 = vsel %vm1751, %v4283, 0.0
      %v4995 = vsel %vm1752, %v4282, 0.0
      %v4996 = vsel %vm1753, %v4281, 0.0
      %v4997 = vsel %vm1754, %v4280, 0.0
      %v4998 = vsel %vm1755, %v4279, 0.0
      %v4999 = vsel %vm1756, %v4278, 0.0
      %v5000 = vsel %vm1757, %v4277, 0.0
      %v5001 = vsel %vm1758, %v4276, 0.0
      %v5002 = vsel %vm1759, %v4275, 0.0
      %v5003 = vsel %vm1760, %v4274, 0.0
      %v5004 = vsel %vm1761, %v4305, 0.0
      %v5005 = vpack.c.bf16 %v4974, %v4973
      %v5006 = vpack.c.bf16 %v4976, %v4975
      %v5007 = vpack.c.bf16 %v4978, %v4977
      %v5008 = vpack.c.bf16 %v4980, %v4979
      %v5009 = vpack.c.bf16 %v4982, %v4981
      %v5010 = vpack.c.bf16 %v4984, %v4983
      %v5011 = vpack.c.bf16 %v4986, %v4985
      %v5012 = vpack.c.bf16 %v4988, %v4987
      %v5013 = vpack.c.bf16 %v4990, %v4989
      %v5014 = vpack.c.bf16 %v4992, %v4991
      %v5015 = vpack.c.bf16 %v4994, %v4993
      %v5016 = vpack.c.bf16 %v4996, %v4995
      %v5017 = vpack.c.bf16 %v4998, %v4997
      %v5018 = vpack.c.bf16 %v5000, %v4999
      %v5019 = vpack.c.bf16 %v5002, %v5001
      %v5020 = vpack.c.bf16 %v5004, %v5003
      %v5021 = vld [vmem:[%s2 + $0x50] sm:$0xf]
      %v5022 = vld [vmem:[%s2 + $0x54] sm:$0xf]
      %v5023 = vld [vmem:[%s2 + $0x58] sm:$0xf]
      %v5024 = vld [vmem:[%s2 + $0x5c] sm:$0xf]
      %v5029 = vunpack.c.l.b16 %v5021
      %v5030 = vunpack.c.l.b16 %v5022
      %v5031 = vunpack.c.l.b16 %v5023
      %v5032 = vunpack.c.l.b16 %v5024
      %v5033 = vpack.c.b16 %v5030, %v5029
      %v5034 = vpack.c.b16 %v5032, %v5031
      %v5038 = vsel %vm3529, %v5005, 0
      %v5041 = vsel %vm3529, %v5006, 0
      %v5044 = vsel %vm3529, %v5007, 0
      %v5047 = vsel %vm3529, %v5008, 0
      %v5050 = vsel %vm3529, %v5009, 0
      %v5053 = vsel %vm3529, %v5010, 0
      %v5056 = vsel %vm3529, %v5011, 0
      %v5059 = vsel %vm3529, %v5012, 0
      %v5062 = vsel %vm3529, %v5013, 0
      %v5065 = vsel %vm3529, %v5014, 0
      %v5068 = vsel %vm3529, %v5015, 0
      %v5071 = vsel %vm3529, %v5016, 0
      %v5074 = vsel %vm3529, %v5017, 0
      %v5077 = vsel %vm3529, %v5018, 0
      %v5080 = vsel %vm3529, %v5019, 0
      %v5083 = vsel %vm3529, %v5020, 0
      %5085 = vmatpush.bf16.msra.mxu0 0
      %5086 = vmatpush.bf16.msra.mxu0 0
      %5087 = vmatpush.bf16.msra.mxu0 0
      %5088 = vmatpush.bf16.msra.mxu0 0
      %5089 = vmatpush.bf16.msra.mxu0 0
      %5090 = vmatpush.bf16.msra.mxu0 0
      %5091 = vmatpush.bf16.msra.mxu0 %v5034
      %5092 = vmatpush.bf16.msra.mxu0 %v5033
      %5093 = vmatmul.bf16.gmra.mxu0 %v5038
      %v5094 = vpop.f32.mrf.mxu0
      %v5095 = vadd.f32 0.0, %v5094
      %v5096 = vpop.f32.mrf.mxu0
      %v5097 = vadd.f32 0.0, %v5096
      %5098 = vmatmul.bf16.gmra.mxu0 %v5041
      %v5099 = vpop.f32.mrf.mxu0
      %v5100 = vadd.f32 0.0, %v5099
      %v5101 = vpop.f32.mrf.mxu0
      %v5102 = vadd.f32 0.0, %v5101
      %5103 = vmatmul.bf16.gmra.mxu0 %v5044
      %v5104 = vpop.f32.mrf.mxu0
      %v5105 = vadd.f32 0.0, %v5104
      %v5106 = vpop.f32.mrf.mxu0
      %v5107 = vadd.f32 0.0, %v5106
      %5108 = vmatmul.bf16.gmra.mxu0 %v5047
      %v5109 = vpop.f32.mrf.mxu0
      %v5110 = vadd.f32 0.0, %v5109
      %v5111 = vpop.f32.mrf.mxu0
      %v5112 = vadd.f32 0.0, %v5111
      %5113 = vmatmul.bf16.gmra.mxu0 %v5050
      %v5114 = vpop.f32.mrf.mxu0
      %v5115 = vadd.f32 0.0, %v5114
      %v5116 = vpop.f32.mrf.mxu0
      %v5117 = vadd.f32 0.0, %v5116
      %5118 = vmatmul.bf16.gmra.mxu0 %v5053
      %v5119 = vpop.f32.mrf.mxu0
      %v5120 = vadd.f32 0.0, %v5119
      %v5121 = vpop.f32.mrf.mxu0
      %v5122 = vadd.f32 0.0, %v5121
      %5123 = vmatmul.bf16.gmra.mxu0 %v5056
      %v5124 = vpop.f32.mrf.mxu0
      %v5125 = vadd.f32 0.0, %v5124
      %v5126 = vpop.f32.mrf.mxu0
      %v5127 = vadd.f32 0.0, %v5126
      %5128 = vmatmul.bf16.gmra.mxu0 %v5059
      %v5129 = vpop.f32.mrf.mxu0
      %v5130 = vadd.f32 0.0, %v5129
      %v5131 = vpop.f32.mrf.mxu0
      %v5132 = vadd.f32 0.0, %v5131
      %5133 = vmatmul.bf16.gmra.mxu0 %v5062
      %v5134 = vpop.f32.mrf.mxu0
      %v5135 = vadd.f32 0.0, %v5134
      %v5136 = vpop.f32.mrf.mxu0
      %v5137 = vadd.f32 0.0, %v5136
      %5138 = vmatmul.bf16.gmra.mxu0 %v5065
      %v5139 = vpop.f32.mrf.mxu0
      %v5140 = vadd.f32 0.0, %v5139
      %v5141 = vpop.f32.mrf.mxu0
      %v5142 = vadd.f32 0.0, %v5141
      %5143 = vmatmul.bf16.gmra.mxu0 %v5068
      %v5144 = vpop.f32.mrf.mxu0
      %v5145 = vadd.f32 0.0, %v5144
      %v5146 = vpop.f32.mrf.mxu0
      %v5147 = vadd.f32 0.0, %v5146
      %5148 = vmatmul.bf16.gmra.mxu0 %v5071
      %v5149 = vpop.f32.mrf.mxu0
      %v5150 = vadd.f32 0.0, %v5149
      %v5151 = vpop.f32.mrf.mxu0
      %v5152 = vadd.f32 0.0, %v5151
      %5153 = vmatmul.bf16.gmra.mxu0 %v5074
      %v5154 = vpop.f32.mrf.mxu0
      %v5155 = vadd.f32 0.0, %v5154
      %v5156 = vpop.f32.mrf.mxu0
      %v5157 = vadd.f32 0.0, %v5156
      %5158 = vmatmul.bf16.gmra.mxu0 %v5077
      %v5159 = vpop.f32.mrf.mxu0
      %v5160 = vadd.f32 0.0, %v5159
      %v5161 = vpop.f32.mrf.mxu0
      %v5162 = vadd.f32 0.0, %v5161
      %5163 = vmatmul.bf16.gmra.mxu0 %v5080
      %v5164 = vpop.f32.mrf.mxu0
      %v5165 = vadd.f32 0.0, %v5164
      %v5166 = vpop.f32.mrf.mxu0
      %v5167 = vadd.f32 0.0, %v5166
      %5168 = vmatmul.bf16.gmra.mxu0 %v5083
      %v5169 = vpop.f32.mrf.mxu0
      %v5170 = vadd.f32 0.0, %v5169
      %v5171 = vpop.f32.mrf.mxu0
      %v5172 = vadd.f32 0.0, %v5171
      %5173 = vdwg.mxu0
      %v5174 = vadd.f32 %v4941, %v5095
      %v5175 = vadd.f32 %v4942, %v5097
      %v5176 = vadd.f32 %v4943, %v5100
      %v5177 = vadd.f32 %v4944, %v5102
      %v5178 = vadd.f32 %v4945, %v5105
      %v5179 = vadd.f32 %v4946, %v5107
      %v5180 = vadd.f32 %v4947, %v5110
      %v5181 = vadd.f32 %v4948, %v5112
      %v5182 = vadd.f32 %v4949, %v5115
      %v5183 = vadd.f32 %v4950, %v5117
      %v5184 = vadd.f32 %v4951, %v5120
      %v5185 = vadd.f32 %v4952, %v5122
      %v5186 = vadd.f32 %v4953, %v5125
      %v5187 = vadd.f32 %v4954, %v5127
      %v5188 = vadd.f32 %v4955, %v5130
      %v5189 = vadd.f32 %v4956, %v5132
      %v5190 = vadd.f32 %v4957, %v5135
      %v5191 = vadd.f32 %v4958, %v5137
      %v5192 = vadd.f32 %v4959, %v5140
      %v5193 = vadd.f32 %v4960, %v5142
      %v5194 = vadd.f32 %v4961, %v5145
      %v5195 = vadd.f32 %v4962, %v5147
      %v5196 = vadd.f32 %v4963, %v5150
      %v5197 = vadd.f32 %v4964, %v5152
      %v5198 = vadd.f32 %v4965, %v5155
      %v5199 = vadd.f32 %v4966, %v5157
      %v5200 = vadd.f32 %v4967, %v5160
      %v5201 = vadd.f32 %v4968, %v5162
      %v5202 = vadd.f32 %v4969, %v5165
      %v5203 = vadd.f32 %v4970, %v5167
      %v5204 = vadd.f32 %v4971, %v5170
      %v5205 = vadd.f32 %v4972, %v5172
      %v5206 = vsel %vm1922, %v3837, 0.0
      %v5207 = vsel %vm1923, %v3836, 0.0
      %v5208 = vsel %vm1924, %v3835, 0.0
      %v5209 = vsel %vm1925, %v3834, 0.0
      %v5210 = vsel %vm1926, %v3833, 0.0
      %v5211 = vsel %vm1927, %v3832, 0.0
      %v5212 = vsel %vm1928, %v3831, 0.0
      %v5213 = vsel %vm1929, %v3830, 0.0
      %v5214 = vsel %vm1930, %v3829, 0.0
      %v5215 = vsel %vm1931, %v3828, 0.0
      %v5216 = vsel %vm1932, %v3827, 0.0
      %v5217 = vsel %vm1933, %v3826, 0.0
      %v5218 = vsel %vm1934, %v3825, 0.0
      %v5219 = vsel %vm1935, %v3824, 0.0
      %v5220 = vsel %vm1936, %v3823, 0.0
      %v5221 = vsel %vm1937, %v3822, 0.0
      %v5222 = vsel %vm1938, %v3821, 0.0
      %v5223 = vsel %vm1939, %v3820, 0.0
      %v5224 = vsel %vm1940, %v3819, 0.0
      %v5225 = vsel %vm1941, %v3818, 0.0
      %v5226 = vsel %vm1942, %v3817, 0.0
      %v5227 = vsel %vm1943, %v3816, 0.0
      %v5228 = vsel %vm1944, %v3815, 0.0
      %v5229 = vsel %vm1945, %v3814, 0.0
      %v5230 = vsel %vm1946, %v3813, 0.0
      %v5231 = vsel %vm1947, %v3812, 0.0
      %v5232 = vsel %vm1948, %v3811, 0.0
      %v5233 = vsel %vm1949, %v3810, 0.0
      %v5234 = vsel %vm1950, %v3809, 0.0
      %v5235 = vsel %vm1951, %v3808, 0.0
      %v5236 = vsel %vm1952, %v3839, 0.0
      %v5237 = vsel %vm1953, %v3838, 0.0
      %v5238 = vpack.c.bf16 %v5207, %v5206
      %v5239 = vpack.c.bf16 %v5209, %v5208
      %v5240 = vpack.c.bf16 %v5211, %v5210
      %v5241 = vpack.c.bf16 %v5213, %v5212
      %v5242 = vpack.c.bf16 %v5215, %v5214
      %v5243 = vpack.c.bf16 %v5217, %v5216
      %v5244 = vpack.c.bf16 %v5219, %v5218
      %v5245 = vpack.c.bf16 %v5221, %v5220
      %v5246 = vpack.c.bf16 %v5223, %v5222
      %v5247 = vpack.c.bf16 %v5225, %v5224
      %v5248 = vpack.c.bf16 %v5227, %v5226
      %v5249 = vpack.c.bf16 %v5229, %v5228
      %v5250 = vpack.c.bf16 %v5231, %v5230
      %v5251 = vpack.c.bf16 %v5233, %v5232
      %v5252 = vpack.c.bf16 %v5235, %v5234
      %v5253 = vpack.c.bf16 %v5237, %v5236
      %v5254 = vld [vmem:[%s2 + $0x60] sm:$0xf]
      %v5255 = vld [vmem:[%s2 + $0x64] sm:$0xf]
      %v5256 = vld [vmem:[%s2 + $0x68] sm:$0xf]
      %v5257 = vld [vmem:[%s2 + $0x6c] sm:$0xf]
      %v5262 = vunpack.c.l.b16 %v5254
      %v5263 = vunpack.c.l.b16 %v5255
      %v5264 = vunpack.c.l.b16 %v5256
      %v5265 = vunpack.c.l.b16 %v5257
      %v5266 = vpack.c.b16 %v5263, %v5262
      %v5267 = vpack.c.b16 %v5265, %v5264
      %v5271 = vsel %vm3529, %v5238, 0
      %v5274 = vsel %vm3529, %v5239, 0
      %v5277 = vsel %vm3529, %v5240, 0
      %v5280 = vsel %vm3529, %v5241, 0
      %v5283 = vsel %vm3529, %v5242, 0
      %v5286 = vsel %vm3529, %v5243, 0
      %v5289 = vsel %vm3529, %v5244, 0
      %v5292 = vsel %vm3529, %v5245, 0
      %v5295 = vsel %vm3529, %v5246, 0
      %v5298 = vsel %vm3529, %v5247, 0
      %v5301 = vsel %vm3529, %v5248, 0
      %v5304 = vsel %vm3529, %v5249, 0
      %v5307 = vsel %vm3529, %v5250, 0
      %v5310 = vsel %vm3529, %v5251, 0
      %v5313 = vsel %vm3529, %v5252, 0
      %v5316 = vsel %vm3529, %v5253, 0
      %5318 = vmatpush.bf16.msra.mxu0 0
      %5319 = vmatpush.bf16.msra.mxu0 0
      %5320 = vmatpush.bf16.msra.mxu0 0
      %5321 = vmatpush.bf16.msra.mxu0 0
      %5322 = vmatpush.bf16.msra.mxu0 0
      %5323 = vmatpush.bf16.msra.mxu0 0
      %5324 = vmatpush.bf16.msra.mxu0 %v5267
      %5325 = vmatpush.bf16.msra.mxu0 %v5266
      %5326 = vmatmul.bf16.gmra.mxu0 %v5271
      %v5327 = vpop.f32.mrf.mxu0
      %v5328 = vadd.f32 0.0, %v5327
      %v5329 = vpop.f32.mrf.mxu0
      %v5330 = vadd.f32 0.0, %v5329
      %5331 = vmatmul.bf16.gmra.mxu0 %v5274
      %v5332 = vpop.f32.mrf.mxu0
      %v5333 = vadd.f32 0.0, %v5332
      %v5334 = vpop.f32.mrf.mxu0
      %v5335 = vadd.f32 0.0, %v5334
      %5336 = vmatmul.bf16.gmra.mxu0 %v5277
      %v5337 = vpop.f32.mrf.mxu0
      %v5338 = vadd.f32 0.0, %v5337
      %v5339 = vpop.f32.mrf.mxu0
      %v5340 = vadd.f32 0.0, %v5339
      %5341 = vmatmul.bf16.gmra.mxu0 %v5280
      %v5342 = vpop.f32.mrf.mxu0
      %v5343 = vadd.f32 0.0, %v5342
      %v5344 = vpop.f32.mrf.mxu0
      %v5345 = vadd.f32 0.0, %v5344
      %5346 = vmatmul.bf16.gmra.mxu0 %v5283
      %v5347 = vpop.f32.mrf.mxu0
      %v5348 = vadd.f32 0.0, %v5347
      %v5349 = vpop.f32.mrf.mxu0
      %v5350 = vadd.f32 0.0, %v5349
      %5351 = vmatmul.bf16.gmra.mxu0 %v5286
      %v5352 = vpop.f32.mrf.mxu0
      %v5353 = vadd.f32 0.0, %v5352
      %v5354 = vpop.f32.mrf.mxu0
      %v5355 = vadd.f32 0.0, %v5354
      %5356 = vmatmul.bf16.gmra.mxu0 %v5289
      %v5357 = vpop.f32.mrf.mxu0
      %v5358 = vadd.f32 0.0, %v5357
      %v5359 = vpop.f32.mrf.mxu0
      %v5360 = vadd.f32 0.0, %v5359
      %5361 = vmatmul.bf16.gmra.mxu0 %v5292
      %v5362 = vpop.f32.mrf.mxu0
      %v5363 = vadd.f32 0.0, %v5362
      %v5364 = vpop.f32.mrf.mxu0
      %v5365 = vadd.f32 0.0, %v5364
      %5366 = vmatmul.bf16.gmra.mxu0 %v5295
      %v5367 = vpop.f32.mrf.mxu0
      %v5368 = vadd.f32 0.0, %v5367
      %v5369 = vpop.f32.mrf.mxu0
      %v5370 = vadd.f32 0.0, %v5369
      %5371 = vmatmul.bf16.gmra.mxu0 %v5298
      %v5372 = vpop.f32.mrf.mxu0
      %v5373 = vadd.f32 0.0, %v5372
      %v5374 = vpop.f32.mrf.mxu0
      %v5375 = vadd.f32 0.0, %v5374
      %5376 = vmatmul.bf16.gmra.mxu0 %v5301
      %v5377 = vpop.f32.mrf.mxu0
      %v5378 = vadd.f32 0.0, %v5377
      %v5379 = vpop.f32.mrf.mxu0
      %v5380 = vadd.f32 0.0, %v5379
      %5381 = vmatmul.bf16.gmra.mxu0 %v5304
      %v5382 = vpop.f32.mrf.mxu0
      %v5383 = vadd.f32 0.0, %v5382
      %v5384 = vpop.f32.mrf.mxu0
      %v5385 = vadd.f32 0.0, %v5384
      %5386 = vmatmul.bf16.gmra.mxu0 %v5307
      %v5387 = vpop.f32.mrf.mxu0
      %v5388 = vadd.f32 0.0, %v5387
      %v5389 = vpop.f32.mrf.mxu0
      %v5390 = vadd.f32 0.0, %v5389
      %5391 = vmatmul.bf16.gmra.mxu0 %v5310
      %v5392 = vpop.f32.mrf.mxu0
      %v5393 = vadd.f32 0.0, %v5392
      %v5394 = vpop.f32.mrf.mxu0
      %v5395 = vadd.f32 0.0, %v5394
      %5396 = vmatmul.bf16.gmra.mxu0 %v5313
      %v5397 = vpop.f32.mrf.mxu0
      %v5398 = vadd.f32 0.0, %v5397
      %v5399 = vpop.f32.mrf.mxu0
      %v5400 = vadd.f32 0.0, %v5399
      %5401 = vmatmul.bf16.gmra.mxu0 %v5316
      %v5402 = vpop.f32.mrf.mxu0
      %v5403 = vadd.f32 0.0, %v5402
      %v5404 = vpop.f32.mrf.mxu0
      %v5405 = vadd.f32 0.0, %v5404
      %5406 = vdwg.mxu0
      %v5407 = vadd.f32 %v5174, %v5328
      %v5408 = vadd.f32 %v5175, %v5330
      %v5409 = vadd.f32 %v5176, %v5333
      %v5410 = vadd.f32 %v5177, %v5335
      %v5411 = vadd.f32 %v5178, %v5338
      %v5412 = vadd.f32 %v5179, %v5340
      %v5413 = vadd.f32 %v5180, %v5343
      %v5414 = vadd.f32 %v5181, %v5345
      %v5415 = vadd.f32 %v5182, %v5348
      %v5416 = vadd.f32 %v5183, %v5350
      %v5417 = vadd.f32 %v5184, %v5353
      %v5418 = vadd.f32 %v5185, %v5355
      %v5419 = vadd.f32 %v5186, %v5358
      %v5420 = vadd.f32 %v5187, %v5360
      %v5421 = vadd.f32 %v5188, %v5363
      %v5422 = vadd.f32 %v5189, %v5365
      %v5423 = vadd.f32 %v5190, %v5368
      %v5424 = vadd.f32 %v5191, %v5370
      %v5425 = vadd.f32 %v5192, %v5373
      %v5426 = vadd.f32 %v5193, %v5375
      %v5427 = vadd.f32 %v5194, %v5378
      %v5428 = vadd.f32 %v5195, %v5380
      %v5429 = vadd.f32 %v5196, %v5383
      %v5430 = vadd.f32 %v5197, %v5385
      %v5431 = vadd.f32 %v5198, %v5388
      %v5432 = vadd.f32 %v5199, %v5390
      %v5433 = vadd.f32 %v5200, %v5393
      %v5434 = vadd.f32 %v5201, %v5395
      %v5435 = vadd.f32 %v5202, %v5398
      %v5436 = vadd.f32 %v5203, %v5400
      %v5437 = vadd.f32 %v5204, %v5403
      %v5438 = vadd.f32 %v5205, %v5405
      %v5439 = vsel %vm2018, %v3746, 0.0
      %v5440 = vsel %vm2019, %v3747, 0.0
      %v5441 = vsel %vm2020, %v3748, 0.0
      %v5442 = vsel %vm2021, %v3749, 0.0
      %v5443 = vsel %vm2022, %v3750, 0.0
      %v5444 = vsel %vm2023, %v3751, 0.0
      %v5445 = vsel %vm2024, %v3752, 0.0
      %v5446 = vsel %vm2025, %v3753, 0.0
      %v5447 = vsel %vm2026, %v3754, 0.0
      %v5448 = vsel %vm2027, %v3755, 0.0
      %v5449 = vsel %vm2028, %v3756, 0.0
      %v5450 = vsel %vm2029, %v3757, 0.0
      %v5451 = vsel %vm2030, %v3758, 0.0
      %v5452 = vsel %vm2031, %v3759, 0.0
      %v5453 = vsel %vm2032, %v3760, 0.0
      %v5454 = vsel %vm2033, %v3761, 0.0
      %v5455 = vsel %vm2034, %v3762, 0.0
      %v5456 = vsel %vm2035, %v3763, 0.0
      %v5457 = vsel %vm2036, %v3764, 0.0
      %v5458 = vsel %vm2037, %v3765, 0.0
      %v5459 = vsel %vm2038, %v3766, 0.0
      %v5460 = vsel %vm2039, %v3767, 0.0
      %v5461 = vsel %vm2040, %v3768, 0.0
      %v5462 = vsel %vm2041, %v3769, 0.0
      %v5463 = vsel %vm2042, %v3770, 0.0
      %v5464 = vsel %vm2043, %v3771, 0.0
      %v5465 = vsel %vm2044, %v3772, 0.0
      %v5466 = vsel %vm2045, %v3773, 0.0
      %v5467 = vsel %vm2046, %v3774, 0.0
      %v5468 = vsel %vm2047, %v3775, 0.0
      %v5469 = vsel %vm2048, %v3744, 0.0
      %v5470 = vsel %vm2049, %v3745, 0.0
      %v5471 = vpack.c.bf16 %v5440, %v5439
      %v5472 = vpack.c.bf16 %v5442, %v5441
      %v5473 = vpack.c.bf16 %v5444, %v5443
      %v5474 = vpack.c.bf16 %v5446, %v5445
      %v5475 = vpack.c.bf16 %v5448, %v5447
      %v5476 = vpack.c.bf16 %v5450, %v5449
      %v5477 = vpack.c.bf16 %v5452, %v5451
      %v5478 = vpack.c.bf16 %v5454, %v5453
      %v5479 = vpack.c.bf16 %v5456, %v5455
      %v5480 = vpack.c.bf16 %v5458, %v5457
      %v5481 = vpack.c.bf16 %v5460, %v5459
      %v5482 = vpack.c.bf16 %v5462, %v5461
      %v5483 = vpack.c.bf16 %v5464, %v5463
      %v5484 = vpack.c.bf16 %v5466, %v5465
      %v5485 = vpack.c.bf16 %v5468, %v5467
      %v5486 = vpack.c.bf16 %v5470, %v5469
      %v5487 = vld [vmem:[%s2 + $0x70] sm:$0xf]
      %v5488 = vld [vmem:[%s2 + $0x74] sm:$0xf]
      %v5489 = vld [vmem:[%s2 + $0x78] sm:$0xf]
      %v5490 = vld [vmem:[%s2 + $0x7c] sm:$0xf]
      %v5495 = vunpack.c.l.b16 %v5487
      %v5496 = vunpack.c.l.b16 %v5488
      %v5497 = vunpack.c.l.b16 %v5489
      %v5498 = vunpack.c.l.b16 %v5490
      %v5499 = vpack.c.b16 %v5496, %v5495
      %v5500 = vpack.c.b16 %v5498, %v5497
      %v5504 = vsel %vm3529, %v5471, 0
      %v5507 = vsel %vm3529, %v5472, 0
      %v5510 = vsel %vm3529, %v5473, 0
      %v5513 = vsel %vm3529, %v5474, 0
      %v5516 = vsel %vm3529, %v5475, 0
      %v5519 = vsel %vm3529, %v5476, 0
      %v5522 = vsel %vm3529, %v5477, 0
      %v5525 = vsel %vm3529, %v5478, 0
      %v5528 = vsel %vm3529, %v5479, 0
      %v5531 = vsel %vm3529, %v5480, 0
      %v5534 = vsel %vm3529, %v5481, 0
      %v5537 = vsel %vm3529, %v5482, 0
      %v5540 = vsel %vm3529, %v5483, 0
      %v5543 = vsel %vm3529, %v5484, 0
      %v5546 = vsel %vm3529, %v5485, 0
      %v5549 = vsel %vm3529, %v5486, 0
      %5551 = vmatpush.bf16.msra.mxu0 0
      %5552 = vmatpush.bf16.msra.mxu0 0
      %5553 = vmatpush.bf16.msra.mxu0 0
      %5554 = vmatpush.bf16.msra.mxu0 0
      %5555 = vmatpush.bf16.msra.mxu0 0
      %5556 = vmatpush.bf16.msra.mxu0 0
      %5557 = vmatpush.bf16.msra.mxu0 %v5500
      %5558 = vmatpush.bf16.msra.mxu0 %v5499
      %5559 = vmatmul.bf16.gmra.mxu0 %v5504
      %v5560 = vpop.f32.mrf.mxu0
      %v5561 = vadd.f32 0.0, %v5560
      %v5562 = vpop.f32.mrf.mxu0
      %v5563 = vadd.f32 0.0, %v5562
      %5564 = vmatmul.bf16.gmra.mxu0 %v5507
      %v5565 = vpop.f32.mrf.mxu0
      %v5566 = vadd.f32 0.0, %v5565
      %v5567 = vpop.f32.mrf.mxu0
      %v5568 = vadd.f32 0.0, %v5567
      %5569 = vmatmul.bf16.gmra.mxu0 %v5510
      %v5570 = vpop.f32.mrf.mxu0
      %v5571 = vadd.f32 0.0, %v5570
      %v5572 = vpop.f32.mrf.mxu0
      %v5573 = vadd.f32 0.0, %v5572
      %5574 = vmatmul.bf16.gmra.mxu0 %v5513
      %v5575 = vpop.f32.mrf.mxu0
      %v5576 = vadd.f32 0.0, %v5575
      %v5577 = vpop.f32.mrf.mxu0
      %v5578 = vadd.f32 0.0, %v5577
      %5579 = vmatmul.bf16.gmra.mxu0 %v5516
      %v5580 = vpop.f32.mrf.mxu0
      %v5581 = vadd.f32 0.0, %v5580
      %v5582 = vpop.f32.mrf.mxu0
      %v5583 = vadd.f32 0.0, %v5582
      %5584 = vmatmul.bf16.gmra.mxu0 %v5519
      %v5585 = vpop.f32.mrf.mxu0
      %v5586 = vadd.f32 0.0, %v5585
      %v5587 = vpop.f32.mrf.mxu0
      %v5588 = vadd.f32 0.0, %v5587
      %5589 = vmatmul.bf16.gmra.mxu0 %v5522
      %v5590 = vpop.f32.mrf.mxu0
      %v5591 = vadd.f32 0.0, %v5590
      %v5592 = vpop.f32.mrf.mxu0
      %v5593 = vadd.f32 0.0, %v5592
      %5594 = vmatmul.bf16.gmra.mxu0 %v5525
      %v5595 = vpop.f32.mrf.mxu0
      %v5596 = vadd.f32 0.0, %v5595
      %v5597 = vpop.f32.mrf.mxu0
      %v5598 = vadd.f32 0.0, %v5597
      %5599 = vmatmul.bf16.gmra.mxu0 %v5528
      %v5600 = vpop.f32.mrf.mxu0
      %v5601 = vadd.f32 0.0, %v5600
      %v5602 = vpop.f32.mrf.mxu0
      %v5603 = vadd.f32 0.0, %v5602
      %5604 = vmatmul.bf16.gmra.mxu0 %v5531
      %v5605 = vpop.f32.mrf.mxu0
      %v5606 = vadd.f32 0.0, %v5605
      %v5607 = vpop.f32.mrf.mxu0
      %v5608 = vadd.f32 0.0, %v5607
      %5609 = vmatmul.bf16.gmra.mxu0 %v5534
      %v5610 = vpop.f32.mrf.mxu0
      %v5611 = vadd.f32 0.0, %v5610
      %v5612 = vpop.f32.mrf.mxu0
      %v5613 = vadd.f32 0.0, %v5612
      %5614 = vmatmul.bf16.gmra.mxu0 %v5537
      %v5615 = vpop.f32.mrf.mxu0
      %v5616 = vadd.f32 0.0, %v5615
      %v5617 = vpop.f32.mrf.mxu0
      %v5618 = vadd.f32 0.0, %v5617
      %5619 = vmatmul.bf16.gmra.mxu0 %v5540
      %v5620 = vpop.f32.mrf.mxu0
      %v5621 = vadd.f32 0.0, %v5620
      %v5622 = vpop.f32.mrf.mxu0
      %v5623 = vadd.f32 0.0, %v5622
      %5624 = vmatmul.bf16.gmra.mxu0 %v5543
      %v5625 = vpop.f32.mrf.mxu0
      %v5626 = vadd.f32 0.0, %v5625
      %v5627 = vpop.f32.mrf.mxu0
      %v5628 = vadd.f32 0.0, %v5627
      %5629 = vmatmul.bf16.gmra.mxu0 %v5546
      %v5630 = vpop.f32.mrf.mxu0
      %v5631 = vadd.f32 0.0, %v5630
      %v5632 = vpop.f32.mrf.mxu0
      %v5633 = vadd.f32 0.0, %v5632
      %5634 = vmatmul.bf16.gmra.mxu0 %v5549
      %v5635 = vpop.f32.mrf.mxu0
      %v5636 = vadd.f32 0.0, %v5635
      %v5637 = vpop.f32.mrf.mxu0
      %v5638 = vadd.f32 0.0, %v5637
      %5639 = vdwg.mxu0
      %v5640 = vadd.f32 %v5407, %v5561
      %v5641 = vadd.f32 %v5408, %v5563
      %v5642 = vadd.f32 %v5409, %v5566
      %v5643 = vadd.f32 %v5410, %v5568
      %v5644 = vadd.f32 %v5411, %v5571
      %v5645 = vadd.f32 %v5412, %v5573
      %v5646 = vadd.f32 %v5413, %v5576
      %v5647 = vadd.f32 %v5414, %v5578
      %v5648 = vadd.f32 %v5415, %v5581
      %v5649 = vadd.f32 %v5416, %v5583
      %v5650 = vadd.f32 %v5417, %v5586
      %v5651 = vadd.f32 %v5418, %v5588
      %v5652 = vadd.f32 %v5419, %v5591
      %v5653 = vadd.f32 %v5420, %v5593
      %v5654 = vadd.f32 %v5421, %v5596
      %v5655 = vadd.f32 %v5422, %v5598
      %v5656 = vadd.f32 %v5423, %v5601
      %v5657 = vadd.f32 %v5424, %v5603
      %v5658 = vadd.f32 %v5425, %v5606
      %v5659 = vadd.f32 %v5426, %v5608
      %v5660 = vadd.f32 %v5427, %v5611
      %v5661 = vadd.f32 %v5428, %v5613
      %v5662 = vadd.f32 %v5429, %v5616
      %v5663 = vadd.f32 %v5430, %v5618
      %v5664 = vadd.f32 %v5431, %v5621
      %v5665 = vadd.f32 %v5432, %v5623
      %v5666 = vadd.f32 %v5433, %v5626
      %v5667 = vadd.f32 %v5434, %v5628
      %v5668 = vadd.f32 %v5435, %v5631
      %v5669 = vadd.f32 %v5436, %v5633
      %v5670 = vadd.f32 %v5437, %v5636
      %v5671 = vadd.f32 %v5438, %v5638
      %v5672 = vsel %vm2210, %v4302, 0.0
      %v5673 = vsel %vm2211, %v4301, 0.0
      %v5674 = vsel %vm2212, %v4300, 0.0
      %v5675 = vsel %vm2213, %v4299, 0.0
      %v5676 = vsel %vm2214, %v4298, 0.0
      %v5677 = vsel %vm2215, %v4297, 0.0
      %v5678 = vsel %vm2216, %v4296, 0.0
      %v5679 = vsel %vm2217, %v4295, 0.0
      %v5680 = vsel %vm2218, %v4294, 0.0
      %v5681 = vsel %vm2219, %v4293, 0.0
      %v5682 = vsel %vm2220, %v4292, 0.0
      %v5683 = vsel %vm2221, %v4291, 0.0
      %v5684 = vsel %vm2222, %v4290, 0.0
      %v5685 = vsel %vm2223, %v4289, 0.0
      %v5686 = vsel %vm2224, %v4288, 0.0
      %v5687 = vsel %vm2225, %v4287, 0.0
      %v5688 = vsel %vm2226, %v4286, 0.0
      %v5689 = vsel %vm2227, %v4285, 0.0
      %v5690 = vsel %vm2228, %v4284, 0.0
      %v5691 = vsel %vm2229, %v4283, 0.0
      %v5692 = vsel %vm2230, %v4282, 0.0
      %v5693 = vsel %vm2231, %v4281, 0.0
      %v5694 = vsel %vm2232, %v4280, 0.0
      %v5695 = vsel %vm2233, %v4279, 0.0
      %v5696 = vsel %vm2234, %v4278, 0.0
      %v5697 = vsel %vm2235, %v4277, 0.0
      %v5698 = vsel %vm2236, %v4276, 0.0
      %v5699 = vsel %vm2237, %v4275, 0.0
      %v5700 = vsel %vm2238, %v4274, 0.0
      %v5701 = vsel %vm2239, %v4305, 0.0
      %v5702 = vsel %vm2240, %v4304, 0.0
      %v5703 = vsel %vm2241, %v4303, 0.0
      %v5704 = vpack.c.bf16 %v5673, %v5672
      %v5705 = vpack.c.bf16 %v5675, %v5674
      %v5706 = vpack.c.bf16 %v5677, %v5676
      %v5707 = vpack.c.bf16 %v5679, %v5678
      %v5708 = vpack.c.bf16 %v5681, %v5680
      %v5709 = vpack.c.bf16 %v5683, %v5682
      %v5710 = vpack.c.bf16 %v5685, %v5684
      %v5711 = vpack.c.bf16 %v5687, %v5686
      %v5712 = vpack.c.bf16 %v5689, %v5688
      %v5713 = vpack.c.bf16 %v5691, %v5690
      %v5714 = vpack.c.bf16 %v5693, %v5692
      %v5715 = vpack.c.bf16 %v5695, %v5694
      %v5716 = vpack.c.bf16 %v5697, %v5696
      %v5717 = vpack.c.bf16 %v5699, %v5698
      %v5718 = vpack.c.bf16 %v5701, %v5700
      %v5719 = vpack.c.bf16 %v5703, %v5702
      %v5720 = vld [vmem:[%s2 + $0x80] sm:$0xf]
      %v5721 = vld [vmem:[%s2 + $0x84] sm:$0xf]
      %v5722 = vld [vmem:[%s2 + $0x88] sm:$0xf]
      %v5723 = vld [vmem:[%s2 + $0x8c] sm:$0xf]
      %v5728 = vunpack.c.l.b16 %v5720
      %v5729 = vunpack.c.l.b16 %v5721
      %v5730 = vunpack.c.l.b16 %v5722
      %v5731 = vunpack.c.l.b16 %v5723
      %v5732 = vpack.c.b16 %v5729, %v5728
      %v5733 = vpack.c.b16 %v5731, %v5730
      %v5737 = vsel %vm3529, %v5704, 0
      %v5740 = vsel %vm3529, %v5705, 0
      %v5743 = vsel %vm3529, %v5706, 0
      %v5746 = vsel %vm3529, %v5707, 0
      %v5749 = vsel %vm3529, %v5708, 0
      %v5752 = vsel %vm3529, %v5709, 0
      %v5755 = vsel %vm3529, %v5710, 0
      %v5758 = vsel %vm3529, %v5711, 0
      %v5761 = vsel %vm3529, %v5712, 0
      %v5764 = vsel %vm3529, %v5713, 0
      %v5767 = vsel %vm3529, %v5714, 0
      %v5770 = vsel %vm3529, %v5715, 0
      %v5773 = vsel %vm3529, %v5716, 0
      %v5776 = vsel %vm3529, %v5717, 0
      %v5779 = vsel %vm3529, %v5718, 0
      %v5782 = vsel %vm3529, %v5719, 0
      %5784 = vmatpush.bf16.msra.mxu0 0
      %5785 = vmatpush.bf16.msra.mxu0 0
      %5786 = vmatpush.bf16.msra.mxu0 0
      %5787 = vmatpush.bf16.msra.mxu0 0
      %5788 = vmatpush.bf16.msra.mxu0 0
      %5789 = vmatpush.bf16.msra.mxu0 0
      %5790 = vmatpush.bf16.msra.mxu0 %v5733
      %5791 = vmatpush.bf16.msra.mxu0 %v5732
      %5792 = vmatmul.bf16.gmra.mxu0 %v5737
      %v5793 = vpop.f32.mrf.mxu0
      %v5794 = vadd.f32 0.0, %v5793
      %v5795 = vpop.f32.mrf.mxu0
      %v5796 = vadd.f32 0.0, %v5795
      %5797 = vmatmul.bf16.gmra.mxu0 %v5740
      %v5798 = vpop.f32.mrf.mxu0
      %v5799 = vadd.f32 0.0, %v5798
      %v5800 = vpop.f32.mrf.mxu0
      %v5801 = vadd.f32 0.0, %v5800
      %5802 = vmatmul.bf16.gmra.mxu0 %v5743
      %v5803 = vpop.f32.mrf.mxu0
      %v5804 = vadd.f32 0.0, %v5803
      %v5805 = vpop.f32.mrf.mxu0
      %v5806 = vadd.f32 0.0, %v5805
      %5807 = vmatmul.bf16.gmra.mxu0 %v5746
      %v5808 = vpop.f32.mrf.mxu0
      %v5809 = vadd.f32 0.0, %v5808
      %v5810 = vpop.f32.mrf.mxu0
      %v5811 = vadd.f32 0.0, %v5810
      %5812 = vmatmul.bf16.gmra.mxu0 %v5749
      %v5813 = vpop.f32.mrf.mxu0
      %v5814 = vadd.f32 0.0, %v5813
      %v5815 = vpop.f32.mrf.mxu0
      %v5816 = vadd.f32 0.0, %v5815
      %5817 = vmatmul.bf16.gmra.mxu0 %v5752
      %v5818 = vpop.f32.mrf.mxu0
      %v5819 = vadd.f32 0.0, %v5818
      %v5820 = vpop.f32.mrf.mxu0
      %v5821 = vadd.f32 0.0, %v5820
      %5822 = vmatmul.bf16.gmra.mxu0 %v5755
      %v5823 = vpop.f32.mrf.mxu0
      %v5824 = vadd.f32 0.0, %v5823
      %v5825 = vpop.f32.mrf.mxu0
      %v5826 = vadd.f32 0.0, %v5825
      %5827 = vmatmul.bf16.gmra.mxu0 %v5758
      %v5828 = vpop.f32.mrf.mxu0
      %v5829 = vadd.f32 0.0, %v5828
      %v5830 = vpop.f32.mrf.mxu0
      %v5831 = vadd.f32 0.0, %v5830
      %5832 = vmatmul.bf16.gmra.mxu0 %v5761
      %v5833 = vpop.f32.mrf.mxu0
      %v5834 = vadd.f32 0.0, %v5833
      %v5835 = vpop.f32.mrf.mxu0
      %v5836 = vadd.f32 0.0, %v5835
      %5837 = vmatmul.bf16.gmra.mxu0 %v5764
      %v5838 = vpop.f32.mrf.mxu0
      %v5839 = vadd.f32 0.0, %v5838
      %v5840 = vpop.f32.mrf.mxu0
      %v5841 = vadd.f32 0.0, %v5840
      %5842 = vmatmul.bf16.gmra.mxu0 %v5767
      %v5843 = vpop.f32.mrf.mxu0
      %v5844 = vadd.f32 0.0, %v5843
      %v5845 = vpop.f32.mrf.mxu0
      %v5846 = vadd.f32 0.0, %v5845
      %5847 = vmatmul.bf16.gmra.mxu0 %v5770
      %v5848 = vpop.f32.mrf.mxu0
      %v5849 = vadd.f32 0.0, %v5848
      %v5850 = vpop.f32.mrf.mxu0
      %v5851 = vadd.f32 0.0, %v5850
      %5852 = vmatmul.bf16.gmra.mxu0 %v5773
      %v5853 = vpop.f32.mrf.mxu0
      %v5854 = vadd.f32 0.0, %v5853
      %v5855 = vpop.f32.mrf.mxu0
      %v5856 = vadd.f32 0.0, %v5855
      %5857 = vmatmul.bf16.gmra.mxu0 %v5776
      %v5858 = vpop.f32.mrf.mxu0
      %v5859 = vadd.f32 0.0, %v5858
      %v5860 = vpop.f32.mrf.mxu0
      %v5861 = vadd.f32 0.0, %v5860
      %5862 = vmatmul.bf16.gmra.mxu0 %v5779
      %v5863 = vpop.f32.mrf.mxu0
      %v5864 = vadd.f32 0.0, %v5863
      %v5865 = vpop.f32.mrf.mxu0
      %v5866 = vadd.f32 0.0, %v5865
      %5867 = vmatmul.bf16.gmra.mxu0 %v5782
      %v5868 = vpop.f32.mrf.mxu0
      %v5869 = vadd.f32 0.0, %v5868
      %v5870 = vpop.f32.mrf.mxu0
      %v5871 = vadd.f32 0.0, %v5870
      %5872 = vdwg.mxu0
      %v5873 = vadd.f32 %v5640, %v5794
      %v5874 = vadd.f32 %v5641, %v5796
      %v5875 = vadd.f32 %v5642, %v5799
      %v5876 = vadd.f32 %v5643, %v5801
      %v5877 = vadd.f32 %v5644, %v5804
      %v5878 = vadd.f32 %v5645, %v5806
      %v5879 = vadd.f32 %v5646, %v5809
      %v5880 = vadd.f32 %v5647, %v5811
      %v5881 = vadd.f32 %v5648, %v5814
      %v5882 = vadd.f32 %v5649, %v5816
      %v5883 = vadd.f32 %v5650, %v5819
      %v5884 = vadd.f32 %v5651, %v5821
      %v5885 = vadd.f32 %v5652, %v5824
      %v5886 = vadd.f32 %v5653, %v5826
      %v5887 = vadd.f32 %v5654, %v5829
      %v5888 = vadd.f32 %v5655, %v5831
      %v5889 = vadd.f32 %v5656, %v5834
      %v5890 = vadd.f32 %v5657, %v5836
      %v5891 = vadd.f32 %v5658, %v5839
      %v5892 = vadd.f32 %v5659, %v5841
      %v5893 = vadd.f32 %v5660, %v5844
      %v5894 = vadd.f32 %v5661, %v5846
      %v5895 = vadd.f32 %v5662, %v5849
      %v5896 = vadd.f32 %v5663, %v5851
      %v5897 = vadd.f32 %v5664, %v5854
      %v5898 = vadd.f32 %v5665, %v5856
      %v5899 = vadd.f32 %v5666, %v5859
      %v5900 = vadd.f32 %v5667, %v5861
      %v5901 = vadd.f32 %v5668, %v5864
      %v5902 = vadd.f32 %v5669, %v5866
      %v5903 = vadd.f32 %v5670, %v5869
      %v5904 = vadd.f32 %v5671, %v5871
      %v5905 = vld [vmem:[%s7] sm:$0x1]
      %v5907 = vperm.slane %v5905, 0
      %v5909 = vadd.f32 %v5873, %v5907
      %v5910 = vadd.f32 %v5874, %v5907
      %v5911 = vadd.f32 %v5875, %v5907
      %v5912 = vadd.f32 %v5876, %v5907
      %v5913 = vadd.f32 %v5877, %v5907
      %v5914 = vadd.f32 %v5878, %v5907
      %v5915 = vadd.f32 %v5879, %v5907
      %v5916 = vadd.f32 %v5880, %v5907
      %v5917 = vadd.f32 %v5881, %v5907
      %v5918 = vadd.f32 %v5882, %v5907
      %v5919 = vadd.f32 %v5883, %v5907
      %v5920 = vadd.f32 %v5884, %v5907
      %v5921 = vadd.f32 %v5885, %v5907
      %v5922 = vadd.f32 %v5886, %v5907
      %v5923 = vadd.f32 %v5887, %v5907
      %v5924 = vadd.f32 %v5888, %v5907
      %v5925 = vadd.f32 %v5889, %v5907
      %v5926 = vadd.f32 %v5890, %v5907
      %v5927 = vadd.f32 %v5891, %v5907
      %v5928 = vadd.f32 %v5892, %v5907
      %v5929 = vadd.f32 %v5893, %v5907
      %v5930 = vadd.f32 %v5894, %v5907
      %v5931 = vadd.f32 %v5895, %v5907
      %v5932 = vadd.f32 %v5896, %v5907
      %v5933 = vadd.f32 %v5897, %v5907
      %v5934 = vadd.f32 %v5898, %v5907
      %v5935 = vadd.f32 %v5899, %v5907
      %v5936 = vadd.f32 %v5900, %v5907
      %v5937 = vadd.f32 %v5901, %v5907
      %v5938 = vadd.f32 %v5902, %v5907
      %v5939 = vadd.f32 %v5903, %v5907
      %v5940 = vadd.f32 %v5904, %v5907
      %v5941 = vmax.f32 %v5909, 0.0
      %v5942 = vmax.f32 %v5910, 0.0
      %v5943 = vmax.f32 %v5911, 0.0
      %v5944 = vmax.f32 %v5912, 0.0
      %v5945 = vmax.f32 %v5913, 0.0
      %v5946 = vmax.f32 %v5914, 0.0
      %v5947 = vmax.f32 %v5915, 0.0
      %v5948 = vmax.f32 %v5916, 0.0
      %v5949 = vmax.f32 %v5917, 0.0
      %v5950 = vmax.f32 %v5918, 0.0
      %v5951 = vmax.f32 %v5919, 0.0
      %v5952 = vmax.f32 %v5920, 0.0
      %v5953 = vmax.f32 %v5921, 0.0
      %v5954 = vmax.f32 %v5922, 0.0
      %v5955 = vmax.f32 %v5923, 0.0
      %v5956 = vmax.f32 %v5924, 0.0
      %v5957 = vmax.f32 %v5925, 0.0
      %v5958 = vmax.f32 %v5926, 0.0
      %v5959 = vmax.f32 %v5927, 0.0
      %v5960 = vmax.f32 %v5928, 0.0
      %v5961 = vmax.f32 %v5929, 0.0
      %v5962 = vmax.f32 %v5930, 0.0
      %v5963 = vmax.f32 %v5931, 0.0
      %v5964 = vmax.f32 %v5932, 0.0
      %v5965 = vmax.f32 %v5933, 0.0
      %v5966 = vmax.f32 %v5934, 0.0
      %v5967 = vmax.f32 %v5935, 0.0
      %v5968 = vmax.f32 %v5936, 0.0
      %v5969 = vmax.f32 %v5937, 0.0
      %v5970 = vmax.f32 %v5938, 0.0
      %v5971 = vmax.f32 %v5939, 0.0
      %v5972 = vmax.f32 %v5940, 0.0
      %v5973 = vrot.slane %v5941, 7
      %v5974 = vrot.slane %v5942, 7
      %v5975 = vrot.slane %v5943, 7
      %v5976 = vrot.slane %v5944, 7
      %v5977 = vrot.slane %v5945, 7
      %v5978 = vrot.slane %v5946, 7
      %v5979 = vrot.slane %v5947, 7
      %v5980 = vrot.slane %v5948, 7
      %v5981 = vrot.slane %v5949, 7
      %v5982 = vrot.slane %v5950, 7
      %v5983 = vrot.slane %v5951, 7
      %v5984 = vrot.slane %v5952, 7
      %v5985 = vrot.slane %v5953, 7
      %v5986 = vrot.slane %v5954, 7
      %v5987 = vrot.slane %v5955, 7
      %v5988 = vrot.slane %v5956, 7
      %v5989 = vrot.slane %v5957, 7
      %v5990 = vrot.slane %v5958, 7
      %v5991 = vrot.slane %v5959, 7
      %v5992 = vrot.slane %v5960, 7
      %v5993 = vrot.slane %v5961, 7
      %v5994 = vrot.slane %v5962, 7
      %v5995 = vrot.slane %v5963, 7
      %v5996 = vrot.slane %v5964, 7
      %v5997 = vrot.slane %v5965, 7
      %v5998 = vrot.slane %v5966, 7
      %v5999 = vrot.slane %v5967, 7
      %v6000 = vrot.slane %v5968, 7
      %v6001 = vrot.slane %v5969, 7
      %v6002 = vrot.slane %v5970, 7
      %v6003 = vrot.slane %v5971, 7
      %v6004 = vrot.slane %v5972, 7
      %v6005 = vsel %vm832, %v6003, %v6004
      %v6006 = vsel %vm832, %v6002, %v6003
      %v6007 = vsel %vm832, %v6001, %v6002
      %v6008 = vsel %vm832, %v6000, %v6001
      %v6009 = vsel %vm832, %v5999, %v6000
      %v6010 = vsel %vm832, %v5998, %v5999
      %v6011 = vsel %vm832, %v5997, %v5998
      %v6012 = vsel %vm832, %v5996, %v5997
      %v6013 = vsel %vm832, %v5995, %v5996
      %v6014 = vsel %vm832, %v5994, %v5995
      %v6015 = vsel %vm832, %v5993, %v5994
      %v6016 = vsel %vm832, %v5992, %v5993
      %v6017 = vsel %vm832, %v5991, %v5992
      %v6018 = vsel %vm832, %v5990, %v5991
      %v6019 = vsel %vm832, %v5989, %v5990
      %v6020 = vsel %vm832, %v5988, %v5989
      %v6021 = vsel %vm832, %v5987, %v5988
      %v6022 = vsel %vm832, %v5986, %v5987
      %v6023 = vsel %vm832, %v5985, %v5986
      %v6024 = vsel %vm832, %v5984, %v5985
      %v6025 = vsel %vm832, %v5983, %v5984
      %v6026 = vsel %vm832, %v5982, %v5983
      %v6027 = vsel %vm832, %v5981, %v5982
      %v6028 = vsel %vm832, %v5980, %v5981
      %v6029 = vsel %vm832, %v5979, %v5980
      %v6030 = vsel %vm832, %v5978, %v5979
      %v6031 = vsel %vm832, %v5977, %v5978
      %v6032 = vsel %vm832, %v5976, %v5977
      %v6033 = vsel %vm832, %v5975, %v5976
      %v6034 = vsel %vm832, %v5974, %v5975
      %v6035 = vsel %vm832, %v5973, %v5974
      %v6036 = vsel %vm832, %v6004, %v5973
      %v6037 = vsel %vm993, %v6006, 0.0
      %v6038 = vsel %vm994, %v6005, 0.0
      %v6039 = vsel %vm995, %v6036, 0.0
      %v6040 = vsel %vm996, %v6035, 0.0
      %v6041 = vsel %vm997, %v6034, 0.0
      %v6042 = vsel %vm998, %v6033, 0.0
      %v6043 = vsel %vm999, %v6032, 0.0
      %v6044 = vsel %vm1000, %v6031, 0.0
      %v6045 = vsel %vm1001, %v6030, 0.0
      %v6046 = vsel %vm1002, %v6029, 0.0
      %v6047 = vsel %vm1003, %v6028, 0.0
      %v6048 = vsel %vm1004, %v6027, 0.0
      %v6049 = vsel %vm1005, %v6026, 0.0
      %v6050 = vsel %vm1006, %v6025, 0.0
      %v6051 = vsel %vm1007, %v6024, 0.0
      %v6052 = vsel %vm1008, %v6023, 0.0
      %v6053 = vsel %vm1009, %v6022, 0.0
      %v6054 = vsel %vm1010, %v6021, 0.0
      %v6055 = vsel %vm1011, %v6020, 0.0
      %v6056 = vsel %vm1012, %v6019, 0.0
      %v6057 = vsel %vm1013, %v6018, 0.0
      %v6058 = vsel %vm1014, %v6017, 0.0
      %v6059 = vsel %vm1015, %v6016, 0.0
      %v6060 = vsel %vm1016, %v6015, 0.0
      %v6061 = vsel %vm1017, %v6014, 0.0
      %v6062 = vsel %vm1018, %v6013, 0.0
      %v6063 = vsel %vm1019, %v6012, 0.0
      %v6064 = vsel %vm1020, %v6011, 0.0
      %v6065 = vsel %vm1021, %v6010, 0.0
      %v6066 = vsel %vm1022, %v6009, 0.0
      %v6067 = vsel %vm1023, %v6008, 0.0
      %v6068 = vsel %vm1024, %v6007, 0.0
      %v6069 = vpack.c.bf16 %v6038, %v6037
      %v6070 = vpack.c.bf16 %v6040, %v6039
      %v6071 = vpack.c.bf16 %v6042, %v6041
      %v6072 = vpack.c.bf16 %v6044, %v6043
      %v6073 = vpack.c.bf16 %v6046, %v6045
      %v6074 = vpack.c.bf16 %v6048, %v6047
      %v6075 = vpack.c.bf16 %v6050, %v6049
      %v6076 = vpack.c.bf16 %v6052, %v6051
      %v6077 = vpack.c.bf16 %v6054, %v6053
      %v6078 = vpack.c.bf16 %v6056, %v6055
      %v6079 = vpack.c.bf16 %v6058, %v6057
      %v6080 = vpack.c.bf16 %v6060, %v6059
      %v6081 = vpack.c.bf16 %v6062, %v6061
      %v6082 = vpack.c.bf16 %v6064, %v6063
      %v6083 = vpack.c.bf16 %v6066, %v6065
      %v6084 = vpack.c.bf16 %v6068, %v6067
      %v6085 = vld [vmem:[%s3] sm:$0xf]
      %v6086 = vld [vmem:[%s3 + $0x4] sm:$0xf]
      %v6087 = vld [vmem:[%s3 + $0x8] sm:$0xf]
      %v6088 = vld [vmem:[%s3 + $0xc] sm:$0xf]
      %v6089 = vsel %vm1089, %v5971, 0.0
      %v6090 = vsel %vm1090, %v5972, 0.0
      %v6091 = vsel %vm1091, %v5941, 0.0
      %v6092 = vsel %vm1092, %v5942, 0.0
      %v6093 = vsel %vm1093, %v5943, 0.0
      %v6094 = vsel %vm1094, %v5944, 0.0
      %v6095 = vsel %vm1095, %v5945, 0.0
      %v6096 = vsel %vm1096, %v5946, 0.0
      %v6097 = vsel %vm1097, %v5947, 0.0
      %v6098 = vsel %vm1098, %v5948, 0.0
      %v6099 = vsel %vm1099, %v5949, 0.0
      %v6100 = vsel %vm1100, %v5950, 0.0
      %v6101 = vsel %vm1101, %v5951, 0.0
      %v6102 = vsel %vm1102, %v5952, 0.0
      %v6103 = vsel %vm1103, %v5953, 0.0
      %v6104 = vsel %vm1104, %v5954, 0.0
      %v6105 = vsel %vm1105, %v5955, 0.0
      %v6106 = vsel %vm1106, %v5956, 0.0
      %v6107 = vsel %vm1107, %v5957, 0.0
      %v6108 = vsel %vm1108, %v5958, 0.0
      %v6109 = vsel %vm1109, %v5959, 0.0
      %v6110 = vsel %vm1110, %v5960, 0.0
      %v6111 = vsel %vm1111, %v5961, 0.0
      %v6112 = vsel %vm1112, %v5962, 0.0
      %v6113 = vsel %vm1113, %v5963, 0.0
      %v6114 = vsel %vm1114, %v5964, 0.0
      %v6115 = vsel %vm1115, %v5965, 0.0
      %v6116 = vsel %vm1116, %v5966, 0.0
      %v6117 = vsel %vm1117, %v5967, 0.0
      %v6118 = vsel %vm1118, %v5968, 0.0
      %v6119 = vsel %vm1119, %v5969, 0.0
      %v6120 = vsel %vm1120, %v5970, 0.0
      %v6121 = vpack.c.bf16 %v6090, %v6089
      %v6122 = vpack.c.bf16 %v6092, %v6091
      %v6123 = vpack.c.bf16 %v6094, %v6093
      %v6124 = vpack.c.bf16 %v6096, %v6095
      %v6125 = vpack.c.bf16 %v6098, %v6097
      %v6126 = vpack.c.bf16 %v6100, %v6099
      %v6127 = vpack.c.bf16 %v6102, %v6101
      %v6128 = vpack.c.bf16 %v6104, %v6103
      %v6129 = vpack.c.bf16 %v6106, %v6105
      %v6130 = vpack.c.bf16 %v6108, %v6107
      %v6131 = vpack.c.bf16 %v6110, %v6109
      %v6132 = vpack.c.bf16 %v6112, %v6111
      %v6133 = vpack.c.bf16 %v6114, %v6113
      %v6134 = vpack.c.bf16 %v6116, %v6115
      %v6135 = vpack.c.bf16 %v6118, %v6117
      %v6136 = vpack.c.bf16 %v6120, %v6119
      %v6137 = vld [vmem:[%s3 + $0x10] sm:$0xf]
      %v6138 = vld [vmem:[%s3 + $0x14] sm:$0xf]
      %v6139 = vld [vmem:[%s3 + $0x18] sm:$0xf]
      %v6140 = vld [vmem:[%s3 + $0x1c] sm:$0xf]
      %v6145 = vunpack.c.l.b16 %v6137
      %v6146 = vunpack.c.l.b16 %v6138
      %v6147 = vunpack.c.l.b16 %v6139
      %v6148 = vunpack.c.l.b16 %v6140
      %v6149 = vpack.c.b16 %v6146, %v6145
      %v6150 = vpack.c.b16 %v6148, %v6147
      %v6154 = vsel %vm3529, %v6121, 0
      %v6157 = vsel %vm3529, %v6122, 0
      %v6160 = vsel %vm3529, %v6123, 0
      %v6163 = vsel %vm3529, %v6124, 0
      %v6166 = vsel %vm3529, %v6125, 0
      %v6169 = vsel %vm3529, %v6126, 0
      %v6172 = vsel %vm3529, %v6127, 0
      %v6175 = vsel %vm3529, %v6128, 0
      %v6178 = vsel %vm3529, %v6129, 0
      %v6181 = vsel %vm3529, %v6130, 0
      %v6184 = vsel %vm3529, %v6131, 0
      %v6187 = vsel %vm3529, %v6132, 0
      %v6190 = vsel %vm3529, %v6133, 0
      %v6193 = vsel %vm3529, %v6134, 0
      %v6196 = vsel %vm3529, %v6135, 0
      %v6199 = vsel %vm3529, %v6136, 0
      %6201 = vmatpush.bf16.msra.mxu0 0
      %6202 = vmatpush.bf16.msra.mxu0 0
      %6203 = vmatpush.bf16.msra.mxu0 0
      %6204 = vmatpush.bf16.msra.mxu0 0
      %6205 = vmatpush.bf16.msra.mxu0 0
      %6206 = vmatpush.bf16.msra.mxu0 0
      %6207 = vmatpush.bf16.msra.mxu0 %v6150
      %6208 = vmatpush.bf16.msra.mxu0 %v6149
      %6209 = vmatmul.bf16.gmra.mxu0 %v6154
      %v6210 = vpop.f32.mrf.mxu0
      %v6211 = vadd.f32 0.0, %v6210
      %v6212 = vpop.f32.mrf.mxu0
      %v6213 = vadd.f32 0.0, %v6212
      %6214 = vmatmul.bf16.gmra.mxu0 %v6157
      %v6215 = vpop.f32.mrf.mxu0
      %v6216 = vadd.f32 0.0, %v6215
      %v6217 = vpop.f32.mrf.mxu0
      %v6218 = vadd.f32 0.0, %v6217
      %6219 = vmatmul.bf16.gmra.mxu0 %v6160
      %v6220 = vpop.f32.mrf.mxu0
      %v6221 = vadd.f32 0.0, %v6220
      %v6222 = vpop.f32.mrf.mxu0
      %v6223 = vadd.f32 0.0, %v6222
      %6224 = vmatmul.bf16.gmra.mxu0 %v6163
      %v6225 = vpop.f32.mrf.mxu0
      %v6226 = vadd.f32 0.0, %v6225
      %v6227 = vpop.f32.mrf.mxu0
      %v6228 = vadd.f32 0.0, %v6227
      %6229 = vmatmul.bf16.gmra.mxu0 %v6166
      %v6230 = vpop.f32.mrf.mxu0
      %v6231 = vadd.f32 0.0, %v6230
      %v6232 = vpop.f32.mrf.mxu0
      %v6233 = vadd.f32 0.0, %v6232
      %6234 = vmatmul.bf16.gmra.mxu0 %v6169
      %v6235 = vpop.f32.mrf.mxu0
      %v6236 = vadd.f32 0.0, %v6235
      %v6237 = vpop.f32.mrf.mxu0
      %v6238 = vadd.f32 0.0, %v6237
      %6239 = vmatmul.bf16.gmra.mxu0 %v6172
      %v6240 = vpop.f32.mrf.mxu0
      %v6241 = vadd.f32 0.0, %v6240
      %v6242 = vpop.f32.mrf.mxu0
      %v6243 = vadd.f32 0.0, %v6242
      %6244 = vmatmul.bf16.gmra.mxu0 %v6175
      %v6245 = vpop.f32.mrf.mxu0
      %v6246 = vadd.f32 0.0, %v6245
      %v6247 = vpop.f32.mrf.mxu0
      %v6248 = vadd.f32 0.0, %v6247
      %6249 = vmatmul.bf16.gmra.mxu0 %v6178
      %v6250 = vpop.f32.mrf.mxu0
      %v6251 = vadd.f32 0.0, %v6250
      %v6252 = vpop.f32.mrf.mxu0
      %v6253 = vadd.f32 0.0, %v6252
      %6254 = vmatmul.bf16.gmra.mxu0 %v6181
      %v6255 = vpop.f32.mrf.mxu0
      %v6256 = vadd.f32 0.0, %v6255
      %v6257 = vpop.f32.mrf.mxu0
      %v6258 = vadd.f32 0.0, %v6257
      %6259 = vmatmul.bf16.gmra.mxu0 %v6184
      %v6260 = vpop.f32.mrf.mxu0
      %v6261 = vadd.f32 0.0, %v6260
      %v6262 = vpop.f32.mrf.mxu0
      %v6263 = vadd.f32 0.0, %v6262
      %6264 = vmatmul.bf16.gmra.mxu0 %v6187
      %v6265 = vpop.f32.mrf.mxu0
      %v6266 = vadd.f32 0.0, %v6265
      %v6267 = vpop.f32.mrf.mxu0
      %v6268 = vadd.f32 0.0, %v6267
      %6269 = vmatmul.bf16.gmra.mxu0 %v6190
      %v6270 = vpop.f32.mrf.mxu0
      %v6271 = vadd.f32 0.0, %v6270
      %v6272 = vpop.f32.mrf.mxu0
      %v6273 = vadd.f32 0.0, %v6272
      %6274 = vmatmul.bf16.gmra.mxu0 %v6193
      %v6275 = vpop.f32.mrf.mxu0
      %v6276 = vadd.f32 0.0, %v6275
      %v6277 = vpop.f32.mrf.mxu0
      %v6278 = vadd.f32 0.0, %v6277
      %6279 = vmatmul.bf16.gmra.mxu0 %v6196
      %v6280 = vpop.f32.mrf.mxu0
      %v6281 = vadd.f32 0.0, %v6280
      %v6282 = vpop.f32.mrf.mxu0
      %v6283 = vadd.f32 0.0, %v6282
      %6284 = vmatmul.bf16.gmra.mxu0 %v6199
      %v6285 = vpop.f32.mrf.mxu0
      %v6286 = vadd.f32 0.0, %v6285
      %v6287 = vpop.f32.mrf.mxu0
      %v6288 = vadd.f32 0.0, %v6287
      %6289 = vdwg.mxu0
      %v6294 = vunpack.c.l.b16 %v6085
      %v6295 = vunpack.c.l.b16 %v6086
      %v6296 = vunpack.c.l.b16 %v6087
      %v6297 = vunpack.c.l.b16 %v6088
      %v6298 = vpack.c.b16 %v6295, %v6294
      %v6299 = vpack.c.b16 %v6297, %v6296
      %v6303 = vsel %vm3529, %v6069, 0
      %v6306 = vsel %vm3529, %v6070, 0
      %v6309 = vsel %vm3529, %v6071, 0
      %v6312 = vsel %vm3529, %v6072, 0
      %v6315 = vsel %vm3529, %v6073, 0
      %v6318 = vsel %vm3529, %v6074, 0
      %v6321 = vsel %vm3529, %v6075, 0
      %v6324 = vsel %vm3529, %v6076, 0
      %v6327 = vsel %vm3529, %v6077, 0
      %v6330 = vsel %vm3529, %v6078, 0
      %v6333 = vsel %vm3529, %v6079, 0
      %v6336 = vsel %vm3529, %v6080, 0
      %v6339 = vsel %vm3529, %v6081, 0
      %v6342 = vsel %vm3529, %v6082, 0
      %v6345 = vsel %vm3529, %v6083, 0
      %v6348 = vsel %vm3529, %v6084, 0
      %6350 = vmatpush.bf16.msra.mxu0 0
      %6351 = vmatpush.bf16.msra.mxu0 0
      %6352 = vmatpush.bf16.msra.mxu0 0
      %6353 = vmatpush.bf16.msra.mxu0 0
      %6354 = vmatpush.bf16.msra.mxu0 0
      %6355 = vmatpush.bf16.msra.mxu0 0
      %6356 = vmatpush.bf16.msra.mxu0 %v6299
      %6357 = vmatpush.bf16.msra.mxu0 %v6298
      %6358 = vmatmul.bf16.gmra.mxu0 %v6303
      %v6359 = vpop.f32.mrf.mxu0
      %v6360 = vadd.f32 %v6211, %v6359
      %v6361 = vpop.f32.mrf.mxu0
      %v6362 = vadd.f32 %v6213, %v6361
      %6363 = vmatmul.bf16.gmra.mxu0 %v6306
      %v6364 = vpop.f32.mrf.mxu0
      %v6365 = vadd.f32 %v6216, %v6364
      %v6366 = vpop.f32.mrf.mxu0
      %v6367 = vadd.f32 %v6218, %v6366
      %6368 = vmatmul.bf16.gmra.mxu0 %v6309
      %v6369 = vpop.f32.mrf.mxu0
      %v6370 = vadd.f32 %v6221, %v6369
      %v6371 = vpop.f32.mrf.mxu0
      %v6372 = vadd.f32 %v6223, %v6371
      %6373 = vmatmul.bf16.gmra.mxu0 %v6312
      %v6374 = vpop.f32.mrf.mxu0
      %v6375 = vadd.f32 %v6226, %v6374
      %v6376 = vpop.f32.mrf.mxu0
      %v6377 = vadd.f32 %v6228, %v6376
      %6378 = vmatmul.bf16.gmra.mxu0 %v6315
      %v6379 = vpop.f32.mrf.mxu0
      %v6380 = vadd.f32 %v6231, %v6379
      %v6381 = vpop.f32.mrf.mxu0
      %v6382 = vadd.f32 %v6233, %v6381
      %6383 = vmatmul.bf16.gmra.mxu0 %v6318
      %v6384 = vpop.f32.mrf.mxu0
      %v6385 = vadd.f32 %v6236, %v6384
      %v6386 = vpop.f32.mrf.mxu0
      %v6387 = vadd.f32 %v6238, %v6386
      %6388 = vmatmul.bf16.gmra.mxu0 %v6321
      %v6389 = vpop.f32.mrf.mxu0
      %v6390 = vadd.f32 %v6241, %v6389
      %v6391 = vpop.f32.mrf.mxu0
      %v6392 = vadd.f32 %v6243, %v6391
      %6393 = vmatmul.bf16.gmra.mxu0 %v6324
      %v6394 = vpop.f32.mrf.mxu0
      %v6395 = vadd.f32 %v6246, %v6394
      %v6396 = vpop.f32.mrf.mxu0
      %v6397 = vadd.f32 %v6248, %v6396
      %6398 = vmatmul.bf16.gmra.mxu0 %v6327
      %v6399 = vpop.f32.mrf.mxu0
      %v6400 = vadd.f32 %v6251, %v6399
      %v6401 = vpop.f32.mrf.mxu0
      %v6402 = vadd.f32 %v6253, %v6401
      %6403 = vmatmul.bf16.gmra.mxu0 %v6330
      %v6404 = vpop.f32.mrf.mxu0
      %v6405 = vadd.f32 %v6256, %v6404
      %v6406 = vpop.f32.mrf.mxu0
      %v6407 = vadd.f32 %v6258, %v6406
      %6408 = vmatmul.bf16.gmra.mxu0 %v6333
      %v6409 = vpop.f32.mrf.mxu0
      %v6410 = vadd.f32 %v6261, %v6409
      %v6411 = vpop.f32.mrf.mxu0
      %v6412 = vadd.f32 %v6263, %v6411
      %6413 = vmatmul.bf16.gmra.mxu0 %v6336
      %v6414 = vpop.f32.mrf.mxu0
      %v6415 = vadd.f32 %v6266, %v6414
      %v6416 = vpop.f32.mrf.mxu0
      %v6417 = vadd.f32 %v6268, %v6416
      %6418 = vmatmul.bf16.gmra.mxu0 %v6339
      %v6419 = vpop.f32.mrf.mxu0
      %v6420 = vadd.f32 %v6271, %v6419
      %v6421 = vpop.f32.mrf.mxu0
      %v6422 = vadd.f32 %v6273, %v6421
      %6423 = vmatmul.bf16.gmra.mxu0 %v6342
      %v6424 = vpop.f32.mrf.mxu0
      %v6425 = vadd.f32 %v6276, %v6424
      %v6426 = vpop.f32.mrf.mxu0
      %v6427 = vadd.f32 %v6278, %v6426
      %6428 = vmatmul.bf16.gmra.mxu0 %v6345
      %v6429 = vpop.f32.mrf.mxu0
      %v6430 = vadd.f32 %v6281, %v6429
      %v6431 = vpop.f32.mrf.mxu0
      %v6432 = vadd.f32 %v6283, %v6431
      %6433 = vmatmul.bf16.gmra.mxu0 %v6348
      %v6434 = vpop.f32.mrf.mxu0
      %v6435 = vadd.f32 %v6286, %v6434
      %v6436 = vpop.f32.mrf.mxu0
      %v6437 = vadd.f32 %v6288, %v6436
      %6438 = vdwg.mxu0
      %v6439 = vrot.slane %v5941, 1
      %v6440 = vrot.slane %v5942, 1
      %v6441 = vrot.slane %v5943, 1
      %v6442 = vrot.slane %v5944, 1
      %v6443 = vrot.slane %v5945, 1
      %v6444 = vrot.slane %v5946, 1
      %v6445 = vrot.slane %v5947, 1
      %v6446 = vrot.slane %v5948, 1
      %v6447 = vrot.slane %v5949, 1
      %v6448 = vrot.slane %v5950, 1
      %v6449 = vrot.slane %v5951, 1
      %v6450 = vrot.slane %v5952, 1
      %v6451 = vrot.slane %v5953, 1
      %v6452 = vrot.slane %v5954, 1
      %v6453 = vrot.slane %v5955, 1
      %v6454 = vrot.slane %v5956, 1
      %v6455 = vrot.slane %v5957, 1
      %v6456 = vrot.slane %v5958, 1
      %v6457 = vrot.slane %v5959, 1
      %v6458 = vrot.slane %v5960, 1
      %v6459 = vrot.slane %v5961, 1
      %v6460 = vrot.slane %v5962, 1
      %v6461 = vrot.slane %v5963, 1
      %v6462 = vrot.slane %v5964, 1
      %v6463 = vrot.slane %v5965, 1
      %v6464 = vrot.slane %v5966, 1
      %v6465 = vrot.slane %v5967, 1
      %v6466 = vrot.slane %v5968, 1
      %v6467 = vrot.slane %v5969, 1
      %v6468 = vrot.slane %v5970, 1
      %v6469 = vrot.slane %v5971, 1
      %v6470 = vrot.slane %v5972, 1
      %v6471 = vsel %vm1185, %v6469, %v6470
      %v6472 = vsel %vm1185, %v6468, %v6469
      %v6473 = vsel %vm1185, %v6467, %v6468
      %v6474 = vsel %vm1185, %v6466, %v6467
      %v6475 = vsel %vm1185, %v6465, %v6466
      %v6476 = vsel %vm1185, %v6464, %v6465
      %v6477 = vsel %vm1185, %v6463, %v6464
      %v6478 = vsel %vm1185, %v6462, %v6463
      %v6479 = vsel %vm1185, %v6461, %v6462
      %v6480 = vsel %vm1185, %v6460, %v6461
      %v6481 = vsel %vm1185, %v6459, %v6460
      %v6482 = vsel %vm1185, %v6458, %v6459
      %v6483 = vsel %vm1185, %v6457, %v6458
      %v6484 = vsel %vm1185, %v6456, %v6457
      %v6485 = vsel %vm1185, %v6455, %v6456
      %v6486 = vsel %vm1185, %v6454, %v6455
      %v6487 = vsel %vm1185, %v6453, %v6454
      %v6488 = vsel %vm1185, %v6452, %v6453
      %v6489 = vsel %vm1185, %v6451, %v6452
      %v6490 = vsel %vm1185, %v6450, %v6451
      %v6491 = vsel %vm1185, %v6449, %v6450
      %v6492 = vsel %vm1185, %v6448, %v6449
      %v6493 = vsel %vm1185, %v6447, %v6448
      %v6494 = vsel %vm1185, %v6446, %v6447
      %v6495 = vsel %vm1185, %v6445, %v6446
      %v6496 = vsel %vm1185, %v6444, %v6445
      %v6497 = vsel %vm1185, %v6443, %v6444
      %v6498 = vsel %vm1185, %v6442, %v6443
      %v6499 = vsel %vm1185, %v6441, %v6442
      %v6500 = vsel %vm1185, %v6440, %v6441
      %v6501 = vsel %vm1185, %v6439, %v6440
      %v6502 = vsel %vm1185, %v6470, %v6439
      %v6503 = vsel %vm1346, %v6471, 0.0
      %v6504 = vsel %vm1347, %v6502, 0.0
      %v6505 = vsel %vm1348, %v6501, 0.0
      %v6506 = vsel %vm1349, %v6500, 0.0
      %v6507 = vsel %vm1350, %v6499, 0.0
      %v6508 = vsel %vm1351, %v6498, 0.0
      %v6509 = vsel %vm1352, %v6497, 0.0
      %v6510 = vsel %vm1353, %v6496, 0.0
      %v6511 = vsel %vm1354, %v6495, 0.0
      %v6512 = vsel %vm1355, %v6494, 0.0
      %v6513 = vsel %vm1356, %v6493, 0.0
      %v6514 = vsel %vm1357, %v6492, 0.0
      %v6515 = vsel %vm1358, %v6491, 0.0
      %v6516 = vsel %vm1359, %v6490, 0.0
      %v6517 = vsel %vm1360, %v6489, 0.0
      %v6518 = vsel %vm1361, %v6488, 0.0
      %v6519 = vsel %vm1362, %v6487, 0.0
      %v6520 = vsel %vm1363, %v6486, 0.0
      %v6521 = vsel %vm1364, %v6485, 0.0
      %v6522 = vsel %vm1365, %v6484, 0.0
      %v6523 = vsel %vm1366, %v6483, 0.0
      %v6524 = vsel %vm1367, %v6482, 0.0
      %v6525 = vsel %vm1368, %v6481, 0.0
      %v6526 = vsel %vm1369, %v6480, 0.0
      %v6527 = vsel %vm1370, %v6479, 0.0
      %v6528 = vsel %vm1371, %v6478, 0.0
      %v6529 = vsel %vm1372, %v6477, 0.0
      %v6530 = vsel %vm1373, %v6476, 0.0
      %v6531 = vsel %vm1374, %v6475, 0.0
      %v6532 = vsel %vm1375, %v6474, 0.0
      %v6533 = vsel %vm1376, %v6473, 0.0
      %v6534 = vsel %vm1377, %v6472, 0.0
      %v6535 = vpack.c.bf16 %v6504, %v6503
      %v6536 = vpack.c.bf16 %v6506, %v6505
      %v6537 = vpack.c.bf16 %v6508, %v6507
      %v6538 = vpack.c.bf16 %v6510, %v6509
      %v6539 = vpack.c.bf16 %v6512, %v6511
      %v6540 = vpack.c.bf16 %v6514, %v6513
      %v6541 = vpack.c.bf16 %v6516, %v6515
      %v6542 = vpack.c.bf16 %v6518, %v6517
      %v6543 = vpack.c.bf16 %v6520, %v6519
      %v6544 = vpack.c.bf16 %v6522, %v6521
      %v6545 = vpack.c.bf16 %v6524, %v6523
      %v6546 = vpack.c.bf16 %v6526, %v6525
      %v6547 = vpack.c.bf16 %v6528, %v6527
      %v6548 = vpack.c.bf16 %v6530, %v6529
      %v6549 = vpack.c.bf16 %v6532, %v6531
      %v6550 = vpack.c.bf16 %v6534, %v6533
      %v6551 = vld [vmem:[%s3 + $0x20] sm:$0xf]
      %v6552 = vld [vmem:[%s3 + $0x24] sm:$0xf]
      %v6553 = vld [vmem:[%s3 + $0x28] sm:$0xf]
      %v6554 = vld [vmem:[%s3 + $0x2c] sm:$0xf]
      %v6559 = vunpack.c.l.b16 %v6551
      %v6560 = vunpack.c.l.b16 %v6552
      %v6561 = vunpack.c.l.b16 %v6553
      %v6562 = vunpack.c.l.b16 %v6554
      %v6563 = vpack.c.b16 %v6560, %v6559
      %v6564 = vpack.c.b16 %v6562, %v6561
      %v6568 = vsel %vm3529, %v6535, 0
      %v6571 = vsel %vm3529, %v6536, 0
      %v6574 = vsel %vm3529, %v6537, 0
      %v6577 = vsel %vm3529, %v6538, 0
      %v6580 = vsel %vm3529, %v6539, 0
      %v6583 = vsel %vm3529, %v6540, 0
      %v6586 = vsel %vm3529, %v6541, 0
      %v6589 = vsel %vm3529, %v6542, 0
      %v6592 = vsel %vm3529, %v6543, 0
      %v6595 = vsel %vm3529, %v6544, 0
      %v6598 = vsel %vm3529, %v6545, 0
      %v6601 = vsel %vm3529, %v6546, 0
      %v6604 = vsel %vm3529, %v6547, 0
      %v6607 = vsel %vm3529, %v6548, 0
      %v6610 = vsel %vm3529, %v6549, 0
      %v6613 = vsel %vm3529, %v6550, 0
      %6615 = vmatpush.bf16.msra.mxu0 0
      %6616 = vmatpush.bf16.msra.mxu0 0
      %6617 = vmatpush.bf16.msra.mxu0 0
      %6618 = vmatpush.bf16.msra.mxu0 0
      %6619 = vmatpush.bf16.msra.mxu0 0
      %6620 = vmatpush.bf16.msra.mxu0 0
      %6621 = vmatpush.bf16.msra.mxu0 %v6564
      %6622 = vmatpush.bf16.msra.mxu0 %v6563
      %6623 = vmatmul.bf16.gmra.mxu0 %v6568
      %v6624 = vpop.f32.mrf.mxu0
      %v6625 = vadd.f32 0.0, %v6624
      %v6626 = vpop.f32.mrf.mxu0
      %v6627 = vadd.f32 0.0, %v6626
      %6628 = vmatmul.bf16.gmra.mxu0 %v6571
      %v6629 = vpop.f32.mrf.mxu0
      %v6630 = vadd.f32 0.0, %v6629
      %v6631 = vpop.f32.mrf.mxu0
      %v6632 = vadd.f32 0.0, %v6631
      %6633 = vmatmul.bf16.gmra.mxu0 %v6574
      %v6634 = vpop.f32.mrf.mxu0
      %v6635 = vadd.f32 0.0, %v6634
      %v6636 = vpop.f32.mrf.mxu0
      %v6637 = vadd.f32 0.0, %v6636
      %6638 = vmatmul.bf16.gmra.mxu0 %v6577
      %v6639 = vpop.f32.mrf.mxu0
      %v6640 = vadd.f32 0.0, %v6639
      %v6641 = vpop.f32.mrf.mxu0
      %v6642 = vadd.f32 0.0, %v6641
      %6643 = vmatmul.bf16.gmra.mxu0 %v6580
      %v6644 = vpop.f32.mrf.mxu0
      %v6645 = vadd.f32 0.0, %v6644
      %v6646 = vpop.f32.mrf.mxu0
      %v6647 = vadd.f32 0.0, %v6646
      %6648 = vmatmul.bf16.gmra.mxu0 %v6583
      %v6649 = vpop.f32.mrf.mxu0
      %v6650 = vadd.f32 0.0, %v6649
      %v6651 = vpop.f32.mrf.mxu0
      %v6652 = vadd.f32 0.0, %v6651
      %6653 = vmatmul.bf16.gmra.mxu0 %v6586
      %v6654 = vpop.f32.mrf.mxu0
      %v6655 = vadd.f32 0.0, %v6654
      %v6656 = vpop.f32.mrf.mxu0
      %v6657 = vadd.f32 0.0, %v6656
      %6658 = vmatmul.bf16.gmra.mxu0 %v6589
      %v6659 = vpop.f32.mrf.mxu0
      %v6660 = vadd.f32 0.0, %v6659
      %v6661 = vpop.f32.mrf.mxu0
      %v6662 = vadd.f32 0.0, %v6661
      %6663 = vmatmul.bf16.gmra.mxu0 %v6592
      %v6664 = vpop.f32.mrf.mxu0
      %v6665 = vadd.f32 0.0, %v6664
      %v6666 = vpop.f32.mrf.mxu0
      %v6667 = vadd.f32 0.0, %v6666
      %6668 = vmatmul.bf16.gmra.mxu0 %v6595
      %v6669 = vpop.f32.mrf.mxu0
      %v6670 = vadd.f32 0.0, %v6669
      %v6671 = vpop.f32.mrf.mxu0
      %v6672 = vadd.f32 0.0, %v6671
      %6673 = vmatmul.bf16.gmra.mxu0 %v6598
      %v6674 = vpop.f32.mrf.mxu0
      %v6675 = vadd.f32 0.0, %v6674
      %v6676 = vpop.f32.mrf.mxu0
      %v6677 = vadd.f32 0.0, %v6676
      %6678 = vmatmul.bf16.gmra.mxu0 %v6601
      %v6679 = vpop.f32.mrf.mxu0
      %v6680 = vadd.f32 0.0, %v6679
      %v6681 = vpop.f32.mrf.mxu0
      %v6682 = vadd.f32 0.0, %v6681
      %6683 = vmatmul.bf16.gmra.mxu0 %v6604
      %v6684 = vpop.f32.mrf.mxu0
      %v6685 = vadd.f32 0.0, %v6684
      %v6686 = vpop.f32.mrf.mxu0
      %v6687 = vadd.f32 0.0, %v6686
      %6688 = vmatmul.bf16.gmra.mxu0 %v6607
      %v6689 = vpop.f32.mrf.mxu0
      %v6690 = vadd.f32 0.0, %v6689
      %v6691 = vpop.f32.mrf.mxu0
      %v6692 = vadd.f32 0.0, %v6691
      %6693 = vmatmul.bf16.gmra.mxu0 %v6610
      %v6694 = vpop.f32.mrf.mxu0
      %v6695 = vadd.f32 0.0, %v6694
      %v6696 = vpop.f32.mrf.mxu0
      %v6697 = vadd.f32 0.0, %v6696
      %6698 = vmatmul.bf16.gmra.mxu0 %v6613
      %v6699 = vpop.f32.mrf.mxu0
      %v6700 = vadd.f32 0.0, %v6699
      %v6701 = vpop.f32.mrf.mxu0
      %v6702 = vadd.f32 0.0, %v6701
      %6703 = vdwg.mxu0
      %v6704 = vadd.f32 %v6360, %v6625
      %v6705 = vadd.f32 %v6362, %v6627
      %v6706 = vadd.f32 %v6365, %v6630
      %v6707 = vadd.f32 %v6367, %v6632
      %v6708 = vadd.f32 %v6370, %v6635
      %v6709 = vadd.f32 %v6372, %v6637
      %v6710 = vadd.f32 %v6375, %v6640
      %v6711 = vadd.f32 %v6377, %v6642
      %v6712 = vadd.f32 %v6380, %v6645
      %v6713 = vadd.f32 %v6382, %v6647
      %v6714 = vadd.f32 %v6385, %v6650
      %v6715 = vadd.f32 %v6387, %v6652
      %v6716 = vadd.f32 %v6390, %v6655
      %v6717 = vadd.f32 %v6392, %v6657
      %v6718 = vadd.f32 %v6395, %v6660
      %v6719 = vadd.f32 %v6397, %v6662
      %v6720 = vadd.f32 %v6400, %v6665
      %v6721 = vadd.f32 %v6402, %v6667
      %v6722 = vadd.f32 %v6405, %v6670
      %v6723 = vadd.f32 %v6407, %v6672
      %v6724 = vadd.f32 %v6410, %v6675
      %v6725 = vadd.f32 %v6412, %v6677
      %v6726 = vadd.f32 %v6415, %v6680
      %v6727 = vadd.f32 %v6417, %v6682
      %v6728 = vadd.f32 %v6420, %v6685
      %v6729 = vadd.f32 %v6422, %v6687
      %v6730 = vadd.f32 %v6425, %v6690
      %v6731 = vadd.f32 %v6427, %v6692
      %v6732 = vadd.f32 %v6430, %v6695
      %v6733 = vadd.f32 %v6432, %v6697
      %v6734 = vadd.f32 %v6435, %v6700
      %v6735 = vadd.f32 %v6437, %v6702
      %v6736 = vsel %vm1538, %v6036, 0.0
      %v6737 = vsel %vm1539, %v6035, 0.0
      %v6738 = vsel %vm1540, %v6034, 0.0
      %v6739 = vsel %vm1541, %v6033, 0.0
      %v6740 = vsel %vm1542, %v6032, 0.0
      %v6741 = vsel %vm1543, %v6031, 0.0
      %v6742 = vsel %vm1544, %v6030, 0.0
      %v6743 = vsel %vm1545, %v6029, 0.0
      %v6744 = vsel %vm1546, %v6028, 0.0
      %v6745 = vsel %vm1547, %v6027, 0.0
      %v6746 = vsel %vm1548, %v6026, 0.0
      %v6747 = vsel %vm1549, %v6025, 0.0
      %v6748 = vsel %vm1550, %v6024, 0.0
      %v6749 = vsel %vm1551, %v6023, 0.0
      %v6750 = vsel %vm1552, %v6022, 0.0
      %v6751 = vsel %vm1553, %v6021, 0.0
      %v6752 = vsel %vm1554, %v6020, 0.0
      %v6753 = vsel %vm1555, %v6019, 0.0
      %v6754 = vsel %vm1556, %v6018, 0.0
      %v6755 = vsel %vm1557, %v6017, 0.0
      %v6756 = vsel %vm1558, %v6016, 0.0
      %v6757 = vsel %vm1559, %v6015, 0.0
      %v6758 = vsel %vm1560, %v6014, 0.0
      %v6759 = vsel %vm1561, %v6013, 0.0
      %v6760 = vsel %vm1562, %v6012, 0.0
      %v6761 = vsel %vm1563, %v6011, 0.0
      %v6762 = vsel %vm1564, %v6010, 0.0
      %v6763 = vsel %vm1565, %v6009, 0.0
      %v6764 = vsel %vm1566, %v6008, 0.0
      %v6765 = vsel %vm1567, %v6007, 0.0
      %v6766 = vsel %vm1568, %v6006, 0.0
      %v6767 = vsel %vm1569, %v6005, 0.0
      %v6768 = vpack.c.bf16 %v6737, %v6736
      %v6769 = vpack.c.bf16 %v6739, %v6738
      %v6770 = vpack.c.bf16 %v6741, %v6740
      %v6771 = vpack.c.bf16 %v6743, %v6742
      %v6772 = vpack.c.bf16 %v6745, %v6744
      %v6773 = vpack.c.bf16 %v6747, %v6746
      %v6774 = vpack.c.bf16 %v6749, %v6748
      %v6775 = vpack.c.bf16 %v6751, %v6750
      %v6776 = vpack.c.bf16 %v6753, %v6752
      %v6777 = vpack.c.bf16 %v6755, %v6754
      %v6778 = vpack.c.bf16 %v6757, %v6756
      %v6779 = vpack.c.bf16 %v6759, %v6758
      %v6780 = vpack.c.bf16 %v6761, %v6760
      %v6781 = vpack.c.bf16 %v6763, %v6762
      %v6782 = vpack.c.bf16 %v6765, %v6764
      %v6783 = vpack.c.bf16 %v6767, %v6766
      %v6784 = vld [vmem:[%s3 + $0x30] sm:$0xf]
      %v6785 = vld [vmem:[%s3 + $0x34] sm:$0xf]
      %v6786 = vld [vmem:[%s3 + $0x38] sm:$0xf]
      %v6787 = vld [vmem:[%s3 + $0x3c] sm:$0xf]
      %v6792 = vunpack.c.l.b16 %v6784
      %v6793 = vunpack.c.l.b16 %v6785
      %v6794 = vunpack.c.l.b16 %v6786
      %v6795 = vunpack.c.l.b16 %v6787
      %v6796 = vpack.c.b16 %v6793, %v6792
      %v6797 = vpack.c.b16 %v6795, %v6794
      %v6801 = vsel %vm3529, %v6768, 0
      %v6804 = vsel %vm3529, %v6769, 0
      %v6807 = vsel %vm3529, %v6770, 0
      %v6810 = vsel %vm3529, %v6771, 0
      %v6813 = vsel %vm3529, %v6772, 0
      %v6816 = vsel %vm3529, %v6773, 0
      %v6819 = vsel %vm3529, %v6774, 0
      %v6822 = vsel %vm3529, %v6775, 0
      %v6825 = vsel %vm3529, %v6776, 0
      %v6828 = vsel %vm3529, %v6777, 0
      %v6831 = vsel %vm3529, %v6778, 0
      %v6834 = vsel %vm3529, %v6779, 0
      %v6837 = vsel %vm3529, %v6780, 0
      %v6840 = vsel %vm3529, %v6781, 0
      %v6843 = vsel %vm3529, %v6782, 0
      %v6846 = vsel %vm3529, %v6783, 0
      %6848 = vmatpush.bf16.msra.mxu0 0
      %6849 = vmatpush.bf16.msra.mxu0 0
      %6850 = vmatpush.bf16.msra.mxu0 0
      %6851 = vmatpush.bf16.msra.mxu0 0
      %6852 = vmatpush.bf16.msra.mxu0 0
      %6853 = vmatpush.bf16.msra.mxu0 0
      %6854 = vmatpush.bf16.msra.mxu0 %v6797
      %6855 = vmatpush.bf16.msra.mxu0 %v6796
      %6856 = vmatmul.bf16.gmra.mxu0 %v6801
      %v6857 = vpop.f32.mrf.mxu0
      %v6858 = vadd.f32 0.0, %v6857
      %v6859 = vpop.f32.mrf.mxu0
      %v6860 = vadd.f32 0.0, %v6859
      %6861 = vmatmul.bf16.gmra.mxu0 %v6804
      %v6862 = vpop.f32.mrf.mxu0
      %v6863 = vadd.f32 0.0, %v6862
      %v6864 = vpop.f32.mrf.mxu0
      %v6865 = vadd.f32 0.0, %v6864
      %6866 = vmatmul.bf16.gmra.mxu0 %v6807
      %v6867 = vpop.f32.mrf.mxu0
      %v6868 = vadd.f32 0.0, %v6867
      %v6869 = vpop.f32.mrf.mxu0
      %v6870 = vadd.f32 0.0, %v6869
      %6871 = vmatmul.bf16.gmra.mxu0 %v6810
      %v6872 = vpop.f32.mrf.mxu0
      %v6873 = vadd.f32 0.0, %v6872
      %v6874 = vpop.f32.mrf.mxu0
      %v6875 = vadd.f32 0.0, %v6874
      %6876 = vmatmul.bf16.gmra.mxu0 %v6813
      %v6877 = vpop.f32.mrf.mxu0
      %v6878 = vadd.f32 0.0, %v6877
      %v6879 = vpop.f32.mrf.mxu0
      %v6880 = vadd.f32 0.0, %v6879
      %6881 = vmatmul.bf16.gmra.mxu0 %v6816
      %v6882 = vpop.f32.mrf.mxu0
      %v6883 = vadd.f32 0.0, %v6882
      %v6884 = vpop.f32.mrf.mxu0
      %v6885 = vadd.f32 0.0, %v6884
      %6886 = vmatmul.bf16.gmra.mxu0 %v6819
      %v6887 = vpop.f32.mrf.mxu0
      %v6888 = vadd.f32 0.0, %v6887
      %v6889 = vpop.f32.mrf.mxu0
      %v6890 = vadd.f32 0.0, %v6889
      %6891 = vmatmul.bf16.gmra.mxu0 %v6822
      %v6892 = vpop.f32.mrf.mxu0
      %v6893 = vadd.f32 0.0, %v6892
      %v6894 = vpop.f32.mrf.mxu0
      %v6895 = vadd.f32 0.0, %v6894
      %6896 = vmatmul.bf16.gmra.mxu0 %v6825
      %v6897 = vpop.f32.mrf.mxu0
      %v6898 = vadd.f32 0.0, %v6897
      %v6899 = vpop.f32.mrf.mxu0
      %v6900 = vadd.f32 0.0, %v6899
      %6901 = vmatmul.bf16.gmra.mxu0 %v6828
      %v6902 = vpop.f32.mrf.mxu0
      %v6903 = vadd.f32 0.0, %v6902
      %v6904 = vpop.f32.mrf.mxu0
      %v6905 = vadd.f32 0.0, %v6904
      %6906 = vmatmul.bf16.gmra.mxu0 %v6831
      %v6907 = vpop.f32.mrf.mxu0
      %v6908 = vadd.f32 0.0, %v6907
      %v6909 = vpop.f32.mrf.mxu0
      %v6910 = vadd.f32 0.0, %v6909
      %6911 = vmatmul.bf16.gmra.mxu0 %v6834
      %v6912 = vpop.f32.mrf.mxu0
      %v6913 = vadd.f32 0.0, %v6912
      %v6914 = vpop.f32.mrf.mxu0
      %v6915 = vadd.f32 0.0, %v6914
      %6916 = vmatmul.bf16.gmra.mxu0 %v6837
      %v6917 = vpop.f32.mrf.mxu0
      %v6918 = vadd.f32 0.0, %v6917
      %v6919 = vpop.f32.mrf.mxu0
      %v6920 = vadd.f32 0.0, %v6919
      %6921 = vmatmul.bf16.gmra.mxu0 %v6840
      %v6922 = vpop.f32.mrf.mxu0
      %v6923 = vadd.f32 0.0, %v6922
      %v6924 = vpop.f32.mrf.mxu0
      %v6925 = vadd.f32 0.0, %v6924
      %6926 = vmatmul.bf16.gmra.mxu0 %v6843
      %v6927 = vpop.f32.mrf.mxu0
      %v6928 = vadd.f32 0.0, %v6927
      %v6929 = vpop.f32.mrf.mxu0
      %v6930 = vadd.f32 0.0, %v6929
      %6931 = vmatmul.bf16.gmra.mxu0 %v6846
      %v6932 = vpop.f32.mrf.mxu0
      %v6933 = vadd.f32 0.0, %v6932
      %v6934 = vpop.f32.mrf.mxu0
      %v6935 = vadd.f32 0.0, %v6934
      %6936 = vdwg.mxu0
      %v6937 = vadd.f32 %v6704, %v6858
      %v6938 = vadd.f32 %v6705, %v6860
      %v6939 = vadd.f32 %v6706, %v6863
      %v6940 = vadd.f32 %v6707, %v6865
      %v6941 = vadd.f32 %v6708, %v6868
      %v6942 = vadd.f32 %v6709, %v6870
      %v6943 = vadd.f32 %v6710, %v6873
      %v6944 = vadd.f32 %v6711, %v6875
      %v6945 = vadd.f32 %v6712, %v6878
      %v6946 = vadd.f32 %v6713, %v6880
      %v6947 = vadd.f32 %v6714, %v6883
      %v6948 = vadd.f32 %v6715, %v6885
      %v6949 = vadd.f32 %v6716, %v6888
      %v6950 = vadd.f32 %v6717, %v6890
      %v6951 = vadd.f32 %v6718, %v6893
      %v6952 = vadd.f32 %v6719, %v6895
      %v6953 = vadd.f32 %v6720, %v6898
      %v6954 = vadd.f32 %v6721, %v6900
      %v6955 = vadd.f32 %v6722, %v6903
      %v6956 = vadd.f32 %v6723, %v6905
      %v6957 = vadd.f32 %v6724, %v6908
      %v6958 = vadd.f32 %v6725, %v6910
      %v6959 = vadd.f32 %v6726, %v6913
      %v6960 = vadd.f32 %v6727, %v6915
      %v6961 = vadd.f32 %v6728, %v6918
      %v6962 = vadd.f32 %v6729, %v6920
      %v6963 = vadd.f32 %v6730, %v6923
      %v6964 = vadd.f32 %v6731, %v6925
      %v6965 = vadd.f32 %v6732, %v6928
      %v6966 = vadd.f32 %v6733, %v6930
      %v6967 = vadd.f32 %v6734, %v6933
      %v6968 = vadd.f32 %v6735, %v6935
      %v6969 = vpack.c.bf16 %v5942, %v5941
      %v6970 = vpack.c.bf16 %v5944, %v5943
      %v6971 = vpack.c.bf16 %v5946, %v5945
      %v6972 = vpack.c.bf16 %v5948, %v5947
      %v6973 = vpack.c.bf16 %v5950, %v5949
      %v6974 = vpack.c.bf16 %v5952, %v5951
      %v6975 = vpack.c.bf16 %v5954, %v5953
      %v6976 = vpack.c.bf16 %v5956, %v5955
      %v6977 = vpack.c.bf16 %v5958, %v5957
      %v6978 = vpack.c.bf16 %v5960, %v5959
      %v6979 = vpack.c.bf16 %v5962, %v5961
      %v6980 = vpack.c.bf16 %v5964, %v5963
      %v6981 = vpack.c.bf16 %v5966, %v5965
      %v6982 = vpack.c.bf16 %v5968, %v5967
      %v6983 = vpack.c.bf16 %v5970, %v5969
      %v6984 = vpack.c.bf16 %v5972, %v5971
      %v6985 = vld [vmem:[%s3 + $0x40] sm:$0xf]
      %v6986 = vld [vmem:[%s3 + $0x44] sm:$0xf]
      %v6987 = vld [vmem:[%s3 + $0x48] sm:$0xf]
      %v6988 = vld [vmem:[%s3 + $0x4c] sm:$0xf]
      %v6993 = vunpack.c.l.b16 %v6985
      %v6994 = vunpack.c.l.b16 %v6986
      %v6995 = vunpack.c.l.b16 %v6987
      %v6996 = vunpack.c.l.b16 %v6988
      %v6997 = vpack.c.b16 %v6994, %v6993
      %v6998 = vpack.c.b16 %v6996, %v6995
      %v7002 = vsel %vm3529, %v6969, 0
      %v7005 = vsel %vm3529, %v6970, 0
      %v7008 = vsel %vm3529, %v6971, 0
      %v7011 = vsel %vm3529, %v6972, 0
      %v7014 = vsel %vm3529, %v6973, 0
      %v7017 = vsel %vm3529, %v6974, 0
      %v7020 = vsel %vm3529, %v6975, 0
      %v7023 = vsel %vm3529, %v6976, 0
      %v7026 = vsel %vm3529, %v6977, 0
      %v7029 = vsel %vm3529, %v6978, 0
      %v7032 = vsel %vm3529, %v6979, 0
      %v7035 = vsel %vm3529, %v6980, 0
      %v7038 = vsel %vm3529, %v6981, 0
      %v7041 = vsel %vm3529, %v6982, 0
      %v7044 = vsel %vm3529, %v6983, 0
      %v7047 = vsel %vm3529, %v6984, 0
      %7049 = vmatpush.bf16.msra.mxu0 0
      %7050 = vmatpush.bf16.msra.mxu0 0
      %7051 = vmatpush.bf16.msra.mxu0 0
      %7052 = vmatpush.bf16.msra.mxu0 0
      %7053 = vmatpush.bf16.msra.mxu0 0
      %7054 = vmatpush.bf16.msra.mxu0 0
      %7055 = vmatpush.bf16.msra.mxu0 %v6998
      %7056 = vmatpush.bf16.msra.mxu0 %v6997
      %7057 = vmatmul.bf16.gmra.mxu0 %v7002
      %v7058 = vpop.f32.mrf.mxu0
      %v7059 = vadd.f32 0.0, %v7058
      %v7060 = vpop.f32.mrf.mxu0
      %v7061 = vadd.f32 0.0, %v7060
      %7062 = vmatmul.bf16.gmra.mxu0 %v7005
      %v7063 = vpop.f32.mrf.mxu0
      %v7064 = vadd.f32 0.0, %v7063
      %v7065 = vpop.f32.mrf.mxu0
      %v7066 = vadd.f32 0.0, %v7065
      %7067 = vmatmul.bf16.gmra.mxu0 %v7008
      %v7068 = vpop.f32.mrf.mxu0
      %v7069 = vadd.f32 0.0, %v7068
      %v7070 = vpop.f32.mrf.mxu0
      %v7071 = vadd.f32 0.0, %v7070
      %7072 = vmatmul.bf16.gmra.mxu0 %v7011
      %v7073 = vpop.f32.mrf.mxu0
      %v7074 = vadd.f32 0.0, %v7073
      %v7075 = vpop.f32.mrf.mxu0
      %v7076 = vadd.f32 0.0, %v7075
      %7077 = vmatmul.bf16.gmra.mxu0 %v7014
      %v7078 = vpop.f32.mrf.mxu0
      %v7079 = vadd.f32 0.0, %v7078
      %v7080 = vpop.f32.mrf.mxu0
      %v7081 = vadd.f32 0.0, %v7080
      %7082 = vmatmul.bf16.gmra.mxu0 %v7017
      %v7083 = vpop.f32.mrf.mxu0
      %v7084 = vadd.f32 0.0, %v7083
      %v7085 = vpop.f32.mrf.mxu0
      %v7086 = vadd.f32 0.0, %v7085
      %7087 = vmatmul.bf16.gmra.mxu0 %v7020
      %v7088 = vpop.f32.mrf.mxu0
      %v7089 = vadd.f32 0.0, %v7088
      %v7090 = vpop.f32.mrf.mxu0
      %v7091 = vadd.f32 0.0, %v7090
      %7092 = vmatmul.bf16.gmra.mxu0 %v7023
      %v7093 = vpop.f32.mrf.mxu0
      %v7094 = vadd.f32 0.0, %v7093
      %v7095 = vpop.f32.mrf.mxu0
      %v7096 = vadd.f32 0.0, %v7095
      %7097 = vmatmul.bf16.gmra.mxu0 %v7026
      %v7098 = vpop.f32.mrf.mxu0
      %v7099 = vadd.f32 0.0, %v7098
      %v7100 = vpop.f32.mrf.mxu0
      %v7101 = vadd.f32 0.0, %v7100
      %7102 = vmatmul.bf16.gmra.mxu0 %v7029
      %v7103 = vpop.f32.mrf.mxu0
      %v7104 = vadd.f32 0.0, %v7103
      %v7105 = vpop.f32.mrf.mxu0
      %v7106 = vadd.f32 0.0, %v7105
      %7107 = vmatmul.bf16.gmra.mxu0 %v7032
      %v7108 = vpop.f32.mrf.mxu0
      %v7109 = vadd.f32 0.0, %v7108
      %v7110 = vpop.f32.mrf.mxu0
      %v7111 = vadd.f32 0.0, %v7110
      %7112 = vmatmul.bf16.gmra.mxu0 %v7035
      %v7113 = vpop.f32.mrf.mxu0
      %v7114 = vadd.f32 0.0, %v7113
      %v7115 = vpop.f32.mrf.mxu0
      %v7116 = vadd.f32 0.0, %v7115
      %7117 = vmatmul.bf16.gmra.mxu0 %v7038
      %v7118 = vpop.f32.mrf.mxu0
      %v7119 = vadd.f32 0.0, %v7118
      %v7120 = vpop.f32.mrf.mxu0
      %v7121 = vadd.f32 0.0, %v7120
      %7122 = vmatmul.bf16.gmra.mxu0 %v7041
      %v7123 = vpop.f32.mrf.mxu0
      %v7124 = vadd.f32 0.0, %v7123
      %v7125 = vpop.f32.mrf.mxu0
      %v7126 = vadd.f32 0.0, %v7125
      %7127 = vmatmul.bf16.gmra.mxu0 %v7044
      %v7128 = vpop.f32.mrf.mxu0
      %v7129 = vadd.f32 0.0, %v7128
      %v7130 = vpop.f32.mrf.mxu0
      %v7131 = vadd.f32 0.0, %v7130
      %7132 = vmatmul.bf16.gmra.mxu0 %v7047
      %v7133 = vpop.f32.mrf.mxu0
      %v7134 = vadd.f32 0.0, %v7133
      %v7135 = vpop.f32.mrf.mxu0
      %v7136 = vadd.f32 0.0, %v7135
      %7137 = vdwg.mxu0
      %v7138 = vadd.f32 %v6937, %v7059
      %v7139 = vadd.f32 %v6938, %v7061
      %v7140 = vadd.f32 %v6939, %v7064
      %v7141 = vadd.f32 %v6940, %v7066
      %v7142 = vadd.f32 %v6941, %v7069
      %v7143 = vadd.f32 %v6942, %v7071
      %v7144 = vadd.f32 %v6943, %v7074
      %v7145 = vadd.f32 %v6944, %v7076
      %v7146 = vadd.f32 %v6945, %v7079
      %v7147 = vadd.f32 %v6946, %v7081
      %v7148 = vadd.f32 %v6947, %v7084
      %v7149 = vadd.f32 %v6948, %v7086
      %v7150 = vadd.f32 %v6949, %v7089
      %v7151 = vadd.f32 %v6950, %v7091
      %v7152 = vadd.f32 %v6951, %v7094
      %v7153 = vadd.f32 %v6952, %v7096
      %v7154 = vadd.f32 %v6953, %v7099
      %v7155 = vadd.f32 %v6954, %v7101
      %v7156 = vadd.f32 %v6955, %v7104
      %v7157 = vadd.f32 %v6956, %v7106
      %v7158 = vadd.f32 %v6957, %v7109
      %v7159 = vadd.f32 %v6958, %v7111
      %v7160 = vadd.f32 %v6959, %v7114
      %v7161 = vadd.f32 %v6960, %v7116
      %v7162 = vadd.f32 %v6961, %v7119
      %v7163 = vadd.f32 %v6962, %v7121
      %v7164 = vadd.f32 %v6963, %v7124
      %v7165 = vadd.f32 %v6964, %v7126
      %v7166 = vadd.f32 %v6965, %v7129
      %v7167 = vadd.f32 %v6966, %v7131
      %v7168 = vadd.f32 %v6967, %v7134
      %v7169 = vadd.f32 %v6968, %v7136
      %v7170 = vsel %vm1730, %v6501, 0.0
      %v7171 = vsel %vm1731, %v6500, 0.0
      %v7172 = vsel %vm1732, %v6499, 0.0
      %v7173 = vsel %vm1733, %v6498, 0.0
      %v7174 = vsel %vm1734, %v6497, 0.0
      %v7175 = vsel %vm1735, %v6496, 0.0
      %v7176 = vsel %vm1736, %v6495, 0.0
      %v7177 = vsel %vm1737, %v6494, 0.0
      %v7178 = vsel %vm1738, %v6493, 0.0
      %v7179 = vsel %vm1739, %v6492, 0.0
      %v7180 = vsel %vm1740, %v6491, 0.0
      %v7181 = vsel %vm1741, %v6490, 0.0
      %v7182 = vsel %vm1742, %v6489, 0.0
      %v7183 = vsel %vm1743, %v6488, 0.0
      %v7184 = vsel %vm1744, %v6487, 0.0
      %v7185 = vsel %vm1745, %v6486, 0.0
      %v7186 = vsel %vm1746, %v6485, 0.0
      %v7187 = vsel %vm1747, %v6484, 0.0
      %v7188 = vsel %vm1748, %v6483, 0.0
      %v7189 = vsel %vm1749, %v6482, 0.0
      %v7190 = vsel %vm1750, %v6481, 0.0
      %v7191 = vsel %vm1751, %v6480, 0.0
      %v7192 = vsel %vm1752, %v6479, 0.0
      %v7193 = vsel %vm1753, %v6478, 0.0
      %v7194 = vsel %vm1754, %v6477, 0.0
      %v7195 = vsel %vm1755, %v6476, 0.0
      %v7196 = vsel %vm1756, %v6475, 0.0
      %v7197 = vsel %vm1757, %v6474, 0.0
      %v7198 = vsel %vm1758, %v6473, 0.0
      %v7199 = vsel %vm1759, %v6472, 0.0
      %v7200 = vsel %vm1760, %v6471, 0.0
      %v7201 = vsel %vm1761, %v6502, 0.0
      %v7202 = vpack.c.bf16 %v7171, %v7170
      %v7203 = vpack.c.bf16 %v7173, %v7172
      %v7204 = vpack.c.bf16 %v7175, %v7174
      %v7205 = vpack.c.bf16 %v7177, %v7176
      %v7206 = vpack.c.bf16 %v7179, %v7178
      %v7207 = vpack.c.bf16 %v7181, %v7180
      %v7208 = vpack.c.bf16 %v7183, %v7182
      %v7209 = vpack.c.bf16 %v7185, %v7184
      %v7210 = vpack.c.bf16 %v7187, %v7186
      %v7211 = vpack.c.bf16 %v7189, %v7188
      %v7212 = vpack.c.bf16 %v7191, %v7190
      %v7213 = vpack.c.bf16 %v7193, %v7192
      %v7214 = vpack.c.bf16 %v7195, %v7194
      %v7215 = vpack.c.bf16 %v7197, %v7196
      %v7216 = vpack.c.bf16 %v7199, %v7198
      %v7217 = vpack.c.bf16 %v7201, %v7200
      %v7218 = vld [vmem:[%s3 + $0x50] sm:$0xf]
      %v7219 = vld [vmem:[%s3 + $0x54] sm:$0xf]
      %v7220 = vld [vmem:[%s3 + $0x58] sm:$0xf]
      %v7221 = vld [vmem:[%s3 + $0x5c] sm:$0xf]
      %v7226 = vunpack.c.l.b16 %v7218
      %v7227 = vunpack.c.l.b16 %v7219
      %v7228 = vunpack.c.l.b16 %v7220
      %v7229 = vunpack.c.l.b16 %v7221
      %v7230 = vpack.c.b16 %v7227, %v7226
      %v7231 = vpack.c.b16 %v7229, %v7228
      %v7235 = vsel %vm3529, %v7202, 0
      %v7238 = vsel %vm3529, %v7203, 0
      %v7241 = vsel %vm3529, %v7204, 0
      %v7244 = vsel %vm3529, %v7205, 0
      %v7247 = vsel %vm3529, %v7206, 0
      %v7250 = vsel %vm3529, %v7207, 0
      %v7253 = vsel %vm3529, %v7208, 0
      %v7256 = vsel %vm3529, %v7209, 0
      %v7259 = vsel %vm3529, %v7210, 0
      %v7262 = vsel %vm3529, %v7211, 0
      %v7265 = vsel %vm3529, %v7212, 0
      %v7268 = vsel %vm3529, %v7213, 0
      %v7271 = vsel %vm3529, %v7214, 0
      %v7274 = vsel %vm3529, %v7215, 0
      %v7277 = vsel %vm3529, %v7216, 0
      %v7280 = vsel %vm3529, %v7217, 0
      %7282 = vmatpush.bf16.msra.mxu0 0
      %7283 = vmatpush.bf16.msra.mxu0 0
      %7284 = vmatpush.bf16.msra.mxu0 0
      %7285 = vmatpush.bf16.msra.mxu0 0
      %7286 = vmatpush.bf16.msra.mxu0 0
      %7287 = vmatpush.bf16.msra.mxu0 0
      %7288 = vmatpush.bf16.msra.mxu0 %v7231
      %7289 = vmatpush.bf16.msra.mxu0 %v7230
      %7290 = vmatmul.bf16.gmra.mxu0 %v7235
      %v7291 = vpop.f32.mrf.mxu0
      %v7292 = vadd.f32 0.0, %v7291
      %v7293 = vpop.f32.mrf.mxu0
      %v7294 = vadd.f32 0.0, %v7293
      %7295 = vmatmul.bf16.gmra.mxu0 %v7238
      %v7296 = vpop.f32.mrf.mxu0
      %v7297 = vadd.f32 0.0, %v7296
      %v7298 = vpop.f32.mrf.mxu0
      %v7299 = vadd.f32 0.0, %v7298
      %7300 = vmatmul.bf16.gmra.mxu0 %v7241
      %v7301 = vpop.f32.mrf.mxu0
      %v7302 = vadd.f32 0.0, %v7301
      %v7303 = vpop.f32.mrf.mxu0
      %v7304 = vadd.f32 0.0, %v7303
      %7305 = vmatmul.bf16.gmra.mxu0 %v7244
      %v7306 = vpop.f32.mrf.mxu0
      %v7307 = vadd.f32 0.0, %v7306
      %v7308 = vpop.f32.mrf.mxu0
      %v7309 = vadd.f32 0.0, %v7308
      %7310 = vmatmul.bf16.gmra.mxu0 %v7247
      %v7311 = vpop.f32.mrf.mxu0
      %v7312 = vadd.f32 0.0, %v7311
      %v7313 = vpop.f32.mrf.mxu0
      %v7314 = vadd.f32 0.0, %v7313
      %7315 = vmatmul.bf16.gmra.mxu0 %v7250
      %v7316 = vpop.f32.mrf.mxu0
      %v7317 = vadd.f32 0.0, %v7316
      %v7318 = vpop.f32.mrf.mxu0
      %v7319 = vadd.f32 0.0, %v7318
      %7320 = vmatmul.bf16.gmra.mxu0 %v7253
      %v7321 = vpop.f32.mrf.mxu0
      %v7322 = vadd.f32 0.0, %v7321
      %v7323 = vpop.f32.mrf.mxu0
      %v7324 = vadd.f32 0.0, %v7323
      %7325 = vmatmul.bf16.gmra.mxu0 %v7256
      %v7326 = vpop.f32.mrf.mxu0
      %v7327 = vadd.f32 0.0, %v7326
      %v7328 = vpop.f32.mrf.mxu0
      %v7329 = vadd.f32 0.0, %v7328
      %7330 = vmatmul.bf16.gmra.mxu0 %v7259
      %v7331 = vpop.f32.mrf.mxu0
      %v7332 = vadd.f32 0.0, %v7331
      %v7333 = vpop.f32.mrf.mxu0
      %v7334 = vadd.f32 0.0, %v7333
      %7335 = vmatmul.bf16.gmra.mxu0 %v7262
      %v7336 = vpop.f32.mrf.mxu0
      %v7337 = vadd.f32 0.0, %v7336
      %v7338 = vpop.f32.mrf.mxu0
      %v7339 = vadd.f32 0.0, %v7338
      %7340 = vmatmul.bf16.gmra.mxu0 %v7265
      %v7341 = vpop.f32.mrf.mxu0
      %v7342 = vadd.f32 0.0, %v7341
      %v7343 = vpop.f32.mrf.mxu0
      %v7344 = vadd.f32 0.0, %v7343
      %7345 = vmatmul.bf16.gmra.mxu0 %v7268
      %v7346 = vpop.f32.mrf.mxu0
      %v7347 = vadd.f32 0.0, %v7346
      %v7348 = vpop.f32.mrf.mxu0
      %v7349 = vadd.f32 0.0, %v7348
      %7350 = vmatmul.bf16.gmra.mxu0 %v7271
      %v7351 = vpop.f32.mrf.mxu0
      %v7352 = vadd.f32 0.0, %v7351
      %v7353 = vpop.f32.mrf.mxu0
      %v7354 = vadd.f32 0.0, %v7353
      %7355 = vmatmul.bf16.gmra.mxu0 %v7274
      %v7356 = vpop.f32.mrf.mxu0
      %v7357 = vadd.f32 0.0, %v7356
      %v7358 = vpop.f32.mrf.mxu0
      %v7359 = vadd.f32 0.0, %v7358
      %7360 = vmatmul.bf16.gmra.mxu0 %v7277
      %v7361 = vpop.f32.mrf.mxu0
      %v7362 = vadd.f32 0.0, %v7361
      %v7363 = vpop.f32.mrf.mxu0
      %v7364 = vadd.f32 0.0, %v7363
      %7365 = vmatmul.bf16.gmra.mxu0 %v7280
      %v7366 = vpop.f32.mrf.mxu0
      %v7367 = vadd.f32 0.0, %v7366
      %v7368 = vpop.f32.mrf.mxu0
      %v7369 = vadd.f32 0.0, %v7368
      %7370 = vdwg.mxu0
      %v7371 = vadd.f32 %v7138, %v7292
      %v7372 = vadd.f32 %v7139, %v7294
      %v7373 = vadd.f32 %v7140, %v7297
      %v7374 = vadd.f32 %v7141, %v7299
      %v7375 = vadd.f32 %v7142, %v7302
      %v7376 = vadd.f32 %v7143, %v7304
      %v7377 = vadd.f32 %v7144, %v7307
      %v7378 = vadd.f32 %v7145, %v7309
      %v7379 = vadd.f32 %v7146, %v7312
      %v7380 = vadd.f32 %v7147, %v7314
      %v7381 = vadd.f32 %v7148, %v7317
      %v7382 = vadd.f32 %v7149, %v7319
      %v7383 = vadd.f32 %v7150, %v7322
      %v7384 = vadd.f32 %v7151, %v7324
      %v7385 = vadd.f32 %v7152, %v7327
      %v7386 = vadd.f32 %v7153, %v7329
      %v7387 = vadd.f32 %v7154, %v7332
      %v7388 = vadd.f32 %v7155, %v7334
      %v7389 = vadd.f32 %v7156, %v7337
      %v7390 = vadd.f32 %v7157, %v7339
      %v7391 = vadd.f32 %v7158, %v7342
      %v7392 = vadd.f32 %v7159, %v7344
      %v7393 = vadd.f32 %v7160, %v7347
      %v7394 = vadd.f32 %v7161, %v7349
      %v7395 = vadd.f32 %v7162, %v7352
      %v7396 = vadd.f32 %v7163, %v7354
      %v7397 = vadd.f32 %v7164, %v7357
      %v7398 = vadd.f32 %v7165, %v7359
      %v7399 = vadd.f32 %v7166, %v7362
      %v7400 = vadd.f32 %v7167, %v7364
      %v7401 = vadd.f32 %v7168, %v7367
      %v7402 = vadd.f32 %v7169, %v7369
      %v7403 = vsel %vm1922, %v6034, 0.0
      %v7404 = vsel %vm1923, %v6033, 0.0
      %v7405 = vsel %vm1924, %v6032, 0.0
      %v7406 = vsel %vm1925, %v6031, 0.0
      %v7407 = vsel %vm1926, %v6030, 0.0
      %v7408 = vsel %vm1927, %v6029, 0.0
      %v7409 = vsel %vm1928, %v6028, 0.0
      %v7410 = vsel %vm1929, %v6027, 0.0
      %v7411 = vsel %vm1930, %v6026, 0.0
      %v7412 = vsel %vm1931, %v6025, 0.0
      %v7413 = vsel %vm1932, %v6024, 0.0
      %v7414 = vsel %vm1933, %v6023, 0.0
      %v7415 = vsel %vm1934, %v6022, 0.0
      %v7416 = vsel %vm1935, %v6021, 0.0
      %v7417 = vsel %vm1936, %v6020, 0.0
      %v7418 = vsel %vm1937, %v6019, 0.0
      %v7419 = vsel %vm1938, %v6018, 0.0
      %v7420 = vsel %vm1939, %v6017, 0.0
      %v7421 = vsel %vm1940, %v6016, 0.0
      %v7422 = vsel %vm1941, %v6015, 0.0
      %v7423 = vsel %vm1942, %v6014, 0.0
      %v7424 = vsel %vm1943, %v6013, 0.0
      %v7425 = vsel %vm1944, %v6012, 0.0
      %v7426 = vsel %vm1945, %v6011, 0.0
      %v7427 = vsel %vm1946, %v6010, 0.0
      %v7428 = vsel %vm1947, %v6009, 0.0
      %v7429 = vsel %vm1948, %v6008, 0.0
      %v7430 = vsel %vm1949, %v6007, 0.0
      %v7431 = vsel %vm1950, %v6006, 0.0
      %v7432 = vsel %vm1951, %v6005, 0.0
      %v7433 = vsel %vm1952, %v6036, 0.0
      %v7434 = vsel %vm1953, %v6035, 0.0
      %v7435 = vpack.c.bf16 %v7404, %v7403
      %v7436 = vpack.c.bf16 %v7406, %v7405
      %v7437 = vpack.c.bf16 %v7408, %v7407
      %v7438 = vpack.c.bf16 %v7410, %v7409
      %v7439 = vpack.c.bf16 %v7412, %v7411
      %v7440 = vpack.c.bf16 %v7414, %v7413
      %v7441 = vpack.c.bf16 %v7416, %v7415
      %v7442 = vpack.c.bf16 %v7418, %v7417
      %v7443 = vpack.c.bf16 %v7420, %v7419
      %v7444 = vpack.c.bf16 %v7422, %v7421
      %v7445 = vpack.c.bf16 %v7424, %v7423
      %v7446 = vpack.c.bf16 %v7426, %v7425
      %v7447 = vpack.c.bf16 %v7428, %v7427
      %v7448 = vpack.c.bf16 %v7430, %v7429
      %v7449 = vpack.c.bf16 %v7432, %v7431
      %v7450 = vpack.c.bf16 %v7434, %v7433
      %v7451 = vld [vmem:[%s3 + $0x60] sm:$0xf]
      %v7452 = vld [vmem:[%s3 + $0x64] sm:$0xf]
      %v7453 = vld [vmem:[%s3 + $0x68] sm:$0xf]
      %v7454 = vld [vmem:[%s3 + $0x6c] sm:$0xf]
      %v7459 = vunpack.c.l.b16 %v7451
      %v7460 = vunpack.c.l.b16 %v7452
      %v7461 = vunpack.c.l.b16 %v7453
      %v7462 = vunpack.c.l.b16 %v7454
      %v7463 = vpack.c.b16 %v7460, %v7459
      %v7464 = vpack.c.b16 %v7462, %v7461
      %v7468 = vsel %vm3529, %v7435, 0
      %v7471 = vsel %vm3529, %v7436, 0
      %v7474 = vsel %vm3529, %v7437, 0
      %v7477 = vsel %vm3529, %v7438, 0
      %v7480 = vsel %vm3529, %v7439, 0
      %v7483 = vsel %vm3529, %v7440, 0
      %v7486 = vsel %vm3529, %v7441, 0
      %v7489 = vsel %vm3529, %v7442, 0
      %v7492 = vsel %vm3529, %v7443, 0
      %v7495 = vsel %vm3529, %v7444, 0
      %v7498 = vsel %vm3529, %v7445, 0
      %v7501 = vsel %vm3529, %v7446, 0
      %v7504 = vsel %vm3529, %v7447, 0
      %v7507 = vsel %vm3529, %v7448, 0
      %v7510 = vsel %vm3529, %v7449, 0
      %v7513 = vsel %vm3529, %v7450, 0
      %7515 = vmatpush.bf16.msra.mxu0 0
      %7516 = vmatpush.bf16.msra.mxu0 0
      %7517 = vmatpush.bf16.msra.mxu0 0
      %7518 = vmatpush.bf16.msra.mxu0 0
      %7519 = vmatpush.bf16.msra.mxu0 0
      %7520 = vmatpush.bf16.msra.mxu0 0
      %7521 = vmatpush.bf16.msra.mxu0 %v7464
      %7522 = vmatpush.bf16.msra.mxu0 %v7463
      %7523 = vmatmul.bf16.gmra.mxu0 %v7468
      %v7524 = vpop.f32.mrf.mxu0
      %v7525 = vadd.f32 0.0, %v7524
      %v7526 = vpop.f32.mrf.mxu0
      %v7527 = vadd.f32 0.0, %v7526
      %7528 = vmatmul.bf16.gmra.mxu0 %v7471
      %v7529 = vpop.f32.mrf.mxu0
      %v7530 = vadd.f32 0.0, %v7529
      %v7531 = vpop.f32.mrf.mxu0
      %v7532 = vadd.f32 0.0, %v7531
      %7533 = vmatmul.bf16.gmra.mxu0 %v7474
      %v7534 = vpop.f32.mrf.mxu0
      %v7535 = vadd.f32 0.0, %v7534
      %v7536 = vpop.f32.mrf.mxu0
      %v7537 = vadd.f32 0.0, %v7536
      %7538 = vmatmul.bf16.gmra.mxu0 %v7477
      %v7539 = vpop.f32.mrf.mxu0
      %v7540 = vadd.f32 0.0, %v7539
      %v7541 = vpop.f32.mrf.mxu0
      %v7542 = vadd.f32 0.0, %v7541
      %7543 = vmatmul.bf16.gmra.mxu0 %v7480
      %v7544 = vpop.f32.mrf.mxu0
      %v7545 = vadd.f32 0.0, %v7544
      %v7546 = vpop.f32.mrf.mxu0
      %v7547 = vadd.f32 0.0, %v7546
      %7548 = vmatmul.bf16.gmra.mxu0 %v7483
      %v7549 = vpop.f32.mrf.mxu0
      %v7550 = vadd.f32 0.0, %v7549
      %v7551 = vpop.f32.mrf.mxu0
      %v7552 = vadd.f32 0.0, %v7551
      %7553 = vmatmul.bf16.gmra.mxu0 %v7486
      %v7554 = vpop.f32.mrf.mxu0
      %v7555 = vadd.f32 0.0, %v7554
      %v7556 = vpop.f32.mrf.mxu0
      %v7557 = vadd.f32 0.0, %v7556
      %7558 = vmatmul.bf16.gmra.mxu0 %v7489
      %v7559 = vpop.f32.mrf.mxu0
      %v7560 = vadd.f32 0.0, %v7559
      %v7561 = vpop.f32.mrf.mxu0
      %v7562 = vadd.f32 0.0, %v7561
      %7563 = vmatmul.bf16.gmra.mxu0 %v7492
      %v7564 = vpop.f32.mrf.mxu0
      %v7565 = vadd.f32 0.0, %v7564
      %v7566 = vpop.f32.mrf.mxu0
      %v7567 = vadd.f32 0.0, %v7566
      %7568 = vmatmul.bf16.gmra.mxu0 %v7495
      %v7569 = vpop.f32.mrf.mxu0
      %v7570 = vadd.f32 0.0, %v7569
      %v7571 = vpop.f32.mrf.mxu0
      %v7572 = vadd.f32 0.0, %v7571
      %7573 = vmatmul.bf16.gmra.mxu0 %v7498
      %v7574 = vpop.f32.mrf.mxu0
      %v7575 = vadd.f32 0.0, %v7574
      %v7576 = vpop.f32.mrf.mxu0
      %v7577 = vadd.f32 0.0, %v7576
      %7578 = vmatmul.bf16.gmra.mxu0 %v7501
      %v7579 = vpop.f32.mrf.mxu0
      %v7580 = vadd.f32 0.0, %v7579
      %v7581 = vpop.f32.mrf.mxu0
      %v7582 = vadd.f32 0.0, %v7581
      %7583 = vmatmul.bf16.gmra.mxu0 %v7504
      %v7584 = vpop.f32.mrf.mxu0
      %v7585 = vadd.f32 0.0, %v7584
      %v7586 = vpop.f32.mrf.mxu0
      %v7587 = vadd.f32 0.0, %v7586
      %7588 = vmatmul.bf16.gmra.mxu0 %v7507
      %v7589 = vpop.f32.mrf.mxu0
      %v7590 = vadd.f32 0.0, %v7589
      %v7591 = vpop.f32.mrf.mxu0
      %v7592 = vadd.f32 0.0, %v7591
      %7593 = vmatmul.bf16.gmra.mxu0 %v7510
      %v7594 = vpop.f32.mrf.mxu0
      %v7595 = vadd.f32 0.0, %v7594
      %v7596 = vpop.f32.mrf.mxu0
      %v7597 = vadd.f32 0.0, %v7596
      %7598 = vmatmul.bf16.gmra.mxu0 %v7513
      %v7599 = vpop.f32.mrf.mxu0
      %v7600 = vadd.f32 0.0, %v7599
      %v7601 = vpop.f32.mrf.mxu0
      %v7602 = vadd.f32 0.0, %v7601
      %7603 = vdwg.mxu0
      %v7604 = vadd.f32 %v7371, %v7525
      %v7605 = vadd.f32 %v7372, %v7527
      %v7606 = vadd.f32 %v7373, %v7530
      %v7607 = vadd.f32 %v7374, %v7532
      %v7608 = vadd.f32 %v7375, %v7535
      %v7609 = vadd.f32 %v7376, %v7537
      %v7610 = vadd.f32 %v7377, %v7540
      %v7611 = vadd.f32 %v7378, %v7542
      %v7612 = vadd.f32 %v7379, %v7545
      %v7613 = vadd.f32 %v7380, %v7547
      %v7614 = vadd.f32 %v7381, %v7550
      %v7615 = vadd.f32 %v7382, %v7552
      %v7616 = vadd.f32 %v7383, %v7555
      %v7617 = vadd.f32 %v7384, %v7557
      %v7618 = vadd.f32 %v7385, %v7560
      %v7619 = vadd.f32 %v7386, %v7562
      %v7620 = vadd.f32 %v7387, %v7565
      %v7621 = vadd.f32 %v7388, %v7567
      %v7622 = vadd.f32 %v7389, %v7570
      %v7623 = vadd.f32 %v7390, %v7572
      %v7624 = vadd.f32 %v7391, %v7575
      %v7625 = vadd.f32 %v7392, %v7577
      %v7626 = vadd.f32 %v7393, %v7580
      %v7627 = vadd.f32 %v7394, %v7582
      %v7628 = vadd.f32 %v7395, %v7585
      %v7629 = vadd.f32 %v7396, %v7587
      %v7630 = vadd.f32 %v7397, %v7590
      %v7631 = vadd.f32 %v7398, %v7592
      %v7632 = vadd.f32 %v7399, %v7595
      %v7633 = vadd.f32 %v7400, %v7597
      %v7634 = vadd.f32 %v7401, %v7600
      %v7635 = vadd.f32 %v7402, %v7602
      %v7636 = vsel %vm2018, %v5943, 0.0
      %v7637 = vsel %vm2019, %v5944, 0.0
      %v7638 = vsel %vm2020, %v5945, 0.0
      %v7639 = vsel %vm2021, %v5946, 0.0
      %v7640 = vsel %vm2022, %v5947, 0.0
      %v7641 = vsel %vm2023, %v5948, 0.0
      %v7642 = vsel %vm2024, %v5949, 0.0
      %v7643 = vsel %vm2025, %v5950, 0.0
      %v7644 = vsel %vm2026, %v5951, 0.0
      %v7645 = vsel %vm2027, %v5952, 0.0
      %v7646 = vsel %vm2028, %v5953, 0.0
      %v7647 = vsel %vm2029, %v5954, 0.0
      %v7648 = vsel %vm2030, %v5955, 0.0
      %v7649 = vsel %vm2031, %v5956, 0.0
      %v7650 = vsel %vm2032, %v5957, 0.0
      %v7651 = vsel %vm2033, %v5958, 0.0
      %v7652 = vsel %vm2034, %v5959, 0.0
      %v7653 = vsel %vm2035, %v5960, 0.0
      %v7654 = vsel %vm2036, %v5961, 0.0
      %v7655 = vsel %vm2037, %v5962, 0.0
      %v7656 = vsel %vm2038, %v5963, 0.0
      %v7657 = vsel %vm2039, %v5964, 0.0
      %v7658 = vsel %vm2040, %v5965, 0.0
      %v7659 = vsel %vm2041, %v5966, 0.0
      %v7660 = vsel %vm2042, %v5967, 0.0
      %v7661 = vsel %vm2043, %v5968, 0.0
      %v7662 = vsel %vm2044, %v5969, 0.0
      %v7663 = vsel %vm2045, %v5970, 0.0
      %v7664 = vsel %vm2046, %v5971, 0.0
      %v7665 = vsel %vm2047, %v5972, 0.0
      %v7666 = vsel %vm2048, %v5941, 0.0
      %v7667 = vsel %vm2049, %v5942, 0.0
      %v7668 = vpack.c.bf16 %v7637, %v7636
      %v7669 = vpack.c.bf16 %v7639, %v7638
      %v7670 = vpack.c.bf16 %v7641, %v7640
      %v7671 = vpack.c.bf16 %v7643, %v7642
      %v7672 = vpack.c.bf16 %v7645, %v7644
      %v7673 = vpack.c.bf16 %v7647, %v7646
      %v7674 = vpack.c.bf16 %v7649, %v7648
      %v7675 = vpack.c.bf16 %v7651, %v7650
      %v7676 = vpack.c.bf16 %v7653, %v7652
      %v7677 = vpack.c.bf16 %v7655, %v7654
      %v7678 = vpack.c.bf16 %v7657, %v7656
      %v7679 = vpack.c.bf16 %v7659, %v7658
      %v7680 = vpack.c.bf16 %v7661, %v7660
      %v7681 = vpack.c.bf16 %v7663, %v7662
      %v7682 = vpack.c.bf16 %v7665, %v7664
      %v7683 = vpack.c.bf16 %v7667, %v7666
      %v7684 = vld [vmem:[%s3 + $0x70] sm:$0xf]
      %v7685 = vld [vmem:[%s3 + $0x74] sm:$0xf]
      %v7686 = vld [vmem:[%s3 + $0x78] sm:$0xf]
      %v7687 = vld [vmem:[%s3 + $0x7c] sm:$0xf]
      %v7692 = vunpack.c.l.b16 %v7684
      %v7693 = vunpack.c.l.b16 %v7685
      %v7694 = vunpack.c.l.b16 %v7686
      %v7695 = vunpack.c.l.b16 %v7687
      %v7696 = vpack.c.b16 %v7693, %v7692
      %v7697 = vpack.c.b16 %v7695, %v7694
      %v7701 = vsel %vm3529, %v7668, 0
      %v7704 = vsel %vm3529, %v7669, 0
      %v7707 = vsel %vm3529, %v7670, 0
      %v7710 = vsel %vm3529, %v7671, 0
      %v7713 = vsel %vm3529, %v7672, 0
      %v7716 = vsel %vm3529, %v7673, 0
      %v7719 = vsel %vm3529, %v7674, 0
      %v7722 = vsel %vm3529, %v7675, 0
      %v7725 = vsel %vm3529, %v7676, 0
      %v7728 = vsel %vm3529, %v7677, 0
      %v7731 = vsel %vm3529, %v7678, 0
      %v7734 = vsel %vm3529, %v7679, 0
      %v7737 = vsel %vm3529, %v7680, 0
      %v7740 = vsel %vm3529, %v7681, 0
      %v7743 = vsel %vm3529, %v7682, 0
      %v7746 = vsel %vm3529, %v7683, 0
      %7748 = vmatpush.bf16.msra.mxu0 0
      %7749 = vmatpush.bf16.msra.mxu0 0
      %7750 = vmatpush.bf16.msra.mxu0 0
      %7751 = vmatpush.bf16.msra.mxu0 0
      %7752 = vmatpush.bf16.msra.mxu0 0
      %7753 = vmatpush.bf16.msra.mxu0 0
      %7754 = vmatpush.bf16.msra.mxu0 %v7697
      %7755 = vmatpush.bf16.msra.mxu0 %v7696
      %7756 = vmatmul.bf16.gmra.mxu0 %v7701
      %v7757 = vpop.f32.mrf.mxu0
      %v7758 = vadd.f32 0.0, %v7757
      %v7759 = vpop.f32.mrf.mxu0
      %v7760 = vadd.f32 0.0, %v7759
      %7761 = vmatmul.bf16.gmra.mxu0 %v7704
      %v7762 = vpop.f32.mrf.mxu0
      %v7763 = vadd.f32 0.0, %v7762
      %v7764 = vpop.f32.mrf.mxu0
      %v7765 = vadd.f32 0.0, %v7764
      %7766 = vmatmul.bf16.gmra.mxu0 %v7707
      %v7767 = vpop.f32.mrf.mxu0
      %v7768 = vadd.f32 0.0, %v7767
      %v7769 = vpop.f32.mrf.mxu0
      %v7770 = vadd.f32 0.0, %v7769
      %7771 = vmatmul.bf16.gmra.mxu0 %v7710
      %v7772 = vpop.f32.mrf.mxu0
      %v7773 = vadd.f32 0.0, %v7772
      %v7774 = vpop.f32.mrf.mxu0
      %v7775 = vadd.f32 0.0, %v7774
      %7776 = vmatmul.bf16.gmra.mxu0 %v7713
      %v7777 = vpop.f32.mrf.mxu0
      %v7778 = vadd.f32 0.0, %v7777
      %v7779 = vpop.f32.mrf.mxu0
      %v7780 = vadd.f32 0.0, %v7779
      %7781 = vmatmul.bf16.gmra.mxu0 %v7716
      %v7782 = vpop.f32.mrf.mxu0
      %v7783 = vadd.f32 0.0, %v7782
      %v7784 = vpop.f32.mrf.mxu0
      %v7785 = vadd.f32 0.0, %v7784
      %7786 = vmatmul.bf16.gmra.mxu0 %v7719
      %v7787 = vpop.f32.mrf.mxu0
      %v7788 = vadd.f32 0.0, %v7787
      %v7789 = vpop.f32.mrf.mxu0
      %v7790 = vadd.f32 0.0, %v7789
      %7791 = vmatmul.bf16.gmra.mxu0 %v7722
      %v7792 = vpop.f32.mrf.mxu0
      %v7793 = vadd.f32 0.0, %v7792
      %v7794 = vpop.f32.mrf.mxu0
      %v7795 = vadd.f32 0.0, %v7794
      %7796 = vmatmul.bf16.gmra.mxu0 %v7725
      %v7797 = vpop.f32.mrf.mxu0
      %v7798 = vadd.f32 0.0, %v7797
      %v7799 = vpop.f32.mrf.mxu0
      %v7800 = vadd.f32 0.0, %v7799
      %7801 = vmatmul.bf16.gmra.mxu0 %v7728
      %v7802 = vpop.f32.mrf.mxu0
      %v7803 = vadd.f32 0.0, %v7802
      %v7804 = vpop.f32.mrf.mxu0
      %v7805 = vadd.f32 0.0, %v7804
      %7806 = vmatmul.bf16.gmra.mxu0 %v7731
      %v7807 = vpop.f32.mrf.mxu0
      %v7808 = vadd.f32 0.0, %v7807
      %v7809 = vpop.f32.mrf.mxu0
      %v7810 = vadd.f32 0.0, %v7809
      %7811 = vmatmul.bf16.gmra.mxu0 %v7734
      %v7812 = vpop.f32.mrf.mxu0
      %v7813 = vadd.f32 0.0, %v7812
      %v7814 = vpop.f32.mrf.mxu0
      %v7815 = vadd.f32 0.0, %v7814
      %7816 = vmatmul.bf16.gmra.mxu0 %v7737
      %v7817 = vpop.f32.mrf.mxu0
      %v7818 = vadd.f32 0.0, %v7817
      %v7819 = vpop.f32.mrf.mxu0
      %v7820 = vadd.f32 0.0, %v7819
      %7821 = vmatmul.bf16.gmra.mxu0 %v7740
      %v7822 = vpop.f32.mrf.mxu0
      %v7823 = vadd.f32 0.0, %v7822
      %v7824 = vpop.f32.mrf.mxu0
      %v7825 = vadd.f32 0.0, %v7824
      %7826 = vmatmul.bf16.gmra.mxu0 %v7743
      %v7827 = vpop.f32.mrf.mxu0
      %v7828 = vadd.f32 0.0, %v7827
      %v7829 = vpop.f32.mrf.mxu0
      %v7830 = vadd.f32 0.0, %v7829
      %7831 = vmatmul.bf16.gmra.mxu0 %v7746
      %v7832 = vpop.f32.mrf.mxu0
      %v7833 = vadd.f32 0.0, %v7832
      %v7834 = vpop.f32.mrf.mxu0
      %v7835 = vadd.f32 0.0, %v7834
      %7836 = vdwg.mxu0
      %v7837 = vadd.f32 %v7604, %v7758
      %v7838 = vadd.f32 %v7605, %v7760
      %v7839 = vadd.f32 %v7606, %v7763
      %v7840 = vadd.f32 %v7607, %v7765
      %v7841 = vadd.f32 %v7608, %v7768
      %v7842 = vadd.f32 %v7609, %v7770
      %v7843 = vadd.f32 %v7610, %v7773
      %v7844 = vadd.f32 %v7611, %v7775
      %v7845 = vadd.f32 %v7612, %v7778
      %v7846 = vadd.f32 %v7613, %v7780
      %v7847 = vadd.f32 %v7614, %v7783
      %v7848 = vadd.f32 %v7615, %v7785
      %v7849 = vadd.f32 %v7616, %v7788
      %v7850 = vadd.f32 %v7617, %v7790
      %v7851 = vadd.f32 %v7618, %v7793
      %v7852 = vadd.f32 %v7619, %v7795
      %v7853 = vadd.f32 %v7620, %v7798
      %v7854 = vadd.f32 %v7621, %v7800
      %v7855 = vadd.f32 %v7622, %v7803
      %v7856 = vadd.f32 %v7623, %v7805
      %v7857 = vadd.f32 %v7624, %v7808
      %v7858 = vadd.f32 %v7625, %v7810
      %v7859 = vadd.f32 %v7626, %v7813
      %v7860 = vadd.f32 %v7627, %v7815
      %v7861 = vadd.f32 %v7628, %v7818
      %v7862 = vadd.f32 %v7629, %v7820
      %v7863 = vadd.f32 %v7630, %v7823
      %v7864 = vadd.f32 %v7631, %v7825
      %v7865 = vadd.f32 %v7632, %v7828
      %v7866 = vadd.f32 %v7633, %v7830
      %v7867 = vadd.f32 %v7634, %v7833
      %v7868 = vadd.f32 %v7635, %v7835
      %v7869 = vsel %vm2210, %v6499, 0.0
      %v7870 = vsel %vm2211, %v6498, 0.0
      %v7871 = vsel %vm2212, %v6497, 0.0
      %v7872 = vsel %vm2213, %v6496, 0.0
      %v7873 = vsel %vm2214, %v6495, 0.0
      %v7874 = vsel %vm2215, %v6494, 0.0
      %v7875 = vsel %vm2216, %v6493, 0.0
      %v7876 = vsel %vm2217, %v6492, 0.0
      %v7877 = vsel %vm2218, %v6491, 0.0
      %v7878 = vsel %vm2219, %v6490, 0.0
      %v7879 = vsel %vm2220, %v6489, 0.0
      %v7880 = vsel %vm2221, %v6488, 0.0
      %v7881 = vsel %vm2222, %v6487, 0.0
      %v7882 = vsel %vm2223, %v6486, 0.0
      %v7883 = vsel %vm2224, %v6485, 0.0
      %v7884 = vsel %vm2225, %v6484, 0.0
      %v7885 = vsel %vm2226, %v6483, 0.0
      %v7886 = vsel %vm2227, %v6482, 0.0
      %v7887 = vsel %vm2228, %v6481, 0.0
      %v7888 = vsel %vm2229, %v6480, 0.0
      %v7889 = vsel %vm2230, %v6479, 0.0
      %v7890 = vsel %vm2231, %v6478, 0.0
      %v7891 = vsel %vm2232, %v6477, 0.0
      %v7892 = vsel %vm2233, %v6476, 0.0
      %v7893 = vsel %vm2234, %v6475, 0.0
      %v7894 = vsel %vm2235, %v6474, 0.0
      %v7895 = vsel %vm2236, %v6473, 0.0
      %v7896 = vsel %vm2237, %v6472, 0.0
      %v7897 = vsel %vm2238, %v6471, 0.0
      %v7898 = vsel %vm2239, %v6502, 0.0
      %v7899 = vsel %vm2240, %v6501, 0.0
      %v7900 = vsel %vm2241, %v6500, 0.0
      %v7901 = vpack.c.bf16 %v7870, %v7869
      %v7902 = vpack.c.bf16 %v7872, %v7871
      %v7903 = vpack.c.bf16 %v7874, %v7873
      %v7904 = vpack.c.bf16 %v7876, %v7875
      %v7905 = vpack.c.bf16 %v7878, %v7877
      %v7906 = vpack.c.bf16 %v7880, %v7879
      %v7907 = vpack.c.bf16 %v7882, %v7881
      %v7908 = vpack.c.bf16 %v7884, %v7883
      %v7909 = vpack.c.bf16 %v7886, %v7885
      %v7910 = vpack.c.bf16 %v7888, %v7887
      %v7911 = vpack.c.bf16 %v7890, %v7889
      %v7912 = vpack.c.bf16 %v7892, %v7891
      %v7913 = vpack.c.bf16 %v7894, %v7893
      %v7914 = vpack.c.bf16 %v7896, %v7895
      %v7915 = vpack.c.bf16 %v7898, %v7897
      %v7916 = vpack.c.bf16 %v7900, %v7899
      %v7917 = vld [vmem:[%s3 + $0x80] sm:$0xf]
      %v7918 = vld [vmem:[%s3 + $0x84] sm:$0xf]
      %v7919 = vld [vmem:[%s3 + $0x88] sm:$0xf]
      %v7920 = vld [vmem:[%s3 + $0x8c] sm:$0xf]
      %v7925 = vunpack.c.l.b16 %v7917
      %v7926 = vunpack.c.l.b16 %v7918
      %v7927 = vunpack.c.l.b16 %v7919
      %v7928 = vunpack.c.l.b16 %v7920
      %v7929 = vpack.c.b16 %v7926, %v7925
      %v7930 = vpack.c.b16 %v7928, %v7927
      %v7934 = vsel %vm3529, %v7901, 0
      %v7937 = vsel %vm3529, %v7902, 0
      %v7940 = vsel %vm3529, %v7903, 0
      %v7943 = vsel %vm3529, %v7904, 0
      %v7946 = vsel %vm3529, %v7905, 0
      %v7949 = vsel %vm3529, %v7906, 0
      %v7952 = vsel %vm3529, %v7907, 0
      %v7955 = vsel %vm3529, %v7908, 0
      %v7958 = vsel %vm3529, %v7909, 0
      %v7961 = vsel %vm3529, %v7910, 0
      %v7964 = vsel %vm3529, %v7911, 0
      %v7967 = vsel %vm3529, %v7912, 0
      %v7970 = vsel %vm3529, %v7913, 0
      %v7973 = vsel %vm3529, %v7914, 0
      %v7976 = vsel %vm3529, %v7915, 0
      %v7979 = vsel %vm3529, %v7916, 0
      %7981 = vmatpush.bf16.msra.mxu0 0
      %7982 = vmatpush.bf16.msra.mxu0 0
      %7983 = vmatpush.bf16.msra.mxu0 0
      %7984 = vmatpush.bf16.msra.mxu0 0
      %7985 = vmatpush.bf16.msra.mxu0 0
      %7986 = vmatpush.bf16.msra.mxu0 0
      %7987 = vmatpush.bf16.msra.mxu0 %v7930
      %7988 = vmatpush.bf16.msra.mxu0 %v7929
      %7989 = vmatmul.bf16.gmra.mxu0 %v7934
      %v7990 = vpop.f32.mrf.mxu0
      %v7991 = vadd.f32 0.0, %v7990
      %v7992 = vpop.f32.mrf.mxu0
      %v7993 = vadd.f32 0.0, %v7992
      %7994 = vmatmul.bf16.gmra.mxu0 %v7937
      %v7995 = vpop.f32.mrf.mxu0
      %v7996 = vadd.f32 0.0, %v7995
      %v7997 = vpop.f32.mrf.mxu0
      %v7998 = vadd.f32 0.0, %v7997
      %7999 = vmatmul.bf16.gmra.mxu0 %v7940
      %v8000 = vpop.f32.mrf.mxu0
      %v8001 = vadd.f32 0.0, %v8000
      %v8002 = vpop.f32.mrf.mxu0
      %v8003 = vadd.f32 0.0, %v8002
      %8004 = vmatmul.bf16.gmra.mxu0 %v7943
      %v8005 = vpop.f32.mrf.mxu0
      %v8006 = vadd.f32 0.0, %v8005
      %v8007 = vpop.f32.mrf.mxu0
      %v8008 = vadd.f32 0.0, %v8007
      %8009 = vmatmul.bf16.gmra.mxu0 %v7946
      %v8010 = vpop.f32.mrf.mxu0
      %v8011 = vadd.f32 0.0, %v8010
      %v8012 = vpop.f32.mrf.mxu0
      %v8013 = vadd.f32 0.0, %v8012
      %8014 = vmatmul.bf16.gmra.mxu0 %v7949
      %v8015 = vpop.f32.mrf.mxu0
      %v8016 = vadd.f32 0.0, %v8015
      %v8017 = vpop.f32.mrf.mxu0
      %v8018 = vadd.f32 0.0, %v8017
      %8019 = vmatmul.bf16.gmra.mxu0 %v7952
      %v8020 = vpop.f32.mrf.mxu0
      %v8021 = vadd.f32 0.0, %v8020
      %v8022 = vpop.f32.mrf.mxu0
      %v8023 = vadd.f32 0.0, %v8022
      %8024 = vmatmul.bf16.gmra.mxu0 %v7955
      %v8025 = vpop.f32.mrf.mxu0
      %v8026 = vadd.f32 0.0, %v8025
      %v8027 = vpop.f32.mrf.mxu0
      %v8028 = vadd.f32 0.0, %v8027
      %8029 = vmatmul.bf16.gmra.mxu0 %v7958
      %v8030 = vpop.f32.mrf.mxu0
      %v8031 = vadd.f32 0.0, %v8030
      %v8032 = vpop.f32.mrf.mxu0
      %v8033 = vadd.f32 0.0, %v8032
      %8034 = vmatmul.bf16.gmra.mxu0 %v7961
      %v8035 = vpop.f32.mrf.mxu0
      %v8036 = vadd.f32 0.0, %v8035
      %v8037 = vpop.f32.mrf.mxu0
      %v8038 = vadd.f32 0.0, %v8037
      %8039 = vmatmul.bf16.gmra.mxu0 %v7964
      %v8040 = vpop.f32.mrf.mxu0
      %v8041 = vadd.f32 0.0, %v8040
      %v8042 = vpop.f32.mrf.mxu0
      %v8043 = vadd.f32 0.0, %v8042
      %8044 = vmatmul.bf16.gmra.mxu0 %v7967
      %v8045 = vpop.f32.mrf.mxu0
      %v8046 = vadd.f32 0.0, %v8045
      %v8047 = vpop.f32.mrf.mxu0
      %v8048 = vadd.f32 0.0, %v8047
      %8049 = vmatmul.bf16.gmra.mxu0 %v7970
      %v8050 = vpop.f32.mrf.mxu0
      %v8051 = vadd.f32 0.0, %v8050
      %v8052 = vpop.f32.mrf.mxu0
      %v8053 = vadd.f32 0.0, %v8052
      %8054 = vmatmul.bf16.gmra.mxu0 %v7973
      %v8055 = vpop.f32.mrf.mxu0
      %v8056 = vadd.f32 0.0, %v8055
      %v8057 = vpop.f32.mrf.mxu0
      %v8058 = vadd.f32 0.0, %v8057
      %8059 = vmatmul.bf16.gmra.mxu0 %v7976
      %v8060 = vpop.f32.mrf.mxu0
      %v8061 = vadd.f32 0.0, %v8060
      %v8062 = vpop.f32.mrf.mxu0
      %v8063 = vadd.f32 0.0, %v8062
      %8064 = vmatmul.bf16.gmra.mxu0 %v7979
      %v8065 = vpop.f32.mrf.mxu0
      %v8066 = vadd.f32 0.0, %v8065
      %v8067 = vpop.f32.mrf.mxu0
      %v8068 = vadd.f32 0.0, %v8067
      %8069 = vdwg.mxu0
      %v8070 = vadd.f32 %v7837, %v7991
      %v8071 = vadd.f32 %v7838, %v7993
      %v8072 = vadd.f32 %v7839, %v7996
      %v8073 = vadd.f32 %v7840, %v7998
      %v8074 = vadd.f32 %v7841, %v8001
      %v8075 = vadd.f32 %v7842, %v8003
      %v8076 = vadd.f32 %v7843, %v8006
      %v8077 = vadd.f32 %v7844, %v8008
      %v8078 = vadd.f32 %v7845, %v8011
      %v8079 = vadd.f32 %v7846, %v8013
      %v8080 = vadd.f32 %v7847, %v8016
      %v8081 = vadd.f32 %v7848, %v8018
      %v8082 = vadd.f32 %v7849, %v8021
      %v8083 = vadd.f32 %v7850, %v8023
      %v8084 = vadd.f32 %v7851, %v8026
      %v8085 = vadd.f32 %v7852, %v8028
      %v8086 = vadd.f32 %v7853, %v8031
      %v8087 = vadd.f32 %v7854, %v8033
      %v8088 = vadd.f32 %v7855, %v8036
      %v8089 = vadd.f32 %v7856, %v8038
      %v8090 = vadd.f32 %v7857, %v8041
      %v8091 = vadd.f32 %v7858, %v8043
      %v8092 = vadd.f32 %v7859, %v8046
      %v8093 = vadd.f32 %v7860, %v8048
      %v8094 = vadd.f32 %v7861, %v8051
      %v8095 = vadd.f32 %v7862, %v8053
      %v8096 = vadd.f32 %v7863, %v8056
      %v8097 = vadd.f32 %v7864, %v8058
      %v8098 = vadd.f32 %v7865, %v8061
      %v8099 = vadd.f32 %v7866, %v8063
      %v8100 = vadd.f32 %v7867, %v8066
      %v8101 = vadd.f32 %v7868, %v8068
      %v8102 = vld [vmem:[%s8] sm:$0x1]
      %v8104 = vperm.slane %v8102, 0
      %v8106 = vadd.f32 %v8070, %v8104
      %v8107 = vadd.f32 %v8071, %v8104
      %v8108 = vadd.f32 %v8072, %v8104
      %v8109 = vadd.f32 %v8073, %v8104
      %v8110 = vadd.f32 %v8074, %v8104
      %v8111 = vadd.f32 %v8075, %v8104
      %v8112 = vadd.f32 %v8076, %v8104
      %v8113 = vadd.f32 %v8077, %v8104
      %v8114 = vadd.f32 %v8078, %v8104
      %v8115 = vadd.f32 %v8079, %v8104
      %v8116 = vadd.f32 %v8080, %v8104
      %v8117 = vadd.f32 %v8081, %v8104
      %v8118 = vadd.f32 %v8082, %v8104
      %v8119 = vadd.f32 %v8083, %v8104
      %v8120 = vadd.f32 %v8084, %v8104
      %v8121 = vadd.f32 %v8085, %v8104
      %v8122 = vadd.f32 %v8086, %v8104
      %v8123 = vadd.f32 %v8087, %v8104
      %v8124 = vadd.f32 %v8088, %v8104
      %v8125 = vadd.f32 %v8089, %v8104
      %v8126 = vadd.f32 %v8090, %v8104
      %v8127 = vadd.f32 %v8091, %v8104
      %v8128 = vadd.f32 %v8092, %v8104
      %v8129 = vadd.f32 %v8093, %v8104
      %v8130 = vadd.f32 %v8094, %v8104
      %v8131 = vadd.f32 %v8095, %v8104
      %v8132 = vadd.f32 %v8096, %v8104
      %v8133 = vadd.f32 %v8097, %v8104
      %v8134 = vadd.f32 %v8098, %v8104
      %v8135 = vadd.f32 %v8099, %v8104
      %v8136 = vadd.f32 %v8100, %v8104
      %v8137 = vadd.f32 %v8101, %v8104
      %v8138 = vmax.f32 %v8106, 0.0
      %v8139 = vmax.f32 %v8107, 0.0
      %v8140 = vmax.f32 %v8108, 0.0
      %v8141 = vmax.f32 %v8109, 0.0
      %v8142 = vmax.f32 %v8110, 0.0
      %v8143 = vmax.f32 %v8111, 0.0
      %v8144 = vmax.f32 %v8112, 0.0
      %v8145 = vmax.f32 %v8113, 0.0
      %v8146 = vmax.f32 %v8114, 0.0
      %v8147 = vmax.f32 %v8115, 0.0
      %v8148 = vmax.f32 %v8116, 0.0
      %v8149 = vmax.f32 %v8117, 0.0
      %v8150 = vmax.f32 %v8118, 0.0
      %v8151 = vmax.f32 %v8119, 0.0
      %v8152 = vmax.f32 %v8120, 0.0
      %v8153 = vmax.f32 %v8121, 0.0
      %v8154 = vmax.f32 %v8122, 0.0
      %v8155 = vmax.f32 %v8123, 0.0
      %v8156 = vmax.f32 %v8124, 0.0
      %v8157 = vmax.f32 %v8125, 0.0
      %v8158 = vmax.f32 %v8126, 0.0
      %v8159 = vmax.f32 %v8127, 0.0
      %v8160 = vmax.f32 %v8128, 0.0
      %v8161 = vmax.f32 %v8129, 0.0
      %v8162 = vmax.f32 %v8130, 0.0
      %v8163 = vmax.f32 %v8131, 0.0
      %v8164 = vmax.f32 %v8132, 0.0
      %v8165 = vmax.f32 %v8133, 0.0
      %v8166 = vmax.f32 %v8134, 0.0
      %v8167 = vmax.f32 %v8135, 0.0
      %v8168 = vmax.f32 %v8136, 0.0
      %v8169 = vmax.f32 %v8137, 0.0
      %v8170 = vrot.slane %v8138, 7
      %v8171 = vrot.slane %v8139, 7
      %v8172 = vrot.slane %v8140, 7
      %v8173 = vrot.slane %v8141, 7
      %v8174 = vrot.slane %v8142, 7
      %v8175 = vrot.slane %v8143, 7
      %v8176 = vrot.slane %v8144, 7
      %v8177 = vrot.slane %v8145, 7
      %v8178 = vrot.slane %v8146, 7
      %v8179 = vrot.slane %v8147, 7
      %v8180 = vrot.slane %v8148, 7
      %v8181 = vrot.slane %v8149, 7
      %v8182 = vrot.slane %v8150, 7
      %v8183 = vrot.slane %v8151, 7
      %v8184 = vrot.slane %v8152, 7
      %v8185 = vrot.slane %v8153, 7
      %v8186 = vrot.slane %v8154, 7
      %v8187 = vrot.slane %v8155, 7
      %v8188 = vrot.slane %v8156, 7
      %v8189 = vrot.slane %v8157, 7
      %v8190 = vrot.slane %v8158, 7
      %v8191 = vrot.slane %v8159, 7
      %v8192 = vrot.slane %v8160, 7
      %v8193 = vrot.slane %v8161, 7
      %v8194 = vrot.slane %v8162, 7
      %v8195 = vrot.slane %v8163, 7
      %v8196 = vrot.slane %v8164, 7
      %v8197 = vrot.slane %v8165, 7
      %v8198 = vrot.slane %v8166, 7
      %v8199 = vrot.slane %v8167, 7
      %v8200 = vrot.slane %v8168, 7
      %v8201 = vrot.slane %v8169, 7
      %v8202 = vsel %vm832, %v8200, %v8201
      %v8203 = vsel %vm832, %v8199, %v8200
      %v8204 = vsel %vm832, %v8198, %v8199
      %v8205 = vsel %vm832, %v8197, %v8198
      %v8206 = vsel %vm832, %v8196, %v8197
      %v8207 = vsel %vm832, %v8195, %v8196
      %v8208 = vsel %vm832, %v8194, %v8195
      %v8209 = vsel %vm832, %v8193, %v8194
      %v8210 = vsel %vm832, %v8192, %v8193
      %v8211 = vsel %vm832, %v8191, %v8192
      %v8212 = vsel %vm832, %v8190, %v8191
      %v8213 = vsel %vm832, %v8189, %v8190
      %v8214 = vsel %vm832, %v8188, %v8189
      %v8215 = vsel %vm832, %v8187, %v8188
      %v8216 = vsel %vm832, %v8186, %v8187
      %v8217 = vsel %vm832, %v8185, %v8186
      %v8218 = vsel %vm832, %v8184, %v8185
      %v8219 = vsel %vm832, %v8183, %v8184
      %v8220 = vsel %vm832, %v8182, %v8183
      %v8221 = vsel %vm832, %v8181, %v8182
      %v8222 = vsel %vm832, %v8180, %v8181
      %v8223 = vsel %vm832, %v8179, %v8180
      %v8224 = vsel %vm832, %v8178, %v8179
      %v8225 = vsel %vm832, %v8177, %v8178
      %v8226 = vsel %vm832, %v8176, %v8177
      %v8227 = vsel %vm832, %v8175, %v8176
      %v8228 = vsel %vm832, %v8174, %v8175
      %v8229 = vsel %vm832, %v8173, %v8174
      %v8230 = vsel %vm832, %v8172, %v8173
      %v8231 = vsel %vm832, %v8171, %v8172
      %v8232 = vsel %vm832, %v8170, %v8171
      %v8233 = vsel %vm832, %v8201, %v8170
      %v8234 = vsel %vm993, %v8203, 0.0
      %v8235 = vsel %vm994, %v8202, 0.0
      %v8236 = vsel %vm995, %v8233, 0.0
      %v8237 = vsel %vm996, %v8232, 0.0
      %v8238 = vsel %vm997, %v8231, 0.0
      %v8239 = vsel %vm998, %v8230, 0.0
      %v8240 = vsel %vm999, %v8229, 0.0
      %v8241 = vsel %vm1000, %v8228, 0.0
      %v8242 = vsel %vm1001, %v8227, 0.0
      %v8243 = vsel %vm1002, %v8226, 0.0
      %v8244 = vsel %vm1003, %v8225, 0.0
      %v8245 = vsel %vm1004, %v8224, 0.0
      %v8246 = vsel %vm1005, %v8223, 0.0
      %v8247 = vsel %vm1006, %v8222, 0.0
      %v8248 = vsel %vm1007, %v8221, 0.0
      %v8249 = vsel %vm1008, %v8220, 0.0
      %v8250 = vsel %vm1009, %v8219, 0.0
      %v8251 = vsel %vm1010, %v8218, 0.0
      %v8252 = vsel %vm1011, %v8217, 0.0
      %v8253 = vsel %vm1012, %v8216, 0.0
      %v8254 = vsel %vm1013, %v8215, 0.0
      %v8255 = vsel %vm1014, %v8214, 0.0
      %v8256 = vsel %vm1015, %v8213, 0.0
      %v8257 = vsel %vm1016, %v8212, 0.0
      %v8258 = vsel %vm1017, %v8211, 0.0
      %v8259 = vsel %vm1018, %v8210, 0.0
      %v8260 = vsel %vm1019, %v8209, 0.0
      %v8261 = vsel %vm1020, %v8208, 0.0
      %v8262 = vsel %vm1021, %v8207, 0.0
      %v8263 = vsel %vm1022, %v8206, 0.0
      %v8264 = vsel %vm1023, %v8205, 0.0
      %v8265 = vsel %vm1024, %v8204, 0.0
      %v8266 = vpack.c.bf16 %v8235, %v8234
      %v8267 = vpack.c.bf16 %v8237, %v8236
      %v8268 = vpack.c.bf16 %v8239, %v8238
      %v8269 = vpack.c.bf16 %v8241, %v8240
      %v8270 = vpack.c.bf16 %v8243, %v8242
      %v8271 = vpack.c.bf16 %v8245, %v8244
      %v8272 = vpack.c.bf16 %v8247, %v8246
      %v8273 = vpack.c.bf16 %v8249, %v8248
      %v8274 = vpack.c.bf16 %v8251, %v8250
      %v8275 = vpack.c.bf16 %v8253, %v8252
      %v8276 = vpack.c.bf16 %v8255, %v8254
      %v8277 = vpack.c.bf16 %v8257, %v8256
      %v8278 = vpack.c.bf16 %v8259, %v8258
      %v8279 = vpack.c.bf16 %v8261, %v8260
      %v8280 = vpack.c.bf16 %v8263, %v8262
      %v8281 = vpack.c.bf16 %v8265, %v8264
      %v8282 = vld [vmem:[%s4] sm:$0xf]
      %v8283 = vld [vmem:[%s4 + $0x4] sm:$0xf]
      %v8284 = vld [vmem:[%s4 + $0x8] sm:$0xf]
      %v8285 = vld [vmem:[%s4 + $0xc] sm:$0xf]
      %v8286 = vsel %vm1089, %v8168, 0.0
      %v8287 = vsel %vm1090, %v8169, 0.0
      %v8288 = vsel %vm1091, %v8138, 0.0
      %v8289 = vsel %vm1092, %v8139, 0.0
      %v8290 = vsel %vm1093, %v8140, 0.0
      %v8291 = vsel %vm1094, %v8141, 0.0
      %v8292 = vsel %vm1095, %v8142, 0.0
      %v8293 = vsel %vm1096, %v8143, 0.0
      %v8294 = vsel %vm1097, %v8144, 0.0
      %v8295 = vsel %vm1098, %v8145, 0.0
      %v8296 = vsel %vm1099, %v8146, 0.0
      %v8297 = vsel %vm1100, %v8147, 0.0
      %v8298 = vsel %vm1101, %v8148, 0.0
      %v8299 = vsel %vm1102, %v8149, 0.0
      %v8300 = vsel %vm1103, %v8150, 0.0
      %v8301 = vsel %vm1104, %v8151, 0.0
      %v8302 = vsel %vm1105, %v8152, 0.0
      %v8303 = vsel %vm1106, %v8153, 0.0
      %v8304 = vsel %vm1107, %v8154, 0.0
      %v8305 = vsel %vm1108, %v8155, 0.0
      %v8306 = vsel %vm1109, %v8156, 0.0
      %v8307 = vsel %vm1110, %v8157, 0.0
      %v8308 = vsel %vm1111, %v8158, 0.0
      %v8309 = vsel %vm1112, %v8159, 0.0
      %v8310 = vsel %vm1113, %v8160, 0.0
      %v8311 = vsel %vm1114, %v8161, 0.0
      %v8312 = vsel %vm1115, %v8162, 0.0
      %v8313 = vsel %vm1116, %v8163, 0.0
      %v8314 = vsel %vm1117, %v8164, 0.0
      %v8315 = vsel %vm1118, %v8165, 0.0
      %v8316 = vsel %vm1119, %v8166, 0.0
      %v8317 = vsel %vm1120, %v8167, 0.0
      %v8318 = vpack.c.bf16 %v8287, %v8286
      %v8319 = vpack.c.bf16 %v8289, %v8288
      %v8320 = vpack.c.bf16 %v8291, %v8290
      %v8321 = vpack.c.bf16 %v8293, %v8292
      %v8322 = vpack.c.bf16 %v8295, %v8294
      %v8323 = vpack.c.bf16 %v8297, %v8296
      %v8324 = vpack.c.bf16 %v8299, %v8298
      %v8325 = vpack.c.bf16 %v8301, %v8300
      %v8326 = vpack.c.bf16 %v8303, %v8302
      %v8327 = vpack.c.bf16 %v8305, %v8304
      %v8328 = vpack.c.bf16 %v8307, %v8306
      %v8329 = vpack.c.bf16 %v8309, %v8308
      %v8330 = vpack.c.bf16 %v8311, %v8310
      %v8331 = vpack.c.bf16 %v8313, %v8312
      %v8332 = vpack.c.bf16 %v8315, %v8314
      %v8333 = vpack.c.bf16 %v8317, %v8316
      %v8334 = vld [vmem:[%s4 + $0x10] sm:$0xf]
      %v8335 = vld [vmem:[%s4 + $0x14] sm:$0xf]
      %v8336 = vld [vmem:[%s4 + $0x18] sm:$0xf]
      %v8337 = vld [vmem:[%s4 + $0x1c] sm:$0xf]
      %v8342 = vunpack.c.l.b16 %v8334
      %v8343 = vunpack.c.l.b16 %v8335
      %v8344 = vunpack.c.l.b16 %v8336
      %v8345 = vunpack.c.l.b16 %v8337
      %v8346 = vpack.c.b16 %v8343, %v8342
      %v8347 = vpack.c.b16 %v8345, %v8344
      %v8351 = vsel %vm3529, %v8318, 0
      %v8354 = vsel %vm3529, %v8319, 0
      %v8357 = vsel %vm3529, %v8320, 0
      %v8360 = vsel %vm3529, %v8321, 0
      %v8363 = vsel %vm3529, %v8322, 0
      %v8366 = vsel %vm3529, %v8323, 0
      %v8369 = vsel %vm3529, %v8324, 0
      %v8372 = vsel %vm3529, %v8325, 0
      %v8375 = vsel %vm3529, %v8326, 0
      %v8378 = vsel %vm3529, %v8327, 0
      %v8381 = vsel %vm3529, %v8328, 0
      %v8384 = vsel %vm3529, %v8329, 0
      %v8387 = vsel %vm3529, %v8330, 0
      %v8390 = vsel %vm3529, %v8331, 0
      %v8393 = vsel %vm3529, %v8332, 0
      %v8396 = vsel %vm3529, %v8333, 0
      %8398 = vmatpush.bf16.msra.mxu0 0
      %8399 = vmatpush.bf16.msra.mxu0 0
      %8400 = vmatpush.bf16.msra.mxu0 0
      %8401 = vmatpush.bf16.msra.mxu0 0
      %8402 = vmatpush.bf16.msra.mxu0 0
      %8403 = vmatpush.bf16.msra.mxu0 0
      %8404 = vmatpush.bf16.msra.mxu0 %v8347
      %8405 = vmatpush.bf16.msra.mxu0 %v8346
      %8406 = vmatmul.bf16.gmra.mxu0 %v8351
      %v8407 = vpop.f32.mrf.mxu0
      %v8408 = vadd.f32 0.0, %v8407
      %v8409 = vpop.f32.mrf.mxu0
      %v8410 = vadd.f32 0.0, %v8409
      %8411 = vmatmul.bf16.gmra.mxu0 %v8354
      %v8412 = vpop.f32.mrf.mxu0
      %v8413 = vadd.f32 0.0, %v8412
      %v8414 = vpop.f32.mrf.mxu0
      %v8415 = vadd.f32 0.0, %v8414
      %8416 = vmatmul.bf16.gmra.mxu0 %v8357
      %v8417 = vpop.f32.mrf.mxu0
      %v8418 = vadd.f32 0.0, %v8417
      %v8419 = vpop.f32.mrf.mxu0
      %v8420 = vadd.f32 0.0, %v8419
      %8421 = vmatmul.bf16.gmra.mxu0 %v8360
      %v8422 = vpop.f32.mrf.mxu0
      %v8423 = vadd.f32 0.0, %v8422
      %v8424 = vpop.f32.mrf.mxu0
      %v8425 = vadd.f32 0.0, %v8424
      %8426 = vmatmul.bf16.gmra.mxu0 %v8363
      %v8427 = vpop.f32.mrf.mxu0
      %v8428 = vadd.f32 0.0, %v8427
      %v8429 = vpop.f32.mrf.mxu0
      %v8430 = vadd.f32 0.0, %v8429
      %8431 = vmatmul.bf16.gmra.mxu0 %v8366
      %v8432 = vpop.f32.mrf.mxu0
      %v8433 = vadd.f32 0.0, %v8432
      %v8434 = vpop.f32.mrf.mxu0
      %v8435 = vadd.f32 0.0, %v8434
      %8436 = vmatmul.bf16.gmra.mxu0 %v8369
      %v8437 = vpop.f32.mrf.mxu0
      %v8438 = vadd.f32 0.0, %v8437
      %v8439 = vpop.f32.mrf.mxu0
      %v8440 = vadd.f32 0.0, %v8439
      %8441 = vmatmul.bf16.gmra.mxu0 %v8372
      %v8442 = vpop.f32.mrf.mxu0
      %v8443 = vadd.f32 0.0, %v8442
      %v8444 = vpop.f32.mrf.mxu0
      %v8445 = vadd.f32 0.0, %v8444
      %8446 = vmatmul.bf16.gmra.mxu0 %v8375
      %v8447 = vpop.f32.mrf.mxu0
      %v8448 = vadd.f32 0.0, %v8447
      %v8449 = vpop.f32.mrf.mxu0
      %v8450 = vadd.f32 0.0, %v8449
      %8451 = vmatmul.bf16.gmra.mxu0 %v8378
      %v8452 = vpop.f32.mrf.mxu0
      %v8453 = vadd.f32 0.0, %v8452
      %v8454 = vpop.f32.mrf.mxu0
      %v8455 = vadd.f32 0.0, %v8454
      %8456 = vmatmul.bf16.gmra.mxu0 %v8381
      %v8457 = vpop.f32.mrf.mxu0
      %v8458 = vadd.f32 0.0, %v8457
      %v8459 = vpop.f32.mrf.mxu0
      %v8460 = vadd.f32 0.0, %v8459
      %8461 = vmatmul.bf16.gmra.mxu0 %v8384
      %v8462 = vpop.f32.mrf.mxu0
      %v8463 = vadd.f32 0.0, %v8462
      %v8464 = vpop.f32.mrf.mxu0
      %v8465 = vadd.f32 0.0, %v8464
      %8466 = vmatmul.bf16.gmra.mxu0 %v8387
      %v8467 = vpop.f32.mrf.mxu0
      %v8468 = vadd.f32 0.0, %v8467
      %v8469 = vpop.f32.mrf.mxu0
      %v8470 = vadd.f32 0.0, %v8469
      %8471 = vmatmul.bf16.gmra.mxu0 %v8390
      %v8472 = vpop.f32.mrf.mxu0
      %v8473 = vadd.f32 0.0, %v8472
      %v8474 = vpop.f32.mrf.mxu0
      %v8475 = vadd.f32 0.0, %v8474
      %8476 = vmatmul.bf16.gmra.mxu0 %v8393
      %v8477 = vpop.f32.mrf.mxu0
      %v8478 = vadd.f32 0.0, %v8477
      %v8479 = vpop.f32.mrf.mxu0
      %v8480 = vadd.f32 0.0, %v8479
      %8481 = vmatmul.bf16.gmra.mxu0 %v8396
      %v8482 = vpop.f32.mrf.mxu0
      %v8483 = vadd.f32 0.0, %v8482
      %v8484 = vpop.f32.mrf.mxu0
      %v8485 = vadd.f32 0.0, %v8484
      %8486 = vdwg.mxu0
      %v8491 = vunpack.c.l.b16 %v8282
      %v8492 = vunpack.c.l.b16 %v8283
      %v8493 = vunpack.c.l.b16 %v8284
      %v8494 = vunpack.c.l.b16 %v8285
      %v8495 = vpack.c.b16 %v8492, %v8491
      %v8496 = vpack.c.b16 %v8494, %v8493
      %v8500 = vsel %vm3529, %v8266, 0
      %v8503 = vsel %vm3529, %v8267, 0
      %v8506 = vsel %vm3529, %v8268, 0
      %v8509 = vsel %vm3529, %v8269, 0
      %v8512 = vsel %vm3529, %v8270, 0
      %v8515 = vsel %vm3529, %v8271, 0
      %v8518 = vsel %vm3529, %v8272, 0
      %v8521 = vsel %vm3529, %v8273, 0
      %v8524 = vsel %vm3529, %v8274, 0
      %v8527 = vsel %vm3529, %v8275, 0
      %v8530 = vsel %vm3529, %v8276, 0
      %v8533 = vsel %vm3529, %v8277, 0
      %v8536 = vsel %vm3529, %v8278, 0
      %v8539 = vsel %vm3529, %v8279, 0
      %v8542 = vsel %vm3529, %v8280, 0
      %v8545 = vsel %vm3529, %v8281, 0
      %8547 = vmatpush.bf16.msra.mxu0 0
      %8548 = vmatpush.bf16.msra.mxu0 0
      %8549 = vmatpush.bf16.msra.mxu0 0
      %8550 = vmatpush.bf16.msra.mxu0 0
      %8551 = vmatpush.bf16.msra.mxu0 0
      %8552 = vmatpush.bf16.msra.mxu0 0
      %8553 = vmatpush.bf16.msra.mxu0 %v8496
      %8554 = vmatpush.bf16.msra.mxu0 %v8495
      %8555 = vmatmul.bf16.gmra.mxu0 %v8500
      %v8556 = vpop.f32.mrf.mxu0
      %v8557 = vadd.f32 %v8408, %v8556
      %v8558 = vpop.f32.mrf.mxu0
      %v8559 = vadd.f32 %v8410, %v8558
      %8560 = vmatmul.bf16.gmra.mxu0 %v8503
      %v8561 = vpop.f32.mrf.mxu0
      %v8562 = vadd.f32 %v8413, %v8561
      %v8563 = vpop.f32.mrf.mxu0
      %v8564 = vadd.f32 %v8415, %v8563
      %8565 = vmatmul.bf16.gmra.mxu0 %v8506
      %v8566 = vpop.f32.mrf.mxu0
      %v8567 = vadd.f32 %v8418, %v8566
      %v8568 = vpop.f32.mrf.mxu0
      %v8569 = vadd.f32 %v8420, %v8568
      %8570 = vmatmul.bf16.gmra.mxu0 %v8509
      %v8571 = vpop.f32.mrf.mxu0
      %v8572 = vadd.f32 %v8423, %v8571
      %v8573 = vpop.f32.mrf.mxu0
      %v8574 = vadd.f32 %v8425, %v8573
      %8575 = vmatmul.bf16.gmra.mxu0 %v8512
      %v8576 = vpop.f32.mrf.mxu0
      %v8577 = vadd.f32 %v8428, %v8576
      %v8578 = vpop.f32.mrf.mxu0
      %v8579 = vadd.f32 %v8430, %v8578
      %8580 = vmatmul.bf16.gmra.mxu0 %v8515
      %v8581 = vpop.f32.mrf.mxu0
      %v8582 = vadd.f32 %v8433, %v8581
      %v8583 = vpop.f32.mrf.mxu0
      %v8584 = vadd.f32 %v8435, %v8583
      %8585 = vmatmul.bf16.gmra.mxu0 %v8518
      %v8586 = vpop.f32.mrf.mxu0
      %v8587 = vadd.f32 %v8438, %v8586
      %v8588 = vpop.f32.mrf.mxu0
      %v8589 = vadd.f32 %v8440, %v8588
      %8590 = vmatmul.bf16.gmra.mxu0 %v8521
      %v8591 = vpop.f32.mrf.mxu0
      %v8592 = vadd.f32 %v8443, %v8591
      %v8593 = vpop.f32.mrf.mxu0
      %v8594 = vadd.f32 %v8445, %v8593
      %8595 = vmatmul.bf16.gmra.mxu0 %v8524
      %v8596 = vpop.f32.mrf.mxu0
      %v8597 = vadd.f32 %v8448, %v8596
      %v8598 = vpop.f32.mrf.mxu0
      %v8599 = vadd.f32 %v8450, %v8598
      %8600 = vmatmul.bf16.gmra.mxu0 %v8527
      %v8601 = vpop.f32.mrf.mxu0
      %v8602 = vadd.f32 %v8453, %v8601
      %v8603 = vpop.f32.mrf.mxu0
      %v8604 = vadd.f32 %v8455, %v8603
      %8605 = vmatmul.bf16.gmra.mxu0 %v8530
      %v8606 = vpop.f32.mrf.mxu0
      %v8607 = vadd.f32 %v8458, %v8606
      %v8608 = vpop.f32.mrf.mxu0
      %v8609 = vadd.f32 %v8460, %v8608
      %8610 = vmatmul.bf16.gmra.mxu0 %v8533
      %v8611 = vpop.f32.mrf.mxu0
      %v8612 = vadd.f32 %v8463, %v8611
      %v8613 = vpop.f32.mrf.mxu0
      %v8614 = vadd.f32 %v8465, %v8613
      %8615 = vmatmul.bf16.gmra.mxu0 %v8536
      %v8616 = vpop.f32.mrf.mxu0
      %v8617 = vadd.f32 %v8468, %v8616
      %v8618 = vpop.f32.mrf.mxu0
      %v8619 = vadd.f32 %v8470, %v8618
      %8620 = vmatmul.bf16.gmra.mxu0 %v8539
      %v8621 = vpop.f32.mrf.mxu0
      %v8622 = vadd.f32 %v8473, %v8621
      %v8623 = vpop.f32.mrf.mxu0
      %v8624 = vadd.f32 %v8475, %v8623
      %8625 = vmatmul.bf16.gmra.mxu0 %v8542
      %v8626 = vpop.f32.mrf.mxu0
      %v8627 = vadd.f32 %v8478, %v8626
      %v8628 = vpop.f32.mrf.mxu0
      %v8629 = vadd.f32 %v8480, %v8628
      %8630 = vmatmul.bf16.gmra.mxu0 %v8545
      %v8631 = vpop.f32.mrf.mxu0
      %v8632 = vadd.f32 %v8483, %v8631
      %v8633 = vpop.f32.mrf.mxu0
      %v8634 = vadd.f32 %v8485, %v8633
      %8635 = vdwg.mxu0
      %v8636 = vrot.slane %v8138, 1
      %v8637 = vrot.slane %v8139, 1
      %v8638 = vrot.slane %v8140, 1
      %v8639 = vrot.slane %v8141, 1
      %v8640 = vrot.slane %v8142, 1
      %v8641 = vrot.slane %v8143, 1
      %v8642 = vrot.slane %v8144, 1
      %v8643 = vrot.slane %v8145, 1
      %v8644 = vrot.slane %v8146, 1
      %v8645 = vrot.slane %v8147, 1
      %v8646 = vrot.slane %v8148, 1
      %v8647 = vrot.slane %v8149, 1
      %v8648 = vrot.slane %v8150, 1
      %v8649 = vrot.slane %v8151, 1
      %v8650 = vrot.slane %v8152, 1
      %v8651 = vrot.slane %v8153, 1
      %v8652 = vrot.slane %v8154, 1
      %v8653 = vrot.slane %v8155, 1
      %v8654 = vrot.slane %v8156, 1
      %v8655 = vrot.slane %v8157, 1
      %v8656 = vrot.slane %v8158, 1
      %v8657 = vrot.slane %v8159, 1
      %v8658 = vrot.slane %v8160, 1
      %v8659 = vrot.slane %v8161, 1
      %v8660 = vrot.slane %v8162, 1
      %v8661 = vrot.slane %v8163, 1
      %v8662 = vrot.slane %v8164, 1
      %v8663 = vrot.slane %v8165, 1
      %v8664 = vrot.slane %v8166, 1
      %v8665 = vrot.slane %v8167, 1
      %v8666 = vrot.slane %v8168, 1
      %v8667 = vrot.slane %v8169, 1
      %v8668 = vsel %vm1185, %v8666, %v8667
      %v8669 = vsel %vm1185, %v8665, %v8666
      %v8670 = vsel %vm1185, %v8664, %v8665
      %v8671 = vsel %vm1185, %v8663, %v8664
      %v8672 = vsel %vm1185, %v8662, %v8663
      %v8673 = vsel %vm1185, %v8661, %v8662
      %v8674 = vsel %vm1185, %v8660, %v8661
      %v8675 = vsel %vm1185, %v8659, %v8660
      %v8676 = vsel %vm1185, %v8658, %v8659
      %v8677 = vsel %vm1185, %v8657, %v8658
      %v8678 = vsel %vm1185, %v8656, %v8657
      %v8679 = vsel %vm1185, %v8655, %v8656
      %v8680 = vsel %vm1185, %v8654, %v8655
      %v8681 = vsel %vm1185, %v8653, %v8654
      %v8682 = vsel %vm1185, %v8652, %v8653
      %v8683 = vsel %vm1185, %v8651, %v8652
      %v8684 = vsel %vm1185, %v8650, %v8651
      %v8685 = vsel %vm1185, %v8649, %v8650
      %v8686 = vsel %vm1185, %v8648, %v8649
      %v8687 = vsel %vm1185, %v8647, %v8648
      %v8688 = vsel %vm1185, %v8646, %v8647
      %v8689 = vsel %vm1185, %v8645, %v8646
      %v8690 = vsel %vm1185, %v8644, %v8645
      %v8691 = vsel %vm1185, %v8643, %v8644
      %v8692 = vsel %vm1185, %v8642, %v8643
      %v8693 = vsel %vm1185, %v8641, %v8642
      %v8694 = vsel %vm1185, %v8640, %v8641
      %v8695 = vsel %vm1185, %v8639, %v8640
      %v8696 = vsel %vm1185, %v8638, %v8639
      %v8697 = vsel %vm1185, %v8637, %v8638
      %v8698 = vsel %vm1185, %v8636, %v8637
      %v8699 = vsel %vm1185, %v8667, %v8636
      %v8700 = vsel %vm1346, %v8668, 0.0
      %v8701 = vsel %vm1347, %v8699, 0.0
      %v8702 = vsel %vm1348, %v8698, 0.0
      %v8703 = vsel %vm1349, %v8697, 0.0
      %v8704 = vsel %vm1350, %v8696, 0.0
      %v8705 = vsel %vm1351, %v8695, 0.0
      %v8706 = vsel %vm1352, %v8694, 0.0
      %v8707 = vsel %vm1353, %v8693, 0.0
      %v8708 = vsel %vm1354, %v8692, 0.0
      %v8709 = vsel %vm1355, %v8691, 0.0
      %v8710 = vsel %vm1356, %v8690, 0.0
      %v8711 = vsel %vm1357, %v8689, 0.0
      %v8712 = vsel %vm1358, %v8688, 0.0
      %v8713 = vsel %vm1359, %v8687, 0.0
      %v8714 = vsel %vm1360, %v8686, 0.0
      %v8715 = vsel %vm1361, %v8685, 0.0
      %v8716 = vsel %vm1362, %v8684, 0.0
      %v8717 = vsel %vm1363, %v8683, 0.0
      %v8718 = vsel %vm1364, %v8682, 0.0
      %v8719 = vsel %vm1365, %v8681, 0.0
      %v8720 = vsel %vm1366, %v8680, 0.0
      %v8721 = vsel %vm1367, %v8679, 0.0
      %v8722 = vsel %vm1368, %v8678, 0.0
      %v8723 = vsel %vm1369, %v8677, 0.0
      %v8724 = vsel %vm1370, %v8676, 0.0
      %v8725 = vsel %vm1371, %v8675, 0.0
      %v8726 = vsel %vm1372, %v8674, 0.0
      %v8727 = vsel %vm1373, %v8673, 0.0
      %v8728 = vsel %vm1374, %v8672, 0.0
      %v8729 = vsel %vm1375, %v8671, 0.0
      %v8730 = vsel %vm1376, %v8670, 0.0
      %v8731 = vsel %vm1377, %v8669, 0.0
      %v8732 = vpack.c.bf16 %v8701, %v8700
      %v8733 = vpack.c.bf16 %v8703, %v8702
      %v8734 = vpack.c.bf16 %v8705, %v8704
      %v8735 = vpack.c.bf16 %v8707, %v8706
      %v8736 = vpack.c.bf16 %v8709, %v8708
      %v8737 = vpack.c.bf16 %v8711, %v8710
      %v8738 = vpack.c.bf16 %v8713, %v8712
      %v8739 = vpack.c.bf16 %v8715, %v8714
      %v8740 = vpack.c.bf16 %v8717, %v8716
      %v8741 = vpack.c.bf16 %v8719, %v8718
      %v8742 = vpack.c.bf16 %v8721, %v8720
      %v8743 = vpack.c.bf16 %v8723, %v8722
      %v8744 = vpack.c.bf16 %v8725, %v8724
      %v8745 = vpack.c.bf16 %v8727, %v8726
      %v8746 = vpack.c.bf16 %v8729, %v8728
      %v8747 = vpack.c.bf16 %v8731, %v8730
      %v8748 = vld [vmem:[%s4 + $0x20] sm:$0xf]
      %v8749 = vld [vmem:[%s4 + $0x24] sm:$0xf]
      %v8750 = vld [vmem:[%s4 + $0x28] sm:$0xf]
      %v8751 = vld [vmem:[%s4 + $0x2c] sm:$0xf]
      %v8756 = vunpack.c.l.b16 %v8748
      %v8757 = vunpack.c.l.b16 %v8749
      %v8758 = vunpack.c.l.b16 %v8750
      %v8759 = vunpack.c.l.b16 %v8751
      %v8760 = vpack.c.b16 %v8757, %v8756
      %v8761 = vpack.c.b16 %v8759, %v8758
      %v8765 = vsel %vm3529, %v8732, 0
      %v8768 = vsel %vm3529, %v8733, 0
      %v8771 = vsel %vm3529, %v8734, 0
      %v8774 = vsel %vm3529, %v8735, 0
      %v8777 = vsel %vm3529, %v8736, 0
      %v8780 = vsel %vm3529, %v8737, 0
      %v8783 = vsel %vm3529, %v8738, 0
      %v8786 = vsel %vm3529, %v8739, 0
      %v8789 = vsel %vm3529, %v8740, 0
      %v8792 = vsel %vm3529, %v8741, 0
      %v8795 = vsel %vm3529, %v8742, 0
      %v8798 = vsel %vm3529, %v8743, 0
      %v8801 = vsel %vm3529, %v8744, 0
      %v8804 = vsel %vm3529, %v8745, 0
      %v8807 = vsel %vm3529, %v8746, 0
      %v8810 = vsel %vm3529, %v8747, 0
      %8812 = vmatpush.bf16.msra.mxu0 0
      %8813 = vmatpush.bf16.msra.mxu0 0
      %8814 = vmatpush.bf16.msra.mxu0 0
      %8815 = vmatpush.bf16.msra.mxu0 0
      %8816 = vmatpush.bf16.msra.mxu0 0
      %8817 = vmatpush.bf16.msra.mxu0 0
      %8818 = vmatpush.bf16.msra.mxu0 %v8761
      %8819 = vmatpush.bf16.msra.mxu0 %v8760
      %8820 = vmatmul.bf16.gmra.mxu0 %v8765
      %v8821 = vpop.f32.mrf.mxu0
      %v8822 = vadd.f32 0.0, %v8821
      %v8823 = vpop.f32.mrf.mxu0
      %v8824 = vadd.f32 0.0, %v8823
      %8825 = vmatmul.bf16.gmra.mxu0 %v8768
      %v8826 = vpop.f32.mrf.mxu0
      %v8827 = vadd.f32 0.0, %v8826
      %v8828 = vpop.f32.mrf.mxu0
      %v8829 = vadd.f32 0.0, %v8828
      %8830 = vmatmul.bf16.gmra.mxu0 %v8771
      %v8831 = vpop.f32.mrf.mxu0
      %v8832 = vadd.f32 0.0, %v8831
      %v8833 = vpop.f32.mrf.mxu0
      %v8834 = vadd.f32 0.0, %v8833
      %8835 = vmatmul.bf16.gmra.mxu0 %v8774
      %v8836 = vpop.f32.mrf.mxu0
      %v8837 = vadd.f32 0.0, %v8836
      %v8838 = vpop.f32.mrf.mxu0
      %v8839 = vadd.f32 0.0, %v8838
      %8840 = vmatmul.bf16.gmra.mxu0 %v8777
      %v8841 = vpop.f32.mrf.mxu0
      %v8842 = vadd.f32 0.0, %v8841
      %v8843 = vpop.f32.mrf.mxu0
      %v8844 = vadd.f32 0.0, %v8843
      %8845 = vmatmul.bf16.gmra.mxu0 %v8780
      %v8846 = vpop.f32.mrf.mxu0
      %v8847 = vadd.f32 0.0, %v8846
      %v8848 = vpop.f32.mrf.mxu0
      %v8849 = vadd.f32 0.0, %v8848
      %8850 = vmatmul.bf16.gmra.mxu0 %v8783
      %v8851 = vpop.f32.mrf.mxu0
      %v8852 = vadd.f32 0.0, %v8851
      %v8853 = vpop.f32.mrf.mxu0
      %v8854 = vadd.f32 0.0, %v8853
      %8855 = vmatmul.bf16.gmra.mxu0 %v8786
      %v8856 = vpop.f32.mrf.mxu0
      %v8857 = vadd.f32 0.0, %v8856
      %v8858 = vpop.f32.mrf.mxu0
      %v8859 = vadd.f32 0.0, %v8858
      %8860 = vmatmul.bf16.gmra.mxu0 %v8789
      %v8861 = vpop.f32.mrf.mxu0
      %v8862 = vadd.f32 0.0, %v8861
      %v8863 = vpop.f32.mrf.mxu0
      %v8864 = vadd.f32 0.0, %v8863
      %8865 = vmatmul.bf16.gmra.mxu0 %v8792
      %v8866 = vpop.f32.mrf.mxu0
      %v8867 = vadd.f32 0.0, %v8866
      %v8868 = vpop.f32.mrf.mxu0
      %v8869 = vadd.f32 0.0, %v8868
      %8870 = vmatmul.bf16.gmra.mxu0 %v8795
      %v8871 = vpop.f32.mrf.mxu0
      %v8872 = vadd.f32 0.0, %v8871
      %v8873 = vpop.f32.mrf.mxu0
      %v8874 = vadd.f32 0.0, %v8873
      %8875 = vmatmul.bf16.gmra.mxu0 %v8798
      %v8876 = vpop.f32.mrf.mxu0
      %v8877 = vadd.f32 0.0, %v8876
      %v8878 = vpop.f32.mrf.mxu0
      %v8879 = vadd.f32 0.0, %v8878
      %8880 = vmatmul.bf16.gmra.mxu0 %v8801
      %v8881 = vpop.f32.mrf.mxu0
      %v8882 = vadd.f32 0.0, %v8881
      %v8883 = vpop.f32.mrf.mxu0
      %v8884 = vadd.f32 0.0, %v8883
      %8885 = vmatmul.bf16.gmra.mxu0 %v8804
      %v8886 = vpop.f32.mrf.mxu0
      %v8887 = vadd.f32 0.0, %v8886
      %v8888 = vpop.f32.mrf.mxu0
      %v8889 = vadd.f32 0.0, %v8888
      %8890 = vmatmul.bf16.gmra.mxu0 %v8807
      %v8891 = vpop.f32.mrf.mxu0
      %v8892 = vadd.f32 0.0, %v8891
      %v8893 = vpop.f32.mrf.mxu0
      %v8894 = vadd.f32 0.0, %v8893
      %8895 = vmatmul.bf16.gmra.mxu0 %v8810
      %v8896 = vpop.f32.mrf.mxu0
      %v8897 = vadd.f32 0.0, %v8896
      %v8898 = vpop.f32.mrf.mxu0
      %v8899 = vadd.f32 0.0, %v8898
      %8900 = vdwg.mxu0
      %v8901 = vadd.f32 %v8557, %v8822
      %v8902 = vadd.f32 %v8559, %v8824
      %v8903 = vadd.f32 %v8562, %v8827
      %v8904 = vadd.f32 %v8564, %v8829
      %v8905 = vadd.f32 %v8567, %v8832
      %v8906 = vadd.f32 %v8569, %v8834
      %v8907 = vadd.f32 %v8572, %v8837
      %v8908 = vadd.f32 %v8574, %v8839
      %v8909 = vadd.f32 %v8577, %v8842
      %v8910 = vadd.f32 %v8579, %v8844
      %v8911 = vadd.f32 %v8582, %v8847
      %v8912 = vadd.f32 %v8584, %v8849
      %v8913 = vadd.f32 %v8587, %v8852
      %v8914 = vadd.f32 %v8589, %v8854
      %v8915 = vadd.f32 %v8592, %v8857
      %v8916 = vadd.f32 %v8594, %v8859
      %v8917 = vadd.f32 %v8597, %v8862
      %v8918 = vadd.f32 %v8599, %v8864
      %v8919 = vadd.f32 %v8602, %v8867
      %v8920 = vadd.f32 %v8604, %v8869
      %v8921 = vadd.f32 %v8607, %v8872
      %v8922 = vadd.f32 %v8609, %v8874
      %v8923 = vadd.f32 %v8612, %v8877
      %v8924 = vadd.f32 %v8614, %v8879
      %v8925 = vadd.f32 %v8617, %v8882
      %v8926 = vadd.f32 %v8619, %v8884
      %v8927 = vadd.f32 %v8622, %v8887
      %v8928 = vadd.f32 %v8624, %v8889
      %v8929 = vadd.f32 %v8627, %v8892
      %v8930 = vadd.f32 %v8629, %v8894
      %v8931 = vadd.f32 %v8632, %v8897
      %v8932 = vadd.f32 %v8634, %v8899
      %v8933 = vsel %vm1538, %v8233, 0.0
      %v8934 = vsel %vm1539, %v8232, 0.0
      %v8935 = vsel %vm1540, %v8231, 0.0
      %v8936 = vsel %vm1541, %v8230, 0.0
      %v8937 = vsel %vm1542, %v8229, 0.0
      %v8938 = vsel %vm1543, %v8228, 0.0
      %v8939 = vsel %vm1544, %v8227, 0.0
      %v8940 = vsel %vm1545, %v8226, 0.0
      %v8941 = vsel %vm1546, %v8225, 0.0
      %v8942 = vsel %vm1547, %v8224, 0.0
      %v8943 = vsel %vm1548, %v8223, 0.0
      %v8944 = vsel %vm1549, %v8222, 0.0
      %v8945 = vsel %vm1550, %v8221, 0.0
      %v8946 = vsel %vm1551, %v8220, 0.0
      %v8947 = vsel %vm1552, %v8219, 0.0
      %v8948 = vsel %vm1553, %v8218, 0.0
      %v8949 = vsel %vm1554, %v8217, 0.0
      %v8950 = vsel %vm1555, %v8216, 0.0
      %v8951 = vsel %vm1556, %v8215, 0.0
      %v8952 = vsel %vm1557, %v8214, 0.0
      %v8953 = vsel %vm1558, %v8213, 0.0
      %v8954 = vsel %vm1559, %v8212, 0.0
      %v8955 = vsel %vm1560, %v8211, 0.0
      %v8956 = vsel %vm1561, %v8210, 0.0
      %v8957 = vsel %vm1562, %v8209, 0.0
      %v8958 = vsel %vm1563, %v8208, 0.0
      %v8959 = vsel %vm1564, %v8207, 0.0
      %v8960 = vsel %vm1565, %v8206, 0.0
      %v8961 = vsel %vm1566, %v8205, 0.0
      %v8962 = vsel %vm1567, %v8204, 0.0
      %v8963 = vsel %vm1568, %v8203, 0.0
      %v8964 = vsel %vm1569, %v8202, 0.0
      %v8965 = vpack.c.bf16 %v8934, %v8933
      %v8966 = vpack.c.bf16 %v8936, %v8935
      %v8967 = vpack.c.bf16 %v8938, %v8937
      %v8968 = vpack.c.bf16 %v8940, %v8939
      %v8969 = vpack.c.bf16 %v8942, %v8941
      %v8970 = vpack.c.bf16 %v8944, %v8943
      %v8971 = vpack.c.bf16 %v8946, %v8945
      %v8972 = vpack.c.bf16 %v8948, %v8947
      %v8973 = vpack.c.bf16 %v8950, %v8949
      %v8974 = vpack.c.bf16 %v8952, %v8951
      %v8975 = vpack.c.bf16 %v8954, %v8953
      %v8976 = vpack.c.bf16 %v8956, %v8955
      %v8977 = vpack.c.bf16 %v8958, %v8957
      %v8978 = vpack.c.bf16 %v8960, %v8959
      %v8979 = vpack.c.bf16 %v8962, %v8961
      %v8980 = vpack.c.bf16 %v8964, %v8963
      %v8981 = vld [vmem:[%s4 + $0x30] sm:$0xf]
      %v8982 = vld [vmem:[%s4 + $0x34] sm:$0xf]
      %v8983 = vld [vmem:[%s4 + $0x38] sm:$0xf]
      %v8984 = vld [vmem:[%s4 + $0x3c] sm:$0xf]
      %v8989 = vunpack.c.l.b16 %v8981
      %v8990 = vunpack.c.l.b16 %v8982
      %v8991 = vunpack.c.l.b16 %v8983
      %v8992 = vunpack.c.l.b16 %v8984
      %v8993 = vpack.c.b16 %v8990, %v8989
      %v8994 = vpack.c.b16 %v8992, %v8991
      %v8998 = vsel %vm3529, %v8965, 0
      %v9001 = vsel %vm3529, %v8966, 0
      %v9004 = vsel %vm3529, %v8967, 0
      %v9007 = vsel %vm3529, %v8968, 0
      %v9010 = vsel %vm3529, %v8969, 0
      %v9013 = vsel %vm3529, %v8970, 0
      %v9016 = vsel %vm3529, %v8971, 0
      %v9019 = vsel %vm3529, %v8972, 0
      %v9022 = vsel %vm3529, %v8973, 0
      %v9025 = vsel %vm3529, %v8974, 0
      %v9028 = vsel %vm3529, %v8975, 0
      %v9031 = vsel %vm3529, %v8976, 0
      %v9034 = vsel %vm3529, %v8977, 0
      %v9037 = vsel %vm3529, %v8978, 0
      %v9040 = vsel %vm3529, %v8979, 0
      %v9043 = vsel %vm3529, %v8980, 0
      %9045 = vmatpush.bf16.msra.mxu0 0
      %9046 = vmatpush.bf16.msra.mxu0 0
      %9047 = vmatpush.bf16.msra.mxu0 0
      %9048 = vmatpush.bf16.msra.mxu0 0
      %9049 = vmatpush.bf16.msra.mxu0 0
      %9050 = vmatpush.bf16.msra.mxu0 0
      %9051 = vmatpush.bf16.msra.mxu0 %v8994
      %9052 = vmatpush.bf16.msra.mxu0 %v8993
      %9053 = vmatmul.bf16.gmra.mxu0 %v8998
      %v9054 = vpop.f32.mrf.mxu0
      %v9055 = vadd.f32 0.0, %v9054
      %v9056 = vpop.f32.mrf.mxu0
      %v9057 = vadd.f32 0.0, %v9056
      %9058 = vmatmul.bf16.gmra.mxu0 %v9001
      %v9059 = vpop.f32.mrf.mxu0
      %v9060 = vadd.f32 0.0, %v9059
      %v9061 = vpop.f32.mrf.mxu0
      %v9062 = vadd.f32 0.0, %v9061
      %9063 = vmatmul.bf16.gmra.mxu0 %v9004
      %v9064 = vpop.f32.mrf.mxu0
      %v9065 = vadd.f32 0.0, %v9064
      %v9066 = vpop.f32.mrf.mxu0
      %v9067 = vadd.f32 0.0, %v9066
      %9068 = vmatmul.bf16.gmra.mxu0 %v9007
      %v9069 = vpop.f32.mrf.mxu0
      %v9070 = vadd.f32 0.0, %v9069
      %v9071 = vpop.f32.mrf.mxu0
      %v9072 = vadd.f32 0.0, %v9071
      %9073 = vmatmul.bf16.gmra.mxu0 %v9010
      %v9074 = vpop.f32.mrf.mxu0
      %v9075 = vadd.f32 0.0, %v9074
      %v9076 = vpop.f32.mrf.mxu0
      %v9077 = vadd.f32 0.0, %v9076
      %9078 = vmatmul.bf16.gmra.mxu0 %v9013
      %v9079 = vpop.f32.mrf.mxu0
      %v9080 = vadd.f32 0.0, %v9079
      %v9081 = vpop.f32.mrf.mxu0
      %v9082 = vadd.f32 0.0, %v9081
      %9083 = vmatmul.bf16.gmra.mxu0 %v9016
      %v9084 = vpop.f32.mrf.mxu0
      %v9085 = vadd.f32 0.0, %v9084
      %v9086 = vpop.f32.mrf.mxu0
      %v9087 = vadd.f32 0.0, %v9086
      %9088 = vmatmul.bf16.gmra.mxu0 %v9019
      %v9089 = vpop.f32.mrf.mxu0
      %v9090 = vadd.f32 0.0, %v9089
      %v9091 = vpop.f32.mrf.mxu0
      %v9092 = vadd.f32 0.0, %v9091
      %9093 = vmatmul.bf16.gmra.mxu0 %v9022
      %v9094 = vpop.f32.mrf.mxu0
      %v9095 = vadd.f32 0.0, %v9094
      %v9096 = vpop.f32.mrf.mxu0
      %v9097 = vadd.f32 0.0, %v9096
      %9098 = vmatmul.bf16.gmra.mxu0 %v9025
      %v9099 = vpop.f32.mrf.mxu0
      %v9100 = vadd.f32 0.0, %v9099
      %v9101 = vpop.f32.mrf.mxu0
      %v9102 = vadd.f32 0.0, %v9101
      %9103 = vmatmul.bf16.gmra.mxu0 %v9028
      %v9104 = vpop.f32.mrf.mxu0
      %v9105 = vadd.f32 0.0, %v9104
      %v9106 = vpop.f32.mrf.mxu0
      %v9107 = vadd.f32 0.0, %v9106
      %9108 = vmatmul.bf16.gmra.mxu0 %v9031
      %v9109 = vpop.f32.mrf.mxu0
      %v9110 = vadd.f32 0.0, %v9109
      %v9111 = vpop.f32.mrf.mxu0
      %v9112 = vadd.f32 0.0, %v9111
      %9113 = vmatmul.bf16.gmra.mxu0 %v9034
      %v9114 = vpop.f32.mrf.mxu0
      %v9115 = vadd.f32 0.0, %v9114
      %v9116 = vpop.f32.mrf.mxu0
      %v9117 = vadd.f32 0.0, %v9116
      %9118 = vmatmul.bf16.gmra.mxu0 %v9037
      %v9119 = vpop.f32.mrf.mxu0
      %v9120 = vadd.f32 0.0, %v9119
      %v9121 = vpop.f32.mrf.mxu0
      %v9122 = vadd.f32 0.0, %v9121
      %9123 = vmatmul.bf16.gmra.mxu0 %v9040
      %v9124 = vpop.f32.mrf.mxu0
      %v9125 = vadd.f32 0.0, %v9124
      %v9126 = vpop.f32.mrf.mxu0
      %v9127 = vadd.f32 0.0, %v9126
      %9128 = vmatmul.bf16.gmra.mxu0 %v9043
      %v9129 = vpop.f32.mrf.mxu0
      %v9130 = vadd.f32 0.0, %v9129
      %v9131 = vpop.f32.mrf.mxu0
      %v9132 = vadd.f32 0.0, %v9131
      %9133 = vdwg.mxu0
      %v9134 = vadd.f32 %v8901, %v9055
      %v9135 = vadd.f32 %v8902, %v9057
      %v9136 = vadd.f32 %v8903, %v9060
      %v9137 = vadd.f32 %v8904, %v9062
      %v9138 = vadd.f32 %v8905, %v9065
      %v9139 = vadd.f32 %v8906, %v9067
      %v9140 = vadd.f32 %v8907, %v9070
      %v9141 = vadd.f32 %v8908, %v9072
      %v9142 = vadd.f32 %v8909, %v9075
      %v9143 = vadd.f32 %v8910, %v9077
      %v9144 = vadd.f32 %v8911, %v9080
      %v9145 = vadd.f32 %v8912, %v9082
      %v9146 = vadd.f32 %v8913, %v9085
      %v9147 = vadd.f32 %v8914, %v9087
      %v9148 = vadd.f32 %v8915, %v9090
      %v9149 = vadd.f32 %v8916, %v9092
      %v9150 = vadd.f32 %v8917, %v9095
      %v9151 = vadd.f32 %v8918, %v9097
      %v9152 = vadd.f32 %v8919, %v9100
      %v9153 = vadd.f32 %v8920, %v9102
      %v9154 = vadd.f32 %v8921, %v9105
      %v9155 = vadd.f32 %v8922, %v9107
      %v9156 = vadd.f32 %v8923, %v9110
      %v9157 = vadd.f32 %v8924, %v9112
      %v9158 = vadd.f32 %v8925, %v9115
      %v9159 = vadd.f32 %v8926, %v9117
      %v9160 = vadd.f32 %v8927, %v9120
      %v9161 = vadd.f32 %v8928, %v9122
      %v9162 = vadd.f32 %v8929, %v9125
      %v9163 = vadd.f32 %v8930, %v9127
      %v9164 = vadd.f32 %v8931, %v9130
      %v9165 = vadd.f32 %v8932, %v9132
      %v9166 = vpack.c.bf16 %v8139, %v8138
      %v9167 = vpack.c.bf16 %v8141, %v8140
      %v9168 = vpack.c.bf16 %v8143, %v8142
      %v9169 = vpack.c.bf16 %v8145, %v8144
      %v9170 = vpack.c.bf16 %v8147, %v8146
      %v9171 = vpack.c.bf16 %v8149, %v8148
      %v9172 = vpack.c.bf16 %v8151, %v8150
      %v9173 = vpack.c.bf16 %v8153, %v8152
      %v9174 = vpack.c.bf16 %v8155, %v8154
      %v9175 = vpack.c.bf16 %v8157, %v8156
      %v9176 = vpack.c.bf16 %v8159, %v8158
      %v9177 = vpack.c.bf16 %v8161, %v8160
      %v9178 = vpack.c.bf16 %v8163, %v8162
      %v9179 = vpack.c.bf16 %v8165, %v8164
      %v9180 = vpack.c.bf16 %v8167, %v8166
      %v9181 = vpack.c.bf16 %v8169, %v8168
      %v9182 = vld [vmem:[%s4 + $0x40] sm:$0xf]
      %v9183 = vld [vmem:[%s4 + $0x44] sm:$0xf]
      %v9184 = vld [vmem:[%s4 + $0x48] sm:$0xf]
      %v9185 = vld [vmem:[%s4 + $0x4c] sm:$0xf]
      %v9190 = vunpack.c.l.b16 %v9182
      %v9191 = vunpack.c.l.b16 %v9183
      %v9192 = vunpack.c.l.b16 %v9184
      %v9193 = vunpack.c.l.b16 %v9185
      %v9194 = vpack.c.b16 %v9191, %v9190
      %v9195 = vpack.c.b16 %v9193, %v9192
      %v9199 = vsel %vm3529, %v9166, 0
      %v9202 = vsel %vm3529, %v9167, 0
      %v9205 = vsel %vm3529, %v9168, 0
      %v9208 = vsel %vm3529, %v9169, 0
      %v9211 = vsel %vm3529, %v9170, 0
      %v9214 = vsel %vm3529, %v9171, 0
      %v9217 = vsel %vm3529, %v9172, 0
      %v9220 = vsel %vm3529, %v9173, 0
      %v9223 = vsel %vm3529, %v9174, 0
      %v9226 = vsel %vm3529, %v9175, 0
      %v9229 = vsel %vm3529, %v9176, 0
      %v9232 = vsel %vm3529, %v9177, 0
      %v9235 = vsel %vm3529, %v9178, 0
      %v9238 = vsel %vm3529, %v9179, 0
      %v9241 = vsel %vm3529, %v9180, 0
      %v9244 = vsel %vm3529, %v9181, 0
      %9246 = vmatpush.bf16.msra.mxu0 0
      %9247 = vmatpush.bf16.msra.mxu0 0
      %9248 = vmatpush.bf16.msra.mxu0 0
      %9249 = vmatpush.bf16.msra.mxu0 0
      %9250 = vmatpush.bf16.msra.mxu0 0
      %9251 = vmatpush.bf16.msra.mxu0 0
      %9252 = vmatpush.bf16.msra.mxu0 %v9195
      %9253 = vmatpush.bf16.msra.mxu0 %v9194
      %9254 = vmatmul.bf16.gmra.mxu0 %v9199
      %v9255 = vpop.f32.mrf.mxu0
      %v9256 = vadd.f32 0.0, %v9255
      %v9257 = vpop.f32.mrf.mxu0
      %v9258 = vadd.f32 0.0, %v9257
      %9259 = vmatmul.bf16.gmra.mxu0 %v9202
      %v9260 = vpop.f32.mrf.mxu0
      %v9261 = vadd.f32 0.0, %v9260
      %v9262 = vpop.f32.mrf.mxu0
      %v9263 = vadd.f32 0.0, %v9262
      %9264 = vmatmul.bf16.gmra.mxu0 %v9205
      %v9265 = vpop.f32.mrf.mxu0
      %v9266 = vadd.f32 0.0, %v9265
      %v9267 = vpop.f32.mrf.mxu0
      %v9268 = vadd.f32 0.0, %v9267
      %9269 = vmatmul.bf16.gmra.mxu0 %v9208
      %v9270 = vpop.f32.mrf.mxu0
      %v9271 = vadd.f32 0.0, %v9270
      %v9272 = vpop.f32.mrf.mxu0
      %v9273 = vadd.f32 0.0, %v9272
      %9274 = vmatmul.bf16.gmra.mxu0 %v9211
      %v9275 = vpop.f32.mrf.mxu0
      %v9276 = vadd.f32 0.0, %v9275
      %v9277 = vpop.f32.mrf.mxu0
      %v9278 = vadd.f32 0.0, %v9277
      %9279 = vmatmul.bf16.gmra.mxu0 %v9214
      %v9280 = vpop.f32.mrf.mxu0
      %v9281 = vadd.f32 0.0, %v9280
      %v9282 = vpop.f32.mrf.mxu0
      %v9283 = vadd.f32 0.0, %v9282
      %9284 = vmatmul.bf16.gmra.mxu0 %v9217
      %v9285 = vpop.f32.mrf.mxu0
      %v9286 = vadd.f32 0.0, %v9285
      %v9287 = vpop.f32.mrf.mxu0
      %v9288 = vadd.f32 0.0, %v9287
      %9289 = vmatmul.bf16.gmra.mxu0 %v9220
      %v9290 = vpop.f32.mrf.mxu0
      %v9291 = vadd.f32 0.0, %v9290
      %v9292 = vpop.f32.mrf.mxu0
      %v9293 = vadd.f32 0.0, %v9292
      %9294 = vmatmul.bf16.gmra.mxu0 %v9223
      %v9295 = vpop.f32.mrf.mxu0
      %v9296 = vadd.f32 0.0, %v9295
      %v9297 = vpop.f32.mrf.mxu0
      %v9298 = vadd.f32 0.0, %v9297
      %9299 = vmatmul.bf16.gmra.mxu0 %v9226
      %v9300 = vpop.f32.mrf.mxu0
      %v9301 = vadd.f32 0.0, %v9300
      %v9302 = vpop.f32.mrf.mxu0
      %v9303 = vadd.f32 0.0, %v9302
      %9304 = vmatmul.bf16.gmra.mxu0 %v9229
      %v9305 = vpop.f32.mrf.mxu0
      %v9306 = vadd.f32 0.0, %v9305
      %v9307 = vpop.f32.mrf.mxu0
      %v9308 = vadd.f32 0.0, %v9307
      %9309 = vmatmul.bf16.gmra.mxu0 %v9232
      %v9310 = vpop.f32.mrf.mxu0
      %v9311 = vadd.f32 0.0, %v9310
      %v9312 = vpop.f32.mrf.mxu0
      %v9313 = vadd.f32 0.0, %v9312
      %9314 = vmatmul.bf16.gmra.mxu0 %v9235
      %v9315 = vpop.f32.mrf.mxu0
      %v9316 = vadd.f32 0.0, %v9315
      %v9317 = vpop.f32.mrf.mxu0
      %v9318 = vadd.f32 0.0, %v9317
      %9319 = vmatmul.bf16.gmra.mxu0 %v9238
      %v9320 = vpop.f32.mrf.mxu0
      %v9321 = vadd.f32 0.0, %v9320
      %v9322 = vpop.f32.mrf.mxu0
      %v9323 = vadd.f32 0.0, %v9322
      %9324 = vmatmul.bf16.gmra.mxu0 %v9241
      %v9325 = vpop.f32.mrf.mxu0
      %v9326 = vadd.f32 0.0, %v9325
      %v9327 = vpop.f32.mrf.mxu0
      %v9328 = vadd.f32 0.0, %v9327
      %9329 = vmatmul.bf16.gmra.mxu0 %v9244
      %v9330 = vpop.f32.mrf.mxu0
      %v9331 = vadd.f32 0.0, %v9330
      %v9332 = vpop.f32.mrf.mxu0
      %v9333 = vadd.f32 0.0, %v9332
      %9334 = vdwg.mxu0
      %v9335 = vadd.f32 %v9134, %v9256
      %v9336 = vadd.f32 %v9135, %v9258
      %v9337 = vadd.f32 %v9136, %v9261
      %v9338 = vadd.f32 %v9137, %v9263
      %v9339 = vadd.f32 %v9138, %v9266
      %v9340 = vadd.f32 %v9139, %v9268
      %v9341 = vadd.f32 %v9140, %v9271
      %v9342 = vadd.f32 %v9141, %v9273
      %v9343 = vadd.f32 %v9142, %v9276
      %v9344 = vadd.f32 %v9143, %v9278
      %v9345 = vadd.f32 %v9144, %v9281
      %v9346 = vadd.f32 %v9145, %v9283
      %v9347 = vadd.f32 %v9146, %v9286
      %v9348 = vadd.f32 %v9147, %v9288
      %v9349 = vadd.f32 %v9148, %v9291
      %v9350 = vadd.f32 %v9149, %v9293
      %v9351 = vadd.f32 %v9150, %v9296
      %v9352 = vadd.f32 %v9151, %v9298
      %v9353 = vadd.f32 %v9152, %v9301
      %v9354 = vadd.f32 %v9153, %v9303
      %v9355 = vadd.f32 %v9154, %v9306
      %v9356 = vadd.f32 %v9155, %v9308
      %v9357 = vadd.f32 %v9156, %v9311
      %v9358 = vadd.f32 %v9157, %v9313
      %v9359 = vadd.f32 %v9158, %v9316
      %v9360 = vadd.f32 %v9159, %v9318
      %v9361 = vadd.f32 %v9160, %v9321
      %v9362 = vadd.f32 %v9161, %v9323
      %v9363 = vadd.f32 %v9162, %v9326
      %v9364 = vadd.f32 %v9163, %v9328
      %v9365 = vadd.f32 %v9164, %v9331
      %v9366 = vadd.f32 %v9165, %v9333
      %v9367 = vsel %vm1730, %v8698, 0.0
      %v9368 = vsel %vm1731, %v8697, 0.0
      %v9369 = vsel %vm1732, %v8696, 0.0
      %v9370 = vsel %vm1733, %v8695, 0.0
      %v9371 = vsel %vm1734, %v8694, 0.0
      %v9372 = vsel %vm1735, %v8693, 0.0
      %v9373 = vsel %vm1736, %v8692, 0.0
      %v9374 = vsel %vm1737, %v8691, 0.0
      %v9375 = vsel %vm1738, %v8690, 0.0
      %v9376 = vsel %vm1739, %v8689, 0.0
      %v9377 = vsel %vm1740, %v8688, 0.0
      %v9378 = vsel %vm1741, %v8687, 0.0
      %v9379 = vsel %vm1742, %v8686, 0.0
      %v9380 = vsel %vm1743, %v8685, 0.0
      %v9381 = vsel %vm1744, %v8684, 0.0
      %v9382 = vsel %vm1745, %v8683, 0.0
      %v9383 = vsel %vm1746, %v8682, 0.0
      %v9384 = vsel %vm1747, %v8681, 0.0
      %v9385 = vsel %vm1748, %v8680, 0.0
      %v9386 = vsel %vm1749, %v8679, 0.0
      %v9387 = vsel %vm1750, %v8678, 0.0
      %v9388 = vsel %vm1751, %v8677, 0.0
      %v9389 = vsel %vm1752, %v8676, 0.0
      %v9390 = vsel %vm1753, %v8675, 0.0
      %v9391 = vsel %vm1754, %v8674, 0.0
      %v9392 = vsel %vm1755, %v8673, 0.0
      %v9393 = vsel %vm1756, %v8672, 0.0
      %v9394 = vsel %vm1757, %v8671, 0.0
      %v9395 = vsel %vm1758, %v8670, 0.0
      %v9396 = vsel %vm1759, %v8669, 0.0
      %v9397 = vsel %vm1760, %v8668, 0.0
      %v9398 = vsel %vm1761, %v8699, 0.0
      %v9399 = vpack.c.bf16 %v9368, %v9367
      %v9400 = vpack.c.bf16 %v9370, %v9369
      %v9401 = vpack.c.bf16 %v9372, %v9371
      %v9402 = vpack.c.bf16 %v9374, %v9373
      %v9403 = vpack.c.bf16 %v9376, %v9375
      %v9404 = vpack.c.bf16 %v9378, %v9377
      %v9405 = vpack.c.bf16 %v9380, %v9379
      %v9406 = vpack.c.bf16 %v9382, %v9381
      %v9407 = vpack.c.bf16 %v9384, %v9383
      %v9408 = vpack.c.bf16 %v9386, %v9385
      %v9409 = vpack.c.bf16 %v9388, %v9387
      %v9410 = vpack.c.bf16 %v9390, %v9389
      %v9411 = vpack.c.bf16 %v9392, %v9391
      %v9412 = vpack.c.bf16 %v9394, %v9393
      %v9413 = vpack.c.bf16 %v9396, %v9395
      %v9414 = vpack.c.bf16 %v9398, %v9397
      %v9415 = vld [vmem:[%s4 + $0x50] sm:$0xf]
      %v9416 = vld [vmem:[%s4 + $0x54] sm:$0xf]
      %v9417 = vld [vmem:[%s4 + $0x58] sm:$0xf]
      %v9418 = vld [vmem:[%s4 + $0x5c] sm:$0xf]
      %v9423 = vunpack.c.l.b16 %v9415
      %v9424 = vunpack.c.l.b16 %v9416
      %v9425 = vunpack.c.l.b16 %v9417
      %v9426 = vunpack.c.l.b16 %v9418
      %v9427 = vpack.c.b16 %v9424, %v9423
      %v9428 = vpack.c.b16 %v9426, %v9425
      %v9432 = vsel %vm3529, %v9399, 0
      %v9435 = vsel %vm3529, %v9400, 0
      %v9438 = vsel %vm3529, %v9401, 0
      %v9441 = vsel %vm3529, %v9402, 0
      %v9444 = vsel %vm3529, %v9403, 0
      %v9447 = vsel %vm3529, %v9404, 0
      %v9450 = vsel %vm3529, %v9405, 0
      %v9453 = vsel %vm3529, %v9406, 0
      %v9456 = vsel %vm3529, %v9407, 0
      %v9459 = vsel %vm3529, %v9408, 0
      %v9462 = vsel %vm3529, %v9409, 0
      %v9465 = vsel %vm3529, %v9410, 0
      %v9468 = vsel %vm3529, %v9411, 0
      %v9471 = vsel %vm3529, %v9412, 0
      %v9474 = vsel %vm3529, %v9413, 0
      %v9477 = vsel %vm3529, %v9414, 0
      %9479 = vmatpush.bf16.msra.mxu0 0
      %9480 = vmatpush.bf16.msra.mxu0 0
      %9481 = vmatpush.bf16.msra.mxu0 0
      %9482 = vmatpush.bf16.msra.mxu0 0
      %9483 = vmatpush.bf16.msra.mxu0 0
      %9484 = vmatpush.bf16.msra.mxu0 0
      %9485 = vmatpush.bf16.msra.mxu0 %v9428
      %9486 = vmatpush.bf16.msra.mxu0 %v9427
      %9487 = vmatmul.bf16.gmra.mxu0 %v9432
      %v9488 = vpop.f32.mrf.mxu0
      %v9489 = vadd.f32 0.0, %v9488
      %v9490 = vpop.f32.mrf.mxu0
      %v9491 = vadd.f32 0.0, %v9490
      %9492 = vmatmul.bf16.gmra.mxu0 %v9435
      %v9493 = vpop.f32.mrf.mxu0
      %v9494 = vadd.f32 0.0, %v9493
      %v9495 = vpop.f32.mrf.mxu0
      %v9496 = vadd.f32 0.0, %v9495
      %9497 = vmatmul.bf16.gmra.mxu0 %v9438
      %v9498 = vpop.f32.mrf.mxu0
      %v9499 = vadd.f32 0.0, %v9498
      %v9500 = vpop.f32.mrf.mxu0
      %v9501 = vadd.f32 0.0, %v9500
      %9502 = vmatmul.bf16.gmra.mxu0 %v9441
      %v9503 = vpop.f32.mrf.mxu0
      %v9504 = vadd.f32 0.0, %v9503
      %v9505 = vpop.f32.mrf.mxu0
      %v9506 = vadd.f32 0.0, %v9505
      %9507 = vmatmul.bf16.gmra.mxu0 %v9444
      %v9508 = vpop.f32.mrf.mxu0
      %v9509 = vadd.f32 0.0, %v9508
      %v9510 = vpop.f32.mrf.mxu0
      %v9511 = vadd.f32 0.0, %v9510
      %9512 = vmatmul.bf16.gmra.mxu0 %v9447
      %v9513 = vpop.f32.mrf.mxu0
      %v9514 = vadd.f32 0.0, %v9513
      %v9515 = vpop.f32.mrf.mxu0
      %v9516 = vadd.f32 0.0, %v9515
      %9517 = vmatmul.bf16.gmra.mxu0 %v9450
      %v9518 = vpop.f32.mrf.mxu0
      %v9519 = vadd.f32 0.0, %v9518
      %v9520 = vpop.f32.mrf.mxu0
      %v9521 = vadd.f32 0.0, %v9520
      %9522 = vmatmul.bf16.gmra.mxu0 %v9453
      %v9523 = vpop.f32.mrf.mxu0
      %v9524 = vadd.f32 0.0, %v9523
      %v9525 = vpop.f32.mrf.mxu0
      %v9526 = vadd.f32 0.0, %v9525
      %9527 = vmatmul.bf16.gmra.mxu0 %v9456
      %v9528 = vpop.f32.mrf.mxu0
      %v9529 = vadd.f32 0.0, %v9528
      %v9530 = vpop.f32.mrf.mxu0
      %v9531 = vadd.f32 0.0, %v9530
      %9532 = vmatmul.bf16.gmra.mxu0 %v9459
      %v9533 = vpop.f32.mrf.mxu0
      %v9534 = vadd.f32 0.0, %v9533
      %v9535 = vpop.f32.mrf.mxu0
      %v9536 = vadd.f32 0.0, %v9535
      %9537 = vmatmul.bf16.gmra.mxu0 %v9462
      %v9538 = vpop.f32.mrf.mxu0
      %v9539 = vadd.f32 0.0, %v9538
      %v9540 = vpop.f32.mrf.mxu0
      %v9541 = vadd.f32 0.0, %v9540
      %9542 = vmatmul.bf16.gmra.mxu0 %v9465
      %v9543 = vpop.f32.mrf.mxu0
      %v9544 = vadd.f32 0.0, %v9543
      %v9545 = vpop.f32.mrf.mxu0
      %v9546 = vadd.f32 0.0, %v9545
      %9547 = vmatmul.bf16.gmra.mxu0 %v9468
      %v9548 = vpop.f32.mrf.mxu0
      %v9549 = vadd.f32 0.0, %v9548
      %v9550 = vpop.f32.mrf.mxu0
      %v9551 = vadd.f32 0.0, %v9550
      %9552 = vmatmul.bf16.gmra.mxu0 %v9471
      %v9553 = vpop.f32.mrf.mxu0
      %v9554 = vadd.f32 0.0, %v9553
      %v9555 = vpop.f32.mrf.mxu0
      %v9556 = vadd.f32 0.0, %v9555
      %9557 = vmatmul.bf16.gmra.mxu0 %v9474
      %v9558 = vpop.f32.mrf.mxu0
      %v9559 = vadd.f32 0.0, %v9558
      %v9560 = vpop.f32.mrf.mxu0
      %v9561 = vadd.f32 0.0, %v9560
      %9562 = vmatmul.bf16.gmra.mxu0 %v9477
      %v9563 = vpop.f32.mrf.mxu0
      %v9564 = vadd.f32 0.0, %v9563
      %v9565 = vpop.f32.mrf.mxu0
      %v9566 = vadd.f32 0.0, %v9565
      %9567 = vdwg.mxu0
      %v9568 = vadd.f32 %v9335, %v9489
      %v9569 = vadd.f32 %v9336, %v9491
      %v9570 = vadd.f32 %v9337, %v9494
      %v9571 = vadd.f32 %v9338, %v9496
      %v9572 = vadd.f32 %v9339, %v9499
      %v9573 = vadd.f32 %v9340, %v9501
      %v9574 = vadd.f32 %v9341, %v9504
      %v9575 = vadd.f32 %v9342, %v9506
      %v9576 = vadd.f32 %v9343, %v9509
      %v9577 = vadd.f32 %v9344, %v9511
      %v9578 = vadd.f32 %v9345, %v9514
      %v9579 = vadd.f32 %v9346, %v9516
      %v9580 = vadd.f32 %v9347, %v9519
      %v9581 = vadd.f32 %v9348, %v9521
      %v9582 = vadd.f32 %v9349, %v9524
      %v9583 = vadd.f32 %v9350, %v9526
      %v9584 = vadd.f32 %v9351, %v9529
      %v9585 = vadd.f32 %v9352, %v9531
      %v9586 = vadd.f32 %v9353, %v9534
      %v9587 = vadd.f32 %v9354, %v9536
      %v9588 = vadd.f32 %v9355, %v9539
      %v9589 = vadd.f32 %v9356, %v9541
      %v9590 = vadd.f32 %v9357, %v9544
      %v9591 = vadd.f32 %v9358, %v9546
      %v9592 = vadd.f32 %v9359, %v9549
      %v9593 = vadd.f32 %v9360, %v9551
      %v9594 = vadd.f32 %v9361, %v9554
      %v9595 = vadd.f32 %v9362, %v9556
      %v9596 = vadd.f32 %v9363, %v9559
      %v9597 = vadd.f32 %v9364, %v9561
      %v9598 = vadd.f32 %v9365, %v9564
      %v9599 = vadd.f32 %v9366, %v9566
      %v9600 = vsel %vm1922, %v8231, 0.0
      %v9601 = vsel %vm1923, %v8230, 0.0
      %v9602 = vsel %vm1924, %v8229, 0.0
      %v9603 = vsel %vm1925, %v8228, 0.0
      %v9604 = vsel %vm1926, %v8227, 0.0
      %v9605 = vsel %vm1927, %v8226, 0.0
      %v9606 = vsel %vm1928, %v8225, 0.0
      %v9607 = vsel %vm1929, %v8224, 0.0
      %v9608 = vsel %vm1930, %v8223, 0.0
      %v9609 = vsel %vm1931, %v8222, 0.0
      %v9610 = vsel %vm1932, %v8221, 0.0
      %v9611 = vsel %vm1933, %v8220, 0.0
      %v9612 = vsel %vm1934, %v8219, 0.0
      %v9613 = vsel %vm1935, %v8218, 0.0
      %v9614 = vsel %vm1936, %v8217, 0.0
      %v9615 = vsel %vm1937, %v8216, 0.0
      %v9616 = vsel %vm1938, %v8215, 0.0
      %v9617 = vsel %vm1939, %v8214, 0.0
      %v9618 = vsel %vm1940, %v8213, 0.0
      %v9619 = vsel %vm1941, %v8212, 0.0
      %v9620 = vsel %vm1942, %v8211, 0.0
      %v9621 = vsel %vm1943, %v8210, 0.0
      %v9622 = vsel %vm1944, %v8209, 0.0
      %v9623 = vsel %vm1945, %v8208, 0.0
      %v9624 = vsel %vm1946, %v8207, 0.0
      %v9625 = vsel %vm1947, %v8206, 0.0
      %v9626 = vsel %vm1948, %v8205, 0.0
      %v9627 = vsel %vm1949, %v8204, 0.0
      %v9628 = vsel %vm1950, %v8203, 0.0
      %v9629 = vsel %vm1951, %v8202, 0.0
      %v9630 = vsel %vm1952, %v8233, 0.0
      %v9631 = vsel %vm1953, %v8232, 0.0
      %v9632 = vpack.c.bf16 %v9601, %v9600
      %v9633 = vpack.c.bf16 %v9603, %v9602
      %v9634 = vpack.c.bf16 %v9605, %v9604
      %v9635 = vpack.c.bf16 %v9607, %v9606
      %v9636 = vpack.c.bf16 %v9609, %v9608
      %v9637 = vpack.c.bf16 %v9611, %v9610
      %v9638 = vpack.c.bf16 %v9613, %v9612
      %v9639 = vpack.c.bf16 %v9615, %v9614
      %v9640 = vpack.c.bf16 %v9617, %v9616
      %v9641 = vpack.c.bf16 %v9619, %v9618
      %v9642 = vpack.c.bf16 %v9621, %v9620
      %v9643 = vpack.c.bf16 %v9623, %v9622
      %v9644 = vpack.c.bf16 %v9625, %v9624
      %v9645 = vpack.c.bf16 %v9627, %v9626
      %v9646 = vpack.c.bf16 %v9629, %v9628
      %v9647 = vpack.c.bf16 %v9631, %v9630
      %v9648 = vld [vmem:[%s4 + $0x60] sm:$0xf]
      %v9649 = vld [vmem:[%s4 + $0x64] sm:$0xf]
      %v9650 = vld [vmem:[%s4 + $0x68] sm:$0xf]
      %v9651 = vld [vmem:[%s4 + $0x6c] sm:$0xf]
      %v9656 = vunpack.c.l.b16 %v9648
      %v9657 = vunpack.c.l.b16 %v9649
      %v9658 = vunpack.c.l.b16 %v9650
      %v9659 = vunpack.c.l.b16 %v9651
      %v9660 = vpack.c.b16 %v9657, %v9656
      %v9661 = vpack.c.b16 %v9659, %v9658
      %v9665 = vsel %vm3529, %v9632, 0
      %v9668 = vsel %vm3529, %v9633, 0
      %v9671 = vsel %vm3529, %v9634, 0
      %v9674 = vsel %vm3529, %v9635, 0
      %v9677 = vsel %vm3529, %v9636, 0
      %v9680 = vsel %vm3529, %v9637, 0
      %v9683 = vsel %vm3529, %v9638, 0
      %v9686 = vsel %vm3529, %v9639, 0
      %v9689 = vsel %vm3529, %v9640, 0
      %v9692 = vsel %vm3529, %v9641, 0
      %v9695 = vsel %vm3529, %v9642, 0
      %v9698 = vsel %vm3529, %v9643, 0
      %v9701 = vsel %vm3529, %v9644, 0
      %v9704 = vsel %vm3529, %v9645, 0
      %v9707 = vsel %vm3529, %v9646, 0
      %v9710 = vsel %vm3529, %v9647, 0
      %9712 = vmatpush.bf16.msra.mxu0 0
      %9713 = vmatpush.bf16.msra.mxu0 0
      %9714 = vmatpush.bf16.msra.mxu0 0
      %9715 = vmatpush.bf16.msra.mxu0 0
      %9716 = vmatpush.bf16.msra.mxu0 0
      %9717 = vmatpush.bf16.msra.mxu0 0
      %9718 = vmatpush.bf16.msra.mxu0 %v9661
      %9719 = vmatpush.bf16.msra.mxu0 %v9660
      %9720 = vmatmul.bf16.gmra.mxu0 %v9665
      %v9721 = vpop.f32.mrf.mxu0
      %v9722 = vadd.f32 0.0, %v9721
      %v9723 = vpop.f32.mrf.mxu0
      %v9724 = vadd.f32 0.0, %v9723
      %9725 = vmatmul.bf16.gmra.mxu0 %v9668
      %v9726 = vpop.f32.mrf.mxu0
      %v9727 = vadd.f32 0.0, %v9726
      %v9728 = vpop.f32.mrf.mxu0
      %v9729 = vadd.f32 0.0, %v9728
      %9730 = vmatmul.bf16.gmra.mxu0 %v9671
      %v9731 = vpop.f32.mrf.mxu0
      %v9732 = vadd.f32 0.0, %v9731
      %v9733 = vpop.f32.mrf.mxu0
      %v9734 = vadd.f32 0.0, %v9733
      %9735 = vmatmul.bf16.gmra.mxu0 %v9674
      %v9736 = vpop.f32.mrf.mxu0
      %v9737 = vadd.f32 0.0, %v9736
      %v9738 = vpop.f32.mrf.mxu0
      %v9739 = vadd.f32 0.0, %v9738
      %9740 = vmatmul.bf16.gmra.mxu0 %v9677
      %v9741 = vpop.f32.mrf.mxu0
      %v9742 = vadd.f32 0.0, %v9741
      %v9743 = vpop.f32.mrf.mxu0
      %v9744 = vadd.f32 0.0, %v9743
      %9745 = vmatmul.bf16.gmra.mxu0 %v9680
      %v9746 = vpop.f32.mrf.mxu0
      %v9747 = vadd.f32 0.0, %v9746
      %v9748 = vpop.f32.mrf.mxu0
      %v9749 = vadd.f32 0.0, %v9748
      %9750 = vmatmul.bf16.gmra.mxu0 %v9683
      %v9751 = vpop.f32.mrf.mxu0
      %v9752 = vadd.f32 0.0, %v9751
      %v9753 = vpop.f32.mrf.mxu0
      %v9754 = vadd.f32 0.0, %v9753
      %9755 = vmatmul.bf16.gmra.mxu0 %v9686
      %v9756 = vpop.f32.mrf.mxu0
      %v9757 = vadd.f32 0.0, %v9756
      %v9758 = vpop.f32.mrf.mxu0
      %v9759 = vadd.f32 0.0, %v9758
      %9760 = vmatmul.bf16.gmra.mxu0 %v9689
      %v9761 = vpop.f32.mrf.mxu0
      %v9762 = vadd.f32 0.0, %v9761
      %v9763 = vpop.f32.mrf.mxu0
      %v9764 = vadd.f32 0.0, %v9763
      %9765 = vmatmul.bf16.gmra.mxu0 %v9692
      %v9766 = vpop.f32.mrf.mxu0
      %v9767 = vadd.f32 0.0, %v9766
      %v9768 = vpop.f32.mrf.mxu0
      %v9769 = vadd.f32 0.0, %v9768
      %9770 = vmatmul.bf16.gmra.mxu0 %v9695
      %v9771 = vpop.f32.mrf.mxu0
      %v9772 = vadd.f32 0.0, %v9771
      %v9773 = vpop.f32.mrf.mxu0
      %v9774 = vadd.f32 0.0, %v9773
      %9775 = vmatmul.bf16.gmra.mxu0 %v9698
      %v9776 = vpop.f32.mrf.mxu0
      %v9777 = vadd.f32 0.0, %v9776
      %v9778 = vpop.f32.mrf.mxu0
      %v9779 = vadd.f32 0.0, %v9778
      %9780 = vmatmul.bf16.gmra.mxu0 %v9701
      %v9781 = vpop.f32.mrf.mxu0
      %v9782 = vadd.f32 0.0, %v9781
      %v9783 = vpop.f32.mrf.mxu0
      %v9784 = vadd.f32 0.0, %v9783
      %9785 = vmatmul.bf16.gmra.mxu0 %v9704
      %v9786 = vpop.f32.mrf.mxu0
      %v9787 = vadd.f32 0.0, %v9786
      %v9788 = vpop.f32.mrf.mxu0
      %v9789 = vadd.f32 0.0, %v9788
      %9790 = vmatmul.bf16.gmra.mxu0 %v9707
      %v9791 = vpop.f32.mrf.mxu0
      %v9792 = vadd.f32 0.0, %v9791
      %v9793 = vpop.f32.mrf.mxu0
      %v9794 = vadd.f32 0.0, %v9793
      %9795 = vmatmul.bf16.gmra.mxu0 %v9710
      %v9796 = vpop.f32.mrf.mxu0
      %v9797 = vadd.f32 0.0, %v9796
      %v9798 = vpop.f32.mrf.mxu0
      %v9799 = vadd.f32 0.0, %v9798
      %9800 = vdwg.mxu0
      %v9801 = vadd.f32 %v9568, %v9722
      %v9802 = vadd.f32 %v9569, %v9724
      %v9803 = vadd.f32 %v9570, %v9727
      %v9804 = vadd.f32 %v9571, %v9729
      %v9805 = vadd.f32 %v9572, %v9732
      %v9806 = vadd.f32 %v9573, %v9734
      %v9807 = vadd.f32 %v9574, %v9737
      %v9808 = vadd.f32 %v9575, %v9739
      %v9809 = vadd.f32 %v9576, %v9742
      %v9810 = vadd.f32 %v9577, %v9744
      %v9811 = vadd.f32 %v9578, %v9747
      %v9812 = vadd.f32 %v9579, %v9749
      %v9813 = vadd.f32 %v9580, %v9752
      %v9814 = vadd.f32 %v9581, %v9754
      %v9815 = vadd.f32 %v9582, %v9757
      %v9816 = vadd.f32 %v9583, %v9759
      %v9817 = vadd.f32 %v9584, %v9762
      %v9818 = vadd.f32 %v9585, %v9764
      %v9819 = vadd.f32 %v9586, %v9767
      %v9820 = vadd.f32 %v9587, %v9769
      %v9821 = vadd.f32 %v9588, %v9772
      %v9822 = vadd.f32 %v9589, %v9774
      %v9823 = vadd.f32 %v9590, %v9777
      %v9824 = vadd.f32 %v9591, %v9779
      %v9825 = vadd.f32 %v9592, %v9782
      %v9826 = vadd.f32 %v9593, %v9784
      %v9827 = vadd.f32 %v9594, %v9787
      %v9828 = vadd.f32 %v9595, %v9789
      %v9829 = vadd.f32 %v9596, %v9792
      %v9830 = vadd.f32 %v9597, %v9794
      %v9831 = vadd.f32 %v9598, %v9797
      %v9832 = vadd.f32 %v9599, %v9799
      %v9833 = vsel %vm2018, %v8140, 0.0
      %v9834 = vsel %vm2019, %v8141, 0.0
      %v9835 = vsel %vm2020, %v8142, 0.0
      %v9836 = vsel %vm2021, %v8143, 0.0
      %v9837 = vsel %vm2022, %v8144, 0.0
      %v9838 = vsel %vm2023, %v8145, 0.0
      %v9839 = vsel %vm2024, %v8146, 0.0
      %v9840 = vsel %vm2025, %v8147, 0.0
      %v9841 = vsel %vm2026, %v8148, 0.0
      %v9842 = vsel %vm2027, %v8149, 0.0
      %v9843 = vsel %vm2028, %v8150, 0.0
      %v9844 = vsel %vm2029, %v8151, 0.0
      %v9845 = vsel %vm2030, %v8152, 0.0
      %v9846 = vsel %vm2031, %v8153, 0.0
      %v9847 = vsel %vm2032, %v8154, 0.0
      %v9848 = vsel %vm2033, %v8155, 0.0
      %v9849 = vsel %vm2034, %v8156, 0.0
      %v9850 = vsel %vm2035, %v8157, 0.0
      %v9851 = vsel %vm2036, %v8158, 0.0
      %v9852 = vsel %vm2037, %v8159, 0.0
      %v9853 = vsel %vm2038, %v8160, 0.0
      %v9854 = vsel %vm2039, %v8161, 0.0
      %v9855 = vsel %vm2040, %v8162, 0.0
      %v9856 = vsel %vm2041, %v8163, 0.0
      %v9857 = vsel %vm2042, %v8164, 0.0
      %v9858 = vsel %vm2043, %v8165, 0.0
      %v9859 = vsel %vm2044, %v8166, 0.0
      %v9860 = vsel %vm2045, %v8167, 0.0
      %v9861 = vsel %vm2046, %v8168, 0.0
      %v9862 = vsel %vm2047, %v8169, 0.0
      %v9863 = vsel %vm2048, %v8138, 0.0
      %v9864 = vsel %vm2049, %v8139, 0.0
      %v9865 = vpack.c.bf16 %v9834, %v9833
      %v9866 = vpack.c.bf16 %v9836, %v9835
      %v9867 = vpack.c.bf16 %v9838, %v9837
      %v9868 = vpack.c.bf16 %v9840, %v9839
      %v9869 = vpack.c.bf16 %v9842, %v9841
      %v9870 = vpack.c.bf16 %v9844, %v9843
      %v9871 = vpack.c.bf16 %v9846, %v9845
      %v9872 = vpack.c.bf16 %v9848, %v9847
      %v9873 = vpack.c.bf16 %v9850, %v9849
      %v9874 = vpack.c.bf16 %v9852, %v9851
      %v9875 = vpack.c.bf16 %v9854, %v9853
      %v9876 = vpack.c.bf16 %v9856, %v9855
      %v9877 = vpack.c.bf16 %v9858, %v9857
      %v9878 = vpack.c.bf16 %v9860, %v9859
      %v9879 = vpack.c.bf16 %v9862, %v9861
      %v9880 = vpack.c.bf16 %v9864, %v9863
      %v9881 = vld [vmem:[%s4 + $0x70] sm:$0xf]
      %v9882 = vld [vmem:[%s4 + $0x74] sm:$0xf]
      %v9883 = vld [vmem:[%s4 + $0x78] sm:$0xf]
      %v9884 = vld [vmem:[%s4 + $0x7c] sm:$0xf]
      %v9889 = vunpack.c.l.b16 %v9881
      %v9890 = vunpack.c.l.b16 %v9882
      %v9891 = vunpack.c.l.b16 %v9883
      %v9892 = vunpack.c.l.b16 %v9884
      %v9893 = vpack.c.b16 %v9890, %v9889
      %v9894 = vpack.c.b16 %v9892, %v9891
      %v9898 = vsel %vm3529, %v9865, 0
      %v9901 = vsel %vm3529, %v9866, 0
      %v9904 = vsel %vm3529, %v9867, 0
      %v9907 = vsel %vm3529, %v9868, 0
      %v9910 = vsel %vm3529, %v9869, 0
      %v9913 = vsel %vm3529, %v9870, 0
      %v9916 = vsel %vm3529, %v9871, 0
      %v9919 = vsel %vm3529, %v9872, 0
      %v9922 = vsel %vm3529, %v9873, 0
      %v9925 = vsel %vm3529, %v9874, 0
      %v9928 = vsel %vm3529, %v9875, 0
      %v9931 = vsel %vm3529, %v9876, 0
      %v9934 = vsel %vm3529, %v9877, 0
      %v9937 = vsel %vm3529, %v9878, 0
      %v9940 = vsel %vm3529, %v9879, 0
      %v9943 = vsel %vm3529, %v9880, 0
      %9945 = vmatpush.bf16.msra.mxu0 0
      %9946 = vmatpush.bf16.msra.mxu0 0
      %9947 = vmatpush.bf16.msra.mxu0 0
      %9948 = vmatpush.bf16.msra.mxu0 0
      %9949 = vmatpush.bf16.msra.mxu0 0
      %9950 = vmatpush.bf16.msra.mxu0 0
      %9951 = vmatpush.bf16.msra.mxu0 %v9894
      %9952 = vmatpush.bf16.msra.mxu0 %v9893
      %9953 = vmatmul.bf16.gmra.mxu0 %v9898
      %v9954 = vpop.f32.mrf.mxu0
      %v9955 = vadd.f32 0.0, %v9954
      %v9956 = vpop.f32.mrf.mxu0
      %v9957 = vadd.f32 0.0, %v9956
      %9958 = vmatmul.bf16.gmra.mxu0 %v9901
      %v9959 = vpop.f32.mrf.mxu0
      %v9960 = vadd.f32 0.0, %v9959
      %v9961 = vpop.f32.mrf.mxu0
      %v9962 = vadd.f32 0.0, %v9961
      %9963 = vmatmul.bf16.gmra.mxu0 %v9904
      %v9964 = vpop.f32.mrf.mxu0
      %v9965 = vadd.f32 0.0, %v9964
      %v9966 = vpop.f32.mrf.mxu0
      %v9967 = vadd.f32 0.0, %v9966
      %9968 = vmatmul.bf16.gmra.mxu0 %v9907
      %v9969 = vpop.f32.mrf.mxu0
      %v9970 = vadd.f32 0.0, %v9969
      %v9971 = vpop.f32.mrf.mxu0
      %v9972 = vadd.f32 0.0, %v9971
      %9973 = vmatmul.bf16.gmra.mxu0 %v9910
      %v9974 = vpop.f32.mrf.mxu0
      %v9975 = vadd.f32 0.0, %v9974
      %v9976 = vpop.f32.mrf.mxu0
      %v9977 = vadd.f32 0.0, %v9976
      %9978 = vmatmul.bf16.gmra.mxu0 %v9913
      %v9979 = vpop.f32.mrf.mxu0
      %v9980 = vadd.f32 0.0, %v9979
      %v9981 = vpop.f32.mrf.mxu0
      %v9982 = vadd.f32 0.0, %v9981
      %9983 = vmatmul.bf16.gmra.mxu0 %v9916
      %v9984 = vpop.f32.mrf.mxu0
      %v9985 = vadd.f32 0.0, %v9984
      %v9986 = vpop.f32.mrf.mxu0
      %v9987 = vadd.f32 0.0, %v9986
      %9988 = vmatmul.bf16.gmra.mxu0 %v9919
      %v9989 = vpop.f32.mrf.mxu0
      %v9990 = vadd.f32 0.0, %v9989
      %v9991 = vpop.f32.mrf.mxu0
      %v9992 = vadd.f32 0.0, %v9991
      %9993 = vmatmul.bf16.gmra.mxu0 %v9922
      %v9994 = vpop.f32.mrf.mxu0
      %v9995 = vadd.f32 0.0, %v9994
      %v9996 = vpop.f32.mrf.mxu0
      %v9997 = vadd.f32 0.0, %v9996
      %9998 = vmatmul.bf16.gmra.mxu0 %v9925
      %v9999 = vpop.f32.mrf.mxu0
      %v10000 = vadd.f32 0.0, %v9999
      %v10001 = vpop.f32.mrf.mxu0
      %v10002 = vadd.f32 0.0, %v10001
      %10003 = vmatmul.bf16.gmra.mxu0 %v9928
      %v10004 = vpop.f32.mrf.mxu0
      %v10005 = vadd.f32 0.0, %v10004
      %v10006 = vpop.f32.mrf.mxu0
      %v10007 = vadd.f32 0.0, %v10006
      %10008 = vmatmul.bf16.gmra.mxu0 %v9931
      %v10009 = vpop.f32.mrf.mxu0
      %v10010 = vadd.f32 0.0, %v10009
      %v10011 = vpop.f32.mrf.mxu0
      %v10012 = vadd.f32 0.0, %v10011
      %10013 = vmatmul.bf16.gmra.mxu0 %v9934
      %v10014 = vpop.f32.mrf.mxu0
      %v10015 = vadd.f32 0.0, %v10014
      %v10016 = vpop.f32.mrf.mxu0
      %v10017 = vadd.f32 0.0, %v10016
      %10018 = vmatmul.bf16.gmra.mxu0 %v9937
      %v10019 = vpop.f32.mrf.mxu0
      %v10020 = vadd.f32 0.0, %v10019
      %v10021 = vpop.f32.mrf.mxu0
      %v10022 = vadd.f32 0.0, %v10021
      %10023 = vmatmul.bf16.gmra.mxu0 %v9940
      %v10024 = vpop.f32.mrf.mxu0
      %v10025 = vadd.f32 0.0, %v10024
      %v10026 = vpop.f32.mrf.mxu0
      %v10027 = vadd.f32 0.0, %v10026
      %10028 = vmatmul.bf16.gmra.mxu0 %v9943
      %v10029 = vpop.f32.mrf.mxu0
      %v10030 = vadd.f32 0.0, %v10029
      %v10031 = vpop.f32.mrf.mxu0
      %v10032 = vadd.f32 0.0, %v10031
      %10033 = vdwg.mxu0
      %v10034 = vadd.f32 %v9801, %v9955
      %v10035 = vadd.f32 %v9802, %v9957
      %v10036 = vadd.f32 %v9803, %v9960
      %v10037 = vadd.f32 %v9804, %v9962
      %v10038 = vadd.f32 %v9805, %v9965
      %v10039 = vadd.f32 %v9806, %v9967
      %v10040 = vadd.f32 %v9807, %v9970
      %v10041 = vadd.f32 %v9808, %v9972
      %v10042 = vadd.f32 %v9809, %v9975
      %v10043 = vadd.f32 %v9810, %v9977
      %v10044 = vadd.f32 %v9811, %v9980
      %v10045 = vadd.f32 %v9812, %v9982
      %v10046 = vadd.f32 %v9813, %v9985
      %v10047 = vadd.f32 %v9814, %v9987
      %v10048 = vadd.f32 %v9815, %v9990
      %v10049 = vadd.f32 %v9816, %v9992
      %v10050 = vadd.f32 %v9817, %v9995
      %v10051 = vadd.f32 %v9818, %v9997
      %v10052 = vadd.f32 %v9819, %v10000
      %v10053 = vadd.f32 %v9820, %v10002
      %v10054 = vadd.f32 %v9821, %v10005
      %v10055 = vadd.f32 %v9822, %v10007
      %v10056 = vadd.f32 %v9823, %v10010
      %v10057 = vadd.f32 %v9824, %v10012
      %v10058 = vadd.f32 %v9825, %v10015
      %v10059 = vadd.f32 %v9826, %v10017
      %v10060 = vadd.f32 %v9827, %v10020
      %v10061 = vadd.f32 %v9828, %v10022
      %v10062 = vadd.f32 %v9829, %v10025
      %v10063 = vadd.f32 %v9830, %v10027
      %v10064 = vadd.f32 %v9831, %v10030
      %v10065 = vadd.f32 %v9832, %v10032
      %v10066 = vsel %vm2210, %v8696, 0.0
      %v10067 = vsel %vm2211, %v8695, 0.0
      %v10068 = vsel %vm2212, %v8694, 0.0
      %v10069 = vsel %vm2213, %v8693, 0.0
      %v10070 = vsel %vm2214, %v8692, 0.0
      %v10071 = vsel %vm2215, %v8691, 0.0
      %v10072 = vsel %vm2216, %v8690, 0.0
      %v10073 = vsel %vm2217, %v8689, 0.0
      %v10074 = vsel %vm2218, %v8688, 0.0
      %v10075 = vsel %vm2219, %v8687, 0.0
      %v10076 = vsel %vm2220, %v8686, 0.0
      %v10077 = vsel %vm2221, %v8685, 0.0
      %v10078 = vsel %vm2222, %v8684, 0.0
      %v10079 = vsel %vm2223, %v8683, 0.0
      %v10080 = vsel %vm2224, %v8682, 0.0
      %v10081 = vsel %vm2225, %v8681, 0.0
      %v10082 = vsel %vm2226, %v8680, 0.0
      %v10083 = vsel %vm2227, %v8679, 0.0
      %v10084 = vsel %vm2228, %v8678, 0.0
      %v10085 = vsel %vm2229, %v8677, 0.0
      %v10086 = vsel %vm2230, %v8676, 0.0
      %v10087 = vsel %vm2231, %v8675, 0.0
      %v10088 = vsel %vm2232, %v8674, 0.0
      %v10089 = vsel %vm2233, %v8673, 0.0
      %v10090 = vsel %vm2234, %v8672, 0.0
      %v10091 = vsel %vm2235, %v8671, 0.0
      %v10092 = vsel %vm2236, %v8670, 0.0
      %v10093 = vsel %vm2237, %v8669, 0.0
      %v10094 = vsel %vm2238, %v8668, 0.0
      %v10095 = vsel %vm2239, %v8699, 0.0
      %v10096 = vsel %vm2240, %v8698, 0.0
      %v10097 = vsel %vm2241, %v8697, 0.0
      %v10098 = vpack.c.bf16 %v10067, %v10066
      %v10099 = vpack.c.bf16 %v10069, %v10068
      %v10100 = vpack.c.bf16 %v10071, %v10070
      %v10101 = vpack.c.bf16 %v10073, %v10072
      %v10102 = vpack.c.bf16 %v10075, %v10074
      %v10103 = vpack.c.bf16 %v10077, %v10076
      %v10104 = vpack.c.bf16 %v10079, %v10078
      %v10105 = vpack.c.bf16 %v10081, %v10080
      %v10106 = vpack.c.bf16 %v10083, %v10082
      %v10107 = vpack.c.bf16 %v10085, %v10084
      %v10108 = vpack.c.bf16 %v10087, %v10086
      %v10109 = vpack.c.bf16 %v10089, %v10088
      %v10110 = vpack.c.bf16 %v10091, %v10090
      %v10111 = vpack.c.bf16 %v10093, %v10092
      %v10112 = vpack.c.bf16 %v10095, %v10094
      %v10113 = vpack.c.bf16 %v10097, %v10096
      %v10114 = vld [vmem:[%s4 + $0x80] sm:$0xf]
      %v10115 = vld [vmem:[%s4 + $0x84] sm:$0xf]
      %v10116 = vld [vmem:[%s4 + $0x88] sm:$0xf]
      %v10117 = vld [vmem:[%s4 + $0x8c] sm:$0xf]
      %v10122 = vunpack.c.l.b16 %v10114
      %v10123 = vunpack.c.l.b16 %v10115
      %v10124 = vunpack.c.l.b16 %v10116
      %v10125 = vunpack.c.l.b16 %v10117
      %v10126 = vpack.c.b16 %v10123, %v10122
      %v10127 = vpack.c.b16 %v10125, %v10124
      %v10131 = vsel %vm3529, %v10098, 0
      %v10134 = vsel %vm3529, %v10099, 0
      %v10137 = vsel %vm3529, %v10100, 0
      %v10140 = vsel %vm3529, %v10101, 0
      %v10143 = vsel %vm3529, %v10102, 0
      %v10146 = vsel %vm3529, %v10103, 0
      %v10149 = vsel %vm3529, %v10104, 0
      %v10152 = vsel %vm3529, %v10105, 0
      %v10155 = vsel %vm3529, %v10106, 0
      %v10158 = vsel %vm3529, %v10107, 0
      %v10161 = vsel %vm3529, %v10108, 0
      %v10164 = vsel %vm3529, %v10109, 0
      %v10167 = vsel %vm3529, %v10110, 0
      %v10170 = vsel %vm3529, %v10111, 0
      %v10173 = vsel %vm3529, %v10112, 0
      %v10176 = vsel %vm3529, %v10113, 0
      %10178 = vmatpush.bf16.msra.mxu0 0
      %10179 = vmatpush.bf16.msra.mxu0 0
      %10180 = vmatpush.bf16.msra.mxu0 0
      %10181 = vmatpush.bf16.msra.mxu0 0
      %10182 = vmatpush.bf16.msra.mxu0 0
      %10183 = vmatpush.bf16.msra.mxu0 0
      %10184 = vmatpush.bf16.msra.mxu0 %v10127
      %10185 = vmatpush.bf16.msra.mxu0 %v10126
      %10186 = vmatmul.bf16.gmra.mxu0 %v10131
      %v10187 = vpop.f32.mrf.mxu0
      %v10188 = vadd.f32 0.0, %v10187
      %v10189 = vpop.f32.mrf.mxu0
      %v10190 = vadd.f32 0.0, %v10189
      %10191 = vmatmul.bf16.gmra.mxu0 %v10134
      %v10192 = vpop.f32.mrf.mxu0
      %v10193 = vadd.f32 0.0, %v10192
      %v10194 = vpop.f32.mrf.mxu0
      %v10195 = vadd.f32 0.0, %v10194
      %10196 = vmatmul.bf16.gmra.mxu0 %v10137
      %v10197 = vpop.f32.mrf.mxu0
      %v10198 = vadd.f32 0.0, %v10197
      %v10199 = vpop.f32.mrf.mxu0
      %v10200 = vadd.f32 0.0, %v10199
      %10201 = vmatmul.bf16.gmra.mxu0 %v10140
      %v10202 = vpop.f32.mrf.mxu0
      %v10203 = vadd.f32 0.0, %v10202
      %v10204 = vpop.f32.mrf.mxu0
      %v10205 = vadd.f32 0.0, %v10204
      %10206 = vmatmul.bf16.gmra.mxu0 %v10143
      %v10207 = vpop.f32.mrf.mxu0
      %v10208 = vadd.f32 0.0, %v10207
      %v10209 = vpop.f32.mrf.mxu0
      %v10210 = vadd.f32 0.0, %v10209
      %10211 = vmatmul.bf16.gmra.mxu0 %v10146
      %v10212 = vpop.f32.mrf.mxu0
      %v10213 = vadd.f32 0.0, %v10212
      %v10214 = vpop.f32.mrf.mxu0
      %v10215 = vadd.f32 0.0, %v10214
      %10216 = vmatmul.bf16.gmra.mxu0 %v10149
      %v10217 = vpop.f32.mrf.mxu0
      %v10218 = vadd.f32 0.0, %v10217
      %v10219 = vpop.f32.mrf.mxu0
      %v10220 = vadd.f32 0.0, %v10219
      %10221 = vmatmul.bf16.gmra.mxu0 %v10152
      %v10222 = vpop.f32.mrf.mxu0
      %v10223 = vadd.f32 0.0, %v10222
      %v10224 = vpop.f32.mrf.mxu0
      %v10225 = vadd.f32 0.0, %v10224
      %10226 = vmatmul.bf16.gmra.mxu0 %v10155
      %v10227 = vpop.f32.mrf.mxu0
      %v10228 = vadd.f32 0.0, %v10227
      %v10229 = vpop.f32.mrf.mxu0
      %v10230 = vadd.f32 0.0, %v10229
      %10231 = vmatmul.bf16.gmra.mxu0 %v10158
      %v10232 = vpop.f32.mrf.mxu0
      %v10233 = vadd.f32 0.0, %v10232
      %v10234 = vpop.f32.mrf.mxu0
      %v10235 = vadd.f32 0.0, %v10234
      %10236 = vmatmul.bf16.gmra.mxu0 %v10161
      %v10237 = vpop.f32.mrf.mxu0
      %v10238 = vadd.f32 0.0, %v10237
      %v10239 = vpop.f32.mrf.mxu0
      %v10240 = vadd.f32 0.0, %v10239
      %10241 = vmatmul.bf16.gmra.mxu0 %v10164
      %v10242 = vpop.f32.mrf.mxu0
      %v10243 = vadd.f32 0.0, %v10242
      %v10244 = vpop.f32.mrf.mxu0
      %v10245 = vadd.f32 0.0, %v10244
      %10246 = vmatmul.bf16.gmra.mxu0 %v10167
      %v10247 = vpop.f32.mrf.mxu0
      %v10248 = vadd.f32 0.0, %v10247
      %v10249 = vpop.f32.mrf.mxu0
      %v10250 = vadd.f32 0.0, %v10249
      %10251 = vmatmul.bf16.gmra.mxu0 %v10170
      %v10252 = vpop.f32.mrf.mxu0
      %v10253 = vadd.f32 0.0, %v10252
      %v10254 = vpop.f32.mrf.mxu0
      %v10255 = vadd.f32 0.0, %v10254
      %10256 = vmatmul.bf16.gmra.mxu0 %v10173
      %v10257 = vpop.f32.mrf.mxu0
      %v10258 = vadd.f32 0.0, %v10257
      %v10259 = vpop.f32.mrf.mxu0
      %v10260 = vadd.f32 0.0, %v10259
      %10261 = vmatmul.bf16.gmra.mxu0 %v10176
      %v10262 = vpop.f32.mrf.mxu0
      %v10263 = vadd.f32 0.0, %v10262
      %v10264 = vpop.f32.mrf.mxu0
      %v10265 = vadd.f32 0.0, %v10264
      %10266 = vdwg.mxu0
      %v10267 = vadd.f32 %v10034, %v10188
      %v10268 = vadd.f32 %v10035, %v10190
      %v10269 = vadd.f32 %v10036, %v10193
      %v10270 = vadd.f32 %v10037, %v10195
      %v10271 = vadd.f32 %v10038, %v10198
      %v10272 = vadd.f32 %v10039, %v10200
      %v10273 = vadd.f32 %v10040, %v10203
      %v10274 = vadd.f32 %v10041, %v10205
      %v10275 = vadd.f32 %v10042, %v10208
      %v10276 = vadd.f32 %v10043, %v10210
      %v10277 = vadd.f32 %v10044, %v10213
      %v10278 = vadd.f32 %v10045, %v10215
      %v10279 = vadd.f32 %v10046, %v10218
      %v10280 = vadd.f32 %v10047, %v10220
      %v10281 = vadd.f32 %v10048, %v10223
      %v10282 = vadd.f32 %v10049, %v10225
      %v10283 = vadd.f32 %v10050, %v10228
      %v10284 = vadd.f32 %v10051, %v10230
      %v10285 = vadd.f32 %v10052, %v10233
      %v10286 = vadd.f32 %v10053, %v10235
      %v10287 = vadd.f32 %v10054, %v10238
      %v10288 = vadd.f32 %v10055, %v10240
      %v10289 = vadd.f32 %v10056, %v10243
      %v10290 = vadd.f32 %v10057, %v10245
      %v10291 = vadd.f32 %v10058, %v10248
      %v10292 = vadd.f32 %v10059, %v10250
      %v10293 = vadd.f32 %v10060, %v10253
      %v10294 = vadd.f32 %v10061, %v10255
      %v10295 = vadd.f32 %v10062, %v10258
      %v10296 = vadd.f32 %v10063, %v10260
      %v10297 = vadd.f32 %v10064, %v10263
      %v10298 = vadd.f32 %v10065, %v10265
      %v10299 = vld [vmem:[%s9] sm:$0x1]
      %v10301 = vperm.slane %v10299, 0
      %v10303 = vadd.f32 %v10267, %v10301
      %v10304 = vadd.f32 %v10268, %v10301
      %v10305 = vadd.f32 %v10269, %v10301
      %v10306 = vadd.f32 %v10270, %v10301
      %v10307 = vadd.f32 %v10271, %v10301
      %v10308 = vadd.f32 %v10272, %v10301
      %v10309 = vadd.f32 %v10273, %v10301
      %v10310 = vadd.f32 %v10274, %v10301
      %v10311 = vadd.f32 %v10275, %v10301
      %v10312 = vadd.f32 %v10276, %v10301
      %v10313 = vadd.f32 %v10277, %v10301
      %v10314 = vadd.f32 %v10278, %v10301
      %v10315 = vadd.f32 %v10279, %v10301
      %v10316 = vadd.f32 %v10280, %v10301
      %v10317 = vadd.f32 %v10281, %v10301
      %v10318 = vadd.f32 %v10282, %v10301
      %v10319 = vadd.f32 %v10283, %v10301
      %v10320 = vadd.f32 %v10284, %v10301
      %v10321 = vadd.f32 %v10285, %v10301
      %v10322 = vadd.f32 %v10286, %v10301
      %v10323 = vadd.f32 %v10287, %v10301
      %v10324 = vadd.f32 %v10288, %v10301
      %v10325 = vadd.f32 %v10289, %v10301
      %v10326 = vadd.f32 %v10290, %v10301
      %v10327 = vadd.f32 %v10291, %v10301
      %v10328 = vadd.f32 %v10292, %v10301
      %v10329 = vadd.f32 %v10293, %v10301
      %v10330 = vadd.f32 %v10294, %v10301
      %v10331 = vadd.f32 %v10295, %v10301
      %v10332 = vadd.f32 %v10296, %v10301
      %v10333 = vadd.f32 %v10297, %v10301
      %v10334 = vadd.f32 %v10298, %v10301
      %v10335 = vmax.f32 %v10303, 0.0
      %v10336 = vmax.f32 %v10304, 0.0
      %v10337 = vmax.f32 %v10305, 0.0
      %v10338 = vmax.f32 %v10306, 0.0
      %v10339 = vmax.f32 %v10307, 0.0
      %v10340 = vmax.f32 %v10308, 0.0
      %v10341 = vmax.f32 %v10309, 0.0
      %v10342 = vmax.f32 %v10310, 0.0
      %v10343 = vmax.f32 %v10311, 0.0
      %v10344 = vmax.f32 %v10312, 0.0
      %v10345 = vmax.f32 %v10313, 0.0
      %v10346 = vmax.f32 %v10314, 0.0
      %v10347 = vmax.f32 %v10315, 0.0
      %v10348 = vmax.f32 %v10316, 0.0
      %v10349 = vmax.f32 %v10317, 0.0
      %v10350 = vmax.f32 %v10318, 0.0
      %v10351 = vmax.f32 %v10319, 0.0
      %v10352 = vmax.f32 %v10320, 0.0
      %v10353 = vmax.f32 %v10321, 0.0
      %v10354 = vmax.f32 %v10322, 0.0
      %v10355 = vmax.f32 %v10323, 0.0
      %v10356 = vmax.f32 %v10324, 0.0
      %v10357 = vmax.f32 %v10325, 0.0
      %v10358 = vmax.f32 %v10326, 0.0
      %v10359 = vmax.f32 %v10327, 0.0
      %v10360 = vmax.f32 %v10328, 0.0
      %v10361 = vmax.f32 %v10329, 0.0
      %v10362 = vmax.f32 %v10330, 0.0
      %v10363 = vmax.f32 %v10331, 0.0
      %v10364 = vmax.f32 %v10332, 0.0
      %v10365 = vmax.f32 %v10333, 0.0
      %v10366 = vmax.f32 %v10334, 0.0
      %v10367 = vrot.slane %v10335, 7
      %v10368 = vrot.slane %v10336, 7
      %v10369 = vrot.slane %v10337, 7
      %v10370 = vrot.slane %v10338, 7
      %v10371 = vrot.slane %v10339, 7
      %v10372 = vrot.slane %v10340, 7
      %v10373 = vrot.slane %v10341, 7
      %v10374 = vrot.slane %v10342, 7
      %v10375 = vrot.slane %v10343, 7
      %v10376 = vrot.slane %v10344, 7
      %v10377 = vrot.slane %v10345, 7
      %v10378 = vrot.slane %v10346, 7
      %v10379 = vrot.slane %v10347, 7
      %v10380 = vrot.slane %v10348, 7
      %v10381 = vrot.slane %v10349, 7
      %v10382 = vrot.slane %v10350, 7
      %v10383 = vrot.slane %v10351, 7
      %v10384 = vrot.slane %v10352, 7
      %v10385 = vrot.slane %v10353, 7
      %v10386 = vrot.slane %v10354, 7
      %v10387 = vrot.slane %v10355, 7
      %v10388 = vrot.slane %v10356, 7
      %v10389 = vrot.slane %v10357, 7
      %v10390 = vrot.slane %v10358, 7
      %v10391 = vrot.slane %v10359, 7
      %v10392 = vrot.slane %v10360, 7
      %v10393 = vrot.slane %v10361, 7
      %v10394 = vrot.slane %v10362, 7
      %v10395 = vrot.slane %v10363, 7
      %v10396 = vrot.slane %v10364, 7
      %v10397 = vrot.slane %v10365, 7
      %v10398 = vrot.slane %v10366, 7
      %v10399 = vsel %vm832, %v10397, %v10398
      %v10400 = vsel %vm832, %v10396, %v10397
      %v10401 = vsel %vm832, %v10395, %v10396
      %v10402 = vsel %vm832, %v10394, %v10395
      %v10403 = vsel %vm832, %v10393, %v10394
      %v10404 = vsel %vm832, %v10392, %v10393
      %v10405 = vsel %vm832, %v10391, %v10392
      %v10406 = vsel %vm832, %v10390, %v10391
      %v10407 = vsel %vm832, %v10389, %v10390
      %v10408 = vsel %vm832, %v10388, %v10389
      %v10409 = vsel %vm832, %v10387, %v10388
      %v10410 = vsel %vm832, %v10386, %v10387
      %v10411 = vsel %vm832, %v10385, %v10386
      %v10412 = vsel %vm832, %v10384, %v10385
      %v10413 = vsel %vm832, %v10383, %v10384
      %v10414 = vsel %vm832, %v10382, %v10383
      %v10415 = vsel %vm832, %v10381, %v10382
      %v10416 = vsel %vm832, %v10380, %v10381
      %v10417 = vsel %vm832, %v10379, %v10380
      %v10418 = vsel %vm832, %v10378, %v10379
      %v10419 = vsel %vm832, %v10377, %v10378
      %v10420 = vsel %vm832, %v10376, %v10377
      %v10421 = vsel %vm832, %v10375, %v10376
      %v10422 = vsel %vm832, %v10374, %v10375
      %v10423 = vsel %vm832, %v10373, %v10374
      %v10424 = vsel %vm832, %v10372, %v10373
      %v10425 = vsel %vm832, %v10371, %v10372
      %v10426 = vsel %vm832, %v10370, %v10371
      %v10427 = vsel %vm832, %v10369, %v10370
      %v10428 = vsel %vm832, %v10368, %v10369
      %v10429 = vsel %vm832, %v10367, %v10368
      %v10430 = vsel %vm832, %v10398, %v10367
      %v10431 = vsel %vm993, %v10400, 0.0
      %v10432 = vsel %vm994, %v10399, 0.0
      %v10433 = vsel %vm995, %v10430, 0.0
      %v10434 = vsel %vm996, %v10429, 0.0
      %v10435 = vsel %vm997, %v10428, 0.0
      %v10436 = vsel %vm998, %v10427, 0.0
      %v10437 = vsel %vm999, %v10426, 0.0
      %v10438 = vsel %vm1000, %v10425, 0.0
      %v10439 = vsel %vm1001, %v10424, 0.0
      %v10440 = vsel %vm1002, %v10423, 0.0
      %v10441 = vsel %vm1003, %v10422, 0.0
      %v10442 = vsel %vm1004, %v10421, 0.0
      %v10443 = vsel %vm1005, %v10420, 0.0
      %v10444 = vsel %vm1006, %v10419, 0.0
      %v10445 = vsel %vm1007, %v10418, 0.0
      %v10446 = vsel %vm1008, %v10417, 0.0
      %v10447 = vsel %vm1009, %v10416, 0.0
      %v10448 = vsel %vm1010, %v10415, 0.0
      %v10449 = vsel %vm1011, %v10414, 0.0
      %v10450 = vsel %vm1012, %v10413, 0.0
      %v10451 = vsel %vm1013, %v10412, 0.0
      %v10452 = vsel %vm1014, %v10411, 0.0
      %v10453 = vsel %vm1015, %v10410, 0.0
      %v10454 = vsel %vm1016, %v10409, 0.0
      %v10455 = vsel %vm1017, %v10408, 0.0
      %v10456 = vsel %vm1018, %v10407, 0.0
      %v10457 = vsel %vm1019, %v10406, 0.0
      %v10458 = vsel %vm1020, %v10405, 0.0
      %v10459 = vsel %vm1021, %v10404, 0.0
      %v10460 = vsel %vm1022, %v10403, 0.0
      %v10461 = vsel %vm1023, %v10402, 0.0
      %v10462 = vsel %vm1024, %v10401, 0.0
      %v10463 = vpack.c.bf16 %v10432, %v10431
      %v10464 = vpack.c.bf16 %v10434, %v10433
      %v10465 = vpack.c.bf16 %v10436, %v10435
      %v10466 = vpack.c.bf16 %v10438, %v10437
      %v10467 = vpack.c.bf16 %v10440, %v10439
      %v10468 = vpack.c.bf16 %v10442, %v10441
      %v10469 = vpack.c.bf16 %v10444, %v10443
      %v10470 = vpack.c.bf16 %v10446, %v10445
      %v10471 = vpack.c.bf16 %v10448, %v10447
      %v10472 = vpack.c.bf16 %v10450, %v10449
      %v10473 = vpack.c.bf16 %v10452, %v10451
      %v10474 = vpack.c.bf16 %v10454, %v10453
      %v10475 = vpack.c.bf16 %v10456, %v10455
      %v10476 = vpack.c.bf16 %v10458, %v10457
      %v10477 = vpack.c.bf16 %v10460, %v10459
      %v10478 = vpack.c.bf16 %v10462, %v10461
      %v10479 = vld [vmem:[%s5] sm:$0xf]
      %v10480 = vld [vmem:[%s5 + $0x4] sm:$0xf]
      %v10481 = vld [vmem:[%s5 + $0x8] sm:$0xf]
      %v10482 = vld [vmem:[%s5 + $0xc] sm:$0xf]
      %v10483 = vsel %vm1089, %v10365, 0.0
      %v10484 = vsel %vm1090, %v10366, 0.0
      %v10485 = vsel %vm1091, %v10335, 0.0
      %v10486 = vsel %vm1092, %v10336, 0.0
      %v10487 = vsel %vm1093, %v10337, 0.0
      %v10488 = vsel %vm1094, %v10338, 0.0
      %v10489 = vsel %vm1095, %v10339, 0.0
      %v10490 = vsel %vm1096, %v10340, 0.0
      %v10491 = vsel %vm1097, %v10341, 0.0
      %v10492 = vsel %vm1098, %v10342, 0.0
      %v10493 = vsel %vm1099, %v10343, 0.0
      %v10494 = vsel %vm1100, %v10344, 0.0
      %v10495 = vsel %vm1101, %v10345, 0.0
      %v10496 = vsel %vm1102, %v10346, 0.0
      %v10497 = vsel %vm1103, %v10347, 0.0
      %v10498 = vsel %vm1104, %v10348, 0.0
      %v10499 = vsel %vm1105, %v10349, 0.0
      %v10500 = vsel %vm1106, %v10350, 0.0
      %v10501 = vsel %vm1107, %v10351, 0.0
      %v10502 = vsel %vm1108, %v10352, 0.0
      %v10503 = vsel %vm1109, %v10353, 0.0
      %v10504 = vsel %vm1110, %v10354, 0.0
      %v10505 = vsel %vm1111, %v10355, 0.0
      %v10506 = vsel %vm1112, %v10356, 0.0
      %v10507 = vsel %vm1113, %v10357, 0.0
      %v10508 = vsel %vm1114, %v10358, 0.0
      %v10509 = vsel %vm1115, %v10359, 0.0
      %v10510 = vsel %vm1116, %v10360, 0.0
      %v10511 = vsel %vm1117, %v10361, 0.0
      %v10512 = vsel %vm1118, %v10362, 0.0
      %v10513 = vsel %vm1119, %v10363, 0.0
      %v10514 = vsel %vm1120, %v10364, 0.0
      %v10515 = vpack.c.bf16 %v10484, %v10483
      %v10516 = vpack.c.bf16 %v10486, %v10485
      %v10517 = vpack.c.bf16 %v10488, %v10487
      %v10518 = vpack.c.bf16 %v10490, %v10489
      %v10519 = vpack.c.bf16 %v10492, %v10491
      %v10520 = vpack.c.bf16 %v10494, %v10493
      %v10521 = vpack.c.bf16 %v10496, %v10495
      %v10522 = vpack.c.bf16 %v10498, %v10497
      %v10523 = vpack.c.bf16 %v10500, %v10499
      %v10524 = vpack.c.bf16 %v10502, %v10501
      %v10525 = vpack.c.bf16 %v10504, %v10503
      %v10526 = vpack.c.bf16 %v10506, %v10505
      %v10527 = vpack.c.bf16 %v10508, %v10507
      %v10528 = vpack.c.bf16 %v10510, %v10509
      %v10529 = vpack.c.bf16 %v10512, %v10511
      %v10530 = vpack.c.bf16 %v10514, %v10513
      %v10531 = vld [vmem:[%s5 + $0x10] sm:$0xf]
      %v10532 = vld [vmem:[%s5 + $0x14] sm:$0xf]
      %v10533 = vld [vmem:[%s5 + $0x18] sm:$0xf]
      %v10534 = vld [vmem:[%s5 + $0x1c] sm:$0xf]
      %v10539 = vunpack.c.l.b16 %v10531
      %v10540 = vunpack.c.l.b16 %v10532
      %v10541 = vunpack.c.l.b16 %v10533
      %v10542 = vunpack.c.l.b16 %v10534
      %v10543 = vpack.c.b16 %v10540, %v10539
      %v10544 = vpack.c.b16 %v10542, %v10541
      %v10548 = vsel %vm3529, %v10515, 0
      %v10551 = vsel %vm3529, %v10516, 0
      %v10554 = vsel %vm3529, %v10517, 0
      %v10557 = vsel %vm3529, %v10518, 0
      %v10560 = vsel %vm3529, %v10519, 0
      %v10563 = vsel %vm3529, %v10520, 0
      %v10566 = vsel %vm3529, %v10521, 0
      %v10569 = vsel %vm3529, %v10522, 0
      %v10572 = vsel %vm3529, %v10523, 0
      %v10575 = vsel %vm3529, %v10524, 0
      %v10578 = vsel %vm3529, %v10525, 0
      %v10581 = vsel %vm3529, %v10526, 0
      %v10584 = vsel %vm3529, %v10527, 0
      %v10587 = vsel %vm3529, %v10528, 0
      %v10590 = vsel %vm3529, %v10529, 0
      %v10593 = vsel %vm3529, %v10530, 0
      %10595 = vmatpush.bf16.msra.mxu0 0
      %10596 = vmatpush.bf16.msra.mxu0 0
      %10597 = vmatpush.bf16.msra.mxu0 0
      %10598 = vmatpush.bf16.msra.mxu0 0
      %10599 = vmatpush.bf16.msra.mxu0 0
      %10600 = vmatpush.bf16.msra.mxu0 0
      %10601 = vmatpush.bf16.msra.mxu0 %v10544
      %10602 = vmatpush.bf16.msra.mxu0 %v10543
      %10603 = vmatmul.bf16.gmra.mxu0 %v10548
      %v10604 = vpop.f32.mrf.mxu0
      %v10605 = vadd.f32 0.0, %v10604
      %v10606 = vpop.f32.mrf.mxu0
      %v10607 = vadd.f32 0.0, %v10606
      %10608 = vmatmul.bf16.gmra.mxu0 %v10551
      %v10609 = vpop.f32.mrf.mxu0
      %v10610 = vadd.f32 0.0, %v10609
      %v10611 = vpop.f32.mrf.mxu0
      %v10612 = vadd.f32 0.0, %v10611
      %10613 = vmatmul.bf16.gmra.mxu0 %v10554
      %v10614 = vpop.f32.mrf.mxu0
      %v10615 = vadd.f32 0.0, %v10614
      %v10616 = vpop.f32.mrf.mxu0
      %v10617 = vadd.f32 0.0, %v10616
      %10618 = vmatmul.bf16.gmra.mxu0 %v10557
      %v10619 = vpop.f32.mrf.mxu0
      %v10620 = vadd.f32 0.0, %v10619
      %v10621 = vpop.f32.mrf.mxu0
      %v10622 = vadd.f32 0.0, %v10621
      %10623 = vmatmul.bf16.gmra.mxu0 %v10560
      %v10624 = vpop.f32.mrf.mxu0
      %v10625 = vadd.f32 0.0, %v10624
      %v10626 = vpop.f32.mrf.mxu0
      %v10627 = vadd.f32 0.0, %v10626
      %10628 = vmatmul.bf16.gmra.mxu0 %v10563
      %v10629 = vpop.f32.mrf.mxu0
      %v10630 = vadd.f32 0.0, %v10629
      %v10631 = vpop.f32.mrf.mxu0
      %v10632 = vadd.f32 0.0, %v10631
      %10633 = vmatmul.bf16.gmra.mxu0 %v10566
      %v10634 = vpop.f32.mrf.mxu0
      %v10635 = vadd.f32 0.0, %v10634
      %v10636 = vpop.f32.mrf.mxu0
      %v10637 = vadd.f32 0.0, %v10636
      %10638 = vmatmul.bf16.gmra.mxu0 %v10569
      %v10639 = vpop.f32.mrf.mxu0
      %v10640 = vadd.f32 0.0, %v10639
      %v10641 = vpop.f32.mrf.mxu0
      %v10642 = vadd.f32 0.0, %v10641
      %10643 = vmatmul.bf16.gmra.mxu0 %v10572
      %v10644 = vpop.f32.mrf.mxu0
      %v10645 = vadd.f32 0.0, %v10644
      %v10646 = vpop.f32.mrf.mxu0
      %v10647 = vadd.f32 0.0, %v10646
      %10648 = vmatmul.bf16.gmra.mxu0 %v10575
      %v10649 = vpop.f32.mrf.mxu0
      %v10650 = vadd.f32 0.0, %v10649
      %v10651 = vpop.f32.mrf.mxu0
      %v10652 = vadd.f32 0.0, %v10651
      %10653 = vmatmul.bf16.gmra.mxu0 %v10578
      %v10654 = vpop.f32.mrf.mxu0
      %v10655 = vadd.f32 0.0, %v10654
      %v10656 = vpop.f32.mrf.mxu0
      %v10657 = vadd.f32 0.0, %v10656
      %10658 = vmatmul.bf16.gmra.mxu0 %v10581
      %v10659 = vpop.f32.mrf.mxu0
      %v10660 = vadd.f32 0.0, %v10659
      %v10661 = vpop.f32.mrf.mxu0
      %v10662 = vadd.f32 0.0, %v10661
      %10663 = vmatmul.bf16.gmra.mxu0 %v10584
      %v10664 = vpop.f32.mrf.mxu0
      %v10665 = vadd.f32 0.0, %v10664
      %v10666 = vpop.f32.mrf.mxu0
      %v10667 = vadd.f32 0.0, %v10666
      %10668 = vmatmul.bf16.gmra.mxu0 %v10587
      %v10669 = vpop.f32.mrf.mxu0
      %v10670 = vadd.f32 0.0, %v10669
      %v10671 = vpop.f32.mrf.mxu0
      %v10672 = vadd.f32 0.0, %v10671
      %10673 = vmatmul.bf16.gmra.mxu0 %v10590
      %v10674 = vpop.f32.mrf.mxu0
      %v10675 = vadd.f32 0.0, %v10674
      %v10676 = vpop.f32.mrf.mxu0
      %v10677 = vadd.f32 0.0, %v10676
      %10678 = vmatmul.bf16.gmra.mxu0 %v10593
      %v10679 = vpop.f32.mrf.mxu0
      %v10680 = vadd.f32 0.0, %v10679
      %v10681 = vpop.f32.mrf.mxu0
      %v10682 = vadd.f32 0.0, %v10681
      %10683 = vdwg.mxu0
      %v10688 = vunpack.c.l.b16 %v10479
      %v10689 = vunpack.c.l.b16 %v10480
      %v10690 = vunpack.c.l.b16 %v10481
      %v10691 = vunpack.c.l.b16 %v10482
      %v10692 = vpack.c.b16 %v10689, %v10688
      %v10693 = vpack.c.b16 %v10691, %v10690
      %v10697 = vsel %vm3529, %v10463, 0
      %v10700 = vsel %vm3529, %v10464, 0
      %v10703 = vsel %vm3529, %v10465, 0
      %v10706 = vsel %vm3529, %v10466, 0
      %v10709 = vsel %vm3529, %v10467, 0
      %v10712 = vsel %vm3529, %v10468, 0
      %v10715 = vsel %vm3529, %v10469, 0
      %v10718 = vsel %vm3529, %v10470, 0
      %v10721 = vsel %vm3529, %v10471, 0
      %v10724 = vsel %vm3529, %v10472, 0
      %v10727 = vsel %vm3529, %v10473, 0
      %v10730 = vsel %vm3529, %v10474, 0
      %v10733 = vsel %vm3529, %v10475, 0
      %v10736 = vsel %vm3529, %v10476, 0
      %v10739 = vsel %vm3529, %v10477, 0
      %v10742 = vsel %vm3529, %v10478, 0
      %10744 = vmatpush.bf16.msra.mxu0 0
      %10745 = vmatpush.bf16.msra.mxu0 0
      %10746 = vmatpush.bf16.msra.mxu0 0
      %10747 = vmatpush.bf16.msra.mxu0 0
      %10748 = vmatpush.bf16.msra.mxu0 0
      %10749 = vmatpush.bf16.msra.mxu0 0
      %10750 = vmatpush.bf16.msra.mxu0 %v10693
      %10751 = vmatpush.bf16.msra.mxu0 %v10692
      %10752 = vmatmul.bf16.gmra.mxu0 %v10697
      %v10753 = vpop.f32.mrf.mxu0
      %v10754 = vadd.f32 %v10605, %v10753
      %v10755 = vpop.f32.mrf.mxu0
      %v10756 = vadd.f32 %v10607, %v10755
      %10757 = vmatmul.bf16.gmra.mxu0 %v10700
      %v10758 = vpop.f32.mrf.mxu0
      %v10759 = vadd.f32 %v10610, %v10758
      %v10760 = vpop.f32.mrf.mxu0
      %v10761 = vadd.f32 %v10612, %v10760
      %10762 = vmatmul.bf16.gmra.mxu0 %v10703
      %v10763 = vpop.f32.mrf.mxu0
      %v10764 = vadd.f32 %v10615, %v10763
      %v10765 = vpop.f32.mrf.mxu0
      %v10766 = vadd.f32 %v10617, %v10765
      %10767 = vmatmul.bf16.gmra.mxu0 %v10706
      %v10768 = vpop.f32.mrf.mxu0
      %v10769 = vadd.f32 %v10620, %v10768
      %v10770 = vpop.f32.mrf.mxu0
      %v10771 = vadd.f32 %v10622, %v10770
      %10772 = vmatmul.bf16.gmra.mxu0 %v10709
      %v10773 = vpop.f32.mrf.mxu0
      %v10774 = vadd.f32 %v10625, %v10773
      %v10775 = vpop.f32.mrf.mxu0
      %v10776 = vadd.f32 %v10627, %v10775
      %10777 = vmatmul.bf16.gmra.mxu0 %v10712
      %v10778 = vpop.f32.mrf.mxu0
      %v10779 = vadd.f32 %v10630, %v10778
      %v10780 = vpop.f32.mrf.mxu0
      %v10781 = vadd.f32 %v10632, %v10780
      %10782 = vmatmul.bf16.gmra.mxu0 %v10715
      %v10783 = vpop.f32.mrf.mxu0
      %v10784 = vadd.f32 %v10635, %v10783
      %v10785 = vpop.f32.mrf.mxu0
      %v10786 = vadd.f32 %v10637, %v10785
      %10787 = vmatmul.bf16.gmra.mxu0 %v10718
      %v10788 = vpop.f32.mrf.mxu0
      %v10789 = vadd.f32 %v10640, %v10788
      %v10790 = vpop.f32.mrf.mxu0
      %v10791 = vadd.f32 %v10642, %v10790
      %10792 = vmatmul.bf16.gmra.mxu0 %v10721
      %v10793 = vpop.f32.mrf.mxu0
      %v10794 = vadd.f32 %v10645, %v10793
      %v10795 = vpop.f32.mrf.mxu0
      %v10796 = vadd.f32 %v10647, %v10795
      %10797 = vmatmul.bf16.gmra.mxu0 %v10724
      %v10798 = vpop.f32.mrf.mxu0
      %v10799 = vadd.f32 %v10650, %v10798
      %v10800 = vpop.f32.mrf.mxu0
      %v10801 = vadd.f32 %v10652, %v10800
      %10802 = vmatmul.bf16.gmra.mxu0 %v10727
      %v10803 = vpop.f32.mrf.mxu0
      %v10804 = vadd.f32 %v10655, %v10803
      %v10805 = vpop.f32.mrf.mxu0
      %v10806 = vadd.f32 %v10657, %v10805
      %10807 = vmatmul.bf16.gmra.mxu0 %v10730
      %v10808 = vpop.f32.mrf.mxu0
      %v10809 = vadd.f32 %v10660, %v10808
      %v10810 = vpop.f32.mrf.mxu0
      %v10811 = vadd.f32 %v10662, %v10810
      %10812 = vmatmul.bf16.gmra.mxu0 %v10733
      %v10813 = vpop.f32.mrf.mxu0
      %v10814 = vadd.f32 %v10665, %v10813
      %v10815 = vpop.f32.mrf.mxu0
      %v10816 = vadd.f32 %v10667, %v10815
      %10817 = vmatmul.bf16.gmra.mxu0 %v10736
      %v10818 = vpop.f32.mrf.mxu0
      %v10819 = vadd.f32 %v10670, %v10818
      %v10820 = vpop.f32.mrf.mxu0
      %v10821 = vadd.f32 %v10672, %v10820
      %10822 = vmatmul.bf16.gmra.mxu0 %v10739
      %v10823 = vpop.f32.mrf.mxu0
      %v10824 = vadd.f32 %v10675, %v10823
      %v10825 = vpop.f32.mrf.mxu0
      %v10826 = vadd.f32 %v10677, %v10825
      %10827 = vmatmul.bf16.gmra.mxu0 %v10742
      %v10828 = vpop.f32.mrf.mxu0
      %v10829 = vadd.f32 %v10680, %v10828
      %v10830 = vpop.f32.mrf.mxu0
      %v10831 = vadd.f32 %v10682, %v10830
      %10832 = vdwg.mxu0
      %v10833 = vrot.slane %v10335, 1
      %v10834 = vrot.slane %v10336, 1
      %v10835 = vrot.slane %v10337, 1
      %v10836 = vrot.slane %v10338, 1
      %v10837 = vrot.slane %v10339, 1
      %v10838 = vrot.slane %v10340, 1
      %v10839 = vrot.slane %v10341, 1
      %v10840 = vrot.slane %v10342, 1
      %v10841 = vrot.slane %v10343, 1
      %v10842 = vrot.slane %v10344, 1
      %v10843 = vrot.slane %v10345, 1
      %v10844 = vrot.slane %v10346, 1
      %v10845 = vrot.slane %v10347, 1
      %v10846 = vrot.slane %v10348, 1
      %v10847 = vrot.slane %v10349, 1
      %v10848 = vrot.slane %v10350, 1
      %v10849 = vrot.slane %v10351, 1
      %v10850 = vrot.slane %v10352, 1
      %v10851 = vrot.slane %v10353, 1
      %v10852 = vrot.slane %v10354, 1
      %v10853 = vrot.slane %v10355, 1
      %v10854 = vrot.slane %v10356, 1
      %v10855 = vrot.slane %v10357, 1
      %v10856 = vrot.slane %v10358, 1
      %v10857 = vrot.slane %v10359, 1
      %v10858 = vrot.slane %v10360, 1
      %v10859 = vrot.slane %v10361, 1
      %v10860 = vrot.slane %v10362, 1
      %v10861 = vrot.slane %v10363, 1
      %v10862 = vrot.slane %v10364, 1
      %v10863 = vrot.slane %v10365, 1
      %v10864 = vrot.slane %v10366, 1
      %v10865 = vsel %vm1185, %v10863, %v10864
      %v10866 = vsel %vm1185, %v10862, %v10863
      %v10867 = vsel %vm1185, %v10861, %v10862
      %v10868 = vsel %vm1185, %v10860, %v10861
      %v10869 = vsel %vm1185, %v10859, %v10860
      %v10870 = vsel %vm1185, %v10858, %v10859
      %v10871 = vsel %vm1185, %v10857, %v10858
      %v10872 = vsel %vm1185, %v10856, %v10857
      %v10873 = vsel %vm1185, %v10855, %v10856
      %v10874 = vsel %vm1185, %v10854, %v10855
      %v10875 = vsel %vm1185, %v10853, %v10854
      %v10876 = vsel %vm1185, %v10852, %v10853
      %v10877 = vsel %vm1185, %v10851, %v10852
      %v10878 = vsel %vm1185, %v10850, %v10851
      %v10879 = vsel %vm1185, %v10849, %v10850
      %v10880 = vsel %vm1185, %v10848, %v10849
      %v10881 = vsel %vm1185, %v10847, %v10848
      %v10882 = vsel %vm1185, %v10846, %v10847
      %v10883 = vsel %vm1185, %v10845, %v10846
      %v10884 = vsel %vm1185, %v10844, %v10845
      %v10885 = vsel %vm1185, %v10843, %v10844
      %v10886 = vsel %vm1185, %v10842, %v10843
      %v10887 = vsel %vm1185, %v10841, %v10842
      %v10888 = vsel %vm1185, %v10840, %v10841
      %v10889 = vsel %vm1185, %v10839, %v10840
      %v10890 = vsel %vm1185, %v10838, %v10839
      %v10891 = vsel %vm1185, %v10837, %v10838
      %v10892 = vsel %vm1185, %v10836, %v10837
      %v10893 = vsel %vm1185, %v10835, %v10836
      %v10894 = vsel %vm1185, %v10834, %v10835
      %v10895 = vsel %vm1185, %v10833, %v10834
      %v10896 = vsel %vm1185, %v10864, %v10833
      %v10897 = vsel %vm1346, %v10865, 0.0
      %v10898 = vsel %vm1347, %v10896, 0.0
      %v10899 = vsel %vm1348, %v10895, 0.0
      %v10900 = vsel %vm1349, %v10894, 0.0
      %v10901 = vsel %vm1350, %v10893, 0.0
      %v10902 = vsel %vm1351, %v10892, 0.0
      %v10903 = vsel %vm1352, %v10891, 0.0
      %v10904 = vsel %vm1353, %v10890, 0.0
      %v10905 = vsel %vm1354, %v10889, 0.0
      %v10906 = vsel %vm1355, %v10888, 0.0
      %v10907 = vsel %vm1356, %v10887, 0.0
      %v10908 = vsel %vm1357, %v10886, 0.0
      %v10909 = vsel %vm1358, %v10885, 0.0
      %v10910 = vsel %vm1359, %v10884, 0.0
      %v10911 = vsel %vm1360, %v10883, 0.0
      %v10912 = vsel %vm1361, %v10882, 0.0
      %v10913 = vsel %vm1362, %v10881, 0.0
      %v10914 = vsel %vm1363, %v10880, 0.0
      %v10915 = vsel %vm1364, %v10879, 0.0
      %v10916 = vsel %vm1365, %v10878, 0.0
      %v10917 = vsel %vm1366, %v10877, 0.0
      %v10918 = vsel %vm1367, %v10876, 0.0
      %v10919 = vsel %vm1368, %v10875, 0.0
      %v10920 = vsel %vm1369, %v10874, 0.0
      %v10921 = vsel %vm1370, %v10873, 0.0
      %v10922 = vsel %vm1371, %v10872, 0.0
      %v10923 = vsel %vm1372, %v10871, 0.0
      %v10924 = vsel %vm1373, %v10870, 0.0
      %v10925 = vsel %vm1374, %v10869, 0.0
      %v10926 = vsel %vm1375, %v10868, 0.0
      %v10927 = vsel %vm1376, %v10867, 0.0
      %v10928 = vsel %vm1377, %v10866, 0.0
      %v10929 = vpack.c.bf16 %v10898, %v10897
      %v10930 = vpack.c.bf16 %v10900, %v10899
      %v10931 = vpack.c.bf16 %v10902, %v10901
      %v10932 = vpack.c.bf16 %v10904, %v10903
      %v10933 = vpack.c.bf16 %v10906, %v10905
      %v10934 = vpack.c.bf16 %v10908, %v10907
      %v10935 = vpack.c.bf16 %v10910, %v10909
      %v10936 = vpack.c.bf16 %v10912, %v10911
      %v10937 = vpack.c.bf16 %v10914, %v10913
      %v10938 = vpack.c.bf16 %v10916, %v10915
      %v10939 = vpack.c.bf16 %v10918, %v10917
      %v10940 = vpack.c.bf16 %v10920, %v10919
      %v10941 = vpack.c.bf16 %v10922, %v10921
      %v10942 = vpack.c.bf16 %v10924, %v10923
      %v10943 = vpack.c.bf16 %v10926, %v10925
      %v10944 = vpack.c.bf16 %v10928, %v10927
      %v10945 = vld [vmem:[%s5 + $0x20] sm:$0xf]
      %v10946 = vld [vmem:[%s5 + $0x24] sm:$0xf]
      %v10947 = vld [vmem:[%s5 + $0x28] sm:$0xf]
      %v10948 = vld [vmem:[%s5 + $0x2c] sm:$0xf]
      %v10953 = vunpack.c.l.b16 %v10945
      %v10954 = vunpack.c.l.b16 %v10946
      %v10955 = vunpack.c.l.b16 %v10947
      %v10956 = vunpack.c.l.b16 %v10948
      %v10957 = vpack.c.b16 %v10954, %v10953
      %v10958 = vpack.c.b16 %v10956, %v10955
      %v10962 = vsel %vm3529, %v10929, 0
      %v10965 = vsel %vm3529, %v10930, 0
      %v10968 = vsel %vm3529, %v10931, 0
      %v10971 = vsel %vm3529, %v10932, 0
      %v10974 = vsel %vm3529, %v10933, 0
      %v10977 = vsel %vm3529, %v10934, 0
      %v10980 = vsel %vm3529, %v10935, 0
      %v10983 = vsel %vm3529, %v10936, 0
      %v10986 = vsel %vm3529, %v10937, 0
      %v10989 = vsel %vm3529, %v10938, 0
      %v10992 = vsel %vm3529, %v10939, 0
      %v10995 = vsel %vm3529, %v10940, 0
      %v10998 = vsel %vm3529, %v10941, 0
      %v11001 = vsel %vm3529, %v10942, 0
      %v11004 = vsel %vm3529, %v10943, 0
      %v11007 = vsel %vm3529, %v10944, 0
      %11009 = vmatpush.bf16.msra.mxu0 0
      %11010 = vmatpush.bf16.msra.mxu0 0
      %11011 = vmatpush.bf16.msra.mxu0 0
      %11012 = vmatpush.bf16.msra.mxu0 0
      %11013 = vmatpush.bf16.msra.mxu0 0
      %11014 = vmatpush.bf16.msra.mxu0 0
      %11015 = vmatpush.bf16.msra.mxu0 %v10958
      %11016 = vmatpush.bf16.msra.mxu0 %v10957
      %11017 = vmatmul.bf16.gmra.mxu0 %v10962
      %v11018 = vpop.f32.mrf.mxu0
      %v11019 = vadd.f32 0.0, %v11018
      %v11020 = vpop.f32.mrf.mxu0
      %v11021 = vadd.f32 0.0, %v11020
      %11022 = vmatmul.bf16.gmra.mxu0 %v10965
      %v11023 = vpop.f32.mrf.mxu0
      %v11024 = vadd.f32 0.0, %v11023
      %v11025 = vpop.f32.mrf.mxu0
      %v11026 = vadd.f32 0.0, %v11025
      %11027 = vmatmul.bf16.gmra.mxu0 %v10968
      %v11028 = vpop.f32.mrf.mxu0
      %v11029 = vadd.f32 0.0, %v11028
      %v11030 = vpop.f32.mrf.mxu0
      %v11031 = vadd.f32 0.0, %v11030
      %11032 = vmatmul.bf16.gmra.mxu0 %v10971
      %v11033 = vpop.f32.mrf.mxu0
      %v11034 = vadd.f32 0.0, %v11033
      %v11035 = vpop.f32.mrf.mxu0
      %v11036 = vadd.f32 0.0, %v11035
      %11037 = vmatmul.bf16.gmra.mxu0 %v10974
      %v11038 = vpop.f32.mrf.mxu0
      %v11039 = vadd.f32 0.0, %v11038
      %v11040 = vpop.f32.mrf.mxu0
      %v11041 = vadd.f32 0.0, %v11040
      %11042 = vmatmul.bf16.gmra.mxu0 %v10977
      %v11043 = vpop.f32.mrf.mxu0
      %v11044 = vadd.f32 0.0, %v11043
      %v11045 = vpop.f32.mrf.mxu0
      %v11046 = vadd.f32 0.0, %v11045
      %11047 = vmatmul.bf16.gmra.mxu0 %v10980
      %v11048 = vpop.f32.mrf.mxu0
      %v11049 = vadd.f32 0.0, %v11048
      %v11050 = vpop.f32.mrf.mxu0
      %v11051 = vadd.f32 0.0, %v11050
      %11052 = vmatmul.bf16.gmra.mxu0 %v10983
      %v11053 = vpop.f32.mrf.mxu0
      %v11054 = vadd.f32 0.0, %v11053
      %v11055 = vpop.f32.mrf.mxu0
      %v11056 = vadd.f32 0.0, %v11055
      %11057 = vmatmul.bf16.gmra.mxu0 %v10986
      %v11058 = vpop.f32.mrf.mxu0
      %v11059 = vadd.f32 0.0, %v11058
      %v11060 = vpop.f32.mrf.mxu0
      %v11061 = vadd.f32 0.0, %v11060
      %11062 = vmatmul.bf16.gmra.mxu0 %v10989
      %v11063 = vpop.f32.mrf.mxu0
      %v11064 = vadd.f32 0.0, %v11063
      %v11065 = vpop.f32.mrf.mxu0
      %v11066 = vadd.f32 0.0, %v11065
      %11067 = vmatmul.bf16.gmra.mxu0 %v10992
      %v11068 = vpop.f32.mrf.mxu0
      %v11069 = vadd.f32 0.0, %v11068
      %v11070 = vpop.f32.mrf.mxu0
      %v11071 = vadd.f32 0.0, %v11070
      %11072 = vmatmul.bf16.gmra.mxu0 %v10995
      %v11073 = vpop.f32.mrf.mxu0
      %v11074 = vadd.f32 0.0, %v11073
      %v11075 = vpop.f32.mrf.mxu0
      %v11076 = vadd.f32 0.0, %v11075
      %11077 = vmatmul.bf16.gmra.mxu0 %v10998
      %v11078 = vpop.f32.mrf.mxu0
      %v11079 = vadd.f32 0.0, %v11078
      %v11080 = vpop.f32.mrf.mxu0
      %v11081 = vadd.f32 0.0, %v11080
      %11082 = vmatmul.bf16.gmra.mxu0 %v11001
      %v11083 = vpop.f32.mrf.mxu0
      %v11084 = vadd.f32 0.0, %v11083
      %v11085 = vpop.f32.mrf.mxu0
      %v11086 = vadd.f32 0.0, %v11085
      %11087 = vmatmul.bf16.gmra.mxu0 %v11004
      %v11088 = vpop.f32.mrf.mxu0
      %v11089 = vadd.f32 0.0, %v11088
      %v11090 = vpop.f32.mrf.mxu0
      %v11091 = vadd.f32 0.0, %v11090
      %11092 = vmatmul.bf16.gmra.mxu0 %v11007
      %v11093 = vpop.f32.mrf.mxu0
      %v11094 = vadd.f32 0.0, %v11093
      %v11095 = vpop.f32.mrf.mxu0
      %v11096 = vadd.f32 0.0, %v11095
      %11097 = vdwg.mxu0
      %v11098 = vadd.f32 %v10754, %v11019
      %v11099 = vadd.f32 %v10756, %v11021
      %v11100 = vadd.f32 %v10759, %v11024
      %v11101 = vadd.f32 %v10761, %v11026
      %v11102 = vadd.f32 %v10764, %v11029
      %v11103 = vadd.f32 %v10766, %v11031
      %v11104 = vadd.f32 %v10769, %v11034
      %v11105 = vadd.f32 %v10771, %v11036
      %v11106 = vadd.f32 %v10774, %v11039
      %v11107 = vadd.f32 %v10776, %v11041
      %v11108 = vadd.f32 %v10779, %v11044
      %v11109 = vadd.f32 %v10781, %v11046
      %v11110 = vadd.f32 %v10784, %v11049
      %v11111 = vadd.f32 %v10786, %v11051
      %v11112 = vadd.f32 %v10789, %v11054
      %v11113 = vadd.f32 %v10791, %v11056
      %v11114 = vadd.f32 %v10794, %v11059
      %v11115 = vadd.f32 %v10796, %v11061
      %v11116 = vadd.f32 %v10799, %v11064
      %v11117 = vadd.f32 %v10801, %v11066
      %v11118 = vadd.f32 %v10804, %v11069
      %v11119 = vadd.f32 %v10806, %v11071
      %v11120 = vadd.f32 %v10809, %v11074
      %v11121 = vadd.f32 %v10811, %v11076
      %v11122 = vadd.f32 %v10814, %v11079
      %v11123 = vadd.f32 %v10816, %v11081
      %v11124 = vadd.f32 %v10819, %v11084
      %v11125 = vadd.f32 %v10821, %v11086
      %v11126 = vadd.f32 %v10824, %v11089
      %v11127 = vadd.f32 %v10826, %v11091
      %v11128 = vadd.f32 %v10829, %v11094
      %v11129 = vadd.f32 %v10831, %v11096
      %v11130 = vsel %vm1538, %v10430, 0.0
      %v11131 = vsel %vm1539, %v10429, 0.0
      %v11132 = vsel %vm1540, %v10428, 0.0
      %v11133 = vsel %vm1541, %v10427, 0.0
      %v11134 = vsel %vm1542, %v10426, 0.0
      %v11135 = vsel %vm1543, %v10425, 0.0
      %v11136 = vsel %vm1544, %v10424, 0.0
      %v11137 = vsel %vm1545, %v10423, 0.0
      %v11138 = vsel %vm1546, %v10422, 0.0
      %v11139 = vsel %vm1547, %v10421, 0.0
      %v11140 = vsel %vm1548, %v10420, 0.0
      %v11141 = vsel %vm1549, %v10419, 0.0
      %v11142 = vsel %vm1550, %v10418, 0.0
      %v11143 = vsel %vm1551, %v10417, 0.0
      %v11144 = vsel %vm1552, %v10416, 0.0
      %v11145 = vsel %vm1553, %v10415, 0.0
      %v11146 = vsel %vm1554, %v10414, 0.0
      %v11147 = vsel %vm1555, %v10413, 0.0
      %v11148 = vsel %vm1556, %v10412, 0.0
      %v11149 = vsel %vm1557, %v10411, 0.0
      %v11150 = vsel %vm1558, %v10410, 0.0
      %v11151 = vsel %vm1559, %v10409, 0.0
      %v11152 = vsel %vm1560, %v10408, 0.0
      %v11153 = vsel %vm1561, %v10407, 0.0
      %v11154 = vsel %vm1562, %v10406, 0.0
      %v11155 = vsel %vm1563, %v10405, 0.0
      %v11156 = vsel %vm1564, %v10404, 0.0
      %v11157 = vsel %vm1565, %v10403, 0.0
      %v11158 = vsel %vm1566, %v10402, 0.0
      %v11159 = vsel %vm1567, %v10401, 0.0
      %v11160 = vsel %vm1568, %v10400, 0.0
      %v11161 = vsel %vm1569, %v10399, 0.0
      %v11162 = vpack.c.bf16 %v11131, %v11130
      %v11163 = vpack.c.bf16 %v11133, %v11132
      %v11164 = vpack.c.bf16 %v11135, %v11134
      %v11165 = vpack.c.bf16 %v11137, %v11136
      %v11166 = vpack.c.bf16 %v11139, %v11138
      %v11167 = vpack.c.bf16 %v11141, %v11140
      %v11168 = vpack.c.bf16 %v11143, %v11142
      %v11169 = vpack.c.bf16 %v11145, %v11144
      %v11170 = vpack.c.bf16 %v11147, %v11146
      %v11171 = vpack.c.bf16 %v11149, %v11148
      %v11172 = vpack.c.bf16 %v11151, %v11150
      %v11173 = vpack.c.bf16 %v11153, %v11152
      %v11174 = vpack.c.bf16 %v11155, %v11154
      %v11175 = vpack.c.bf16 %v11157, %v11156
      %v11176 = vpack.c.bf16 %v11159, %v11158
      %v11177 = vpack.c.bf16 %v11161, %v11160
      %v11178 = vld [vmem:[%s5 + $0x30] sm:$0xf]
      %v11179 = vld [vmem:[%s5 + $0x34] sm:$0xf]
      %v11180 = vld [vmem:[%s5 + $0x38] sm:$0xf]
      %v11181 = vld [vmem:[%s5 + $0x3c] sm:$0xf]
      %v11186 = vunpack.c.l.b16 %v11178
      %v11187 = vunpack.c.l.b16 %v11179
      %v11188 = vunpack.c.l.b16 %v11180
      %v11189 = vunpack.c.l.b16 %v11181
      %v11190 = vpack.c.b16 %v11187, %v11186
      %v11191 = vpack.c.b16 %v11189, %v11188
      %v11195 = vsel %vm3529, %v11162, 0
      %v11198 = vsel %vm3529, %v11163, 0
      %v11201 = vsel %vm3529, %v11164, 0
      %v11204 = vsel %vm3529, %v11165, 0
      %v11207 = vsel %vm3529, %v11166, 0
      %v11210 = vsel %vm3529, %v11167, 0
      %v11213 = vsel %vm3529, %v11168, 0
      %v11216 = vsel %vm3529, %v11169, 0
      %v11219 = vsel %vm3529, %v11170, 0
      %v11222 = vsel %vm3529, %v11171, 0
      %v11225 = vsel %vm3529, %v11172, 0
      %v11228 = vsel %vm3529, %v11173, 0
      %v11231 = vsel %vm3529, %v11174, 0
      %v11234 = vsel %vm3529, %v11175, 0
      %v11237 = vsel %vm3529, %v11176, 0
      %v11240 = vsel %vm3529, %v11177, 0
      %11242 = vmatpush.bf16.msra.mxu0 0
      %11243 = vmatpush.bf16.msra.mxu0 0
      %11244 = vmatpush.bf16.msra.mxu0 0
      %11245 = vmatpush.bf16.msra.mxu0 0
      %11246 = vmatpush.bf16.msra.mxu0 0
      %11247 = vmatpush.bf16.msra.mxu0 0
      %11248 = vmatpush.bf16.msra.mxu0 %v11191
      %11249 = vmatpush.bf16.msra.mxu0 %v11190
      %11250 = vmatmul.bf16.gmra.mxu0 %v11195
      %v11251 = vpop.f32.mrf.mxu0
      %v11252 = vadd.f32 0.0, %v11251
      %v11253 = vpop.f32.mrf.mxu0
      %v11254 = vadd.f32 0.0, %v11253
      %11255 = vmatmul.bf16.gmra.mxu0 %v11198
      %v11256 = vpop.f32.mrf.mxu0
      %v11257 = vadd.f32 0.0, %v11256
      %v11258 = vpop.f32.mrf.mxu0
      %v11259 = vadd.f32 0.0, %v11258
      %11260 = vmatmul.bf16.gmra.mxu0 %v11201
      %v11261 = vpop.f32.mrf.mxu0
      %v11262 = vadd.f32 0.0, %v11261
      %v11263 = vpop.f32.mrf.mxu0
      %v11264 = vadd.f32 0.0, %v11263
      %11265 = vmatmul.bf16.gmra.mxu0 %v11204
      %v11266 = vpop.f32.mrf.mxu0
      %v11267 = vadd.f32 0.0, %v11266
      %v11268 = vpop.f32.mrf.mxu0
      %v11269 = vadd.f32 0.0, %v11268
      %11270 = vmatmul.bf16.gmra.mxu0 %v11207
      %v11271 = vpop.f32.mrf.mxu0
      %v11272 = vadd.f32 0.0, %v11271
      %v11273 = vpop.f32.mrf.mxu0
      %v11274 = vadd.f32 0.0, %v11273
      %11275 = vmatmul.bf16.gmra.mxu0 %v11210
      %v11276 = vpop.f32.mrf.mxu0
      %v11277 = vadd.f32 0.0, %v11276
      %v11278 = vpop.f32.mrf.mxu0
      %v11279 = vadd.f32 0.0, %v11278
      %11280 = vmatmul.bf16.gmra.mxu0 %v11213
      %v11281 = vpop.f32.mrf.mxu0
      %v11282 = vadd.f32 0.0, %v11281
      %v11283 = vpop.f32.mrf.mxu0
      %v11284 = vadd.f32 0.0, %v11283
      %11285 = vmatmul.bf16.gmra.mxu0 %v11216
      %v11286 = vpop.f32.mrf.mxu0
      %v11287 = vadd.f32 0.0, %v11286
      %v11288 = vpop.f32.mrf.mxu0
      %v11289 = vadd.f32 0.0, %v11288
      %11290 = vmatmul.bf16.gmra.mxu0 %v11219
      %v11291 = vpop.f32.mrf.mxu0
      %v11292 = vadd.f32 0.0, %v11291
      %v11293 = vpop.f32.mrf.mxu0
      %v11294 = vadd.f32 0.0, %v11293
      %11295 = vmatmul.bf16.gmra.mxu0 %v11222
      %v11296 = vpop.f32.mrf.mxu0
      %v11297 = vadd.f32 0.0, %v11296
      %v11298 = vpop.f32.mrf.mxu0
      %v11299 = vadd.f32 0.0, %v11298
      %11300 = vmatmul.bf16.gmra.mxu0 %v11225
      %v11301 = vpop.f32.mrf.mxu0
      %v11302 = vadd.f32 0.0, %v11301
      %v11303 = vpop.f32.mrf.mxu0
      %v11304 = vadd.f32 0.0, %v11303
      %11305 = vmatmul.bf16.gmra.mxu0 %v11228
      %v11306 = vpop.f32.mrf.mxu0
      %v11307 = vadd.f32 0.0, %v11306
      %v11308 = vpop.f32.mrf.mxu0
      %v11309 = vadd.f32 0.0, %v11308
      %11310 = vmatmul.bf16.gmra.mxu0 %v11231
      %v11311 = vpop.f32.mrf.mxu0
      %v11312 = vadd.f32 0.0, %v11311
      %v11313 = vpop.f32.mrf.mxu0
      %v11314 = vadd.f32 0.0, %v11313
      %11315 = vmatmul.bf16.gmra.mxu0 %v11234
      %v11316 = vpop.f32.mrf.mxu0
      %v11317 = vadd.f32 0.0, %v11316
      %v11318 = vpop.f32.mrf.mxu0
      %v11319 = vadd.f32 0.0, %v11318
      %11320 = vmatmul.bf16.gmra.mxu0 %v11237
      %v11321 = vpop.f32.mrf.mxu0
      %v11322 = vadd.f32 0.0, %v11321
      %v11323 = vpop.f32.mrf.mxu0
      %v11324 = vadd.f32 0.0, %v11323
      %11325 = vmatmul.bf16.gmra.mxu0 %v11240
      %v11326 = vpop.f32.mrf.mxu0
      %v11327 = vadd.f32 0.0, %v11326
      %v11328 = vpop.f32.mrf.mxu0
      %v11329 = vadd.f32 0.0, %v11328
      %11330 = vdwg.mxu0
      %v11331 = vadd.f32 %v11098, %v11252
      %v11332 = vadd.f32 %v11099, %v11254
      %v11333 = vadd.f32 %v11100, %v11257
      %v11334 = vadd.f32 %v11101, %v11259
      %v11335 = vadd.f32 %v11102, %v11262
      %v11336 = vadd.f32 %v11103, %v11264
      %v11337 = vadd.f32 %v11104, %v11267
      %v11338 = vadd.f32 %v11105, %v11269
      %v11339 = vadd.f32 %v11106, %v11272
      %v11340 = vadd.f32 %v11107, %v11274
      %v11341 = vadd.f32 %v11108, %v11277
      %v11342 = vadd.f32 %v11109, %v11279
      %v11343 = vadd.f32 %v11110, %v11282
      %v11344 = vadd.f32 %v11111, %v11284
      %v11345 = vadd.f32 %v11112, %v11287
      %v11346 = vadd.f32 %v11113, %v11289
      %v11347 = vadd.f32 %v11114, %v11292
      %v11348 = vadd.f32 %v11115, %v11294
      %v11349 = vadd.f32 %v11116, %v11297
      %v11350 = vadd.f32 %v11117, %v11299
      %v11351 = vadd.f32 %v11118, %v11302
      %v11352 = vadd.f32 %v11119, %v11304
      %v11353 = vadd.f32 %v11120, %v11307
      %v11354 = vadd.f32 %v11121, %v11309
      %v11355 = vadd.f32 %v11122, %v11312
      %v11356 = vadd.f32 %v11123, %v11314
      %v11357 = vadd.f32 %v11124, %v11317
      %v11358 = vadd.f32 %v11125, %v11319
      %v11359 = vadd.f32 %v11126, %v11322
      %v11360 = vadd.f32 %v11127, %v11324
      %v11361 = vadd.f32 %v11128, %v11327
      %v11362 = vadd.f32 %v11129, %v11329
      %v11363 = vpack.c.bf16 %v10336, %v10335
      %v11364 = vpack.c.bf16 %v10338, %v10337
      %v11365 = vpack.c.bf16 %v10340, %v10339
      %v11366 = vpack.c.bf16 %v10342, %v10341
      %v11367 = vpack.c.bf16 %v10344, %v10343
      %v11368 = vpack.c.bf16 %v10346, %v10345
      %v11369 = vpack.c.bf16 %v10348, %v10347
      %v11370 = vpack.c.bf16 %v10350, %v10349
      %v11371 = vpack.c.bf16 %v10352, %v10351
      %v11372 = vpack.c.bf16 %v10354, %v10353
      %v11373 = vpack.c.bf16 %v10356, %v10355
      %v11374 = vpack.c.bf16 %v10358, %v10357
      %v11375 = vpack.c.bf16 %v10360, %v10359
      %v11376 = vpack.c.bf16 %v10362, %v10361
      %v11377 = vpack.c.bf16 %v10364, %v10363
      %v11378 = vpack.c.bf16 %v10366, %v10365
      %v11379 = vld [vmem:[%s5 + $0x40] sm:$0xf]
      %v11380 = vld [vmem:[%s5 + $0x44] sm:$0xf]
      %v11381 = vld [vmem:[%s5 + $0x48] sm:$0xf]
      %v11382 = vld [vmem:[%s5 + $0x4c] sm:$0xf]
      %v11387 = vunpack.c.l.b16 %v11379
      %v11388 = vunpack.c.l.b16 %v11380
      %v11389 = vunpack.c.l.b16 %v11381
      %v11390 = vunpack.c.l.b16 %v11382
      %v11391 = vpack.c.b16 %v11388, %v11387
      %v11392 = vpack.c.b16 %v11390, %v11389
      %v11396 = vsel %vm3529, %v11363, 0
      %v11399 = vsel %vm3529, %v11364, 0
      %v11402 = vsel %vm3529, %v11365, 0
      %v11405 = vsel %vm3529, %v11366, 0
      %v11408 = vsel %vm3529, %v11367, 0
      %v11411 = vsel %vm3529, %v11368, 0
      %v11414 = vsel %vm3529, %v11369, 0
      %v11417 = vsel %vm3529, %v11370, 0
      %v11420 = vsel %vm3529, %v11371, 0
      %v11423 = vsel %vm3529, %v11372, 0
      %v11426 = vsel %vm3529, %v11373, 0
      %v11429 = vsel %vm3529, %v11374, 0
      %v11432 = vsel %vm3529, %v11375, 0
      %v11435 = vsel %vm3529, %v11376, 0
      %v11438 = vsel %vm3529, %v11377, 0
      %v11441 = vsel %vm3529, %v11378, 0
      %11443 = vmatpush.bf16.msra.mxu0 0
      %11444 = vmatpush.bf16.msra.mxu0 0
      %11445 = vmatpush.bf16.msra.mxu0 0
      %11446 = vmatpush.bf16.msra.mxu0 0
      %11447 = vmatpush.bf16.msra.mxu0 0
      %11448 = vmatpush.bf16.msra.mxu0 0
      %11449 = vmatpush.bf16.msra.mxu0 %v11392
      %11450 = vmatpush.bf16.msra.mxu0 %v11391
      %11451 = vmatmul.bf16.gmra.mxu0 %v11396
      %v11452 = vpop.f32.mrf.mxu0
      %v11453 = vadd.f32 0.0, %v11452
      %v11454 = vpop.f32.mrf.mxu0
      %v11455 = vadd.f32 0.0, %v11454
      %11456 = vmatmul.bf16.gmra.mxu0 %v11399
      %v11457 = vpop.f32.mrf.mxu0
      %v11458 = vadd.f32 0.0, %v11457
      %v11459 = vpop.f32.mrf.mxu0
      %v11460 = vadd.f32 0.0, %v11459
      %11461 = vmatmul.bf16.gmra.mxu0 %v11402
      %v11462 = vpop.f32.mrf.mxu0
      %v11463 = vadd.f32 0.0, %v11462
      %v11464 = vpop.f32.mrf.mxu0
      %v11465 = vadd.f32 0.0, %v11464
      %11466 = vmatmul.bf16.gmra.mxu0 %v11405
      %v11467 = vpop.f32.mrf.mxu0
      %v11468 = vadd.f32 0.0, %v11467
      %v11469 = vpop.f32.mrf.mxu0
      %v11470 = vadd.f32 0.0, %v11469
      %11471 = vmatmul.bf16.gmra.mxu0 %v11408
      %v11472 = vpop.f32.mrf.mxu0
      %v11473 = vadd.f32 0.0, %v11472
      %v11474 = vpop.f32.mrf.mxu0
      %v11475 = vadd.f32 0.0, %v11474
      %11476 = vmatmul.bf16.gmra.mxu0 %v11411
      %v11477 = vpop.f32.mrf.mxu0
      %v11478 = vadd.f32 0.0, %v11477
      %v11479 = vpop.f32.mrf.mxu0
      %v11480 = vadd.f32 0.0, %v11479
      %11481 = vmatmul.bf16.gmra.mxu0 %v11414
      %v11482 = vpop.f32.mrf.mxu0
      %v11483 = vadd.f32 0.0, %v11482
      %v11484 = vpop.f32.mrf.mxu0
      %v11485 = vadd.f32 0.0, %v11484
      %11486 = vmatmul.bf16.gmra.mxu0 %v11417
      %v11487 = vpop.f32.mrf.mxu0
      %v11488 = vadd.f32 0.0, %v11487
      %v11489 = vpop.f32.mrf.mxu0
      %v11490 = vadd.f32 0.0, %v11489
      %11491 = vmatmul.bf16.gmra.mxu0 %v11420
      %v11492 = vpop.f32.mrf.mxu0
      %v11493 = vadd.f32 0.0, %v11492
      %v11494 = vpop.f32.mrf.mxu0
      %v11495 = vadd.f32 0.0, %v11494
      %11496 = vmatmul.bf16.gmra.mxu0 %v11423
      %v11497 = vpop.f32.mrf.mxu0
      %v11498 = vadd.f32 0.0, %v11497
      %v11499 = vpop.f32.mrf.mxu0
      %v11500 = vadd.f32 0.0, %v11499
      %11501 = vmatmul.bf16.gmra.mxu0 %v11426
      %v11502 = vpop.f32.mrf.mxu0
      %v11503 = vadd.f32 0.0, %v11502
      %v11504 = vpop.f32.mrf.mxu0
      %v11505 = vadd.f32 0.0, %v11504
      %11506 = vmatmul.bf16.gmra.mxu0 %v11429
      %v11507 = vpop.f32.mrf.mxu0
      %v11508 = vadd.f32 0.0, %v11507
      %v11509 = vpop.f32.mrf.mxu0
      %v11510 = vadd.f32 0.0, %v11509
      %11511 = vmatmul.bf16.gmra.mxu0 %v11432
      %v11512 = vpop.f32.mrf.mxu0
      %v11513 = vadd.f32 0.0, %v11512
      %v11514 = vpop.f32.mrf.mxu0
      %v11515 = vadd.f32 0.0, %v11514
      %11516 = vmatmul.bf16.gmra.mxu0 %v11435
      %v11517 = vpop.f32.mrf.mxu0
      %v11518 = vadd.f32 0.0, %v11517
      %v11519 = vpop.f32.mrf.mxu0
      %v11520 = vadd.f32 0.0, %v11519
      %11521 = vmatmul.bf16.gmra.mxu0 %v11438
      %v11522 = vpop.f32.mrf.mxu0
      %v11523 = vadd.f32 0.0, %v11522
      %v11524 = vpop.f32.mrf.mxu0
      %v11525 = vadd.f32 0.0, %v11524
      %11526 = vmatmul.bf16.gmra.mxu0 %v11441
      %v11527 = vpop.f32.mrf.mxu0
      %v11528 = vadd.f32 0.0, %v11527
      %v11529 = vpop.f32.mrf.mxu0
      %v11530 = vadd.f32 0.0, %v11529
      %11531 = vdwg.mxu0
      %v11532 = vadd.f32 %v11331, %v11453
      %v11533 = vadd.f32 %v11332, %v11455
      %v11534 = vadd.f32 %v11333, %v11458
      %v11535 = vadd.f32 %v11334, %v11460
      %v11536 = vadd.f32 %v11335, %v11463
      %v11537 = vadd.f32 %v11336, %v11465
      %v11538 = vadd.f32 %v11337, %v11468
      %v11539 = vadd.f32 %v11338, %v11470
      %v11540 = vadd.f32 %v11339, %v11473
      %v11541 = vadd.f32 %v11340, %v11475
      %v11542 = vadd.f32 %v11341, %v11478
      %v11543 = vadd.f32 %v11342, %v11480
      %v11544 = vadd.f32 %v11343, %v11483
      %v11545 = vadd.f32 %v11344, %v11485
      %v11546 = vadd.f32 %v11345, %v11488
      %v11547 = vadd.f32 %v11346, %v11490
      %v11548 = vadd.f32 %v11347, %v11493
      %v11549 = vadd.f32 %v11348, %v11495
      %v11550 = vadd.f32 %v11349, %v11498
      %v11551 = vadd.f32 %v11350, %v11500
      %v11552 = vadd.f32 %v11351, %v11503
      %v11553 = vadd.f32 %v11352, %v11505
      %v11554 = vadd.f32 %v11353, %v11508
      %v11555 = vadd.f32 %v11354, %v11510
      %v11556 = vadd.f32 %v11355, %v11513
      %v11557 = vadd.f32 %v11356, %v11515
      %v11558 = vadd.f32 %v11357, %v11518
      %v11559 = vadd.f32 %v11358, %v11520
      %v11560 = vadd.f32 %v11359, %v11523
      %v11561 = vadd.f32 %v11360, %v11525
      %v11562 = vadd.f32 %v11361, %v11528
      %v11563 = vadd.f32 %v11362, %v11530
      %v11564 = vsel %vm1730, %v10895, 0.0
      %v11565 = vsel %vm1731, %v10894, 0.0
      %v11566 = vsel %vm1732, %v10893, 0.0
      %v11567 = vsel %vm1733, %v10892, 0.0
      %v11568 = vsel %vm1734, %v10891, 0.0
      %v11569 = vsel %vm1735, %v10890, 0.0
      %v11570 = vsel %vm1736, %v10889, 0.0
      %v11571 = vsel %vm1737, %v10888, 0.0
      %v11572 = vsel %vm1738, %v10887, 0.0
      %v11573 = vsel %vm1739, %v10886, 0.0
      %v11574 = vsel %vm1740, %v10885, 0.0
      %v11575 = vsel %vm1741, %v10884, 0.0
      %v11576 = vsel %vm1742, %v10883, 0.0
      %v11577 = vsel %vm1743, %v10882, 0.0
      %v11578 = vsel %vm1744, %v10881, 0.0
      %v11579 = vsel %vm1745, %v10880, 0.0
      %v11580 = vsel %vm1746, %v10879, 0.0
      %v11581 = vsel %vm1747, %v10878, 0.0
      %v11582 = vsel %vm1748, %v10877, 0.0
      %v11583 = vsel %vm1749, %v10876, 0.0
      %v11584 = vsel %vm1750, %v10875, 0.0
      %v11585 = vsel %vm1751, %v10874, 0.0
      %v11586 = vsel %vm1752, %v10873, 0.0
      %v11587 = vsel %vm1753, %v10872, 0.0
      %v11588 = vsel %vm1754, %v10871, 0.0
      %v11589 = vsel %vm1755, %v10870, 0.0
      %v11590 = vsel %vm1756, %v10869, 0.0
      %v11591 = vsel %vm1757, %v10868, 0.0
      %v11592 = vsel %vm1758, %v10867, 0.0
      %v11593 = vsel %vm1759, %v10866, 0.0
      %v11594 = vsel %vm1760, %v10865, 0.0
      %v11595 = vsel %vm1761, %v10896, 0.0
      %v11596 = vpack.c.bf16 %v11565, %v11564
      %v11597 = vpack.c.bf16 %v11567, %v11566
      %v11598 = vpack.c.bf16 %v11569, %v11568
      %v11599 = vpack.c.bf16 %v11571, %v11570
      %v11600 = vpack.c.bf16 %v11573, %v11572
      %v11601 = vpack.c.bf16 %v11575, %v11574
      %v11602 = vpack.c.bf16 %v11577, %v11576
      %v11603 = vpack.c.bf16 %v11579, %v11578
      %v11604 = vpack.c.bf16 %v11581, %v11580
      %v11605 = vpack.c.bf16 %v11583, %v11582
      %v11606 = vpack.c.bf16 %v11585, %v11584
      %v11607 = vpack.c.bf16 %v11587, %v11586
      %v11608 = vpack.c.bf16 %v11589, %v11588
      %v11609 = vpack.c.bf16 %v11591, %v11590
      %v11610 = vpack.c.bf16 %v11593, %v11592
      %v11611 = vpack.c.bf16 %v11595, %v11594
      %v11612 = vld [vmem:[%s5 + $0x50] sm:$0xf]
      %v11613 = vld [vmem:[%s5 + $0x54] sm:$0xf]
      %v11614 = vld [vmem:[%s5 + $0x58] sm:$0xf]
      %v11615 = vld [vmem:[%s5 + $0x5c] sm:$0xf]
      %v11620 = vunpack.c.l.b16 %v11612
      %v11621 = vunpack.c.l.b16 %v11613
      %v11622 = vunpack.c.l.b16 %v11614
      %v11623 = vunpack.c.l.b16 %v11615
      %v11624 = vpack.c.b16 %v11621, %v11620
      %v11625 = vpack.c.b16 %v11623, %v11622
      %v11629 = vsel %vm3529, %v11596, 0
      %v11632 = vsel %vm3529, %v11597, 0
      %v11635 = vsel %vm3529, %v11598, 0
      %v11638 = vsel %vm3529, %v11599, 0
      %v11641 = vsel %vm3529, %v11600, 0
      %v11644 = vsel %vm3529, %v11601, 0
      %v11647 = vsel %vm3529, %v11602, 0
      %v11650 = vsel %vm3529, %v11603, 0
      %v11653 = vsel %vm3529, %v11604, 0
      %v11656 = vsel %vm3529, %v11605, 0
      %v11659 = vsel %vm3529, %v11606, 0
      %v11662 = vsel %vm3529, %v11607, 0
      %v11665 = vsel %vm3529, %v11608, 0
      %v11668 = vsel %vm3529, %v11609, 0
      %v11671 = vsel %vm3529, %v11610, 0
      %v11674 = vsel %vm3529, %v11611, 0
      %11676 = vmatpush.bf16.msra.mxu0 0
      %11677 = vmatpush.bf16.msra.mxu0 0
      %11678 = vmatpush.bf16.msra.mxu0 0
      %11679 = vmatpush.bf16.msra.mxu0 0
      %11680 = vmatpush.bf16.msra.mxu0 0
      %11681 = vmatpush.bf16.msra.mxu0 0
      %11682 = vmatpush.bf16.msra.mxu0 %v11625
      %11683 = vmatpush.bf16.msra.mxu0 %v11624
      %11684 = vmatmul.bf16.gmra.mxu0 %v11629
      %v11685 = vpop.f32.mrf.mxu0
      %v11686 = vadd.f32 0.0, %v11685
      %v11687 = vpop.f32.mrf.mxu0
      %v11688 = vadd.f32 0.0, %v11687
      %11689 = vmatmul.bf16.gmra.mxu0 %v11632
      %v11690 = vpop.f32.mrf.mxu0
      %v11691 = vadd.f32 0.0, %v11690
      %v11692 = vpop.f32.mrf.mxu0
      %v11693 = vadd.f32 0.0, %v11692
      %11694 = vmatmul.bf16.gmra.mxu0 %v11635
      %v11695 = vpop.f32.mrf.mxu0
      %v11696 = vadd.f32 0.0, %v11695
      %v11697 = vpop.f32.mrf.mxu0
      %v11698 = vadd.f32 0.0, %v11697
      %11699 = vmatmul.bf16.gmra.mxu0 %v11638
      %v11700 = vpop.f32.mrf.mxu0
      %v11701 = vadd.f32 0.0, %v11700
      %v11702 = vpop.f32.mrf.mxu0
      %v11703 = vadd.f32 0.0, %v11702
      %11704 = vmatmul.bf16.gmra.mxu0 %v11641
      %v11705 = vpop.f32.mrf.mxu0
      %v11706 = vadd.f32 0.0, %v11705
      %v11707 = vpop.f32.mrf.mxu0
      %v11708 = vadd.f32 0.0, %v11707
      %11709 = vmatmul.bf16.gmra.mxu0 %v11644
      %v11710 = vpop.f32.mrf.mxu0
      %v11711 = vadd.f32 0.0, %v11710
      %v11712 = vpop.f32.mrf.mxu0
      %v11713 = vadd.f32 0.0, %v11712
      %11714 = vmatmul.bf16.gmra.mxu0 %v11647
      %v11715 = vpop.f32.mrf.mxu0
      %v11716 = vadd.f32 0.0, %v11715
      %v11717 = vpop.f32.mrf.mxu0
      %v11718 = vadd.f32 0.0, %v11717
      %11719 = vmatmul.bf16.gmra.mxu0 %v11650
      %v11720 = vpop.f32.mrf.mxu0
      %v11721 = vadd.f32 0.0, %v11720
      %v11722 = vpop.f32.mrf.mxu0
      %v11723 = vadd.f32 0.0, %v11722
      %11724 = vmatmul.bf16.gmra.mxu0 %v11653
      %v11725 = vpop.f32.mrf.mxu0
      %v11726 = vadd.f32 0.0, %v11725
      %v11727 = vpop.f32.mrf.mxu0
      %v11728 = vadd.f32 0.0, %v11727
      %11729 = vmatmul.bf16.gmra.mxu0 %v11656
      %v11730 = vpop.f32.mrf.mxu0
      %v11731 = vadd.f32 0.0, %v11730
      %v11732 = vpop.f32.mrf.mxu0
      %v11733 = vadd.f32 0.0, %v11732
      %11734 = vmatmul.bf16.gmra.mxu0 %v11659
      %v11735 = vpop.f32.mrf.mxu0
      %v11736 = vadd.f32 0.0, %v11735
      %v11737 = vpop.f32.mrf.mxu0
      %v11738 = vadd.f32 0.0, %v11737
      %11739 = vmatmul.bf16.gmra.mxu0 %v11662
      %v11740 = vpop.f32.mrf.mxu0
      %v11741 = vadd.f32 0.0, %v11740
      %v11742 = vpop.f32.mrf.mxu0
      %v11743 = vadd.f32 0.0, %v11742
      %11744 = vmatmul.bf16.gmra.mxu0 %v11665
      %v11745 = vpop.f32.mrf.mxu0
      %v11746 = vadd.f32 0.0, %v11745
      %v11747 = vpop.f32.mrf.mxu0
      %v11748 = vadd.f32 0.0, %v11747
      %11749 = vmatmul.bf16.gmra.mxu0 %v11668
      %v11750 = vpop.f32.mrf.mxu0
      %v11751 = vadd.f32 0.0, %v11750
      %v11752 = vpop.f32.mrf.mxu0
      %v11753 = vadd.f32 0.0, %v11752
      %11754 = vmatmul.bf16.gmra.mxu0 %v11671
      %v11755 = vpop.f32.mrf.mxu0
      %v11756 = vadd.f32 0.0, %v11755
      %v11757 = vpop.f32.mrf.mxu0
      %v11758 = vadd.f32 0.0, %v11757
      %11759 = vmatmul.bf16.gmra.mxu0 %v11674
      %v11760 = vpop.f32.mrf.mxu0
      %v11761 = vadd.f32 0.0, %v11760
      %v11762 = vpop.f32.mrf.mxu0
      %v11763 = vadd.f32 0.0, %v11762
      %11764 = vdwg.mxu0
      %v11765 = vadd.f32 %v11532, %v11686
      %v11766 = vadd.f32 %v11533, %v11688
      %v11767 = vadd.f32 %v11534, %v11691
      %v11768 = vadd.f32 %v11535, %v11693
      %v11769 = vadd.f32 %v11536, %v11696
      %v11770 = vadd.f32 %v11537, %v11698
      %v11771 = vadd.f32 %v11538, %v11701
      %v11772 = vadd.f32 %v11539, %v11703
      %v11773 = vadd.f32 %v11540, %v11706
      %v11774 = vadd.f32 %v11541, %v11708
      %v11775 = vadd.f32 %v11542, %v11711
      %v11776 = vadd.f32 %v11543, %v11713
      %v11777 = vadd.f32 %v11544, %v11716
      %v11778 = vadd.f32 %v11545, %v11718
      %v11779 = vadd.f32 %v11546, %v11721
      %v11780 = vadd.f32 %v11547, %v11723
      %v11781 = vadd.f32 %v11548, %v11726
      %v11782 = vadd.f32 %v11549, %v11728
      %v11783 = vadd.f32 %v11550, %v11731
      %v11784 = vadd.f32 %v11551, %v11733
      %v11785 = vadd.f32 %v11552, %v11736
      %v11786 = vadd.f32 %v11553, %v11738
      %v11787 = vadd.f32 %v11554, %v11741
      %v11788 = vadd.f32 %v11555, %v11743
      %v11789 = vadd.f32 %v11556, %v11746
      %v11790 = vadd.f32 %v11557, %v11748
      %v11791 = vadd.f32 %v11558, %v11751
      %v11792 = vadd.f32 %v11559, %v11753
      %v11793 = vadd.f32 %v11560, %v11756
      %v11794 = vadd.f32 %v11561, %v11758
      %v11795 = vadd.f32 %v11562, %v11761
      %v11796 = vadd.f32 %v11563, %v11763
      %v11797 = vsel %vm1922, %v10428, 0.0
      %v11798 = vsel %vm1923, %v10427, 0.0
      %v11799 = vsel %vm1924, %v10426, 0.0
      %v11800 = vsel %vm1925, %v10425, 0.0
      %v11801 = vsel %vm1926, %v10424, 0.0
      %v11802 = vsel %vm1927, %v10423, 0.0
      %v11803 = vsel %vm1928, %v10422, 0.0
      %v11804 = vsel %vm1929, %v10421, 0.0
      %v11805 = vsel %vm1930, %v10420, 0.0
      %v11806 = vsel %vm1931, %v10419, 0.0
      %v11807 = vsel %vm1932, %v10418, 0.0
      %v11808 = vsel %vm1933, %v10417, 0.0
      %v11809 = vsel %vm1934, %v10416, 0.0
      %v11810 = vsel %vm1935, %v10415, 0.0
      %v11811 = vsel %vm1936, %v10414, 0.0
      %v11812 = vsel %vm1937, %v10413, 0.0
      %v11813 = vsel %vm1938, %v10412, 0.0
      %v11814 = vsel %vm1939, %v10411, 0.0
      %v11815 = vsel %vm1940, %v10410, 0.0
      %v11816 = vsel %vm1941, %v10409, 0.0
      %v11817 = vsel %vm1942, %v10408, 0.0
      %v11818 = vsel %vm1943, %v10407, 0.0
      %v11819 = vsel %vm1944, %v10406, 0.0
      %v11820 = vsel %vm1945, %v10405, 0.0
      %v11821 = vsel %vm1946, %v10404, 0.0
      %v11822 = vsel %vm1947, %v10403, 0.0
      %v11823 = vsel %vm1948, %v10402, 0.0
      %v11824 = vsel %vm1949, %v10401, 0.0
      %v11825 = vsel %vm1950, %v10400, 0.0
      %v11826 = vsel %vm1951, %v10399, 0.0
      %v11827 = vsel %vm1952, %v10430, 0.0
      %v11828 = vsel %vm1953, %v10429, 0.0
      %v11829 = vpack.c.bf16 %v11798, %v11797
      %v11830 = vpack.c.bf16 %v11800, %v11799
      %v11831 = vpack.c.bf16 %v11802, %v11801
      %v11832 = vpack.c.bf16 %v11804, %v11803
      %v11833 = vpack.c.bf16 %v11806, %v11805
      %v11834 = vpack.c.bf16 %v11808, %v11807
      %v11835 = vpack.c.bf16 %v11810, %v11809
      %v11836 = vpack.c.bf16 %v11812, %v11811
      %v11837 = vpack.c.bf16 %v11814, %v11813
      %v11838 = vpack.c.bf16 %v11816, %v11815
      %v11839 = vpack.c.bf16 %v11818, %v11817
      %v11840 = vpack.c.bf16 %v11820, %v11819
      %v11841 = vpack.c.bf16 %v11822, %v11821
      %v11842 = vpack.c.bf16 %v11824, %v11823
      %v11843 = vpack.c.bf16 %v11826, %v11825
      %v11844 = vpack.c.bf16 %v11828, %v11827
      %v11845 = vld [vmem:[%s5 + $0x60] sm:$0xf]
      %v11846 = vld [vmem:[%s5 + $0x64] sm:$0xf]
      %v11847 = vld [vmem:[%s5 + $0x68] sm:$0xf]
      %v11848 = vld [vmem:[%s5 + $0x6c] sm:$0xf]
      %v11853 = vunpack.c.l.b16 %v11845
      %v11854 = vunpack.c.l.b16 %v11846
      %v11855 = vunpack.c.l.b16 %v11847
      %v11856 = vunpack.c.l.b16 %v11848
      %v11857 = vpack.c.b16 %v11854, %v11853
      %v11858 = vpack.c.b16 %v11856, %v11855
      %v11862 = vsel %vm3529, %v11829, 0
      %v11865 = vsel %vm3529, %v11830, 0
      %v11868 = vsel %vm3529, %v11831, 0
      %v11871 = vsel %vm3529, %v11832, 0
      %v11874 = vsel %vm3529, %v11833, 0
      %v11877 = vsel %vm3529, %v11834, 0
      %v11880 = vsel %vm3529, %v11835, 0
      %v11883 = vsel %vm3529, %v11836, 0
      %v11886 = vsel %vm3529, %v11837, 0
      %v11889 = vsel %vm3529, %v11838, 0
      %v11892 = vsel %vm3529, %v11839, 0
      %v11895 = vsel %vm3529, %v11840, 0
      %v11898 = vsel %vm3529, %v11841, 0
      %v11901 = vsel %vm3529, %v11842, 0
      %v11904 = vsel %vm3529, %v11843, 0
      %v11907 = vsel %vm3529, %v11844, 0
      %11909 = vmatpush.bf16.msra.mxu0 0
      %11910 = vmatpush.bf16.msra.mxu0 0
      %11911 = vmatpush.bf16.msra.mxu0 0
      %11912 = vmatpush.bf16.msra.mxu0 0
      %11913 = vmatpush.bf16.msra.mxu0 0
      %11914 = vmatpush.bf16.msra.mxu0 0
      %11915 = vmatpush.bf16.msra.mxu0 %v11858
      %11916 = vmatpush.bf16.msra.mxu0 %v11857
      %11917 = vmatmul.bf16.gmra.mxu0 %v11862
      %v11918 = vpop.f32.mrf.mxu0
      %v11919 = vadd.f32 0.0, %v11918
      %v11920 = vpop.f32.mrf.mxu0
      %v11921 = vadd.f32 0.0, %v11920
      %11922 = vmatmul.bf16.gmra.mxu0 %v11865
      %v11923 = vpop.f32.mrf.mxu0
      %v11924 = vadd.f32 0.0, %v11923
      %v11925 = vpop.f32.mrf.mxu0
      %v11926 = vadd.f32 0.0, %v11925
      %11927 = vmatmul.bf16.gmra.mxu0 %v11868
      %v11928 = vpop.f32.mrf.mxu0
      %v11929 = vadd.f32 0.0, %v11928
      %v11930 = vpop.f32.mrf.mxu0
      %v11931 = vadd.f32 0.0, %v11930
      %11932 = vmatmul.bf16.gmra.mxu0 %v11871
      %v11933 = vpop.f32.mrf.mxu0
      %v11934 = vadd.f32 0.0, %v11933
      %v11935 = vpop.f32.mrf.mxu0
      %v11936 = vadd.f32 0.0, %v11935
      %11937 = vmatmul.bf16.gmra.mxu0 %v11874
      %v11938 = vpop.f32.mrf.mxu0
      %v11939 = vadd.f32 0.0, %v11938
      %v11940 = vpop.f32.mrf.mxu0
      %v11941 = vadd.f32 0.0, %v11940
      %11942 = vmatmul.bf16.gmra.mxu0 %v11877
      %v11943 = vpop.f32.mrf.mxu0
      %v11944 = vadd.f32 0.0, %v11943
      %v11945 = vpop.f32.mrf.mxu0
      %v11946 = vadd.f32 0.0, %v11945
      %11947 = vmatmul.bf16.gmra.mxu0 %v11880
      %v11948 = vpop.f32.mrf.mxu0
      %v11949 = vadd.f32 0.0, %v11948
      %v11950 = vpop.f32.mrf.mxu0
      %v11951 = vadd.f32 0.0, %v11950
      %11952 = vmatmul.bf16.gmra.mxu0 %v11883
      %v11953 = vpop.f32.mrf.mxu0
      %v11954 = vadd.f32 0.0, %v11953
      %v11955 = vpop.f32.mrf.mxu0
      %v11956 = vadd.f32 0.0, %v11955
      %11957 = vmatmul.bf16.gmra.mxu0 %v11886
      %v11958 = vpop.f32.mrf.mxu0
      %v11959 = vadd.f32 0.0, %v11958
      %v11960 = vpop.f32.mrf.mxu0
      %v11961 = vadd.f32 0.0, %v11960
      %11962 = vmatmul.bf16.gmra.mxu0 %v11889
      %v11963 = vpop.f32.mrf.mxu0
      %v11964 = vadd.f32 0.0, %v11963
      %v11965 = vpop.f32.mrf.mxu0
      %v11966 = vadd.f32 0.0, %v11965
      %11967 = vmatmul.bf16.gmra.mxu0 %v11892
      %v11968 = vpop.f32.mrf.mxu0
      %v11969 = vadd.f32 0.0, %v11968
      %v11970 = vpop.f32.mrf.mxu0
      %v11971 = vadd.f32 0.0, %v11970
      %11972 = vmatmul.bf16.gmra.mxu0 %v11895
      %v11973 = vpop.f32.mrf.mxu0
      %v11974 = vadd.f32 0.0, %v11973
      %v11975 = vpop.f32.mrf.mxu0
      %v11976 = vadd.f32 0.0, %v11975
      %11977 = vmatmul.bf16.gmra.mxu0 %v11898
      %v11978 = vpop.f32.mrf.mxu0
      %v11979 = vadd.f32 0.0, %v11978
      %v11980 = vpop.f32.mrf.mxu0
      %v11981 = vadd.f32 0.0, %v11980
      %11982 = vmatmul.bf16.gmra.mxu0 %v11901
      %v11983 = vpop.f32.mrf.mxu0
      %v11984 = vadd.f32 0.0, %v11983
      %v11985 = vpop.f32.mrf.mxu0
      %v11986 = vadd.f32 0.0, %v11985
      %11987 = vmatmul.bf16.gmra.mxu0 %v11904
      %v11988 = vpop.f32.mrf.mxu0
      %v11989 = vadd.f32 0.0, %v11988
      %v11990 = vpop.f32.mrf.mxu0
      %v11991 = vadd.f32 0.0, %v11990
      %11992 = vmatmul.bf16.gmra.mxu0 %v11907
      %v11993 = vpop.f32.mrf.mxu0
      %v11994 = vadd.f32 0.0, %v11993
      %v11995 = vpop.f32.mrf.mxu0
      %v11996 = vadd.f32 0.0, %v11995
      %11997 = vdwg.mxu0
      %v11998 = vadd.f32 %v11765, %v11919
      %v11999 = vadd.f32 %v11766, %v11921
      %v12000 = vadd.f32 %v11767, %v11924
      %v12001 = vadd.f32 %v11768, %v11926
      %v12002 = vadd.f32 %v11769, %v11929
      %v12003 = vadd.f32 %v11770, %v11931
      %v12004 = vadd.f32 %v11771, %v11934
      %v12005 = vadd.f32 %v11772, %v11936
      %v12006 = vadd.f32 %v11773, %v11939
      %v12007 = vadd.f32 %v11774, %v11941
      %v12008 = vadd.f32 %v11775, %v11944
      %v12009 = vadd.f32 %v11776, %v11946
      %v12010 = vadd.f32 %v11777, %v11949
      %v12011 = vadd.f32 %v11778, %v11951
      %v12012 = vadd.f32 %v11779, %v11954
      %v12013 = vadd.f32 %v11780, %v11956
      %v12014 = vadd.f32 %v11781, %v11959
      %v12015 = vadd.f32 %v11782, %v11961
      %v12016 = vadd.f32 %v11783, %v11964
      %v12017 = vadd.f32 %v11784, %v11966
      %v12018 = vadd.f32 %v11785, %v11969
      %v12019 = vadd.f32 %v11786, %v11971
      %v12020 = vadd.f32 %v11787, %v11974
      %v12021 = vadd.f32 %v11788, %v11976
      %v12022 = vadd.f32 %v11789, %v11979
      %v12023 = vadd.f32 %v11790, %v11981
      %v12024 = vadd.f32 %v11791, %v11984
      %v12025 = vadd.f32 %v11792, %v11986
      %v12026 = vadd.f32 %v11793, %v11989
      %v12027 = vadd.f32 %v11794, %v11991
      %v12028 = vadd.f32 %v11795, %v11994
      %v12029 = vadd.f32 %v11796, %v11996
      %v12030 = vsel %vm2018, %v10337, 0.0
      %v12031 = vsel %vm2019, %v10338, 0.0
      %v12032 = vsel %vm2020, %v10339, 0.0
      %v12033 = vsel %vm2021, %v10340, 0.0
      %v12034 = vsel %vm2022, %v10341, 0.0
      %v12035 = vsel %vm2023, %v10342, 0.0
      %v12036 = vsel %vm2024, %v10343, 0.0
      %v12037 = vsel %vm2025, %v10344, 0.0
      %v12038 = vsel %vm2026, %v10345, 0.0
      %v12039 = vsel %vm2027, %v10346, 0.0
      %v12040 = vsel %vm2028, %v10347, 0.0
      %v12041 = vsel %vm2029, %v10348, 0.0
      %v12042 = vsel %vm2030, %v10349, 0.0
      %v12043 = vsel %vm2031, %v10350, 0.0
      %v12044 = vsel %vm2032, %v10351, 0.0
      %v12045 = vsel %vm2033, %v10352, 0.0
      %v12046 = vsel %vm2034, %v10353, 0.0
      %v12047 = vsel %vm2035, %v10354, 0.0
      %v12048 = vsel %vm2036, %v10355, 0.0
      %v12049 = vsel %vm2037, %v10356, 0.0
      %v12050 = vsel %vm2038, %v10357, 0.0
      %v12051 = vsel %vm2039, %v10358, 0.0
      %v12052 = vsel %vm2040, %v10359, 0.0
      %v12053 = vsel %vm2041, %v10360, 0.0
      %v12054 = vsel %vm2042, %v10361, 0.0
      %v12055 = vsel %vm2043, %v10362, 0.0
      %v12056 = vsel %vm2044, %v10363, 0.0
      %v12057 = vsel %vm2045, %v10364, 0.0
      %v12058 = vsel %vm2046, %v10365, 0.0
      %v12059 = vsel %vm2047, %v10366, 0.0
      %v12060 = vsel %vm2048, %v10335, 0.0
      %v12061 = vsel %vm2049, %v10336, 0.0
      %v12062 = vpack.c.bf16 %v12031, %v12030
      %v12063 = vpack.c.bf16 %v12033, %v12032
      %v12064 = vpack.c.bf16 %v12035, %v12034
      %v12065 = vpack.c.bf16 %v12037, %v12036
      %v12066 = vpack.c.bf16 %v12039, %v12038
      %v12067 = vpack.c.bf16 %v12041, %v12040
      %v12068 = vpack.c.bf16 %v12043, %v12042
      %v12069 = vpack.c.bf16 %v12045, %v12044
      %v12070 = vpack.c.bf16 %v12047, %v12046
      %v12071 = vpack.c.bf16 %v12049, %v12048
      %v12072 = vpack.c.bf16 %v12051, %v12050
      %v12073 = vpack.c.bf16 %v12053, %v12052
      %v12074 = vpack.c.bf16 %v12055, %v12054
      %v12075 = vpack.c.bf16 %v12057, %v12056
      %v12076 = vpack.c.bf16 %v12059, %v12058
      %v12077 = vpack.c.bf16 %v12061, %v12060
      %v12078 = vld [vmem:[%s5 + $0x70] sm:$0xf]
      %v12079 = vld [vmem:[%s5 + $0x74] sm:$0xf]
      %v12080 = vld [vmem:[%s5 + $0x78] sm:$0xf]
      %v12081 = vld [vmem:[%s5 + $0x7c] sm:$0xf]
      %v12086 = vunpack.c.l.b16 %v12078
      %v12087 = vunpack.c.l.b16 %v12079
      %v12088 = vunpack.c.l.b16 %v12080
      %v12089 = vunpack.c.l.b16 %v12081
      %v12090 = vpack.c.b16 %v12087, %v12086
      %v12091 = vpack.c.b16 %v12089, %v12088
      %v12095 = vsel %vm3529, %v12062, 0
      %v12098 = vsel %vm3529, %v12063, 0
      %v12101 = vsel %vm3529, %v12064, 0
      %v12104 = vsel %vm3529, %v12065, 0
      %v12107 = vsel %vm3529, %v12066, 0
      %v12110 = vsel %vm3529, %v12067, 0
      %v12113 = vsel %vm3529, %v12068, 0
      %v12116 = vsel %vm3529, %v12069, 0
      %v12119 = vsel %vm3529, %v12070, 0
      %v12122 = vsel %vm3529, %v12071, 0
      %v12125 = vsel %vm3529, %v12072, 0
      %v12128 = vsel %vm3529, %v12073, 0
      %v12131 = vsel %vm3529, %v12074, 0
      %v12134 = vsel %vm3529, %v12075, 0
      %v12137 = vsel %vm3529, %v12076, 0
      %v12140 = vsel %vm3529, %v12077, 0
      %12142 = vmatpush.bf16.msra.mxu0 0
      %12143 = vmatpush.bf16.msra.mxu0 0
      %12144 = vmatpush.bf16.msra.mxu0 0
      %12145 = vmatpush.bf16.msra.mxu0 0
      %12146 = vmatpush.bf16.msra.mxu0 0
      %12147 = vmatpush.bf16.msra.mxu0 0
      %12148 = vmatpush.bf16.msra.mxu0 %v12091
      %12149 = vmatpush.bf16.msra.mxu0 %v12090
      %12150 = vmatmul.bf16.gmra.mxu0 %v12095
      %v12151 = vpop.f32.mrf.mxu0
      %v12152 = vadd.f32 0.0, %v12151
      %v12153 = vpop.f32.mrf.mxu0
      %v12154 = vadd.f32 0.0, %v12153
      %12155 = vmatmul.bf16.gmra.mxu0 %v12098
      %v12156 = vpop.f32.mrf.mxu0
      %v12157 = vadd.f32 0.0, %v12156
      %v12158 = vpop.f32.mrf.mxu0
      %v12159 = vadd.f32 0.0, %v12158
      %12160 = vmatmul.bf16.gmra.mxu0 %v12101
      %v12161 = vpop.f32.mrf.mxu0
      %v12162 = vadd.f32 0.0, %v12161
      %v12163 = vpop.f32.mrf.mxu0
      %v12164 = vadd.f32 0.0, %v12163
      %12165 = vmatmul.bf16.gmra.mxu0 %v12104
      %v12166 = vpop.f32.mrf.mxu0
      %v12167 = vadd.f32 0.0, %v12166
      %v12168 = vpop.f32.mrf.mxu0
      %v12169 = vadd.f32 0.0, %v12168
      %12170 = vmatmul.bf16.gmra.mxu0 %v12107
      %v12171 = vpop.f32.mrf.mxu0
      %v12172 = vadd.f32 0.0, %v12171
      %v12173 = vpop.f32.mrf.mxu0
      %v12174 = vadd.f32 0.0, %v12173
      %12175 = vmatmul.bf16.gmra.mxu0 %v12110
      %v12176 = vpop.f32.mrf.mxu0
      %v12177 = vadd.f32 0.0, %v12176
      %v12178 = vpop.f32.mrf.mxu0
      %v12179 = vadd.f32 0.0, %v12178
      %12180 = vmatmul.bf16.gmra.mxu0 %v12113
      %v12181 = vpop.f32.mrf.mxu0
      %v12182 = vadd.f32 0.0, %v12181
      %v12183 = vpop.f32.mrf.mxu0
      %v12184 = vadd.f32 0.0, %v12183
      %12185 = vmatmul.bf16.gmra.mxu0 %v12116
      %v12186 = vpop.f32.mrf.mxu0
      %v12187 = vadd.f32 0.0, %v12186
      %v12188 = vpop.f32.mrf.mxu0
      %v12189 = vadd.f32 0.0, %v12188
      %12190 = vmatmul.bf16.gmra.mxu0 %v12119
      %v12191 = vpop.f32.mrf.mxu0
      %v12192 = vadd.f32 0.0, %v12191
      %v12193 = vpop.f32.mrf.mxu0
      %v12194 = vadd.f32 0.0, %v12193
      %12195 = vmatmul.bf16.gmra.mxu0 %v12122
      %v12196 = vpop.f32.mrf.mxu0
      %v12197 = vadd.f32 0.0, %v12196
      %v12198 = vpop.f32.mrf.mxu0
      %v12199 = vadd.f32 0.0, %v12198
      %12200 = vmatmul.bf16.gmra.mxu0 %v12125
      %v12201 = vpop.f32.mrf.mxu0
      %v12202 = vadd.f32 0.0, %v12201
      %v12203 = vpop.f32.mrf.mxu0
      %v12204 = vadd.f32 0.0, %v12203
      %12205 = vmatmul.bf16.gmra.mxu0 %v12128
      %v12206 = vpop.f32.mrf.mxu0
      %v12207 = vadd.f32 0.0, %v12206
      %v12208 = vpop.f32.mrf.mxu0
      %v12209 = vadd.f32 0.0, %v12208
      %12210 = vmatmul.bf16.gmra.mxu0 %v12131
      %v12211 = vpop.f32.mrf.mxu0
      %v12212 = vadd.f32 0.0, %v12211
      %v12213 = vpop.f32.mrf.mxu0
      %v12214 = vadd.f32 0.0, %v12213
      %12215 = vmatmul.bf16.gmra.mxu0 %v12134
      %v12216 = vpop.f32.mrf.mxu0
      %v12217 = vadd.f32 0.0, %v12216
      %v12218 = vpop.f32.mrf.mxu0
      %v12219 = vadd.f32 0.0, %v12218
      %12220 = vmatmul.bf16.gmra.mxu0 %v12137
      %v12221 = vpop.f32.mrf.mxu0
      %v12222 = vadd.f32 0.0, %v12221
      %v12223 = vpop.f32.mrf.mxu0
      %v12224 = vadd.f32 0.0, %v12223
      %12225 = vmatmul.bf16.gmra.mxu0 %v12140
      %v12226 = vpop.f32.mrf.mxu0
      %v12227 = vadd.f32 0.0, %v12226
      %v12228 = vpop.f32.mrf.mxu0
      %v12229 = vadd.f32 0.0, %v12228
      %12230 = vdwg.mxu0
      %v12231 = vadd.f32 %v11998, %v12152
      %v12232 = vadd.f32 %v11999, %v12154
      %v12233 = vadd.f32 %v12000, %v12157
      %v12234 = vadd.f32 %v12001, %v12159
      %v12235 = vadd.f32 %v12002, %v12162
      %v12236 = vadd.f32 %v12003, %v12164
      %v12237 = vadd.f32 %v12004, %v12167
      %v12238 = vadd.f32 %v12005, %v12169
      %v12239 = vadd.f32 %v12006, %v12172
      %v12240 = vadd.f32 %v12007, %v12174
      %v12241 = vadd.f32 %v12008, %v12177
      %v12242 = vadd.f32 %v12009, %v12179
      %v12243 = vadd.f32 %v12010, %v12182
      %v12244 = vadd.f32 %v12011, %v12184
      %v12245 = vadd.f32 %v12012, %v12187
      %v12246 = vadd.f32 %v12013, %v12189
      %v12247 = vadd.f32 %v12014, %v12192
      %v12248 = vadd.f32 %v12015, %v12194
      %v12249 = vadd.f32 %v12016, %v12197
      %v12250 = vadd.f32 %v12017, %v12199
      %v12251 = vadd.f32 %v12018, %v12202
      %v12252 = vadd.f32 %v12019, %v12204
      %v12253 = vadd.f32 %v12020, %v12207
      %v12254 = vadd.f32 %v12021, %v12209
      %v12255 = vadd.f32 %v12022, %v12212
      %v12256 = vadd.f32 %v12023, %v12214
      %v12257 = vadd.f32 %v12024, %v12217
      %v12258 = vadd.f32 %v12025, %v12219
      %v12259 = vadd.f32 %v12026, %v12222
      %v12260 = vadd.f32 %v12027, %v12224
      %v12261 = vadd.f32 %v12028, %v12227
      %v12262 = vadd.f32 %v12029, %v12229
      %v12263 = vsel %vm2210, %v10893, 0.0
      %v12264 = vsel %vm2211, %v10892, 0.0
      %v12265 = vsel %vm2212, %v10891, 0.0
      %v12266 = vsel %vm2213, %v10890, 0.0
      %v12267 = vsel %vm2214, %v10889, 0.0
      %v12268 = vsel %vm2215, %v10888, 0.0
      %v12269 = vsel %vm2216, %v10887, 0.0
      %v12270 = vsel %vm2217, %v10886, 0.0
      %v12271 = vsel %vm2218, %v10885, 0.0
      %v12272 = vsel %vm2219, %v10884, 0.0
      %v12273 = vsel %vm2220, %v10883, 0.0
      %v12274 = vsel %vm2221, %v10882, 0.0
      %v12275 = vsel %vm2222, %v10881, 0.0
      %v12276 = vsel %vm2223, %v10880, 0.0
      %v12277 = vsel %vm2224, %v10879, 0.0
      %v12278 = vsel %vm2225, %v10878, 0.0
      %v12279 = vsel %vm2226, %v10877, 0.0
      %v12280 = vsel %vm2227, %v10876, 0.0
      %v12281 = vsel %vm2228, %v10875, 0.0
      %v12282 = vsel %vm2229, %v10874, 0.0
      %v12283 = vsel %vm2230, %v10873, 0.0
      %v12284 = vsel %vm2231, %v10872, 0.0
      %v12285 = vsel %vm2232, %v10871, 0.0
      %v12286 = vsel %vm2233, %v10870, 0.0
      %v12287 = vsel %vm2234, %v10869, 0.0
      %v12288 = vsel %vm2235, %v10868, 0.0
      %v12289 = vsel %vm2236, %v10867, 0.0
      %v12290 = vsel %vm2237, %v10866, 0.0
      %v12291 = vsel %vm2238, %v10865, 0.0
      %v12292 = vsel %vm2239, %v10896, 0.0
      %v12293 = vsel %vm2240, %v10895, 0.0
      %v12294 = vsel %vm2241, %v10894, 0.0
      %v12295 = vpack.c.bf16 %v12264, %v12263
      %v12296 = vpack.c.bf16 %v12266, %v12265
      %v12297 = vpack.c.bf16 %v12268, %v12267
      %v12298 = vpack.c.bf16 %v12270, %v12269
      %v12299 = vpack.c.bf16 %v12272, %v12271
      %v12300 = vpack.c.bf16 %v12274, %v12273
      %v12301 = vpack.c.bf16 %v12276, %v12275
      %v12302 = vpack.c.bf16 %v12278, %v12277
      %v12303 = vpack.c.bf16 %v12280, %v12279
      %v12304 = vpack.c.bf16 %v12282, %v12281
      %v12305 = vpack.c.bf16 %v12284, %v12283
      %v12306 = vpack.c.bf16 %v12286, %v12285
      %v12307 = vpack.c.bf16 %v12288, %v12287
      %v12308 = vpack.c.bf16 %v12290, %v12289
      %v12309 = vpack.c.bf16 %v12292, %v12291
      %v12310 = vpack.c.bf16 %v12294, %v12293
      %v12311 = vld [vmem:[%s5 + $0x80] sm:$0xf]
      %v12312 = vld [vmem:[%s5 + $0x84] sm:$0xf]
      %v12313 = vld [vmem:[%s5 + $0x88] sm:$0xf]
      %v12314 = vld [vmem:[%s5 + $0x8c] sm:$0xf]
      %v12319 = vunpack.c.l.b16 %v12311
      %v12320 = vunpack.c.l.b16 %v12312
      %v12321 = vunpack.c.l.b16 %v12313
      %v12322 = vunpack.c.l.b16 %v12314
      %v12323 = vpack.c.b16 %v12320, %v12319
      %v12324 = vpack.c.b16 %v12322, %v12321
      %v12328 = vsel %vm3529, %v12295, 0
      %v12331 = vsel %vm3529, %v12296, 0
      %v12334 = vsel %vm3529, %v12297, 0
      %v12337 = vsel %vm3529, %v12298, 0
      %v12340 = vsel %vm3529, %v12299, 0
      %v12343 = vsel %vm3529, %v12300, 0
      %v12346 = vsel %vm3529, %v12301, 0
      %v12349 = vsel %vm3529, %v12302, 0
      %v12352 = vsel %vm3529, %v12303, 0
      %v12355 = vsel %vm3529, %v12304, 0
      %v12358 = vsel %vm3529, %v12305, 0
      %v12361 = vsel %vm3529, %v12306, 0
      %v12364 = vsel %vm3529, %v12307, 0
      %v12367 = vsel %vm3529, %v12308, 0
      %v12370 = vsel %vm3529, %v12309, 0
      %v12373 = vsel %vm3529, %v12310, 0
      %12375 = vmatpush.bf16.msra.mxu0 0
      %12376 = vmatpush.bf16.msra.mxu0 0
      %12377 = vmatpush.bf16.msra.mxu0 0
      %12378 = vmatpush.bf16.msra.mxu0 0
      %12379 = vmatpush.bf16.msra.mxu0 0
      %12380 = vmatpush.bf16.msra.mxu0 0
      %12381 = vmatpush.bf16.msra.mxu0 %v12324
      %12382 = vmatpush.bf16.msra.mxu0 %v12323
      %12383 = vmatmul.bf16.gmra.mxu0 %v12328
      %v12384 = vpop.f32.mrf.mxu0
      %v12385 = vadd.f32 0.0, %v12384
      %v12386 = vpop.f32.mrf.mxu0
      %v12387 = vadd.f32 0.0, %v12386
      %12388 = vmatmul.bf16.gmra.mxu0 %v12331
      %v12389 = vpop.f32.mrf.mxu0
      %v12390 = vadd.f32 0.0, %v12389
      %v12391 = vpop.f32.mrf.mxu0
      %v12392 = vadd.f32 0.0, %v12391
      %12393 = vmatmul.bf16.gmra.mxu0 %v12334
      %v12394 = vpop.f32.mrf.mxu0
      %v12395 = vadd.f32 0.0, %v12394
      %v12396 = vpop.f32.mrf.mxu0
      %v12397 = vadd.f32 0.0, %v12396
      %12398 = vmatmul.bf16.gmra.mxu0 %v12337
      %v12399 = vpop.f32.mrf.mxu0
      %v12400 = vadd.f32 0.0, %v12399
      %v12401 = vpop.f32.mrf.mxu0
      %v12402 = vadd.f32 0.0, %v12401
      %12403 = vmatmul.bf16.gmra.mxu0 %v12340
      %v12404 = vpop.f32.mrf.mxu0
      %v12405 = vadd.f32 0.0, %v12404
      %v12406 = vpop.f32.mrf.mxu0
      %v12407 = vadd.f32 0.0, %v12406
      %12408 = vmatmul.bf16.gmra.mxu0 %v12343
      %v12409 = vpop.f32.mrf.mxu0
      %v12410 = vadd.f32 0.0, %v12409
      %v12411 = vpop.f32.mrf.mxu0
      %v12412 = vadd.f32 0.0, %v12411
      %12413 = vmatmul.bf16.gmra.mxu0 %v12346
      %v12414 = vpop.f32.mrf.mxu0
      %v12415 = vadd.f32 0.0, %v12414
      %v12416 = vpop.f32.mrf.mxu0
      %v12417 = vadd.f32 0.0, %v12416
      %12418 = vmatmul.bf16.gmra.mxu0 %v12349
      %v12419 = vpop.f32.mrf.mxu0
      %v12420 = vadd.f32 0.0, %v12419
      %v12421 = vpop.f32.mrf.mxu0
      %v12422 = vadd.f32 0.0, %v12421
      %12423 = vmatmul.bf16.gmra.mxu0 %v12352
      %v12424 = vpop.f32.mrf.mxu0
      %v12425 = vadd.f32 0.0, %v12424
      %v12426 = vpop.f32.mrf.mxu0
      %v12427 = vadd.f32 0.0, %v12426
      %12428 = vmatmul.bf16.gmra.mxu0 %v12355
      %v12429 = vpop.f32.mrf.mxu0
      %v12430 = vadd.f32 0.0, %v12429
      %v12431 = vpop.f32.mrf.mxu0
      %v12432 = vadd.f32 0.0, %v12431
      %12433 = vmatmul.bf16.gmra.mxu0 %v12358
      %v12434 = vpop.f32.mrf.mxu0
      %v12435 = vadd.f32 0.0, %v12434
      %v12436 = vpop.f32.mrf.mxu0
      %v12437 = vadd.f32 0.0, %v12436
      %12438 = vmatmul.bf16.gmra.mxu0 %v12361
      %v12439 = vpop.f32.mrf.mxu0
      %v12440 = vadd.f32 0.0, %v12439
      %v12441 = vpop.f32.mrf.mxu0
      %v12442 = vadd.f32 0.0, %v12441
      %12443 = vmatmul.bf16.gmra.mxu0 %v12364
      %v12444 = vpop.f32.mrf.mxu0
      %v12445 = vadd.f32 0.0, %v12444
      %v12446 = vpop.f32.mrf.mxu0
      %v12447 = vadd.f32 0.0, %v12446
      %12448 = vmatmul.bf16.gmra.mxu0 %v12367
      %v12449 = vpop.f32.mrf.mxu0
      %v12450 = vadd.f32 0.0, %v12449
      %v12451 = vpop.f32.mrf.mxu0
      %v12452 = vadd.f32 0.0, %v12451
      %12453 = vmatmul.bf16.gmra.mxu0 %v12370
      %v12454 = vpop.f32.mrf.mxu0
      %v12455 = vadd.f32 0.0, %v12454
      %v12456 = vpop.f32.mrf.mxu0
      %v12457 = vadd.f32 0.0, %v12456
      %12458 = vmatmul.bf16.gmra.mxu0 %v12373
      %v12459 = vpop.f32.mrf.mxu0
      %v12460 = vadd.f32 0.0, %v12459
      %v12461 = vpop.f32.mrf.mxu0
      %v12462 = vadd.f32 0.0, %v12461
      %12463 = vdwg.mxu0
      %v12464 = vadd.f32 %v12231, %v12385
      %v12465 = vadd.f32 %v12232, %v12387
      %v12466 = vadd.f32 %v12233, %v12390
      %v12467 = vadd.f32 %v12234, %v12392
      %v12468 = vadd.f32 %v12235, %v12395
      %v12469 = vadd.f32 %v12236, %v12397
      %v12470 = vadd.f32 %v12237, %v12400
      %v12471 = vadd.f32 %v12238, %v12402
      %v12472 = vadd.f32 %v12239, %v12405
      %v12473 = vadd.f32 %v12240, %v12407
      %v12474 = vadd.f32 %v12241, %v12410
      %v12475 = vadd.f32 %v12242, %v12412
      %v12476 = vadd.f32 %v12243, %v12415
      %v12477 = vadd.f32 %v12244, %v12417
      %v12478 = vadd.f32 %v12245, %v12420
      %v12479 = vadd.f32 %v12246, %v12422
      %v12480 = vadd.f32 %v12247, %v12425
      %v12481 = vadd.f32 %v12248, %v12427
      %v12482 = vadd.f32 %v12249, %v12430
      %v12483 = vadd.f32 %v12250, %v12432
      %v12484 = vadd.f32 %v12251, %v12435
      %v12485 = vadd.f32 %v12252, %v12437
      %v12486 = vadd.f32 %v12253, %v12440
      %v12487 = vadd.f32 %v12254, %v12442
      %v12488 = vadd.f32 %v12255, %v12445
      %v12489 = vadd.f32 %v12256, %v12447
      %v12490 = vadd.f32 %v12257, %v12450
      %v12491 = vadd.f32 %v12258, %v12452
      %v12492 = vadd.f32 %v12259, %v12455
      %v12493 = vadd.f32 %v12260, %v12457
      %v12494 = vadd.f32 %v12261, %v12460
      %v12495 = vadd.f32 %v12262, %v12462
      %v12496 = vld [vmem:[%s10] sm:$0x1]
      %v12498 = vperm.slane %v12496, 0
      %v12500 = vadd.f32 %v12464, %v12498
      %v12501 = vadd.f32 %v12465, %v12498
      %v12502 = vadd.f32 %v12466, %v12498
      %v12503 = vadd.f32 %v12467, %v12498
      %v12504 = vadd.f32 %v12468, %v12498
      %v12505 = vadd.f32 %v12469, %v12498
      %v12506 = vadd.f32 %v12470, %v12498
      %v12507 = vadd.f32 %v12471, %v12498
      %v12508 = vadd.f32 %v12472, %v12498
      %v12509 = vadd.f32 %v12473, %v12498
      %v12510 = vadd.f32 %v12474, %v12498
      %v12511 = vadd.f32 %v12475, %v12498
      %v12512 = vadd.f32 %v12476, %v12498
      %v12513 = vadd.f32 %v12477, %v12498
      %v12514 = vadd.f32 %v12478, %v12498
      %v12515 = vadd.f32 %v12479, %v12498
      %v12516 = vadd.f32 %v12480, %v12498
      %v12517 = vadd.f32 %v12481, %v12498
      %v12518 = vadd.f32 %v12482, %v12498
      %v12519 = vadd.f32 %v12483, %v12498
      %v12520 = vadd.f32 %v12484, %v12498
      %v12521 = vadd.f32 %v12485, %v12498
      %v12522 = vadd.f32 %v12486, %v12498
      %v12523 = vadd.f32 %v12487, %v12498
      %v12524 = vadd.f32 %v12488, %v12498
      %v12525 = vadd.f32 %v12489, %v12498
      %v12526 = vadd.f32 %v12490, %v12498
      %v12527 = vadd.f32 %v12491, %v12498
      %v12528 = vadd.f32 %v12492, %v12498
      %v12529 = vadd.f32 %v12493, %v12498
      %v12530 = vadd.f32 %v12494, %v12498
      %v12531 = vadd.f32 %v12495, %v12498
      %12532 = vst.msk [vmem:[%s413] sm:$0xff] %vm3602, %v12500
      %12533 = vst.msk [vmem:[%s413 + $0x8] sm:$0xff] %vm3602, %v12501
      %12534 = vst.msk [vmem:[%s413 + $0x10] sm:$0xff] %vm3602, %v12502
      %12535 = vst.msk [vmem:[%s413 + $0x18] sm:$0xff] %vm3602, %v12503
      %12536 = vst.msk [vmem:[%s413 + $0x20] sm:$0xff] %vm3602, %v12504
      %12537 = vst.msk [vmem:[%s413 + $0x28] sm:$0xff] %vm3602, %v12505
      %12538 = vst.msk [vmem:[%s413 + $0x30] sm:$0xff] %vm3602, %v12506
      %12539 = vst.msk [vmem:[%s413 + $0x38] sm:$0xff] %vm3602, %v12507
      %12540 = vst.msk [vmem:[%s413 + $0x40] sm:$0xff] %vm3602, %v12508
      %12541 = vst.msk [vmem:[%s413 + $0x48] sm:$0xff] %vm3602, %v12509
      %12542 = vst.msk [vmem:[%s413 + $0x50] sm:$0xff] %vm3602, %v12510
      %12543 = vst.msk [vmem:[%s413 + $0x58] sm:$0xff] %vm3602, %v12511
      %12544 = vst.msk [vmem:[%s413 + $0x60] sm:$0xff] %vm3602, %v12512
      %12545 = vst.msk [vmem:[%s413 + $0x68] sm:$0xff] %vm3602, %v12513
      %12546 = vst.msk [vmem:[%s413 + $0x70] sm:$0xff] %vm3602, %v12514
      %12547 = vst.msk [vmem:[%s413 + $0x78] sm:$0xff] %vm3602, %v12515
      %12548 = vst.msk [vmem:[%s413 + $0x80] sm:$0xff] %vm3602, %v12516
      %12549 = vst.msk [vmem:[%s413 + $0x88] sm:$0xff] %vm3602, %v12517
      %12550 = vst.msk [vmem:[%s413 + $0x90] sm:$0xff] %vm3602, %v12518
      %12551 = vst.msk [vmem:[%s413 + $0x98] sm:$0xff] %vm3602, %v12519
      %12552 = vst.msk [vmem:[%s413 + $0xa0] sm:$0xff] %vm3602, %v12520
      %12553 = vst.msk [vmem:[%s413 + $0xa8] sm:$0xff] %vm3602, %v12521
      %12554 = vst.msk [vmem:[%s413 + $0xb0] sm:$0xff] %vm3602, %v12522
      %12555 = vst.msk [vmem:[%s413 + $0xb8] sm:$0xff] %vm3602, %v12523
      %12556 = vst.msk [vmem:[%s413 + $0xc0] sm:$0xff] %vm3602, %v12524
      %12557 = vst.msk [vmem:[%s413 + $0xc8] sm:$0xff] %vm3602, %v12525
      %12558 = vst.msk [vmem:[%s413 + $0xd0] sm:$0xff] %vm3602, %v12526
      %12559 = vst.msk [vmem:[%s413 + $0xd8] sm:$0xff] %vm3602, %v12527
      %12560 = vst.msk [vmem:[%s413 + $0xe0] sm:$0xff] %vm3602, %v12528
      %12561 = vst.msk [vmem:[%s413 + $0xe8] sm:$0xff] %vm3602, %v12529
      %12562 = vst.msk [vmem:[%s413 + $0xf0] sm:$0xff] %vm3602, %v12530
      %12563 = vst.msk [vmem:[%s413 + $0xf8] sm:$0xff] %vm3602, %v12531
      %p12564 = scmp.lt.s32.totalorder %s23, 1
      %s12565 = scalar_select %p12564, %s23, 1
      %s12566 = smul.addr %s12565, 32
      %s12567 = smul.addr %s12566, 8
      %s12568 = scalar_lea.vmem %s12, %s12567
      // Predicated region
      $region69: #{tpu_custom_call.1} parent=67 // pred_check
        %p12569 = pneg %p298
      $region70: #{tpu_custom_call.1} parent=67 // pred_check_branch
        %12571 = sbr.rel (%p12569) target = $region72
      $region71: #{tpu_custom_call.1} parent=67 // pred_region
        _
      $region72: #{tpu_custom_call.1} parent=67 // pred_fallthru
        _
    $region68: #{tpu_custom_call.1} parent=5 // pred_fallthru
      _
    %p12572 = scmp.le.s32.totalorder 2, %s18
    // Predicated region
    $region73: #{tpu_custom_call.1} parent=5 // pred_check
      %p12573 = pneg %p12572
    $region74: #{tpu_custom_call.1} parent=5 // pred_check_branch
      %12575 = sbr.rel (%p12573) target = $region76
    $region75: #{tpu_custom_call.1} parent=5 // pred_region
      %s12576 = ssub.s32 %s18, 2
      // Predicated region
      $region77: #{tpu_custom_call.1} parent=75 // pred_check
        %p12577 = pneg %p304
      $region78: #{tpu_custom_call.1} parent=75 // pred_check_branch
        %12579 = sbr.rel (%p12577) target = $region80
      $region79: #{tpu_custom_call.1} parent=75 // pred_region
        %p12580 = scmp.lt.s32.totalorder %s24, 1
        %s12581 = scalar_select %p12580, %s24, 1
        %s12582 = smul.addr %s12581, 32
        %s12583 = smul.addr %s12582, 8
        %s12584 = scalar_lea.vmem %s12, %s12583
      $region80: #{tpu_custom_call.1} parent=75 // pred_fallthru
        _
    $region76: #{tpu_custom_call.1} parent=5 // pred_fallthru
      _
  $region6: #{tpu_custom_call.1} parent=0 // loop_footer
    %s22 = sadd.s32 1, %s18
  $region7: #{tpu_custom_call.1} parent=0 // loop_footer_branch
    %17 = sbr.rel target = $region3
  $region8: #{tpu_custom_call.1} parent=0 // loop_exit
    _

</llo_original>
